<compile_context>
chip_gen: v7x
topology: tpu7x:2x2x1
jax: 0.10.0
libtpu: 0.0.40
codegen_flags: <defaults>
</compile_context>

<pallas_src>
import jax
import jax.numpy as jnp
from jax.experimental import pallas as pl
from jax.experimental.pallas import tpu as pltpu


def _round_up(x, m):
    return ((x + m - 1) // m) * m


# --------------------------------------------------------------------------
# Kernel 1: fused conv (im2col matmul) + bias + ReLU + 2x2 max-pool.
# --------------------------------------------------------------------------
def _conv_pool_kernel(q00_ref, q01_ref, q10_ref, q11_ref, w_ref, b_ref, o_ref):
    w = w_ref[...]
    acc = jnp.dot(q00_ref[...], w, preferred_element_type=jnp.float32)
    acc = jnp.maximum(acc, jnp.dot(q01_ref[...], w,
                                   preferred_element_type=jnp.float32))
    acc = jnp.maximum(acc, jnp.dot(q10_ref[...], w,
                                   preferred_element_type=jnp.float32))
    acc = jnp.maximum(acc, jnp.dot(q11_ref[...], w,
                                   preferred_element_type=jnp.float32))
    # bias-add + ReLU commute with the max over the 2x2 pool window.
    o_ref[...] = jnp.maximum(acc + b_ref[...], 0.0).astype(o_ref.dtype)


def conv_relu_pool(x, w, b, *, k, pad, grid_steps):
    """Fused Conv2d(stride=1, padding=pad) + ReLU + MaxPool2d(2) on NHWC."""
    if pad:
        x = jnp.pad(x, ((0, 0), (pad, pad), (pad, pad), (0, 0)))
    N, H, W, Cin = x.shape
    Ho, Wo = H - k + 1, W - k + 1
    Hp, Wp = Ho // 2, Wo // 2            # floor-mode pooling
    Cout = w.shape[-1]
    K = k * k * Cin
    M = N * Hp * Wp

    xb = x.astype(jnp.bfloat16)

    tm = _round_up(-(-M // grid_steps), 16)     # bf16-friendly sublane tile
    Mp = _round_up(M, tm)
    grid = Mp // tm

    # im2col patches for each of the 4 positions of every 2x2 pool window.
    quads = []
    for pi in (0, 1):
        for pj in (0, 1):
            parts = [
                xb[:, pi + di: pi + di + 2 * Hp - 1: 2,
                      pj + dj: pj + dj + 2 * Wp - 1: 2, :]
                for di in range(k) for dj in range(k)
            ]
            q = jnp.concatenate(parts, axis=-1).reshape(M, K)
            if Mp != M:
                q = jnp.pad(q, ((0, Mp - M), (0, 0)))
            quads.append(q)

    wf = w.reshape(K, Cout).astype(jnp.bfloat16)
    bf = b.reshape(1, Cout).astype(jnp.float32)

    out = pl.pallas_call(
        _conv_pool_kernel,
        out_shape=jax.ShapeDtypeStruct((Mp, Cout), jnp.float32),
        grid_spec=pltpu.PrefetchScalarGridSpec(
            num_scalar_prefetch=0,
            grid=(grid,),
            in_specs=[pl.BlockSpec((tm, K), lambda i: (i, 0))] * 4
                     + [pl.BlockSpec((K, Cout), lambda i: (0, 0)),
                        pl.BlockSpec((1, Cout), lambda i: (0, 0))],
            out_specs=pl.BlockSpec((tm, Cout), lambda i: (i, 0)),
        ),
        compiler_params=pltpu.CompilerParams(
            dimension_semantics=("parallel",)),
    )(*quads, wf, bf)
    return out[:M].reshape(N, Hp, Wp, Cout)


# --------------------------------------------------------------------------
# Kernel 2: fused MLP head  relu(x@W1+b1) -> relu(@W2+b2) -> @W3+b3.
# All weights stay resident in VMEM; one launch for the whole head.
# --------------------------------------------------------------------------
def _mlp_kernel(x_ref, w1_ref, b1_ref, w2_ref, b2_ref, w3_ref, b3_ref, o_ref):
    h = x_ref[...].astype(jnp.bfloat16)
    h = jnp.dot(h, w1_ref[...], preferred_element_type=jnp.float32)
    h = jnp.maximum(h + b1_ref[...], 0.0)
    h = jnp.dot(h.astype(jnp.bfloat16), w2_ref[...],
                preferred_element_type=jnp.float32)
    h = jnp.maximum(h + b2_ref[...], 0.0)
    h = jnp.dot(h.astype(jnp.bfloat16), w3_ref[...],
                preferred_element_type=jnp.float32)
    o_ref[...] = (h + b3_ref[...]).astype(o_ref.dtype)


def mlp_head(x, w1, b1, w2, b2, w3, b3):
    # Dropout(p=0.15) layers are identity at inference time.
    M, K1 = x.shape
    H1 = w1.shape[1]                 # 128
    H2 = w2.shape[1]                 # 64
    NO = w3.shape[1]                 # 2

    Mp = _round_up(M, 8)
    H2p = _round_up(H2, 128)
    NOp = _round_up(NO, 128)

    xp = jnp.pad(x.astype(jnp.float32), ((0, Mp - M), (0, 0)))
    w1p = w1.astype(jnp.bfloat16)                                     # (784,128)
    b1p = b1.reshape(1, H1).astype(jnp.float32)
    w2p = jnp.pad(w2, ((0, 0), (0, H2p - H2))).astype(jnp.bfloat16)   # (128,128)
    b2p = jnp.pad(b2, (0, H2p - H2)).reshape(1, H2p).astype(jnp.float32)
    w3p = jnp.pad(w3, ((0, H2p - H2), (0, NOp - NO))).astype(jnp.bfloat16)
    b3p = jnp.pad(b3, (0, NOp - NO)).reshape(1, NOp).astype(jnp.float32)

    out = pl.pallas_call(
        _mlp_kernel,
        out_shape=jax.ShapeDtypeStruct((Mp, NOp), jnp.float32),
        grid_spec=pltpu.PrefetchScalarGridSpec(
            num_scalar_prefetch=0,
            grid=(1,),
            in_specs=[
                pl.BlockSpec((Mp, K1), lambda i: (0, 0)),
                pl.BlockSpec((K1, H1), lambda i: (0, 0)),
                pl.BlockSpec((1, H1), lambda i: (0, 0)),
                pl.BlockSpec((H1, H2p), lambda i: (0, 0)),
                pl.BlockSpec((1, H2p), lambda i: (0, 0)),
                pl.BlockSpec((H2p, NOp), lambda i: (0, 0)),
                pl.BlockSpec((1, NOp), lambda i: (0, 0)),
            ],
            out_specs=pl.BlockSpec((Mp, NOp), lambda i: (0, 0)),
        ),
        compiler_params=pltpu.CompilerParams(
            dimension_semantics=("arbitrary",)),
    )(xp, w1p, b1p, w2p, b2p, w3p, b3p)
    return out[:M, :NO]


# ------------------------------ model assembly ------------------------------
def init_params(key):
    keys = jax.random.split(key, 12)

    def u(k, shape, fan_in):
        bound = 1.0 / (fan_in ** 0.5)
        return jax.random.uniform(k, shape, jnp.float32, -bound, bound)

    p = {}
    p["w1"], p["b1"] = u(keys[0], (4, 4, 3, 32), 4 * 4 * 3), u(keys[1], (32,), 4 * 4 * 3)
    p["w2"], p["b2"] = u(keys[2], (3, 3, 32, 16), 3 * 3 * 32), u(keys[3], (16,), 3 * 3 * 32)
    p["w3"], p["b3"] = u(keys[4], (3, 3, 16, 16), 3 * 3 * 16), u(keys[5], (16,), 3 * 3 * 16)
    p["wfc1"], p["bfc1"] = u(keys[6], (784, 128), 784), u(keys[7], (128,), 784)
    p["wfc2"], p["bfc2"] = u(keys[8], (128, 64), 128), u(keys[9], (64,), 128)
    p["wout"], p["bout"] = u(keys[10], (64, 2), 64), u(keys[11], (2,), 64)
    return p


def convnn_forward(params, x_nchw):
    # NCHW (PyTorch) -> NHWC (kernel layout)
    x = jnp.transpose(x_nchw, (0, 2, 3, 1))

    x = conv_relu_pool(x, params["w1"], params["b1"], k=4, pad=1, grid_steps=4)  # (N,34,34,32)
    x = conv_relu_pool(x, params["w2"], params["b2"], k=3, pad=0, grid_steps=2)  # (N,16,16,16)
    x = conv_relu_pool(x, params["w3"], params["b3"], k=3, pad=0, grid_steps=1)  # (N,7,7,16)

    # flatten in PyTorch NCHW order: (N, C*H*W) = (N, 784)
    N = x.shape[0]
    x = jnp.transpose(x, (0, 3, 1, 2)).reshape(N, -1)

    # fc1+ReLU -> (dropout=id) -> fc2+ReLU -> (dropout=id) -> fc_output
    return mlp_head(x, params["wfc1"], params["bfc1"],
                    params["wfc2"], params["bfc2"],
                    params["wout"], params["bout"])


if __name__ == "__main__":
    key = jax.random.PRNGKey(0)
    kx, kp = jax.random.split(key)
    x = jax.random.normal(kx, (2, 3, 70, 70), dtype=jnp.float32)  # NCHW, like PyTorch
    params = init_params(kp)

    out = jax.jit(convnn_forward)(params, x)
    out = jax.block_until_ready(out)
    assert out.shape == (2, 2) and out.dtype == jnp.float32
    print("KERNEL_OK")
</pallas_src>

<mosaic_0001>
module attributes {stable_mosaic.version = 11 : i64} {
  func.func @_conv_pool_kernel(%arg0: i32, %arg1: memref<592x48xbf16, #tpu.memory_space<vmem>>, %arg2: memref<592x48xbf16, #tpu.memory_space<vmem>>, %arg3: memref<592x48xbf16, #tpu.memory_space<vmem>>, %arg4: memref<592x48xbf16, #tpu.memory_space<vmem>>, %arg5: memref<48x32xbf16, #tpu.memory_space<vmem>>, %arg6: memref<1x32xf32, #tpu.memory_space<vmem>>, %arg7: memref<592x32xf32, #tpu.memory_space<vmem>>) attributes {dimension_semantics = [#tpu.dimension_semantics<parallel>], iteration_bounds = array<i64: 4>, scalar_prefetch = 0 : i64, scratch_operands = 0 : i64, tpu.core_type = #tpu.core_type<tc>, window_params = [{transform_indices = @transform_0, window_bounds = array<i64: 592, 48>}, {transform_indices = @transform_1, window_bounds = array<i64: 592, 48>}, {transform_indices = @transform_2, window_bounds = array<i64: 592, 48>}, {transform_indices = @transform_3, window_bounds = array<i64: 592, 48>}, {pipeline_mode = #tpu.pipeline_mode<synchronous>, transform_indices = @transform_4, window_bounds = array<i64: 48, 32>}, {pipeline_mode = #tpu.pipeline_mode<synchronous>, transform_indices = @transform_5, window_bounds = array<i64: 1, 32>}, {transform_indices = @transform_6, window_bounds = array<i64: 592, 32>}]} {
    %c0 = arith.constant 0 : index
    %c0_0 = arith.constant 0 : index
    %0 = vector.load %arg5[%c0, %c0_0] : memref<48x32xbf16, #tpu.memory_space<vmem>>, vector<48x32xbf16>
    %c0_1 = arith.constant 0 : index
    %c0_2 = arith.constant 0 : index
    %1 = vector.load %arg1[%c0_1, %c0_2] : memref<592x48xbf16, #tpu.memory_space<vmem>>, vector<592x48xbf16>
    %cst = arith.constant dense<0.000000e+00> : vector<592x32xf32>
    %2 = tpu.matmul %1, %0, %cst {dimension_numbers = #tpu.dot_dimension_numbers<[1], [0], [0], [1], [0, 0, 1, 1], [], []>} : vector<592x48xbf16>, vector<48x32xbf16>, vector<592x32xf32> -> vector<592x32xf32>
    %c0_3 = arith.constant 0 : index
    %c0_4 = arith.constant 0 : index
    %3 = vector.load %arg2[%c0_3, %c0_4] : memref<592x48xbf16, #tpu.memory_space<vmem>>, vector<592x48xbf16>
    %cst_5 = arith.constant dense<0.000000e+00> : vector<592x32xf32>
    %4 = tpu.matmul %3, %0, %cst_5 {dimension_numbers = #tpu.dot_dimension_numbers<[1], [0], [0], [1], [0, 0, 1, 1], [], []>} : vector<592x48xbf16>, vector<48x32xbf16>, vector<592x32xf32> -> vector<592x32xf32>
    %5 = arith.maximumf %2, %4 : vector<592x32xf32>
    %c0_6 = arith.constant 0 : index
    %c0_7 = arith.constant 0 : index
    %6 = vector.load %arg3[%c0_6, %c0_7] : memref<592x48xbf16, #tpu.memory_space<vmem>>, vector<592x48xbf16>
    %cst_8 = arith.constant dense<0.000000e+00> : vector<592x32xf32>
    %7 = tpu.matmul %6, %0, %cst_8 {dimension_numbers = #tpu.dot_dimension_numbers<[1], [0], [0], [1], [0, 0, 1, 1], [], []>} : vector<592x48xbf16>, vector<48x32xbf16>, vector<592x32xf32> -> vector<592x32xf32>
    %8 = arith.maximumf %5, %7 : vector<592x32xf32>
    %c0_9 = arith.constant 0 : index
    %c0_10 = arith.constant 0 : index
    %9 = vector.load %arg4[%c0_9, %c0_10] : memref<592x48xbf16, #tpu.memory_space<vmem>>, vector<592x48xbf16>
    %cst_11 = arith.constant dense<0.000000e+00> : vector<592x32xf32>
    %10 = tpu.matmul %9, %0, %cst_11 {dimension_numbers = #tpu.dot_dimension_numbers<[1], [0], [0], [1], [0, 0, 1, 1], [], []>} : vector<592x48xbf16>, vector<48x32xbf16>, vector<592x32xf32> -> vector<592x32xf32>
    %11 = arith.maximumf %8, %10 : vector<592x32xf32>
    %c0_12 = arith.constant 0 : index
    %c0_13 = arith.constant 0 : index
    %12 = vector.load %arg6[%c0_12, %c0_13] : memref<1x32xf32, #tpu.memory_space<vmem>>, vector<1x32xf32>
    %13 = vector.broadcast %12 : vector<1x32xf32> to vector<592x32xf32>
    %14 = arith.addf %11, %13 : vector<592x32xf32>
    %cst_14 = arith.constant 0.000000e+00 : f32
    %15 = vector.broadcast %cst_14 : f32 to vector<592x32xf32>
    %16 = arith.maximumf %14, %15 : vector<592x32xf32>
    %c0_15 = arith.constant 0 : index
    %c0_16 = arith.constant 0 : index
    %17 = vector.load %arg7[%c0_15, %c0_16] : memref<592x32xf32, #tpu.memory_space<vmem>>, vector<592x32xf32>
    tpu.vector_store %arg7[%c0_15, %c0_16], %16 {strides = array<i32>} : memref<592x32xf32, #tpu.memory_space<vmem>>, vector<592x32xf32>,
    return
  }
  func.func @transform_0(%arg0: i32) -> (i32, i32) {
    %c0_i32 = arith.constant 0 : i32
    %c0_i32_0 = arith.constant 0 : i32
    return %arg0, %c0_i32 : i32, i32
  }
  func.func @transform_1(%arg0: i32) -> (i32, i32) {
    %c0_i32 = arith.constant 0 : i32
    %c0_i32_0 = arith.constant 0 : i32
    return %arg0, %c0_i32 : i32, i32
  }
  func.func @transform_2(%arg0: i32) -> (i32, i32) {
    %c0_i32 = arith.constant 0 : i32
    %c0_i32_0 = arith.constant 0 : i32
    return %arg0, %c0_i32 : i32, i32
  }
  func.func @transform_3(%arg0: i32) -> (i32, i32) {
    %c0_i32 = arith.constant 0 : i32
    %c0_i32_0 = arith.constant 0 : i32
    return %arg0, %c0_i32 : i32, i32
  }
  func.func @transform_4(%arg0: i32) -> (i32, i32) {
    %c0_i32 = arith.constant 0 : i32
    %c0_i32_0 = arith.constant 0 : i32
    %c0_i32_1 = arith.constant 0 : i32
    return %c0_i32, %c0_i32_0 : i32, i32
  }
  func.func @transform_5(%arg0: i32) -> (i32, i32) {
    %c0_i32 = arith.constant 0 : i32
    %c0_i32_0 = arith.constant 0 : i32
    %c0_i32_1 = arith.constant 0 : i32
    return %c0_i32, %c0_i32_0 : i32, i32
  }
  func.func @transform_6(%arg0: i32) -> (i32, i32) {
    %c0_i32 = arith.constant 0 : i32
    %c0_i32_0 = arith.constant 0 : i32
    return %arg0, %c0_i32 : i32, i32
  }
}

module attributes {stable_mosaic.version = 11 : i64} {
  func.func @_conv_pool_kernel(%arg0: i32, %arg1: memref<256x288xbf16, #tpu.memory_space<vmem>>, %arg2: memref<256x288xbf16, #tpu.memory_space<vmem>>, %arg3: memref<256x288xbf16, #tpu.memory_space<vmem>>, %arg4: memref<256x288xbf16, #tpu.memory_space<vmem>>, %arg5: memref<288x16xbf16, #tpu.memory_space<vmem>>, %arg6: memref<1x16xf32, #tpu.memory_space<vmem>>, %arg7: memref<256x16xf32, #tpu.memory_space<vmem>>) attributes {dimension_semantics = [#tpu.dimension_semantics<parallel>], iteration_bounds = array<i64: 2>, scalar_prefetch = 0 : i64, scratch_operands = 0 : i64, tpu.core_type = #tpu.core_type<tc>, window_params = [{transform_indices = @transform_0, window_bounds = array<i64: 256, 288>}, {transform_indices = @transform_1, window_bounds = array<i64: 256, 288>}, {transform_indices = @transform_2, window_bounds = array<i64: 256, 288>}, {transform_indices = @transform_3, window_bounds = array<i64: 256, 288>}, {pipeline_mode = #tpu.pipeline_mode<synchronous>, transform_indices = @transform_4, window_bounds = array<i64: 288, 16>}, {pipeline_mode = #tpu.pipeline_mode<synchronous>, transform_indices = @transform_5, window_bounds = array<i64: 1, 16>}, {transform_indices = @transform_6, window_bounds = array<i64: 256, 16>}]} {
    %c0 = arith.constant 0 : index
    %c0_0 = arith.constant 0 : index
    %0 = vector.load %arg5[%c0, %c0_0] : memref<288x16xbf16, #tpu.memory_space<vmem>>, vector<288x16xbf16>
    %c0_1 = arith.constant 0 : index
    %c0_2 = arith.constant 0 : index
    %1 = vector.load %arg1[%c0_1, %c0_2] : memref<256x288xbf16, #tpu.memory_space<vmem>>, vector<256x288xbf16>
    %cst = arith.constant dense<0.000000e+00> : vector<256x16xf32>
    %2 = tpu.matmul %1, %0, %cst {dimension_numbers = #tpu.dot_dimension_numbers<[1], [0], [0], [1], [0, 0, 1, 1], [], []>} : vector<256x288xbf16>, vector<288x16xbf16>, vector<256x16xf32> -> vector<256x16xf32>
    %c0_3 = arith.constant 0 : index
    %c0_4 = arith.constant 0 : index
    %3 = vector.load %arg2[%c0_3, %c0_4] : memref<256x288xbf16, #tpu.memory_space<vmem>>, vector<256x288xbf16>
    %cst_5 = arith.constant dense<0.000000e+00> : vector<256x16xf32>
    %4 = tpu.matmul %3, %0, %cst_5 {dimension_numbers = #tpu.dot_dimension_numbers<[1], [0], [0], [1], [0, 0, 1, 1], [], []>} : vector<256x288xbf16>, vector<288x16xbf16>, vector<256x16xf32> -> vector<256x16xf32>
    %5 = arith.maximumf %2, %4 : vector<256x16xf32>
    %c0_6 = arith.constant 0 : index
    %c0_7 = arith.constant 0 : index
    %6 = vector.load %arg3[%c0_6, %c0_7] : memref<256x288xbf16, #tpu.memory_space<vmem>>, vector<256x288xbf16>
    %cst_8 = arith.constant dense<0.000000e+00> : vector<256x16xf32>
    %7 = tpu.matmul %6, %0, %cst_8 {dimension_numbers = #tpu.dot_dimension_numbers<[1], [0], [0], [1], [0, 0, 1, 1], [], []>} : vector<256x288xbf16>, vector<288x16xbf16>, vector<256x16xf32> -> vector<256x16xf32>
    %8 = arith.maximumf %5, %7 : vector<256x16xf32>
    %c0_9 = arith.constant 0 : index
    %c0_10 = arith.constant 0 : index
    %9 = vector.load %arg4[%c0_9, %c0_10] : memref<256x288xbf16, #tpu.memory_space<vmem>>, vector<256x288xbf16>
    %cst_11 = arith.constant dense<0.000000e+00> : vector<256x16xf32>
    %10 = tpu.matmul %9, %0, %cst_11 {dimension_numbers = #tpu.dot_dimension_numbers<[1], [0], [0], [1], [0, 0, 1, 1], [], []>} : vector<256x288xbf16>, vector<288x16xbf16>, vector<256x16xf32> -> vector<256x16xf32>
    %11 = arith.maximumf %8, %10 : vector<256x16xf32>
    %c0_12 = arith.constant 0 : index
    %c0_13 = arith.constant 0 : index
    %12 = vector.load %arg6[%c0_12, %c0_13] : memref<1x16xf32, #tpu.memory_space<vmem>>, vector<1x16xf32>
    %13 = vector.broadcast %12 : vector<1x16xf32> to vector<256x16xf32>
    %14 = arith.addf %11, %13 : vector<256x16xf32>
    %cst_14 = arith.constant 0.000000e+00 : f32
    %15 = vector.broadcast %cst_14 : f32 to vector<256x16xf32>
    %16 = arith.maximumf %14, %15 : vector<256x16xf32>
    %c0_15 = arith.constant 0 : index
    %c0_16 = arith.constant 0 : index
    %17 = vector.load %arg7[%c0_15, %c0_16] : memref<256x16xf32, #tpu.memory_space<vmem>>, vector<256x16xf32>
    tpu.vector_store %arg7[%c0_15, %c0_16], %16 {strides = array<i32>} : memref<256x16xf32, #tpu.memory_space<vmem>>, vector<256x16xf32>,
    return
  }
  func.func @transform_0(%arg0: i32) -> (i32, i32) {
    %c0_i32 = arith.constant 0 : i32
    %c0_i32_0 = arith.constant 0 : i32
    return %arg0, %c0_i32 : i32, i32
  }
  func.func @transform_1(%arg0: i32) -> (i32, i32) {
    %c0_i32 = arith.constant 0 : i32
    %c0_i32_0 = arith.constant 0 : i32
    return %arg0, %c0_i32 : i32, i32
  }
  func.func @transform_2(%arg0: i32) -> (i32, i32) {
    %c0_i32 = arith.constant 0 : i32
    %c0_i32_0 = arith.constant 0 : i32
    return %arg0, %c0_i32 : i32, i32
  }
  func.func @transform_3(%arg0: i32) -> (i32, i32) {
    %c0_i32 = arith.constant 0 : i32
    %c0_i32_0 = arith.constant 0 : i32
    return %arg0, %c0_i32 : i32, i32
  }
  func.func @transform_4(%arg0: i32) -> (i32, i32) {
    %c0_i32 = arith.constant 0 : i32
    %c0_i32_0 = arith.constant 0 : i32
    %c0_i32_1 = arith.constant 0 : i32
    return %c0_i32, %c0_i32_0 : i32, i32
  }
  func.func @transform_5(%arg0: i32) -> (i32, i32) {
    %c0_i32 = arith.constant 0 : i32
    %c0_i32_0 = arith.constant 0 : i32
    %c0_i32_1 = arith.constant 0 : i32
    return %c0_i32, %c0_i32_0 : i32, i32
  }
  func.func @transform_6(%arg0: i32) -> (i32, i32) {
    %c0_i32 = arith.constant 0 : i32
    %c0_i32_0 = arith.constant 0 : i32
    return %arg0, %c0_i32 : i32, i32
  }
}

module attributes {stable_mosaic.version = 11 : i64} {
  func.func @_conv_pool_kernel(%arg0: i32, %arg1: memref<112x144xbf16, #tpu.memory_space<vmem>>, %arg2: memref<112x144xbf16, #tpu.memory_space<vmem>>, %arg3: memref<112x144xbf16, #tpu.memory_space<vmem>>, %arg4: memref<112x144xbf16, #tpu.memory_space<vmem>>, %arg5: memref<144x16xbf16, #tpu.memory_space<vmem>>, %arg6: memref<1x16xf32, #tpu.memory_space<vmem>>, %arg7: memref<112x16xf32, #tpu.memory_space<vmem>>) attributes {dimension_semantics = [#tpu.dimension_semantics<parallel>], iteration_bounds = array<i64: 1>, scalar_prefetch = 0 : i64, scratch_operands = 0 : i64, tpu.core_type = #tpu.core_type<tc>, window_params = [{transform_indices = @transform_0, window_bounds = array<i64: 112, 144>}, {transform_indices = @transform_1, window_bounds = array<i64: 112, 144>}, {transform_indices = @transform_2, window_bounds = array<i64: 112, 144>}, {transform_indices = @transform_3, window_bounds = array<i64: 112, 144>}, {pipeline_mode = #tpu.pipeline_mode<synchronous>, transform_indices = @transform_4, window_bounds = array<i64: 144, 16>}, {pipeline_mode = #tpu.pipeline_mode<synchronous>, transform_indices = @transform_5, window_bounds = array<i64: 1, 16>}, {transform_indices = @transform_6, window_bounds = array<i64: 112, 16>}]} {
    %c0 = arith.constant 0 : index
    %c0_0 = arith.constant 0 : index
    %0 = vector.load %arg5[%c0, %c0_0] : memref<144x16xbf16, #tpu.memory_space<vmem>>, vector<144x16xbf16>
    %c0_1 = arith.constant 0 : index
    %c0_2 = arith.constant 0 : index
    %1 = vector.load %arg1[%c0_1, %c0_2] : memref<112x144xbf16, #tpu.memory_space<vmem>>, vector<112x144xbf16>
    %cst = arith.constant dense<0.000000e+00> : vector<112x16xf32>
    %2 = tpu.matmul %1, %0, %cst {dimension_numbers = #tpu.dot_dimension_numbers<[1], [0], [0], [1], [0, 0, 1, 1], [], []>} : vector<112x144xbf16>, vector<144x16xbf16>, vector<112x16xf32> -> vector<112x16xf32>
    %c0_3 = arith.constant 0 : index
    %c0_4 = arith.constant 0 : index
    %3 = vector.load %arg2[%c0_3, %c0_4] : memref<112x144xbf16, #tpu.memory_space<vmem>>, vector<112x144xbf16>
    %cst_5 = arith.constant dense<0.000000e+00> : vector<112x16xf32>
    %4 = tpu.matmul %3, %0, %cst_5 {dimension_numbers = #tpu.dot_dimension_numbers<[1], [0], [0], [1], [0, 0, 1, 1], [], []>} : vector<112x144xbf16>, vector<144x16xbf16>, vector<112x16xf32> -> vector<112x16xf32>
    %5 = arith.maximumf %2, %4 : vector<112x16xf32>
    %c0_6 = arith.constant 0 : index
    %c0_7 = arith.constant 0 : index
    %6 = vector.load %arg3[%c0_6, %c0_7] : memref<112x144xbf16, #tpu.memory_space<vmem>>, vector<112x144xbf16>
    %cst_8 = arith.constant dense<0.000000e+00> : vector<112x16xf32>
    %7 = tpu.matmul %6, %0, %cst_8 {dimension_numbers = #tpu.dot_dimension_numbers<[1], [0], [0], [1], [0, 0, 1, 1], [], []>} : vector<112x144xbf16>, vector<144x16xbf16>, vector<112x16xf32> -> vector<112x16xf32>
    %8 = arith.maximumf %5, %7 : vector<112x16xf32>
    %c0_9 = arith.constant 0 : index
    %c0_10 = arith.constant 0 : index
    %9 = vector.load %arg4[%c0_9, %c0_10] : memref<112x144xbf16, #tpu.memory_space<vmem>>, vector<112x144xbf16>
    %cst_11 = arith.constant dense<0.000000e+00> : vector<112x16xf32>
    %10 = tpu.matmul %9, %0, %cst_11 {dimension_numbers = #tpu.dot_dimension_numbers<[1], [0], [0], [1], [0, 0, 1, 1], [], []>} : vector<112x144xbf16>, vector<144x16xbf16>, vector<112x16xf32> -> vector<112x16xf32>
    %11 = arith.maximumf %8, %10 : vector<112x16xf32>
    %c0_12 = arith.constant 0 : index
    %c0_13 = arith.constant 0 : index
    %12 = vector.load %arg6[%c0_12, %c0_13] : memref<1x16xf32, #tpu.memory_space<vmem>>, vector<1x16xf32>
    %13 = vector.broadcast %12 : vector<1x16xf32> to vector<112x16xf32>
    %14 = arith.addf %11, %13 : vector<112x16xf32>
    %cst_14 = arith.constant 0.000000e+00 : f32
    %15 = vector.broadcast %cst_14 : f32 to vector<112x16xf32>
    %16 = arith.maximumf %14, %15 : vector<112x16xf32>
    %c0_15 = arith.constant 0 : index
    %c0_16 = arith.constant 0 : index
    %17 = vector.load %arg7[%c0_15, %c0_16] : memref<112x16xf32, #tpu.memory_space<vmem>>, vector<112x16xf32>
    tpu.vector_store %arg7[%c0_15, %c0_16], %16 {strides = array<i32>} : memref<112x16xf32, #tpu.memory_space<vmem>>, vector<112x16xf32>,
    return
  }
  func.func @transform_0(%arg0: i32) -> (i32, i32) {
    %c0_i32 = arith.constant 0 : i32
    %c0_i32_0 = arith.constant 0 : i32
    return %arg0, %c0_i32 : i32, i32
  }
  func.func @transform_1(%arg0: i32) -> (i32, i32) {
    %c0_i32 = arith.constant 0 : i32
    %c0_i32_0 = arith.constant 0 : i32
    return %arg0, %c0_i32 : i32, i32
  }
  func.func @transform_2(%arg0: i32) -> (i32, i32) {
    %c0_i32 = arith.constant 0 : i32
    %c0_i32_0 = arith.constant 0 : i32
    return %arg0, %c0_i32 : i32, i32
  }
  func.func @transform_3(%arg0: i32) -> (i32, i32) {
    %c0_i32 = arith.constant 0 : i32
    %c0_i32_0 = arith.constant 0 : i32
    return %arg0, %c0_i32 : i32, i32
  }
  func.func @transform_4(%arg0: i32) -> (i32, i32) {
    %c0_i32 = arith.constant 0 : i32
    %c0_i32_0 = arith.constant 0 : i32
    %c0_i32_1 = arith.constant 0 : i32
    return %c0_i32, %c0_i32_0 : i32, i32
  }
  func.func @transform_5(%arg0: i32) -> (i32, i32) {
    %c0_i32 = arith.constant 0 : i32
    %c0_i32_0 = arith.constant 0 : i32
    %c0_i32_1 = arith.constant 0 : i32
    return %c0_i32, %c0_i32_0 : i32, i32
  }
  func.func @transform_6(%arg0: i32) -> (i32, i32) {
    %c0_i32 = arith.constant 0 : i32
    %c0_i32_0 = arith.constant 0 : i32
    return %arg0, %c0_i32 : i32, i32
  }
}

module attributes {stable_mosaic.version = 11 : i64} {
  func.func @_mlp_kernel(%arg0: i32, %arg1: memref<8x784xf32, #tpu.memory_space<vmem>>, %arg2: memref<784x128xbf16, #tpu.memory_space<vmem>>, %arg3: memref<1x128xf32, #tpu.memory_space<vmem>>, %arg4: memref<128x128xbf16, #tpu.memory_space<vmem>>, %arg5: memref<1x128xf32, #tpu.memory_space<vmem>>, %arg6: memref<128x128xbf16, #tpu.memory_space<vmem>>, %arg7: memref<1x128xf32, #tpu.memory_space<vmem>>, %arg8: memref<8x128xf32, #tpu.memory_space<vmem>>) attributes {dimension_semantics = [#tpu.dimension_semantics<arbitrary>], iteration_bounds = array<i64: 1>, scalar_prefetch = 0 : i64, scratch_operands = 0 : i64, tpu.core_type = #tpu.core_type<tc>, window_params = [{pipeline_mode = #tpu.pipeline_mode<synchronous>, transform_indices = @transform_0, window_bounds = array<i64: 8, 784>}, {pipeline_mode = #tpu.pipeline_mode<synchronous>, transform_indices = @transform_1, window_bounds = array<i64: 784, 128>}, {pipeline_mode = #tpu.pipeline_mode<synchronous>, transform_indices = @transform_2, window_bounds = array<i64: 1, 128>}, {pipeline_mode = #tpu.pipeline_mode<synchronous>, transform_indices = @transform_3, window_bounds = array<i64: 128, 128>}, {pipeline_mode = #tpu.pipeline_mode<synchronous>, transform_indices = @transform_4, window_bounds = array<i64: 1, 128>}, {pipeline_mode = #tpu.pipeline_mode<synchronous>, transform_indices = @transform_5, window_bounds = array<i64: 128, 128>}, {pipeline_mode = #tpu.pipeline_mode<synchronous>, transform_indices = @transform_6, window_bounds = array<i64: 1, 128>}, {pipeline_mode = #tpu.pipeline_mode<synchronous>, transform_indices = @transform_7, window_bounds = array<i64: 8, 128>}]} {
    %c0 = arith.constant 0 : index
    %c0_0 = arith.constant 0 : index
    %0 = vector.load %arg1[%c0, %c0_0] : memref<8x784xf32, #tpu.memory_space<vmem>>, vector<8x784xf32>
    %1 = arith.truncf %0 : vector<8x784xf32> to vector<8x784xbf16>
    %c0_1 = arith.constant 0 : index
    %c0_2 = arith.constant 0 : index
    %2 = vector.load %arg2[%c0_1, %c0_2] : memref<784x128xbf16, #tpu.memory_space<vmem>>, vector<784x128xbf16>
    %cst = arith.constant dense<0.000000e+00> : vector<8x128xf32>
    %3 = tpu.matmul %1, %2, %cst {dimension_numbers = #tpu.dot_dimension_numbers<[1], [0], [0], [1], [0, 0, 1, 1], [], []>} : vector<8x784xbf16>, vector<784x128xbf16>, vector<8x128xf32> -> vector<8x128xf32>
    %c0_3 = arith.constant 0 : index
    %c0_4 = arith.constant 0 : index
    %4 = vector.load %arg3[%c0_3, %c0_4] : memref<1x128xf32, #tpu.memory_space<vmem>>, vector<1x128xf32>
    %5 = vector.broadcast %4 : vector<1x128xf32> to vector<8x128xf32>
    %6 = arith.addf %3, %5 : vector<8x128xf32>
    %cst_5 = arith.constant 0.000000e+00 : f32
    %7 = vector.broadcast %cst_5 : f32 to vector<8x128xf32>
    %8 = arith.maximumf %6, %7 : vector<8x128xf32>
    %9 = arith.truncf %8 : vector<8x128xf32> to vector<8x128xbf16>
    %c0_6 = arith.constant 0 : index
    %c0_7 = arith.constant 0 : index
    %10 = vector.load %arg4[%c0_6, %c0_7] : memref<128x128xbf16, #tpu.memory_space<vmem>>, vector<128x128xbf16>
    %cst_8 = arith.constant dense<0.000000e+00> : vector<8x128xf32>
    %11 = tpu.matmul %9, %10, %cst_8 {dimension_numbers = #tpu.dot_dimension_numbers<[1], [0], [0], [1], [0, 0, 1, 1], [], []>} : vector<8x128xbf16>, vector<128x128xbf16>, vector<8x128xf32> -> vector<8x128xf32>
    %c0_9 = arith.constant 0 : index
    %c0_10 = arith.constant 0 : index
    %12 = vector.load %arg5[%c0_9, %c0_10] : memref<1x128xf32, #tpu.memory_space<vmem>>, vector<1x128xf32>
    %13 = vector.broadcast %12 : vector<1x128xf32> to vector<8x128xf32>
    %14 = arith.addf %11, %13 : vector<8x128xf32>
    %cst_11 = arith.constant 0.000000e+00 : f32
    %15 = vector.broadcast %cst_11 : f32 to vector<8x128xf32>
    %16 = arith.maximumf %14, %15 : vector<8x128xf32>
    %17 = arith.truncf %16 : vector<8x128xf32> to vector<8x128xbf16>
    %c0_12 = arith.constant 0 : index
    %c0_13 = arith.constant 0 : index
    %18 = vector.load %arg6[%c0_12, %c0_13] : memref<128x128xbf16, #tpu.memory_space<vmem>>, vector<128x128xbf16>
    %cst_14 = arith.constant dense<0.000000e+00> : vector<8x128xf32>
    %19 = tpu.matmul %17, %18, %cst_14 {dimension_numbers = #tpu.dot_dimension_numbers<[1], [0], [0], [1], [0, 0, 1, 1], [], []>} : vector<8x128xbf16>, vector<128x128xbf16>, vector<8x128xf32> -> vector<8x128xf32>
    %c0_15 = arith.constant 0 : index
    %c0_16 = arith.constant 0 : index
    %20 = vector.load %arg7[%c0_15, %c0_16] : memref<1x128xf32, #tpu.memory_space<vmem>>, vector<1x128xf32>
    %21 = vector.broadcast %20 : vector<1x128xf32> to vector<8x128xf32>
    %22 = arith.addf %19, %21 : vector<8x128xf32>
    %c0_17 = arith.constant 0 : index
    %c0_18 = arith.constant 0 : index
    %23 = vector.load %arg8[%c0_17, %c0_18] : memref<8x128xf32, #tpu.memory_space<vmem>>, vector<8x128xf32>
    tpu.vector_store %arg8[%c0_17, %c0_18], %22 {strides = array<i32>} : memref<8x128xf32, #tpu.memory_space<vmem>>, vector<8x128xf32>,
    return
  }
  func.func @transform_0(%arg0: i32) -> (i32, i32) {
    %c0_i32 = arith.constant 0 : i32
    %c0_i32_0 = arith.constant 0 : i32
    %c0_i32_1 = arith.constant 0 : i32
    return %c0_i32, %c0_i32_0 : i32, i32
  }
  func.func @transform_1(%arg0: i32) -> (i32, i32) {
    %c0_i32 = arith.constant 0 : i32
    %c0_i32_0 = arith.constant 0 : i32
    %c0_i32_1 = arith.constant 0 : i32
    return %c0_i32, %c0_i32_0 : i32, i32
  }
  func.func @transform_2(%arg0: i32) -> (i32, i32) {
    %c0_i32 = arith.constant 0 : i32
    %c0_i32_0 = arith.constant 0 : i32
    %c0_i32_1 = arith.constant 0 : i32
    return %c0_i32, %c0_i32_0 : i32, i32
  }
  func.func @transform_3(%arg0: i32) -> (i32, i32) {
    %c0_i32 = arith.constant 0 : i32
    %c0_i32_0 = arith.constant 0 : i32
    %c0_i32_1 = arith.constant 0 : i32
    return %c0_i32, %c0_i32_0 : i32, i32
  }
  func.func @transform_4(%arg0: i32) -> (i32, i32) {
    %c0_i32 = arith.constant 0 : i32
    %c0_i32_0 = arith.constant 0 : i32
    %c0_i32_1 = arith.constant 0 : i32
    return %c0_i32, %c0_i32_0 : i32, i32
  }
  func.func @transform_5(%arg0: i32) -> (i32, i32) {
    %c0_i32 = arith.constant 0 : i32
    %c0_i32_0 = arith.constant 0 : i32
    %c0_i32_1 = arith.constant 0 : i32
    return %c0_i32, %c0_i32_0 : i32, i32
  }
  func.func @transform_6(%arg0: i32) -> (i32, i32) {
    %c0_i32 = arith.constant 0 : i32
    %c0_i32_0 = arith.constant 0 : i32
    %c0_i32_1 = arith.constant 0 : i32
    return %c0_i32, %c0_i32_0 : i32, i32
  }
  func.func @transform_7(%arg0: i32) -> (i32, i32) {
    %c0_i32 = arith.constant 0 : i32
    %c0_i32_0 = arith.constant 0 : i32
    %c0_i32_1 = arith.constant 0 : i32
    return %c0_i32, %c0_i32_0 : i32, i32
  }
}

</mosaic_0001>

<llo_original>
// kernel: convnn_forward.4
$region0: #{convnn_forward.4}
  #allocation0 [shape = 'u32[]', space=smem, size = 0x4, offset = 0x4, fixed_abs, tag = 'smem constant byte address 0x4 - core index']
  #allocation1 [shape = 'u32[144,128]{1,0:T(1,128)}', space=vmem, size = 0x12000, scoped, tag = 'internal scratch']
  %s0 = inlined_call_operand.vmem [shape: bf16[2368,48], index: 0, kind: input, shape index: {}]
  %s1 = inlined_call_operand.vmem [shape: bf16[2368,48], index: 1, kind: input, shape index: {}]
  %s2 = inlined_call_operand.vmem [shape: bf16[2368,48], index: 2, kind: input, shape index: {}]
  %s3 = inlined_call_operand.vmem [shape: bf16[2368,48], index: 3, kind: input, shape index: {}]
  %s4 = inlined_call_operand.vmem [shape: bf16[48,32], index: 4, kind: input, shape index: {}]
  %s5 = inlined_call_operand.vmem [shape: f32[1,32], index: 5, kind: input, shape index: {}]
  %s6 = inlined_call_operand.vmem [shape: f32[2368,32], index: 6, kind: output, shape index: {}]
  %s7 = sld [smem:[#allocation0]]
  $region57: #{convnn_forward.4} parent=0
    _
  %s9 = ssub.s32 1, %s7
  %s10 = scalar_select 0, %s9, %s7
  loop: start=0, step=1, limit=6
  $region2: #{convnn_forward.4} parent=0 // loop_pre_header
    _
  $region3: #{convnn_forward.4} parent=0 // loop_header
    %s12 = sphi 0, %s16
    %p13 = scmp.ge.s32.totalorder %s12, 6
    %s22 = sphi 0, %s24
    %s25 = sphi 0, %s22
    %s26 = sphi 0, %s25
    %s42 = sphi 0, %s26
    %s48 = sphi 0, %s50
    %s51 = sphi 0, %s48
    %s52 = sphi 0, %s51
    %s68 = sphi 0, %s52
    %s74 = sphi 0, %s76
    %s77 = sphi 0, %s74
    %s78 = sphi 0, %s77
    %s94 = sphi 0, %s78
    %s100 = sphi 0, %s102
    %s103 = sphi 0, %s100
    %s104 = sphi 0, %s103
    %s120 = sphi 0, %s104
    %s124 = sphi 0, %s124
    %s126 = sphi 0, %s124
    %s127 = sphi 0, %s126
    %s141 = sphi 0, %s127
    %s145 = sphi 0, %s145
    %s147 = sphi 0, %s145
    %s148 = sphi 0, %s147
    %s162 = sphi 0, %s148
    %s168 = sphi 0, %s170
    %s171 = sphi 0, %s168
    %s172 = sphi 0, %s171
    %s188 = sphi 0, %s172
  $region4: #{convnn_forward.4} parent=0 // loop_header_branch
    %15 = sbr.rel (%p13) target = $region8
  $region5: #{convnn_forward.4} parent=0 // loop_body
    %s17 = ssub.s32 %s12, 1
    %s18 = ssub.s32 %s12, 2
    %s19 = sadd.s32 %s12, 1
    %s20 = ssub.s32 %s12, %s19
    %p21 = scmp.eq.s32.totalorder %s20, 0
    %s23 = sadd.s32 %s22, 1
    %s24 = scalar_select %p21, %s22, %s23
    %p27 = pneg %p21
    %p28 = scmp.eq.s32.totalorder %s12, 3
    %p29 = por %p27, %p28
    %p30 = scmp.ne.s32.totalorder %s22, %s25
    %p31 = scmp.eq.s32.totalorder %s12, 0
    %p32 = por %p30, %p31
    %p33 = scmp.ne.s32.totalorder %s22, %s25
    %p34 = scmp.eq.s32.totalorder %s17, 3
    %p35 = por %p33, %p34
    %p36 = scmp.ne.s32.totalorder %s25, %s26
    %p37 = scmp.eq.s32.totalorder %s17, 0
    %p38 = por %p36, %p37
    %p39 = scmp.ne.s32.totalorder %s25, %s26
    %p40 = scmp.eq.s32.totalorder %s18, 3
    %p41 = por %p39, %p40
    %p43 = scmp.ne.s32.totalorder %s26, %s42
    %p44 = scmp.eq.s32.totalorder %s18, 0
    %p45 = por %p43, %p44
    %s46 = ssub.s32 %s12, %s19
    %p47 = scmp.eq.s32.totalorder %s46, 0
    %s49 = sadd.s32 %s48, 1
    %s50 = scalar_select %p47, %s48, %s49
    %p53 = pneg %p47
    %p54 = scmp.eq.s32.totalorder %s12, 3
    %p55 = por %p53, %p54
    %p56 = scmp.ne.s32.totalorder %s48, %s51
    %p57 = scmp.eq.s32.totalorder %s12, 0
    %p58 = por %p56, %p57
    %p59 = scmp.ne.s32.totalorder %s48, %s51
    %p60 = scmp.eq.s32.totalorder %s17, 3
    %p61 = por %p59, %p60
    %p62 = scmp.ne.s32.totalorder %s51, %s52
    %p63 = scmp.eq.s32.totalorder %s17, 0
    %p64 = por %p62, %p63
    %p65 = scmp.ne.s32.totalorder %s51, %s52
    %p66 = scmp.eq.s32.totalorder %s18, 3
    %p67 = por %p65, %p66
    %p69 = scmp.ne.s32.totalorder %s52, %s68
    %p70 = scmp.eq.s32.totalorder %s18, 0
    %p71 = por %p69, %p70
    %s72 = ssub.s32 %s12, %s19
    %p73 = scmp.eq.s32.totalorder %s72, 0
    %s75 = sadd.s32 %s74, 1
    %s76 = scalar_select %p73, %s74, %s75
    %p79 = pneg %p73
    %p80 = scmp.eq.s32.totalorder %s12, 3
    %p81 = por %p79, %p80
    %p82 = scmp.ne.s32.totalorder %s74, %s77
    %p83 = scmp.eq.s32.totalorder %s12, 0
    %p84 = por %p82, %p83
    %p85 = scmp.ne.s32.totalorder %s74, %s77
    %p86 = scmp.eq.s32.totalorder %s17, 3
    %p87 = por %p85, %p86
    %p88 = scmp.ne.s32.totalorder %s77, %s78
    %p89 = scmp.eq.s32.totalorder %s17, 0
    %p90 = por %p88, %p89
    %p91 = scmp.ne.s32.totalorder %s77, %s78
    %p92 = scmp.eq.s32.totalorder %s18, 3
    %p93 = por %p91, %p92
    %p95 = scmp.ne.s32.totalorder %s78, %s94
    %p96 = scmp.eq.s32.totalorder %s18, 0
    %p97 = por %p95, %p96
    %s98 = ssub.s32 %s12, %s19
    %p99 = scmp.eq.s32.totalorder %s98, 0
    %s101 = sadd.s32 %s100, 1
    %s102 = scalar_select %p99, %s100, %s101
    %p105 = pneg %p99
    %p106 = scmp.eq.s32.totalorder %s12, 3
    %p107 = por %p105, %p106
    %p108 = scmp.ne.s32.totalorder %s100, %s103
    %p109 = scmp.eq.s32.totalorder %s12, 0
    %p110 = por %p108, %p109
    %p111 = scmp.ne.s32.totalorder %s100, %s103
    %p112 = scmp.eq.s32.totalorder %s17, 3
    %p113 = por %p111, %p112
    %p114 = scmp.ne.s32.totalorder %s103, %s104
    %p115 = scmp.eq.s32.totalorder %s17, 0
    %p116 = por %p114, %p115
    %p117 = scmp.ne.s32.totalorder %s103, %s104
    %p118 = scmp.eq.s32.totalorder %s18, 3
    %p119 = por %p117, %p118
    %p121 = scmp.ne.s32.totalorder %s104, %s120
    %p122 = scmp.eq.s32.totalorder %s18, 0
    %p123 = por %p121, %p122
    %s125 = sadd.s32 %s124, 1
    %p128 = scmp.eq.s32.totalorder %s12, 3
    %p129 = scmp.ne.s32.totalorder %s124, %s126
    %p130 = scmp.eq.s32.totalorder %s12, 0
    %p131 = por %p129, %p130
    %p132 = scmp.ne.s32.totalorder %s124, %s126
    %p133 = scmp.eq.s32.totalorder %s17, 3
    %p134 = por %p132, %p133
    %p135 = scmp.ne.s32.totalorder %s126, %s127
    %p136 = scmp.eq.s32.totalorder %s17, 0
    %p137 = por %p135, %p136
    %p138 = scmp.ne.s32.totalorder %s126, %s127
    %p139 = scmp.eq.s32.totalorder %s18, 3
    %p140 = por %p138, %p139
    %p142 = scmp.ne.s32.totalorder %s127, %s141
    %p143 = scmp.eq.s32.totalorder %s18, 0
    %p144 = por %p142, %p143
    %s146 = sadd.s32 %s145, 1
    %p149 = scmp.eq.s32.totalorder %s12, 3
    %p150 = scmp.ne.s32.totalorder %s145, %s147
    %p151 = scmp.eq.s32.totalorder %s12, 0
    %p152 = por %p150, %p151
    %p153 = scmp.ne.s32.totalorder %s145, %s147
    %p154 = scmp.eq.s32.totalorder %s17, 3
    %p155 = por %p153, %p154
    %p156 = scmp.ne.s32.totalorder %s147, %s148
    %p157 = scmp.eq.s32.totalorder %s17, 0
    %p158 = por %p156, %p157
    %p159 = scmp.ne.s32.totalorder %s147, %s148
    %p160 = scmp.eq.s32.totalorder %s18, 3
    %p161 = por %p159, %p160
    %p163 = scmp.ne.s32.totalorder %s148, %s162
    %p164 = scmp.eq.s32.totalorder %s18, 0
    %p165 = por %p163, %p164
    %s166 = ssub.s32 %s12, %s19
    %p167 = scmp.eq.s32.totalorder %s166, 0
    %s169 = sadd.s32 %s168, 1
    %s170 = scalar_select %p167, %s168, %s169
    %p173 = pneg %p167
    %p174 = scmp.eq.s32.totalorder %s12, 3
    %p175 = por %p173, %p174
    %p176 = scmp.ne.s32.totalorder %s168, %s171
    %p177 = scmp.eq.s32.totalorder %s12, 0
    %p178 = por %p176, %p177
    %p179 = scmp.ne.s32.totalorder %s168, %s171
    %p180 = scmp.eq.s32.totalorder %s17, 3
    %p181 = por %p179, %p180
    %p182 = scmp.ne.s32.totalorder %s171, %s172
    %p183 = scmp.eq.s32.totalorder %s17, 0
    %p184 = por %p182, %p183
    %p185 = scmp.ne.s32.totalorder %s171, %s172
    %p186 = scmp.eq.s32.totalorder %s18, 3
    %p187 = por %p185, %p186
    %p189 = scmp.ne.s32.totalorder %s172, %s188
    %p190 = scmp.eq.s32.totalorder %s18, 0
    %p191 = por %p189, %p190
    %p192 = scmp.le.s32.totalorder 1, %s12
    %p193 = scmp.lt.s32.totalorder %s12, 5
    %p194 = pnand %p192, %p193
    %p195 = pneg %p194
    // Predicated region
    $region9: #{convnn_forward.4} parent=5 // pred_check
      _
    $region10: #{convnn_forward.4} parent=5 // pred_check_branch
      %197 = sbr.rel (%p194) target = $region12
    $region11: #{convnn_forward.4} parent=5 // pred_region
      %s198 = ssub.s32 %s12, 1
      // Predicated region
      $region13: #{convnn_forward.4} parent=11 // pred_check
        %p199 = pneg %p137
      $region14: #{convnn_forward.4} parent=11 // pred_check_branch
        %201 = sbr.rel (%p199) target = $region16
      $region15: #{convnn_forward.4} parent=11 // pred_region
        _
      $region16: #{convnn_forward.4} parent=11 // pred_fallthru
        _
      // Predicated region
      $region17: #{convnn_forward.4} parent=11 // pred_check
        %p202 = pneg %p158
      $region18: #{convnn_forward.4} parent=11 // pred_check_branch
        %204 = sbr.rel (%p202) target = $region20
      $region19: #{convnn_forward.4} parent=11 // pred_region
        _
      $region20: #{convnn_forward.4} parent=11 // pred_fallthru
        _
    $region12: #{convnn_forward.4} parent=5 // pred_fallthru
      _
    %p205 = scmp.lt.s32.totalorder %s12, 4
    // Predicated region
    $region21: #{convnn_forward.4} parent=5 // pred_check
      %p206 = pneg %p205
    $region22: #{convnn_forward.4} parent=5 // pred_check_branch
      %208 = sbr.rel (%p206) target = $region24
    $region23: #{convnn_forward.4} parent=5 // pred_region
      // Predicated region
      $region25: #{convnn_forward.4} parent=23 // pred_check
        %p209 = pneg %p32
      $region26: #{convnn_forward.4} parent=23 // pred_check_branch
        %211 = sbr.rel (%p209) target = $region28
      $region27: #{convnn_forward.4} parent=23 // pred_region
        %s212 = smul.u32 74, %s12
        %p213 = scmp.lt.s32.totalorder %s212, 295
        %s214 = scalar_select %p213, %s212, 295
        %s215 = smul.addr %s214, 4
        %s216 = scalar_lea.vmem %s0, %s215
        %s217 = smul.u32 74, %s12
      $region28: #{convnn_forward.4} parent=23 // pred_fallthru
        _
      // Predicated region
      $region29: #{convnn_forward.4} parent=23 // pred_check
        %p218 = pneg %p58
      $region30: #{convnn_forward.4} parent=23 // pred_check_branch
        %220 = sbr.rel (%p218) target = $region32
      $region31: #{convnn_forward.4} parent=23 // pred_region
        %s221 = smul.u32 74, %s12
        %p222 = scmp.lt.s32.totalorder %s221, 295
        %s223 = scalar_select %p222, %s221, 295
        %s224 = smul.addr %s223, 4
        %s225 = scalar_lea.vmem %s1, %s224
        %s226 = smul.u32 74, %s12
      $region32: #{convnn_forward.4} parent=23 // pred_fallthru
        _
      // Predicated region
      $region33: #{convnn_forward.4} parent=23 // pred_check
        %p227 = pneg %p84
      $region34: #{convnn_forward.4} parent=23 // pred_check_branch
        %229 = sbr.rel (%p227) target = $region36
      $region35: #{convnn_forward.4} parent=23 // pred_region
        %s230 = smul.u32 74, %s12
        %p231 = scmp.lt.s32.totalorder %s230, 295
        %s232 = scalar_select %p231, %s230, 295
        %s233 = smul.addr %s232, 4
        %s234 = scalar_lea.vmem %s2, %s233
        %s235 = smul.u32 74, %s12
      $region36: #{convnn_forward.4} parent=23 // pred_fallthru
        _
      // Predicated region
      $region37: #{convnn_forward.4} parent=23 // pred_check
        %p236 = pneg %p110
      $region38: #{convnn_forward.4} parent=23 // pred_check_branch
        %238 = sbr.rel (%p236) target = $region40
      $region39: #{convnn_forward.4} parent=23 // pred_region
        %s239 = smul.u32 74, %s12
        %p240 = scmp.lt.s32.totalorder %s239, 295
        %s241 = scalar_select %p240, %s239, 295
        %s242 = smul.addr %s241, 4
        %s243 = scalar_lea.vmem %s3, %s242
        %s244 = smul.u32 74, %s12
      $region40: #{convnn_forward.4} parent=23 // pred_fallthru
        _
    $region24: #{convnn_forward.4} parent=5 // pred_fallthru
      _
    %p245 = scmp.le.s32.totalorder 1, %s12
    %p246 = scmp.lt.s32.totalorder %s12, 5
    %p247 = pnand %p245, %p246
    %p248 = pneg %p247
    // Predicated region
    $region41: #{convnn_forward.4} parent=5 // pred_check
      _
    $region42: #{convnn_forward.4} parent=5 // pred_check_branch
      %250 = sbr.rel (%p247) target = $region44
    $region43: #{convnn_forward.4} parent=5 // pred_region
      %s251 = ssub.s32 %s12, 1
      %s252 = smul.u32 74, %s17
      %p253 = scmp.lt.s32.totalorder %s252, 295
      %s254 = scalar_select %p253, %s252, 295
      %s255 = smul.addr %s254, 4
      %s256 = scalar_lea.vmem %s0, %s255
      %p257 = pneg %p38
      %p258 = pneg %p35
      %s259 = smul.u32 74, %s17
      %p260 = scmp.lt.s32.totalorder %s259, 295
      %s261 = scalar_select %p260, %s259, 295
      %s262 = smul.addr %s261, 4
      %s263 = scalar_lea.vmem %s1, %s262
      %p264 = pneg %p64
      %p265 = pneg %p61
      %s266 = smul.u32 74, %s17
      %p267 = scmp.lt.s32.totalorder %s266, 295
      %s268 = scalar_select %p267, %s266, 295
      %s269 = smul.addr %s268, 4
      %s270 = scalar_lea.vmem %s2, %s269
      %p271 = pneg %p90
      %p272 = pneg %p87
      %s273 = smul.u32 74, %s17
      %p274 = scmp.lt.s32.totalorder %s273, 295
      %s275 = scalar_select %p274, %s273, 295
      %s276 = smul.addr %s275, 4
      %s277 = scalar_lea.vmem %s3, %s276
      %p278 = pneg %p116
      %p279 = pneg %p113
      %p280 = pneg %p137
      %p281 = pneg %p134
      %p282 = pneg %p158
      %p283 = pneg %p155
      %p284 = pneg %p184
      %p285 = pneg %p181
      %s286 = smul.u32 74, %s17
      %p287 = scmp.lt.s32.totalorder %s286, 295
      %s288 = scalar_select %p287, %s286, 295
      %s289 = smul.addr %s288, 8
      %s290 = scalar_lea.vmem %s6, %s289
      %s291 = smul.u32 74, %s17
      %p292 = scmp.lt.s32.totalorder %s291, 295
      %s293 = scalar_select %p292, %s291, 295
      %s294 = smul.addr %s293, 4
      %s295 = scalar_lea.vmem %s0, %s294
      %s296 = smul.u32 74, %s17
      %s297 = smul.u32 74, %s17
      %p298 = scmp.lt.s32.totalorder %s297, 295
      %s299 = scalar_select %p298, %s297, 295
      %s300 = smul.addr %s299, 4
      %s301 = scalar_lea.vmem %s1, %s300
      %s302 = smul.u32 74, %s17
      %s303 = smul.u32 74, %s17
      %p304 = scmp.lt.s32.totalorder %s303, 295
      %s305 = scalar_select %p304, %s303, 295
      %s306 = smul.addr %s305, 4
      %s307 = scalar_lea.vmem %s2, %s306
      %s308 = smul.u32 74, %s17
      %s309 = smul.u32 74, %s17
      %p310 = scmp.lt.s32.totalorder %s309, 295
      %s311 = scalar_select %p310, %s309, 295
      %s312 = smul.addr %s311, 4
      %s313 = scalar_lea.vmem %s3, %s312
      %s314 = smul.u32 74, %s17
      %s315 = smul.u32 74, %s17
      %p316 = scmp.lt.s32.totalorder %s315, 295
      %s317 = scalar_select %p316, %s315, 295
      %s318 = smul.addr %s317, 8
      %s319 = scalar_lea.vmem %s6, %s318
      %s320 = smul.u32 74, %s17
      %v322 = vld [vmem:[%s4] sm:$0xf]
      %v323 = vld [vmem:[%s4 + $0x4] sm:$0xf]
      %v324 = vld [vmem:[%s4 + $0x8] sm:$0xf]
      %v325 = vld [vmem:[%s4 + $0xc] sm:$0xf]
      %v326 = vld [vmem:[%s4 + $0x10] sm:$0xf]
      %v327 = vld [vmem:[%s4 + $0x14] sm:$0xf]
      %v328 = vld [vmem:[%s295] sm:$0xf]
      %v329 = vld [vmem:[%s295 + $0x4] sm:$0xf]
      %v330 = vld [vmem:[%s295 + $0x8] sm:$0xf]
      %v331 = vld [vmem:[%s295 + $0xc] sm:$0xf]
      %v332 = vld [vmem:[%s295 + $0x10] sm:$0xf]
      %v333 = vld [vmem:[%s295 + $0x14] sm:$0xf]
      %v334 = vld [vmem:[%s295 + $0x18] sm:$0xf]
      %v335 = vld [vmem:[%s295 + $0x1c] sm:$0xf]
      %v336 = vld [vmem:[%s295 + $0x20] sm:$0xf]
      %v337 = vld [vmem:[%s295 + $0x24] sm:$0xf]
      %v338 = vld [vmem:[%s295 + $0x28] sm:$0xf]
      %v339 = vld [vmem:[%s295 + $0x2c] sm:$0xf]
      %v340 = vld [vmem:[%s295 + $0x30] sm:$0xf]
      %v341 = vld [vmem:[%s295 + $0x34] sm:$0xf]
      %v342 = vld [vmem:[%s295 + $0x38] sm:$0xf]
      %v343 = vld [vmem:[%s295 + $0x3c] sm:$0xf]
      %v344 = vld [vmem:[%s295 + $0x40] sm:$0xf]
      %v345 = vld [vmem:[%s295 + $0x44] sm:$0xf]
      %v346 = vld [vmem:[%s295 + $0x48] sm:$0xf]
      %v347 = vld [vmem:[%s295 + $0x4c] sm:$0xf]
      %v348 = vld [vmem:[%s295 + $0x50] sm:$0xf]
      %v349 = vld [vmem:[%s295 + $0x54] sm:$0xf]
      %v350 = vld [vmem:[%s295 + $0x58] sm:$0xf]
      %v351 = vld [vmem:[%s295 + $0x5c] sm:$0xf]
      %v352 = vld [vmem:[%s295 + $0x60] sm:$0xf]
      %v353 = vld [vmem:[%s295 + $0x64] sm:$0xf]
      %v354 = vld [vmem:[%s295 + $0x68] sm:$0xf]
      %v355 = vld [vmem:[%s295 + $0x6c] sm:$0xf]
      %v356 = vld [vmem:[%s295 + $0x70] sm:$0xf]
      %v357 = vld [vmem:[%s295 + $0x74] sm:$0xf]
      %v358 = vld [vmem:[%s295 + $0x78] sm:$0xf]
      %v359 = vld [vmem:[%s295 + $0x7c] sm:$0xf]
      %v360 = vld [vmem:[%s295 + $0x80] sm:$0xf]
      %v361 = vld [vmem:[%s295 + $0x84] sm:$0xf]
      %v362 = vld [vmem:[%s295 + $0x88] sm:$0xf]
      %v363 = vld [vmem:[%s295 + $0x8c] sm:$0xf]
      %v364 = vld [vmem:[%s295 + $0x90] sm:$0xf]
      %v365 = vld [vmem:[%s295 + $0x94] sm:$0xf]
      %v366 = vld [vmem:[%s295 + $0x98] sm:$0xf]
      %v367 = vld [vmem:[%s295 + $0x9c] sm:$0xf]
      %v368 = vld [vmem:[%s295 + $0xa0] sm:$0xf]
      %v369 = vld [vmem:[%s295 + $0xa4] sm:$0xf]
      %v370 = vld [vmem:[%s295 + $0xa8] sm:$0xf]
      %v371 = vld [vmem:[%s295 + $0xac] sm:$0xf]
      %v372 = vld [vmem:[%s295 + $0xb0] sm:$0xf]
      %v373 = vld [vmem:[%s295 + $0xb4] sm:$0xf]
      %v374 = vld [vmem:[%s295 + $0xb8] sm:$0xf]
      %v375 = vld [vmem:[%s295 + $0xbc] sm:$0xf]
      %v376 = vld [vmem:[%s295 + $0xc0] sm:$0xf]
      %v377 = vld [vmem:[%s295 + $0xc4] sm:$0xf]
      %v378 = vld [vmem:[%s295 + $0xc8] sm:$0xf]
      %v379 = vld [vmem:[%s295 + $0xcc] sm:$0xf]
      %v380 = vld [vmem:[%s295 + $0xd0] sm:$0xf]
      %v381 = vld [vmem:[%s295 + $0xd4] sm:$0xf]
      %v382 = vld [vmem:[%s295 + $0xd8] sm:$0xf]
      %v383 = vld [vmem:[%s295 + $0xdc] sm:$0xf]
      %v384 = vld [vmem:[%s295 + $0xe0] sm:$0xf]
      %v385 = vld [vmem:[%s295 + $0xe4] sm:$0xf]
      %v386 = vld [vmem:[%s295 + $0xe8] sm:$0xf]
      %v387 = vld [vmem:[%s295 + $0xec] sm:$0xf]
      %v388 = vld [vmem:[%s295 + $0xf0] sm:$0xf]
      %v389 = vld [vmem:[%s295 + $0xf4] sm:$0xf]
      %v390 = vld [vmem:[%s295 + $0xf8] sm:$0xf]
      %v391 = vld [vmem:[%s295 + $0xfc] sm:$0xf]
      %v392 = vld [vmem:[%s295 + $0x100] sm:$0xf]
      %v393 = vld [vmem:[%s295 + $0x104] sm:$0xf]
      %v394 = vld [vmem:[%s295 + $0x108] sm:$0xf]
      %v395 = vld [vmem:[%s295 + $0x10c] sm:$0xf]
      %v396 = vld [vmem:[%s295 + $0x110] sm:$0xf]
      %v397 = vld [vmem:[%s295 + $0x114] sm:$0xf]
      %v398 = vld [vmem:[%s295 + $0x118] sm:$0xf]
      %v399 = vld [vmem:[%s295 + $0x11c] sm:$0xf]
      %v400 = vld [vmem:[%s295 + $0x120] sm:$0xf]
      %v401 = vld [vmem:[%s295 + $0x124] sm:$0xf]
      %v476 = vunpack.c.l.b16 %v328
      %v477 = vunpack.c.l.b16 %v329
      %v478 = vunpack.c.l.b16 %v330
      %v479 = vunpack.c.l.b16 %v331
      %v480 = vunpack.c.l.b16 %v332
      %v481 = vunpack.c.l.b16 %v333
      %v482 = vunpack.c.l.b16 %v334
      %v483 = vunpack.c.l.b16 %v335
      %v484 = vunpack.c.l.b16 %v336
      %v485 = vunpack.c.l.b16 %v337
      %v486 = vunpack.c.l.b16 %v338
      %v487 = vunpack.c.l.b16 %v339
      %v488 = vunpack.c.l.b16 %v340
      %v489 = vunpack.c.l.b16 %v341
      %v490 = vunpack.c.l.b16 %v342
      %v491 = vunpack.c.l.b16 %v343
      %v492 = vunpack.c.l.b16 %v344
      %v493 = vunpack.c.l.b16 %v345
      %v494 = vunpack.c.l.b16 %v346
      %v495 = vunpack.c.l.b16 %v347
      %v496 = vunpack.c.l.b16 %v348
      %v497 = vunpack.c.l.b16 %v349
      %v498 = vunpack.c.l.b16 %v350
      %v499 = vunpack.c.l.b16 %v351
      %v500 = vunpack.c.l.b16 %v352
      %v501 = vunpack.c.l.b16 %v353
      %v502 = vunpack.c.l.b16 %v354
      %v503 = vunpack.c.l.b16 %v355
      %v504 = vunpack.c.l.b16 %v356
      %v505 = vunpack.c.l.b16 %v357
      %v506 = vunpack.c.l.b16 %v358
      %v507 = vunpack.c.l.b16 %v359
      %v508 = vunpack.c.l.b16 %v360
      %v509 = vunpack.c.l.b16 %v361
      %v510 = vunpack.c.l.b16 %v362
      %v511 = vunpack.c.l.b16 %v363
      %v512 = vunpack.c.l.b16 %v364
      %v513 = vunpack.c.l.b16 %v365
      %v514 = vunpack.c.l.b16 %v366
      %v515 = vunpack.c.l.b16 %v367
      %v516 = vunpack.c.l.b16 %v368
      %v517 = vunpack.c.l.b16 %v369
      %v518 = vunpack.c.l.b16 %v370
      %v519 = vunpack.c.l.b16 %v371
      %v520 = vunpack.c.l.b16 %v372
      %v521 = vunpack.c.l.b16 %v373
      %v522 = vunpack.c.l.b16 %v374
      %v523 = vunpack.c.l.b16 %v375
      %v524 = vunpack.c.l.b16 %v376
      %v525 = vunpack.c.l.b16 %v377
      %v526 = vunpack.c.l.b16 %v378
      %v527 = vunpack.c.l.b16 %v379
      %v528 = vunpack.c.l.b16 %v380
      %v529 = vunpack.c.l.b16 %v381
      %v530 = vunpack.c.l.b16 %v382
      %v531 = vunpack.c.l.b16 %v383
      %v532 = vunpack.c.l.b16 %v384
      %v533 = vunpack.c.l.b16 %v385
      %v534 = vunpack.c.l.b16 %v386
      %v535 = vunpack.c.l.b16 %v387
      %v536 = vunpack.c.l.b16 %v388
      %v537 = vunpack.c.l.b16 %v389
      %v538 = vunpack.c.l.b16 %v390
      %v539 = vunpack.c.l.b16 %v391
      %v540 = vunpack.c.l.b16 %v392
      %v541 = vunpack.c.l.b16 %v393
      %v542 = vunpack.c.l.b16 %v394
      %v543 = vunpack.c.l.b16 %v395
      %v544 = vunpack.c.l.b16 %v396
      %v545 = vunpack.c.l.b16 %v397
      %v546 = vunpack.c.l.b16 %v398
      %v547 = vunpack.c.l.b16 %v399
      %v548 = vunpack.c.l.b16 %v400
      %v549 = vunpack.c.l.b16 %v401
      %v550 = vpack.c.b16 %v477, %v476
      %v551 = vpack.c.b16 %v479, %v478
      %v552 = vpack.c.b16 %v481, %v480
      %v553 = vpack.c.b16 %v483, %v482
      %v554 = vpack.c.b16 %v485, %v484
      %v555 = vpack.c.b16 %v487, %v486
      %v556 = vpack.c.b16 %v489, %v488
      %v557 = vpack.c.b16 %v491, %v490
      %v558 = vpack.c.b16 %v493, %v492
      %v559 = vpack.c.b16 %v495, %v494
      %v560 = vpack.c.b16 %v497, %v496
      %v561 = vpack.c.b16 %v499, %v498
      %v562 = vpack.c.b16 %v501, %v500
      %v563 = vpack.c.b16 %v503, %v502
      %v564 = vpack.c.b16 %v505, %v504
      %v565 = vpack.c.b16 %v507, %v506
      %v566 = vpack.c.b16 %v509, %v508
      %v567 = vpack.c.b16 %v511, %v510
      %v568 = vpack.c.b16 %v513, %v512
      %v569 = vpack.c.b16 %v515, %v514
      %v570 = vpack.c.b16 %v517, %v516
      %v571 = vpack.c.b16 %v519, %v518
      %v572 = vpack.c.b16 %v521, %v520
      %v573 = vpack.c.b16 %v523, %v522
      %v574 = vpack.c.b16 %v525, %v524
      %v575 = vpack.c.b16 %v527, %v526
      %v576 = vpack.c.b16 %v529, %v528
      %v577 = vpack.c.b16 %v531, %v530
      %v578 = vpack.c.b16 %v533, %v532
      %v579 = vpack.c.b16 %v535, %v534
      %v580 = vpack.c.b16 %v537, %v536
      %v581 = vpack.c.b16 %v539, %v538
      %v582 = vpack.c.b16 %v541, %v540
      %v583 = vpack.c.b16 %v543, %v542
      %v584 = vpack.c.b16 %v545, %v544
      %v585 = vpack.c.b16 %v547, %v546
      %v586 = vpack.c.b16 %v549, %v548
      %v593 = vunpack.c.l.b16 %v322
      %v594 = vunpack.c.l.b16 %v323
      %v595 = vunpack.c.l.b16 %v324
      %v596 = vunpack.c.l.b16 %v325
      %v597 = vunpack.c.l.b16 %v326
      %v598 = vunpack.c.l.b16 %v327
      %v599 = vpack.c.b16 %v594, %v593
      %v600 = vpack.c.b16 %v596, %v595
      %v601 = vpack.c.b16 %v598, %v597
      %vm605 = vcmask 392192
      %v607 = vsel %vm605, %v550, 0
      %v610 = vsel %vm605, %v551, 0
      %v613 = vsel %vm605, %v552, 0
      %v616 = vsel %vm605, %v553, 0
      %v619 = vsel %vm605, %v554, 0
      %v622 = vsel %vm605, %v555, 0
      %v625 = vsel %vm605, %v556, 0
      %v628 = vsel %vm605, %v557, 0
      %v631 = vsel %vm605, %v558, 0
      %v634 = vsel %vm605, %v559, 0
      %v637 = vsel %vm605, %v560, 0
      %v640 = vsel %vm605, %v561, 0
      %v643 = vsel %vm605, %v562, 0
      %v646 = vsel %vm605, %v563, 0
      %v649 = vsel %vm605, %v564, 0
      %v652 = vsel %vm605, %v565, 0
      %v655 = vsel %vm605, %v566, 0
      %v658 = vsel %vm605, %v567, 0
      %v661 = vsel %vm605, %v568, 0
      %v664 = vsel %vm605, %v569, 0
      %v667 = vsel %vm605, %v570, 0
      %v670 = vsel %vm605, %v571, 0
      %v673 = vsel %vm605, %v572, 0
      %v676 = vsel %vm605, %v573, 0
      %v679 = vsel %vm605, %v574, 0
      %v682 = vsel %vm605, %v575, 0
      %v685 = vsel %vm605, %v576, 0
      %v688 = vsel %vm605, %v577, 0
      %v691 = vsel %vm605, %v578, 0
      %v694 = vsel %vm605, %v579, 0
      %v697 = vsel %vm605, %v580, 0
      %v700 = vsel %vm605, %v581, 0
      %v703 = vsel %vm605, %v582, 0
      %v706 = vsel %vm605, %v583, 0
      %v709 = vsel %vm605, %v584, 0
      %v712 = vsel %vm605, %v585, 0
      %v715 = vsel %vm605, %v586, 0
      %717 = vmatprep.subr.bf16.mxu0 0
      %718 = vmatpush1.bf16.msra.mxu0 %v599
      %719 = vmatprep.subr.bf16.mxu0 0
      %720 = vmatpush1.bf16.msra.mxu0 %v600
      %721 = vmatprep.subr.bf16.mxu0 0
      %722 = vmatpush1.bf16.msra.mxu0 %v601
      %723 = vmatprep.subr.bf16.mxu0 0
      %724 = vmatpush1.bf16.msra.mxu0 0
      %725 = vmatprep.subr.bf16.mxu0 0
      %726 = vmatpush1.bf16.msra.mxu0 0
      %727 = vmatprep.subr.bf16.mxu0 0
      %728 = vmatpush1.bf16.msra.mxu0 0
      %729 = vmatprep.subr.bf16.mxu0 0
      %730 = vmatpush1.bf16.msra.mxu0 0
      %731 = vmatprep.subr.bf16.mxu0 0
      %732 = vmatpush1.bf16.msra.mxu0 0
      %733 = vmatprep.subr.bf16.mxu0 0
      %734 = vmatpush1.bf16.msra.mxu0 0
      %735 = vmatprep.subr.bf16.mxu0 0
      %736 = vmatpush1.bf16.msra.mxu0 0
      %737 = vmatprep.subr.bf16.mxu0 0
      %738 = vmatpush1.bf16.msra.mxu0 0
      %739 = vmatprep.subr.bf16.mxu0 0
      %740 = vmatpush1.bf16.msra.mxu0 0
      %741 = vmatprep.subr.bf16.mxu0 0
      %742 = vmatpush1.bf16.msra.mxu0 0
      %743 = vmatprep.subr.bf16.mxu0 0
      %744 = vmatpush1.bf16.msra.mxu0 0
      %745 = vmatprep.subr.bf16.mxu0 0
      %746 = vmatpush1.bf16.msra.mxu0 0
      %747 = vmatprep.subr.bf16.mxu0 0
      %748 = vmatpush1.bf16.msra.mxu0 0
      %749 = vmatprep.mubr.bf16.mxu0 0
      %750 = vmatmul.mubr.bf16.gmra.mrb[0].mxu0 %v607
      %v751 = vpop.f32.mrb[0].mxu0
      %v752 = vadd.f32 0.0, %v751
      %v753 = vpop.f32.mrb[0].mxu0
      %v754 = vpop.f32.mrb[0].mxu0
      %v755 = vadd.f32 0.0, %v754
      %v756 = vpop.f32.mrb[0].mxu0
      %757 = vmatprep.mubr.bf16.mxu0 0
      %758 = vmatmul.mubr.bf16.gmra.mrb[0].mxu0 %v610
      %v759 = vpop.f32.mrb[0].mxu0
      %v760 = vadd.f32 0.0, %v759
      %v761 = vpop.f32.mrb[0].mxu0
      %v762 = vpop.f32.mrb[0].mxu0
      %v763 = vadd.f32 0.0, %v762
      %v764 = vpop.f32.mrb[0].mxu0
      %765 = vmatprep.mubr.bf16.mxu0 0
      %766 = vmatmul.mubr.bf16.gmra.mrb[0].mxu0 %v613
      %v767 = vpop.f32.mrb[0].mxu0
      %v768 = vadd.f32 0.0, %v767
      %v769 = vpop.f32.mrb[0].mxu0
      %v770 = vpop.f32.mrb[0].mxu0
      %v771 = vadd.f32 0.0, %v770
      %v772 = vpop.f32.mrb[0].mxu0
      %773 = vmatprep.mubr.bf16.mxu0 0
      %774 = vmatmul.mubr.bf16.gmra.mrb[0].mxu0 %v616
      %v775 = vpop.f32.mrb[0].mxu0
      %v776 = vadd.f32 0.0, %v775
      %v777 = vpop.f32.mrb[0].mxu0
      %v778 = vpop.f32.mrb[0].mxu0
      %v779 = vadd.f32 0.0, %v778
      %v780 = vpop.f32.mrb[0].mxu0
      %781 = vmatprep.mubr.bf16.mxu0 0
      %782 = vmatmul.mubr.bf16.gmra.mrb[0].mxu0 %v619
      %v783 = vpop.f32.mrb[0].mxu0
      %v784 = vadd.f32 0.0, %v783
      %v785 = vpop.f32.mrb[0].mxu0
      %v786 = vpop.f32.mrb[0].mxu0
      %v787 = vadd.f32 0.0, %v786
      %v788 = vpop.f32.mrb[0].mxu0
      %789 = vmatprep.mubr.bf16.mxu0 0
      %790 = vmatmul.mubr.bf16.gmra.mrb[0].mxu0 %v622
      %v791 = vpop.f32.mrb[0].mxu0
      %v792 = vadd.f32 0.0, %v791
      %v793 = vpop.f32.mrb[0].mxu0
      %v794 = vpop.f32.mrb[0].mxu0
      %v795 = vadd.f32 0.0, %v794
      %v796 = vpop.f32.mrb[0].mxu0
      %797 = vmatprep.mubr.bf16.mxu0 0
      %798 = vmatmul.mubr.bf16.gmra.mrb[0].mxu0 %v625
      %v799 = vpop.f32.mrb[0].mxu0
      %v800 = vadd.f32 0.0, %v799
      %v801 = vpop.f32.mrb[0].mxu0
      %v802 = vpop.f32.mrb[0].mxu0
      %v803 = vadd.f32 0.0, %v802
      %v804 = vpop.f32.mrb[0].mxu0
      %805 = vmatprep.mubr.bf16.mxu0 0
      %806 = vmatmul.mubr.bf16.gmra.mrb[0].mxu0 %v628
      %v807 = vpop.f32.mrb[0].mxu0
      %v808 = vadd.f32 0.0, %v807
      %v809 = vpop.f32.mrb[0].mxu0
      %v810 = vpop.f32.mrb[0].mxu0
      %v811 = vadd.f32 0.0, %v810
      %v812 = vpop.f32.mrb[0].mxu0
      %813 = vmatprep.mubr.bf16.mxu0 0
      %814 = vmatmul.mubr.bf16.gmra.mrb[0].mxu0 %v631
      %v815 = vpop.f32.mrb[0].mxu0
      %v816 = vadd.f32 0.0, %v815
      %v817 = vpop.f32.mrb[0].mxu0
      %v818 = vpop.f32.mrb[0].mxu0
      %v819 = vadd.f32 0.0, %v818
      %v820 = vpop.f32.mrb[0].mxu0
      %821 = vmatprep.mubr.bf16.mxu0 0
      %822 = vmatmul.mubr.bf16.gmra.mrb[0].mxu0 %v634
      %v823 = vpop.f32.mrb[0].mxu0
      %v824 = vadd.f32 0.0, %v823
      %v825 = vpop.f32.mrb[0].mxu0
      %v826 = vpop.f32.mrb[0].mxu0
      %v827 = vadd.f32 0.0, %v826
      %v828 = vpop.f32.mrb[0].mxu0
      %829 = vmatprep.mubr.bf16.mxu0 0
      %830 = vmatmul.mubr.bf16.gmra.mrb[0].mxu0 %v637
      %v831 = vpop.f32.mrb[0].mxu0
      %v832 = vadd.f32 0.0, %v831
      %v833 = vpop.f32.mrb[0].mxu0
      %v834 = vpop.f32.mrb[0].mxu0
      %v835 = vadd.f32 0.0, %v834
      %v836 = vpop.f32.mrb[0].mxu0
      %837 = vmatprep.mubr.bf16.mxu0 0
      %838 = vmatmul.mubr.bf16.gmra.mrb[0].mxu0 %v640
      %v839 = vpop.f32.mrb[0].mxu0
      %v840 = vadd.f32 0.0, %v839
      %v841 = vpop.f32.mrb[0].mxu0
      %v842 = vpop.f32.mrb[0].mxu0
      %v843 = vadd.f32 0.0, %v842
      %v844 = vpop.f32.mrb[0].mxu0
      %845 = vmatprep.mubr.bf16.mxu0 0
      %846 = vmatmul.mubr.bf16.gmra.mrb[0].mxu0 %v643
      %v847 = vpop.f32.mrb[0].mxu0
      %v848 = vadd.f32 0.0, %v847
      %v849 = vpop.f32.mrb[0].mxu0
      %v850 = vpop.f32.mrb[0].mxu0
      %v851 = vadd.f32 0.0, %v850
      %v852 = vpop.f32.mrb[0].mxu0
      %853 = vmatprep.mubr.bf16.mxu0 0
      %854 = vmatmul.mubr.bf16.gmra.mrb[0].mxu0 %v646
      %v855 = vpop.f32.mrb[0].mxu0
      %v856 = vadd.f32 0.0, %v855
      %v857 = vpop.f32.mrb[0].mxu0
      %v858 = vpop.f32.mrb[0].mxu0
      %v859 = vadd.f32 0.0, %v858
      %v860 = vpop.f32.mrb[0].mxu0
      %861 = vmatprep.mubr.bf16.mxu0 0
      %862 = vmatmul.mubr.bf16.gmra.mrb[0].mxu0 %v649
      %v863 = vpop.f32.mrb[0].mxu0
      %v864 = vadd.f32 0.0, %v863
      %v865 = vpop.f32.mrb[0].mxu0
      %v866 = vpop.f32.mrb[0].mxu0
      %v867 = vadd.f32 0.0, %v866
      %v868 = vpop.f32.mrb[0].mxu0
      %869 = vmatprep.mubr.bf16.mxu0 0
      %870 = vmatmul.mubr.bf16.gmra.mrb[0].mxu0 %v652
      %v871 = vpop.f32.mrb[0].mxu0
      %v872 = vadd.f32 0.0, %v871
      %v873 = vpop.f32.mrb[0].mxu0
      %v874 = vpop.f32.mrb[0].mxu0
      %v875 = vadd.f32 0.0, %v874
      %v876 = vpop.f32.mrb[0].mxu0
      %877 = vmatprep.mubr.bf16.mxu0 0
      %878 = vmatmul.mubr.bf16.gmra.mrb[0].mxu0 %v655
      %v879 = vpop.f32.mrb[0].mxu0
      %v880 = vadd.f32 0.0, %v879
      %v881 = vpop.f32.mrb[0].mxu0
      %v882 = vpop.f32.mrb[0].mxu0
      %v883 = vadd.f32 0.0, %v882
      %v884 = vpop.f32.mrb[0].mxu0
      %885 = vmatprep.mubr.bf16.mxu0 0
      %886 = vmatmul.mubr.bf16.gmra.mrb[0].mxu0 %v658
      %v887 = vpop.f32.mrb[0].mxu0
      %v888 = vadd.f32 0.0, %v887
      %v889 = vpop.f32.mrb[0].mxu0
      %v890 = vpop.f32.mrb[0].mxu0
      %v891 = vadd.f32 0.0, %v890
      %v892 = vpop.f32.mrb[0].mxu0
      %893 = vmatprep.mubr.bf16.mxu0 0
      %894 = vmatmul.mubr.bf16.gmra.mrb[0].mxu0 %v661
      %v895 = vpop.f32.mrb[0].mxu0
      %v896 = vadd.f32 0.0, %v895
      %v897 = vpop.f32.mrb[0].mxu0
      %v898 = vpop.f32.mrb[0].mxu0
      %v899 = vadd.f32 0.0, %v898
      %v900 = vpop.f32.mrb[0].mxu0
      %901 = vmatprep.mubr.bf16.mxu0 0
      %902 = vmatmul.mubr.bf16.gmra.mrb[0].mxu0 %v664
      %v903 = vpop.f32.mrb[0].mxu0
      %v904 = vadd.f32 0.0, %v903
      %v905 = vpop.f32.mrb[0].mxu0
      %v906 = vpop.f32.mrb[0].mxu0
      %v907 = vadd.f32 0.0, %v906
      %v908 = vpop.f32.mrb[0].mxu0
      %909 = vmatprep.mubr.bf16.mxu0 0
      %910 = vmatmul.mubr.bf16.gmra.mrb[0].mxu0 %v667
      %v911 = vpop.f32.mrb[0].mxu0
      %v912 = vadd.f32 0.0, %v911
      %v913 = vpop.f32.mrb[0].mxu0
      %v914 = vpop.f32.mrb[0].mxu0
      %v915 = vadd.f32 0.0, %v914
      %v916 = vpop.f32.mrb[0].mxu0
      %917 = vmatprep.mubr.bf16.mxu0 0
      %918 = vmatmul.mubr.bf16.gmra.mrb[0].mxu0 %v670
      %v919 = vpop.f32.mrb[0].mxu0
      %v920 = vadd.f32 0.0, %v919
      %v921 = vpop.f32.mrb[0].mxu0
      %v922 = vpop.f32.mrb[0].mxu0
      %v923 = vadd.f32 0.0, %v922
      %v924 = vpop.f32.mrb[0].mxu0
      %925 = vmatprep.mubr.bf16.mxu0 0
      %926 = vmatmul.mubr.bf16.gmra.mrb[0].mxu0 %v673
      %v927 = vpop.f32.mrb[0].mxu0
      %v928 = vadd.f32 0.0, %v927
      %v929 = vpop.f32.mrb[0].mxu0
      %v930 = vpop.f32.mrb[0].mxu0
      %v931 = vadd.f32 0.0, %v930
      %v932 = vpop.f32.mrb[0].mxu0
      %933 = vmatprep.mubr.bf16.mxu0 0
      %934 = vmatmul.mubr.bf16.gmra.mrb[0].mxu0 %v676
      %v935 = vpop.f32.mrb[0].mxu0
      %v936 = vadd.f32 0.0, %v935
      %v937 = vpop.f32.mrb[0].mxu0
      %v938 = vpop.f32.mrb[0].mxu0
      %v939 = vadd.f32 0.0, %v938
      %v940 = vpop.f32.mrb[0].mxu0
      %941 = vmatprep.mubr.bf16.mxu0 0
      %942 = vmatmul.mubr.bf16.gmra.mrb[0].mxu0 %v679
      %v943 = vpop.f32.mrb[0].mxu0
      %v944 = vadd.f32 0.0, %v943
      %v945 = vpop.f32.mrb[0].mxu0
      %v946 = vpop.f32.mrb[0].mxu0
      %v947 = vadd.f32 0.0, %v946
      %v948 = vpop.f32.mrb[0].mxu0
      %949 = vmatprep.mubr.bf16.mxu0 0
      %950 = vmatmul.mubr.bf16.gmra.mrb[0].mxu0 %v682
      %v951 = vpop.f32.mrb[0].mxu0
      %v952 = vadd.f32 0.0, %v951
      %v953 = vpop.f32.mrb[0].mxu0
      %v954 = vpop.f32.mrb[0].mxu0
      %v955 = vadd.f32 0.0, %v954
      %v956 = vpop.f32.mrb[0].mxu0
      %957 = vmatprep.mubr.bf16.mxu0 0
      %958 = vmatmul.mubr.bf16.gmra.mrb[0].mxu0 %v685
      %v959 = vpop.f32.mrb[0].mxu0
      %v960 = vadd.f32 0.0, %v959
      %v961 = vpop.f32.mrb[0].mxu0
      %v962 = vpop.f32.mrb[0].mxu0
      %v963 = vadd.f32 0.0, %v962
      %v964 = vpop.f32.mrb[0].mxu0
      %965 = vmatprep.mubr.bf16.mxu0 0
      %966 = vmatmul.mubr.bf16.gmra.mrb[0].mxu0 %v688
      %v967 = vpop.f32.mrb[0].mxu0
      %v968 = vadd.f32 0.0, %v967
      %v969 = vpop.f32.mrb[0].mxu0
      %v970 = vpop.f32.mrb[0].mxu0
      %v971 = vadd.f32 0.0, %v970
      %v972 = vpop.f32.mrb[0].mxu0
      %973 = vmatprep.mubr.bf16.mxu0 0
      %974 = vmatmul.mubr.bf16.gmra.mrb[0].mxu0 %v691
      %v975 = vpop.f32.mrb[0].mxu0
      %v976 = vadd.f32 0.0, %v975
      %v977 = vpop.f32.mrb[0].mxu0
      %v978 = vpop.f32.mrb[0].mxu0
      %v979 = vadd.f32 0.0, %v978
      %v980 = vpop.f32.mrb[0].mxu0
      %981 = vmatprep.mubr.bf16.mxu0 0
      %982 = vmatmul.mubr.bf16.gmra.mrb[0].mxu0 %v694
      %v983 = vpop.f32.mrb[0].mxu0
      %v984 = vadd.f32 0.0, %v983
      %v985 = vpop.f32.mrb[0].mxu0
      %v986 = vpop.f32.mrb[0].mxu0
      %v987 = vadd.f32 0.0, %v986
      %v988 = vpop.f32.mrb[0].mxu0
      %989 = vmatprep.mubr.bf16.mxu0 0
      %990 = vmatmul.mubr.bf16.gmra.mrb[0].mxu0 %v697
      %v991 = vpop.f32.mrb[0].mxu0
      %v992 = vadd.f32 0.0, %v991
      %v993 = vpop.f32.mrb[0].mxu0
      %v994 = vpop.f32.mrb[0].mxu0
      %v995 = vadd.f32 0.0, %v994
      %v996 = vpop.f32.mrb[0].mxu0
      %997 = vmatprep.mubr.bf16.mxu0 0
      %998 = vmatmul.mubr.bf16.gmra.mrb[0].mxu0 %v700
      %v999 = vpop.f32.mrb[0].mxu0
      %v1000 = vadd.f32 0.0, %v999
      %v1001 = vpop.f32.mrb[0].mxu0
      %v1002 = vpop.f32.mrb[0].mxu0
      %v1003 = vadd.f32 0.0, %v1002
      %v1004 = vpop.f32.mrb[0].mxu0
      %1005 = vmatprep.mubr.bf16.mxu0 0
      %1006 = vmatmul.mubr.bf16.gmra.mrb[0].mxu0 %v703
      %v1007 = vpop.f32.mrb[0].mxu0
      %v1008 = vadd.f32 0.0, %v1007
      %v1009 = vpop.f32.mrb[0].mxu0
      %v1010 = vpop.f32.mrb[0].mxu0
      %v1011 = vadd.f32 0.0, %v1010
      %v1012 = vpop.f32.mrb[0].mxu0
      %1013 = vmatprep.mubr.bf16.mxu0 0
      %1014 = vmatmul.mubr.bf16.gmra.mrb[0].mxu0 %v706
      %v1015 = vpop.f32.mrb[0].mxu0
      %v1016 = vadd.f32 0.0, %v1015
      %v1017 = vpop.f32.mrb[0].mxu0
      %v1018 = vpop.f32.mrb[0].mxu0
      %v1019 = vadd.f32 0.0, %v1018
      %v1020 = vpop.f32.mrb[0].mxu0
      %1021 = vmatprep.mubr.bf16.mxu0 0
      %1022 = vmatmul.mubr.bf16.gmra.mrb[0].mxu0 %v709
      %v1023 = vpop.f32.mrb[0].mxu0
      %v1024 = vadd.f32 0.0, %v1023
      %v1025 = vpop.f32.mrb[0].mxu0
      %v1026 = vpop.f32.mrb[0].mxu0
      %v1027 = vadd.f32 0.0, %v1026
      %v1028 = vpop.f32.mrb[0].mxu0
      %1029 = vmatprep.mubr.bf16.mxu0 0
      %1030 = vmatmul.mubr.bf16.gmra.mrb[0].mxu0 %v712
      %v1031 = vpop.f32.mrb[0].mxu0
      %v1032 = vadd.f32 0.0, %v1031
      %v1033 = vpop.f32.mrb[0].mxu0
      %v1034 = vpop.f32.mrb[0].mxu0
      %v1035 = vadd.f32 0.0, %v1034
      %v1036 = vpop.f32.mrb[0].mxu0
      %1037 = vmatprep.mubr.bf16.mxu0 0
      %1038 = vmatmul.mubr.bf16.gmra.mrb[0].mxu0 %v715
      %v1039 = vpop.f32.mrb[0].mxu0
      %v1040 = vadd.f32 0.0, %v1039
      %v1041 = vpop.f32.mrb[0].mxu0
      %v1042 = vpop.f32.mrb[0].mxu0
      %v1043 = vadd.f32 0.0, %v1042
      %v1044 = vpop.f32.mrb[0].mxu0
      %1045 = vdwg.mxu0
      %v1046 = vld [vmem:[%s301] sm:$0xf]
      %v1047 = vld [vmem:[%s301 + $0x4] sm:$0xf]
      %v1048 = vld [vmem:[%s301 + $0x8] sm:$0xf]
      %v1049 = vld [vmem:[%s301 + $0xc] sm:$0xf]
      %v1050 = vld [vmem:[%s301 + $0x10] sm:$0xf]
      %v1051 = vld [vmem:[%s301 + $0x14] sm:$0xf]
      %v1052 = vld [vmem:[%s301 + $0x18] sm:$0xf]
      %v1053 = vld [vmem:[%s301 + $0x1c] sm:$0xf]
      %v1054 = vld [vmem:[%s301 + $0x20] sm:$0xf]
      %v1055 = vld [vmem:[%s301 + $0x24] sm:$0xf]
      %v1056 = vld [vmem:[%s301 + $0x28] sm:$0xf]
      %v1057 = vld [vmem:[%s301 + $0x2c] sm:$0xf]
      %v1058 = vld [vmem:[%s301 + $0x30] sm:$0xf]
      %v1059 = vld [vmem:[%s301 + $0x34] sm:$0xf]
      %v1060 = vld [vmem:[%s301 + $0x38] sm:$0xf]
      %v1061 = vld [vmem:[%s301 + $0x3c] sm:$0xf]
      %v1062 = vld [vmem:[%s301 + $0x40] sm:$0xf]
      %v1063 = vld [vmem:[%s301 + $0x44] sm:$0xf]
      %v1064 = vld [vmem:[%s301 + $0x48] sm:$0xf]
      %v1065 = vld [vmem:[%s301 + $0x4c] sm:$0xf]
      %v1066 = vld [vmem:[%s301 + $0x50] sm:$0xf]
      %v1067 = vld [vmem:[%s301 + $0x54] sm:$0xf]
      %v1068 = vld [vmem:[%s301 + $0x58] sm:$0xf]
      %v1069 = vld [vmem:[%s301 + $0x5c] sm:$0xf]
      %v1070 = vld [vmem:[%s301 + $0x60] sm:$0xf]
      %v1071 = vld [vmem:[%s301 + $0x64] sm:$0xf]
      %v1072 = vld [vmem:[%s301 + $0x68] sm:$0xf]
      %v1073 = vld [vmem:[%s301 + $0x6c] sm:$0xf]
      %v1074 = vld [vmem:[%s301 + $0x70] sm:$0xf]
      %v1075 = vld [vmem:[%s301 + $0x74] sm:$0xf]
      %v1076 = vld [vmem:[%s301 + $0x78] sm:$0xf]
      %v1077 = vld [vmem:[%s301 + $0x7c] sm:$0xf]
      %v1078 = vld [vmem:[%s301 + $0x80] sm:$0xf]
      %v1079 = vld [vmem:[%s301 + $0x84] sm:$0xf]
      %v1080 = vld [vmem:[%s301 + $0x88] sm:$0xf]
      %v1081 = vld [vmem:[%s301 + $0x8c] sm:$0xf]
      %v1082 = vld [vmem:[%s301 + $0x90] sm:$0xf]
      %v1083 = vld [vmem:[%s301 + $0x94] sm:$0xf]
      %v1084 = vld [vmem:[%s301 + $0x98] sm:$0xf]
      %v1085 = vld [vmem:[%s301 + $0x9c] sm:$0xf]
      %v1086 = vld [vmem:[%s301 + $0xa0] sm:$0xf]
      %v1087 = vld [vmem:[%s301 + $0xa4] sm:$0xf]
      %v1088 = vld [vmem:[%s301 + $0xa8] sm:$0xf]
      %v1089 = vld [vmem:[%s301 + $0xac] sm:$0xf]
      %v1090 = vld [vmem:[%s301 + $0xb0] sm:$0xf]
      %v1091 = vld [vmem:[%s301 + $0xb4] sm:$0xf]
      %v1092 = vld [vmem:[%s301 + $0xb8] sm:$0xf]
      %v1093 = vld [vmem:[%s301 + $0xbc] sm:$0xf]
      %v1094 = vld [vmem:[%s301 + $0xc0] sm:$0xf]
      %v1095 = vld [vmem:[%s301 + $0xc4] sm:$0xf]
      %v1096 = vld [vmem:[%s301 + $0xc8] sm:$0xf]
      %v1097 = vld [vmem:[%s301 + $0xcc] sm:$0xf]
      %v1098 = vld [vmem:[%s301 + $0xd0] sm:$0xf]
      %v1099 = vld [vmem:[%s301 + $0xd4] sm:$0xf]
      %v1100 = vld [vmem:[%s301 + $0xd8] sm:$0xf]
      %v1101 = vld [vmem:[%s301 + $0xdc] sm:$0xf]
      %v1102 = vld [vmem:[%s301 + $0xe0] sm:$0xf]
      %v1103 = vld [vmem:[%s301 + $0xe4] sm:$0xf]
      %v1104 = vld [vmem:[%s301 + $0xe8] sm:$0xf]
      %v1105 = vld [vmem:[%s301 + $0xec] sm:$0xf]
      %v1106 = vld [vmem:[%s301 + $0xf0] sm:$0xf]
      %v1107 = vld [vmem:[%s301 + $0xf4] sm:$0xf]
      %v1108 = vld [vmem:[%s301 + $0xf8] sm:$0xf]
      %v1109 = vld [vmem:[%s301 + $0xfc] sm:$0xf]
      %v1110 = vld [vmem:[%s301 + $0x100] sm:$0xf]
      %v1111 = vld [vmem:[%s301 + $0x104] sm:$0xf]
      %v1112 = vld [vmem:[%s301 + $0x108] sm:$0xf]
      %v1113 = vld [vmem:[%s301 + $0x10c] sm:$0xf]
      %v1114 = vld [vmem:[%s301 + $0x110] sm:$0xf]
      %v1115 = vld [vmem:[%s301 + $0x114] sm:$0xf]
      %v1116 = vld [vmem:[%s301 + $0x118] sm:$0xf]
      %v1117 = vld [vmem:[%s301 + $0x11c] sm:$0xf]
      %v1118 = vld [vmem:[%s301 + $0x120] sm:$0xf]
      %v1119 = vld [vmem:[%s301 + $0x124] sm:$0xf]
      %v1194 = vunpack.c.l.b16 %v1046
      %v1195 = vunpack.c.l.b16 %v1047
      %v1196 = vunpack.c.l.b16 %v1048
      %v1197 = vunpack.c.l.b16 %v1049
      %v1198 = vunpack.c.l.b16 %v1050
      %v1199 = vunpack.c.l.b16 %v1051
      %v1200 = vunpack.c.l.b16 %v1052
      %v1201 = vunpack.c.l.b16 %v1053
      %v1202 = vunpack.c.l.b16 %v1054
      %v1203 = vunpack.c.l.b16 %v1055
      %v1204 = vunpack.c.l.b16 %v1056
      %v1205 = vunpack.c.l.b16 %v1057
      %v1206 = vunpack.c.l.b16 %v1058
      %v1207 = vunpack.c.l.b16 %v1059
      %v1208 = vunpack.c.l.b16 %v1060
      %v1209 = vunpack.c.l.b16 %v1061
      %v1210 = vunpack.c.l.b16 %v1062
      %v1211 = vunpack.c.l.b16 %v1063
      %v1212 = vunpack.c.l.b16 %v1064
      %v1213 = vunpack.c.l.b16 %v1065
      %v1214 = vunpack.c.l.b16 %v1066
      %v1215 = vunpack.c.l.b16 %v1067
      %v1216 = vunpack.c.l.b16 %v1068
      %v1217 = vunpack.c.l.b16 %v1069
      %v1218 = vunpack.c.l.b16 %v1070
      %v1219 = vunpack.c.l.b16 %v1071
      %v1220 = vunpack.c.l.b16 %v1072
      %v1221 = vunpack.c.l.b16 %v1073
      %v1222 = vunpack.c.l.b16 %v1074
      %v1223 = vunpack.c.l.b16 %v1075
      %v1224 = vunpack.c.l.b16 %v1076
      %v1225 = vunpack.c.l.b16 %v1077
      %v1226 = vunpack.c.l.b16 %v1078
      %v1227 = vunpack.c.l.b16 %v1079
      %v1228 = vunpack.c.l.b16 %v1080
      %v1229 = vunpack.c.l.b16 %v1081
      %v1230 = vunpack.c.l.b16 %v1082
      %v1231 = vunpack.c.l.b16 %v1083
      %v1232 = vunpack.c.l.b16 %v1084
      %v1233 = vunpack.c.l.b16 %v1085
      %v1234 = vunpack.c.l.b16 %v1086
      %v1235 = vunpack.c.l.b16 %v1087
      %v1236 = vunpack.c.l.b16 %v1088
      %v1237 = vunpack.c.l.b16 %v1089
      %v1238 = vunpack.c.l.b16 %v1090
      %v1239 = vunpack.c.l.b16 %v1091
      %v1240 = vunpack.c.l.b16 %v1092
      %v1241 = vunpack.c.l.b16 %v1093
      %v1242 = vunpack.c.l.b16 %v1094
      %v1243 = vunpack.c.l.b16 %v1095
      %v1244 = vunpack.c.l.b16 %v1096
      %v1245 = vunpack.c.l.b16 %v1097
      %v1246 = vunpack.c.l.b16 %v1098
      %v1247 = vunpack.c.l.b16 %v1099
      %v1248 = vunpack.c.l.b16 %v1100
      %v1249 = vunpack.c.l.b16 %v1101
      %v1250 = vunpack.c.l.b16 %v1102
      %v1251 = vunpack.c.l.b16 %v1103
      %v1252 = vunpack.c.l.b16 %v1104
      %v1253 = vunpack.c.l.b16 %v1105
      %v1254 = vunpack.c.l.b16 %v1106
      %v1255 = vunpack.c.l.b16 %v1107
      %v1256 = vunpack.c.l.b16 %v1108
      %v1257 = vunpack.c.l.b16 %v1109
      %v1258 = vunpack.c.l.b16 %v1110
      %v1259 = vunpack.c.l.b16 %v1111
      %v1260 = vunpack.c.l.b16 %v1112
      %v1261 = vunpack.c.l.b16 %v1113
      %v1262 = vunpack.c.l.b16 %v1114
      %v1263 = vunpack.c.l.b16 %v1115
      %v1264 = vunpack.c.l.b16 %v1116
      %v1265 = vunpack.c.l.b16 %v1117
      %v1266 = vunpack.c.l.b16 %v1118
      %v1267 = vunpack.c.l.b16 %v1119
      %v1268 = vpack.c.b16 %v1195, %v1194
      %v1269 = vpack.c.b16 %v1197, %v1196
      %v1270 = vpack.c.b16 %v1199, %v1198
      %v1271 = vpack.c.b16 %v1201, %v1200
      %v1272 = vpack.c.b16 %v1203, %v1202
      %v1273 = vpack.c.b16 %v1205, %v1204
      %v1274 = vpack.c.b16 %v1207, %v1206
      %v1275 = vpack.c.b16 %v1209, %v1208
      %v1276 = vpack.c.b16 %v1211, %v1210
      %v1277 = vpack.c.b16 %v1213, %v1212
      %v1278 = vpack.c.b16 %v1215, %v1214
      %v1279 = vpack.c.b16 %v1217, %v1216
      %v1280 = vpack.c.b16 %v1219, %v1218
      %v1281 = vpack.c.b16 %v1221, %v1220
      %v1282 = vpack.c.b16 %v1223, %v1222
      %v1283 = vpack.c.b16 %v1225, %v1224
      %v1284 = vpack.c.b16 %v1227, %v1226
      %v1285 = vpack.c.b16 %v1229, %v1228
      %v1286 = vpack.c.b16 %v1231, %v1230
      %v1287 = vpack.c.b16 %v1233, %v1232
      %v1288 = vpack.c.b16 %v1235, %v1234
      %v1289 = vpack.c.b16 %v1237, %v1236
      %v1290 = vpack.c.b16 %v1239, %v1238
      %v1291 = vpack.c.b16 %v1241, %v1240
      %v1292 = vpack.c.b16 %v1243, %v1242
      %v1293 = vpack.c.b16 %v1245, %v1244
      %v1294 = vpack.c.b16 %v1247, %v1246
      %v1295 = vpack.c.b16 %v1249, %v1248
      %v1296 = vpack.c.b16 %v1251, %v1250
      %v1297 = vpack.c.b16 %v1253, %v1252
      %v1298 = vpack.c.b16 %v1255, %v1254
      %v1299 = vpack.c.b16 %v1257, %v1256
      %v1300 = vpack.c.b16 %v1259, %v1258
      %v1301 = vpack.c.b16 %v1261, %v1260
      %v1302 = vpack.c.b16 %v1263, %v1262
      %v1303 = vpack.c.b16 %v1265, %v1264
      %v1304 = vpack.c.b16 %v1267, %v1266
      %v1306 = vsel %vm605, %v1268, 0
      %v1309 = vsel %vm605, %v1269, 0
      %v1312 = vsel %vm605, %v1270, 0
      %v1315 = vsel %vm605, %v1271, 0
      %v1318 = vsel %vm605, %v1272, 0
      %v1321 = vsel %vm605, %v1273, 0
      %v1324 = vsel %vm605, %v1274, 0
      %v1327 = vsel %vm605, %v1275, 0
      %v1330 = vsel %vm605, %v1276, 0
      %v1333 = vsel %vm605, %v1277, 0
      %v1336 = vsel %vm605, %v1278, 0
      %v1339 = vsel %vm605, %v1279, 0
      %v1342 = vsel %vm605, %v1280, 0
      %v1345 = vsel %vm605, %v1281, 0
      %v1348 = vsel %vm605, %v1282, 0
      %v1351 = vsel %vm605, %v1283, 0
      %v1354 = vsel %vm605, %v1284, 0
      %v1357 = vsel %vm605, %v1285, 0
      %v1360 = vsel %vm605, %v1286, 0
      %v1363 = vsel %vm605, %v1287, 0
      %v1366 = vsel %vm605, %v1288, 0
      %v1369 = vsel %vm605, %v1289, 0
      %v1372 = vsel %vm605, %v1290, 0
      %v1375 = vsel %vm605, %v1291, 0
      %v1378 = vsel %vm605, %v1292, 0
      %v1381 = vsel %vm605, %v1293, 0
      %v1384 = vsel %vm605, %v1294, 0
      %v1387 = vsel %vm605, %v1295, 0
      %v1390 = vsel %vm605, %v1296, 0
      %v1393 = vsel %vm605, %v1297, 0
      %v1396 = vsel %vm605, %v1298, 0
      %v1399 = vsel %vm605, %v1299, 0
      %v1402 = vsel %vm605, %v1300, 0
      %v1405 = vsel %vm605, %v1301, 0
      %v1408 = vsel %vm605, %v1302, 0
      %v1411 = vsel %vm605, %v1303, 0
      %v1414 = vsel %vm605, %v1304, 0
      %1416 = vmatprep.subr.bf16.mxu0 0
      %1417 = vmatpush1.bf16.msra.mxu0 %v599
      %1418 = vmatprep.subr.bf16.mxu0 0
      %1419 = vmatpush1.bf16.msra.mxu0 %v600
      %1420 = vmatprep.subr.bf16.mxu0 0
      %1421 = vmatpush1.bf16.msra.mxu0 %v601
      %1422 = vmatprep.subr.bf16.mxu0 0
      %1423 = vmatpush1.bf16.msra.mxu0 0
      %1424 = vmatprep.subr.bf16.mxu0 0
      %1425 = vmatpush1.bf16.msra.mxu0 0
      %1426 = vmatprep.subr.bf16.mxu0 0
      %1427 = vmatpush1.bf16.msra.mxu0 0
      %1428 = vmatprep.subr.bf16.mxu0 0
      %1429 = vmatpush1.bf16.msra.mxu0 0
      %1430 = vmatprep.subr.bf16.mxu0 0
      %1431 = vmatpush1.bf16.msra.mxu0 0
      %1432 = vmatprep.subr.bf16.mxu0 0
      %1433 = vmatpush1.bf16.msra.mxu0 0
      %1434 = vmatprep.subr.bf16.mxu0 0
      %1435 = vmatpush1.bf16.msra.mxu0 0
      %1436 = vmatprep.subr.bf16.mxu0 0
      %1437 = vmatpush1.bf16.msra.mxu0 0
      %1438 = vmatprep.subr.bf16.mxu0 0
      %1439 = vmatpush1.bf16.msra.mxu0 0
      %1440 = vmatprep.subr.bf16.mxu0 0
      %1441 = vmatpush1.bf16.msra.mxu0 0
      %1442 = vmatprep.subr.bf16.mxu0 0
      %1443 = vmatpush1.bf16.msra.mxu0 0
      %1444 = vmatprep.subr.bf16.mxu0 0
      %1445 = vmatpush1.bf16.msra.mxu0 0
      %1446 = vmatprep.subr.bf16.mxu0 0
      %1447 = vmatpush1.bf16.msra.mxu0 0
      %1448 = vmatprep.mubr.bf16.mxu0 0
      %1449 = vmatmul.mubr.bf16.gmra.mrb[0].mxu0 %v1306
      %v1450 = vpop.f32.mrb[0].mxu0
      %v1451 = vadd.f32 0.0, %v1450
      %v1452 = vpop.f32.mrb[0].mxu0
      %v1453 = vpop.f32.mrb[0].mxu0
      %v1454 = vadd.f32 0.0, %v1453
      %v1455 = vpop.f32.mrb[0].mxu0
      %1456 = vmatprep.mubr.bf16.mxu0 0
      %1457 = vmatmul.mubr.bf16.gmra.mrb[0].mxu0 %v1309
      %v1458 = vpop.f32.mrb[0].mxu0
      %v1459 = vadd.f32 0.0, %v1458
      %v1460 = vpop.f32.mrb[0].mxu0
      %v1461 = vpop.f32.mrb[0].mxu0
      %v1462 = vadd.f32 0.0, %v1461
      %v1463 = vpop.f32.mrb[0].mxu0
      %1464 = vmatprep.mubr.bf16.mxu0 0
      %1465 = vmatmul.mubr.bf16.gmra.mrb[0].mxu0 %v1312
      %v1466 = vpop.f32.mrb[0].mxu0
      %v1467 = vadd.f32 0.0, %v1466
      %v1468 = vpop.f32.mrb[0].mxu0
      %v1469 = vpop.f32.mrb[0].mxu0
      %v1470 = vadd.f32 0.0, %v1469
      %v1471 = vpop.f32.mrb[0].mxu0
      %1472 = vmatprep.mubr.bf16.mxu0 0
      %1473 = vmatmul.mubr.bf16.gmra.mrb[0].mxu0 %v1315
      %v1474 = vpop.f32.mrb[0].mxu0
      %v1475 = vadd.f32 0.0, %v1474
      %v1476 = vpop.f32.mrb[0].mxu0
      %v1477 = vpop.f32.mrb[0].mxu0
      %v1478 = vadd.f32 0.0, %v1477
      %v1479 = vpop.f32.mrb[0].mxu0
      %1480 = vmatprep.mubr.bf16.mxu0 0
      %1481 = vmatmul.mubr.bf16.gmra.mrb[0].mxu0 %v1318
      %v1482 = vpop.f32.mrb[0].mxu0
      %v1483 = vadd.f32 0.0, %v1482
      %v1484 = vpop.f32.mrb[0].mxu0
      %v1485 = vpop.f32.mrb[0].mxu0
      %v1486 = vadd.f32 0.0, %v1485
      %v1487 = vpop.f32.mrb[0].mxu0
      %1488 = vmatprep.mubr.bf16.mxu0 0
      %1489 = vmatmul.mubr.bf16.gmra.mrb[0].mxu0 %v1321
      %v1490 = vpop.f32.mrb[0].mxu0
      %v1491 = vadd.f32 0.0, %v1490
      %v1492 = vpop.f32.mrb[0].mxu0
      %v1493 = vpop.f32.mrb[0].mxu0
      %v1494 = vadd.f32 0.0, %v1493
      %v1495 = vpop.f32.mrb[0].mxu0
      %1496 = vmatprep.mubr.bf16.mxu0 0
      %1497 = vmatmul.mubr.bf16.gmra.mrb[0].mxu0 %v1324
      %v1498 = vpop.f32.mrb[0].mxu0
      %v1499 = vadd.f32 0.0, %v1498
      %v1500 = vpop.f32.mrb[0].mxu0
      %v1501 = vpop.f32.mrb[0].mxu0
      %v1502 = vadd.f32 0.0, %v1501
      %v1503 = vpop.f32.mrb[0].mxu0
      %1504 = vmatprep.mubr.bf16.mxu0 0
      %1505 = vmatmul.mubr.bf16.gmra.mrb[0].mxu0 %v1327
      %v1506 = vpop.f32.mrb[0].mxu0
      %v1507 = vadd.f32 0.0, %v1506
      %v1508 = vpop.f32.mrb[0].mxu0
      %v1509 = vpop.f32.mrb[0].mxu0
      %v1510 = vadd.f32 0.0, %v1509
      %v1511 = vpop.f32.mrb[0].mxu0
      %1512 = vmatprep.mubr.bf16.mxu0 0
      %1513 = vmatmul.mubr.bf16.gmra.mrb[0].mxu0 %v1330
      %v1514 = vpop.f32.mrb[0].mxu0
      %v1515 = vadd.f32 0.0, %v1514
      %v1516 = vpop.f32.mrb[0].mxu0
      %v1517 = vpop.f32.mrb[0].mxu0
      %v1518 = vadd.f32 0.0, %v1517
      %v1519 = vpop.f32.mrb[0].mxu0
      %1520 = vmatprep.mubr.bf16.mxu0 0
      %1521 = vmatmul.mubr.bf16.gmra.mrb[0].mxu0 %v1333
      %v1522 = vpop.f32.mrb[0].mxu0
      %v1523 = vadd.f32 0.0, %v1522
      %v1524 = vpop.f32.mrb[0].mxu0
      %v1525 = vpop.f32.mrb[0].mxu0
      %v1526 = vadd.f32 0.0, %v1525
      %v1527 = vpop.f32.mrb[0].mxu0
      %1528 = vmatprep.mubr.bf16.mxu0 0
      %1529 = vmatmul.mubr.bf16.gmra.mrb[0].mxu0 %v1336
      %v1530 = vpop.f32.mrb[0].mxu0
      %v1531 = vadd.f32 0.0, %v1530
      %v1532 = vpop.f32.mrb[0].mxu0
      %v1533 = vpop.f32.mrb[0].mxu0
      %v1534 = vadd.f32 0.0, %v1533
      %v1535 = vpop.f32.mrb[0].mxu0
      %1536 = vmatprep.mubr.bf16.mxu0 0
      %1537 = vmatmul.mubr.bf16.gmra.mrb[0].mxu0 %v1339
      %v1538 = vpop.f32.mrb[0].mxu0
      %v1539 = vadd.f32 0.0, %v1538
      %v1540 = vpop.f32.mrb[0].mxu0
      %v1541 = vpop.f32.mrb[0].mxu0
      %v1542 = vadd.f32 0.0, %v1541
      %v1543 = vpop.f32.mrb[0].mxu0
      %1544 = vmatprep.mubr.bf16.mxu0 0
      %1545 = vmatmul.mubr.bf16.gmra.mrb[0].mxu0 %v1342
      %v1546 = vpop.f32.mrb[0].mxu0
      %v1547 = vadd.f32 0.0, %v1546
      %v1548 = vpop.f32.mrb[0].mxu0
      %v1549 = vpop.f32.mrb[0].mxu0
      %v1550 = vadd.f32 0.0, %v1549
      %v1551 = vpop.f32.mrb[0].mxu0
      %1552 = vmatprep.mubr.bf16.mxu0 0
      %1553 = vmatmul.mubr.bf16.gmra.mrb[0].mxu0 %v1345
      %v1554 = vpop.f32.mrb[0].mxu0
      %v1555 = vadd.f32 0.0, %v1554
      %v1556 = vpop.f32.mrb[0].mxu0
      %v1557 = vpop.f32.mrb[0].mxu0
      %v1558 = vadd.f32 0.0, %v1557
      %v1559 = vpop.f32.mrb[0].mxu0
      %1560 = vmatprep.mubr.bf16.mxu0 0
      %1561 = vmatmul.mubr.bf16.gmra.mrb[0].mxu0 %v1348
      %v1562 = vpop.f32.mrb[0].mxu0
      %v1563 = vadd.f32 0.0, %v1562
      %v1564 = vpop.f32.mrb[0].mxu0
      %v1565 = vpop.f32.mrb[0].mxu0
      %v1566 = vadd.f32 0.0, %v1565
      %v1567 = vpop.f32.mrb[0].mxu0
      %1568 = vmatprep.mubr.bf16.mxu0 0
      %1569 = vmatmul.mubr.bf16.gmra.mrb[0].mxu0 %v1351
      %v1570 = vpop.f32.mrb[0].mxu0
      %v1571 = vadd.f32 0.0, %v1570
      %v1572 = vpop.f32.mrb[0].mxu0
      %v1573 = vpop.f32.mrb[0].mxu0
      %v1574 = vadd.f32 0.0, %v1573
      %v1575 = vpop.f32.mrb[0].mxu0
      %1576 = vmatprep.mubr.bf16.mxu0 0
      %1577 = vmatmul.mubr.bf16.gmra.mrb[0].mxu0 %v1354
      %v1578 = vpop.f32.mrb[0].mxu0
      %v1579 = vadd.f32 0.0, %v1578
      %v1580 = vpop.f32.mrb[0].mxu0
      %v1581 = vpop.f32.mrb[0].mxu0
      %v1582 = vadd.f32 0.0, %v1581
      %v1583 = vpop.f32.mrb[0].mxu0
      %1584 = vmatprep.mubr.bf16.mxu0 0
      %1585 = vmatmul.mubr.bf16.gmra.mrb[0].mxu0 %v1357
      %v1586 = vpop.f32.mrb[0].mxu0
      %v1587 = vadd.f32 0.0, %v1586
      %v1588 = vpop.f32.mrb[0].mxu0
      %v1589 = vpop.f32.mrb[0].mxu0
      %v1590 = vadd.f32 0.0, %v1589
      %v1591 = vpop.f32.mrb[0].mxu0
      %1592 = vmatprep.mubr.bf16.mxu0 0
      %1593 = vmatmul.mubr.bf16.gmra.mrb[0].mxu0 %v1360
      %v1594 = vpop.f32.mrb[0].mxu0
      %v1595 = vadd.f32 0.0, %v1594
      %v1596 = vpop.f32.mrb[0].mxu0
      %v1597 = vpop.f32.mrb[0].mxu0
      %v1598 = vadd.f32 0.0, %v1597
      %v1599 = vpop.f32.mrb[0].mxu0
      %1600 = vmatprep.mubr.bf16.mxu0 0
      %1601 = vmatmul.mubr.bf16.gmra.mrb[0].mxu0 %v1363
      %v1602 = vpop.f32.mrb[0].mxu0
      %v1603 = vadd.f32 0.0, %v1602
      %v1604 = vpop.f32.mrb[0].mxu0
      %v1605 = vpop.f32.mrb[0].mxu0
      %v1606 = vadd.f32 0.0, %v1605
      %v1607 = vpop.f32.mrb[0].mxu0
      %1608 = vmatprep.mubr.bf16.mxu0 0
      %1609 = vmatmul.mubr.bf16.gmra.mrb[0].mxu0 %v1366
      %v1610 = vpop.f32.mrb[0].mxu0
      %v1611 = vadd.f32 0.0, %v1610
      %v1612 = vpop.f32.mrb[0].mxu0
      %v1613 = vpop.f32.mrb[0].mxu0
      %v1614 = vadd.f32 0.0, %v1613
      %v1615 = vpop.f32.mrb[0].mxu0
      %1616 = vmatprep.mubr.bf16.mxu0 0
      %1617 = vmatmul.mubr.bf16.gmra.mrb[0].mxu0 %v1369
      %v1618 = vpop.f32.mrb[0].mxu0
      %v1619 = vadd.f32 0.0, %v1618
      %v1620 = vpop.f32.mrb[0].mxu0
      %v1621 = vpop.f32.mrb[0].mxu0
      %v1622 = vadd.f32 0.0, %v1621
      %v1623 = vpop.f32.mrb[0].mxu0
      %1624 = vmatprep.mubr.bf16.mxu0 0
      %1625 = vmatmul.mubr.bf16.gmra.mrb[0].mxu0 %v1372
      %v1626 = vpop.f32.mrb[0].mxu0
      %v1627 = vadd.f32 0.0, %v1626
      %v1628 = vpop.f32.mrb[0].mxu0
      %v1629 = vpop.f32.mrb[0].mxu0
      %v1630 = vadd.f32 0.0, %v1629
      %v1631 = vpop.f32.mrb[0].mxu0
      %1632 = vmatprep.mubr.bf16.mxu0 0
      %1633 = vmatmul.mubr.bf16.gmra.mrb[0].mxu0 %v1375
      %v1634 = vpop.f32.mrb[0].mxu0
      %v1635 = vadd.f32 0.0, %v1634
      %v1636 = vpop.f32.mrb[0].mxu0
      %v1637 = vpop.f32.mrb[0].mxu0
      %v1638 = vadd.f32 0.0, %v1637
      %v1639 = vpop.f32.mrb[0].mxu0
      %1640 = vmatprep.mubr.bf16.mxu0 0
      %1641 = vmatmul.mubr.bf16.gmra.mrb[0].mxu0 %v1378
      %v1642 = vpop.f32.mrb[0].mxu0
      %v1643 = vadd.f32 0.0, %v1642
      %v1644 = vpop.f32.mrb[0].mxu0
      %v1645 = vpop.f32.mrb[0].mxu0
      %v1646 = vadd.f32 0.0, %v1645
      %v1647 = vpop.f32.mrb[0].mxu0
      %1648 = vmatprep.mubr.bf16.mxu0 0
      %1649 = vmatmul.mubr.bf16.gmra.mrb[0].mxu0 %v1381
      %v1650 = vpop.f32.mrb[0].mxu0
      %v1651 = vadd.f32 0.0, %v1650
      %v1652 = vpop.f32.mrb[0].mxu0
      %v1653 = vpop.f32.mrb[0].mxu0
      %v1654 = vadd.f32 0.0, %v1653
      %v1655 = vpop.f32.mrb[0].mxu0
      %1656 = vmatprep.mubr.bf16.mxu0 0
      %1657 = vmatmul.mubr.bf16.gmra.mrb[0].mxu0 %v1384
      %v1658 = vpop.f32.mrb[0].mxu0
      %v1659 = vadd.f32 0.0, %v1658
      %v1660 = vpop.f32.mrb[0].mxu0
      %v1661 = vpop.f32.mrb[0].mxu0
      %v1662 = vadd.f32 0.0, %v1661
      %v1663 = vpop.f32.mrb[0].mxu0
      %1664 = vmatprep.mubr.bf16.mxu0 0
      %1665 = vmatmul.mubr.bf16.gmra.mrb[0].mxu0 %v1387
      %v1666 = vpop.f32.mrb[0].mxu0
      %v1667 = vadd.f32 0.0, %v1666
      %v1668 = vpop.f32.mrb[0].mxu0
      %v1669 = vpop.f32.mrb[0].mxu0
      %v1670 = vadd.f32 0.0, %v1669
      %v1671 = vpop.f32.mrb[0].mxu0
      %1672 = vmatprep.mubr.bf16.mxu0 0
      %1673 = vmatmul.mubr.bf16.gmra.mrb[0].mxu0 %v1390
      %v1674 = vpop.f32.mrb[0].mxu0
      %v1675 = vadd.f32 0.0, %v1674
      %v1676 = vpop.f32.mrb[0].mxu0
      %v1677 = vpop.f32.mrb[0].mxu0
      %v1678 = vadd.f32 0.0, %v1677
      %v1679 = vpop.f32.mrb[0].mxu0
      %1680 = vmatprep.mubr.bf16.mxu0 0
      %1681 = vmatmul.mubr.bf16.gmra.mrb[0].mxu0 %v1393
      %v1682 = vpop.f32.mrb[0].mxu0
      %v1683 = vadd.f32 0.0, %v1682
      %v1684 = vpop.f32.mrb[0].mxu0
      %v1685 = vpop.f32.mrb[0].mxu0
      %v1686 = vadd.f32 0.0, %v1685
      %v1687 = vpop.f32.mrb[0].mxu0
      %1688 = vmatprep.mubr.bf16.mxu0 0
      %1689 = vmatmul.mubr.bf16.gmra.mrb[0].mxu0 %v1396
      %v1690 = vpop.f32.mrb[0].mxu0
      %v1691 = vadd.f32 0.0, %v1690
      %v1692 = vpop.f32.mrb[0].mxu0
      %v1693 = vpop.f32.mrb[0].mxu0
      %v1694 = vadd.f32 0.0, %v1693
      %v1695 = vpop.f32.mrb[0].mxu0
      %1696 = vmatprep.mubr.bf16.mxu0 0
      %1697 = vmatmul.mubr.bf16.gmra.mrb[0].mxu0 %v1399
      %v1698 = vpop.f32.mrb[0].mxu0
      %v1699 = vadd.f32 0.0, %v1698
      %v1700 = vpop.f32.mrb[0].mxu0
      %v1701 = vpop.f32.mrb[0].mxu0
      %v1702 = vadd.f32 0.0, %v1701
      %v1703 = vpop.f32.mrb[0].mxu0
      %1704 = vmatprep.mubr.bf16.mxu0 0
      %1705 = vmatmul.mubr.bf16.gmra.mrb[0].mxu0 %v1402
      %v1706 = vpop.f32.mrb[0].mxu0
      %v1707 = vadd.f32 0.0, %v1706
      %v1708 = vpop.f32.mrb[0].mxu0
      %v1709 = vpop.f32.mrb[0].mxu0
      %v1710 = vadd.f32 0.0, %v1709
      %v1711 = vpop.f32.mrb[0].mxu0
      %1712 = vmatprep.mubr.bf16.mxu0 0
      %1713 = vmatmul.mubr.bf16.gmra.mrb[0].mxu0 %v1405
      %v1714 = vpop.f32.mrb[0].mxu0
      %v1715 = vadd.f32 0.0, %v1714
      %v1716 = vpop.f32.mrb[0].mxu0
      %v1717 = vpop.f32.mrb[0].mxu0
      %v1718 = vadd.f32 0.0, %v1717
      %v1719 = vpop.f32.mrb[0].mxu0
      %1720 = vmatprep.mubr.bf16.mxu0 0
      %1721 = vmatmul.mubr.bf16.gmra.mrb[0].mxu0 %v1408
      %v1722 = vpop.f32.mrb[0].mxu0
      %v1723 = vadd.f32 0.0, %v1722
      %v1724 = vpop.f32.mrb[0].mxu0
      %v1725 = vpop.f32.mrb[0].mxu0
      %v1726 = vadd.f32 0.0, %v1725
      %v1727 = vpop.f32.mrb[0].mxu0
      %1728 = vmatprep.mubr.bf16.mxu0 0
      %1729 = vmatmul.mubr.bf16.gmra.mrb[0].mxu0 %v1411
      %v1730 = vpop.f32.mrb[0].mxu0
      %v1731 = vadd.f32 0.0, %v1730
      %v1732 = vpop.f32.mrb[0].mxu0
      %v1733 = vpop.f32.mrb[0].mxu0
      %v1734 = vadd.f32 0.0, %v1733
      %v1735 = vpop.f32.mrb[0].mxu0
      %1736 = vmatprep.mubr.bf16.mxu0 0
      %1737 = vmatmul.mubr.bf16.gmra.mrb[0].mxu0 %v1414
      %v1738 = vpop.f32.mrb[0].mxu0
      %v1739 = vadd.f32 0.0, %v1738
      %v1740 = vpop.f32.mrb[0].mxu0
      %v1741 = vpop.f32.mrb[0].mxu0
      %v1742 = vadd.f32 0.0, %v1741
      %v1743 = vpop.f32.mrb[0].mxu0
      %1744 = vdwg.mxu0
      %v1745 = vmax.f32 %v752, %v1451
      %v1746 = vmax.f32 %v755, %v1454
      %v1747 = vmax.f32 %v760, %v1459
      %v1748 = vmax.f32 %v763, %v1462
      %v1749 = vmax.f32 %v768, %v1467
      %v1750 = vmax.f32 %v771, %v1470
      %v1751 = vmax.f32 %v776, %v1475
      %v1752 = vmax.f32 %v779, %v1478
      %v1753 = vmax.f32 %v784, %v1483
      %v1754 = vmax.f32 %v787, %v1486
      %v1755 = vmax.f32 %v792, %v1491
      %v1756 = vmax.f32 %v795, %v1494
      %v1757 = vmax.f32 %v800, %v1499
      %v1758 = vmax.f32 %v803, %v1502
      %v1759 = vmax.f32 %v808, %v1507
      %v1760 = vmax.f32 %v811, %v1510
      %v1761 = vmax.f32 %v816, %v1515
      %v1762 = vmax.f32 %v819, %v1518
      %v1763 = vmax.f32 %v824, %v1523
      %v1764 = vmax.f32 %v827, %v1526
      %v1765 = vmax.f32 %v832, %v1531
      %v1766 = vmax.f32 %v835, %v1534
      %v1767 = vmax.f32 %v840, %v1539
      %v1768 = vmax.f32 %v843, %v1542
      %v1769 = vmax.f32 %v848, %v1547
      %v1770 = vmax.f32 %v851, %v1550
      %v1771 = vmax.f32 %v856, %v1555
      %v1772 = vmax.f32 %v859, %v1558
      %v1773 = vmax.f32 %v864, %v1563
      %v1774 = vmax.f32 %v867, %v1566
      %v1775 = vmax.f32 %v872, %v1571
      %v1776 = vmax.f32 %v875, %v1574
      %v1777 = vmax.f32 %v880, %v1579
      %v1778 = vmax.f32 %v883, %v1582
      %v1779 = vmax.f32 %v888, %v1587
      %v1780 = vmax.f32 %v891, %v1590
      %v1781 = vmax.f32 %v896, %v1595
      %v1782 = vmax.f32 %v899, %v1598
      %v1783 = vmax.f32 %v904, %v1603
      %v1784 = vmax.f32 %v907, %v1606
      %v1785 = vmax.f32 %v912, %v1611
      %v1786 = vmax.f32 %v915, %v1614
      %v1787 = vmax.f32 %v920, %v1619
      %v1788 = vmax.f32 %v923, %v1622
      %v1789 = vmax.f32 %v928, %v1627
      %v1790 = vmax.f32 %v931, %v1630
      %v1791 = vmax.f32 %v936, %v1635
      %v1792 = vmax.f32 %v939, %v1638
      %v1793 = vmax.f32 %v944, %v1643
      %v1794 = vmax.f32 %v947, %v1646
      %v1795 = vmax.f32 %v952, %v1651
      %v1796 = vmax.f32 %v955, %v1654
      %v1797 = vmax.f32 %v960, %v1659
      %v1798 = vmax.f32 %v963, %v1662
      %v1799 = vmax.f32 %v968, %v1667
      %v1800 = vmax.f32 %v971, %v1670
      %v1801 = vmax.f32 %v976, %v1675
      %v1802 = vmax.f32 %v979, %v1678
      %v1803 = vmax.f32 %v984, %v1683
      %v1804 = vmax.f32 %v987, %v1686
      %v1805 = vmax.f32 %v992, %v1691
      %v1806 = vmax.f32 %v995, %v1694
      %v1807 = vmax.f32 %v1000, %v1699
      %v1808 = vmax.f32 %v1003, %v1702
      %v1809 = vmax.f32 %v1008, %v1707
      %v1810 = vmax.f32 %v1011, %v1710
      %v1811 = vmax.f32 %v1016, %v1715
      %v1812 = vmax.f32 %v1019, %v1718
      %v1813 = vmax.f32 %v1024, %v1723
      %v1814 = vmax.f32 %v1027, %v1726
      %v1815 = vmax.f32 %v1032, %v1731
      %v1816 = vmax.f32 %v1035, %v1734
      %v1817 = vmax.f32 %v1040, %v1739
      %v1818 = vmax.f32 %v1043, %v1742
      %v1819 = vld [vmem:[%s307] sm:$0xf]
      %v1820 = vld [vmem:[%s307 + $0x4] sm:$0xf]
      %v1821 = vld [vmem:[%s307 + $0x8] sm:$0xf]
      %v1822 = vld [vmem:[%s307 + $0xc] sm:$0xf]
      %v1823 = vld [vmem:[%s307 + $0x10] sm:$0xf]
      %v1824 = vld [vmem:[%s307 + $0x14] sm:$0xf]
      %v1825 = vld [vmem:[%s307 + $0x18] sm:$0xf]
      %v1826 = vld [vmem:[%s307 + $0x1c] sm:$0xf]
      %v1827 = vld [vmem:[%s307 + $0x20] sm:$0xf]
      %v1828 = vld [vmem:[%s307 + $0x24] sm:$0xf]
      %v1829 = vld [vmem:[%s307 + $0x28] sm:$0xf]
      %v1830 = vld [vmem:[%s307 + $0x2c] sm:$0xf]
      %v1831 = vld [vmem:[%s307 + $0x30] sm:$0xf]
      %v1832 = vld [vmem:[%s307 + $0x34] sm:$0xf]
      %v1833 = vld [vmem:[%s307 + $0x38] sm:$0xf]
      %v1834 = vld [vmem:[%s307 + $0x3c] sm:$0xf]
      %v1835 = vld [vmem:[%s307 + $0x40] sm:$0xf]
      %v1836 = vld [vmem:[%s307 + $0x44] sm:$0xf]
      %v1837 = vld [vmem:[%s307 + $0x48] sm:$0xf]
      %v1838 = vld [vmem:[%s307 + $0x4c] sm:$0xf]
      %v1839 = vld [vmem:[%s307 + $0x50] sm:$0xf]
      %v1840 = vld [vmem:[%s307 + $0x54] sm:$0xf]
      %v1841 = vld [vmem:[%s307 + $0x58] sm:$0xf]
      %v1842 = vld [vmem:[%s307 + $0x5c] sm:$0xf]
      %v1843 = vld [vmem:[%s307 + $0x60] sm:$0xf]
      %v1844 = vld [vmem:[%s307 + $0x64] sm:$0xf]
      %v1845 = vld [vmem:[%s307 + $0x68] sm:$0xf]
      %v1846 = vld [vmem:[%s307 + $0x6c] sm:$0xf]
      %v1847 = vld [vmem:[%s307 + $0x70] sm:$0xf]
      %v1848 = vld [vmem:[%s307 + $0x74] sm:$0xf]
      %v1849 = vld [vmem:[%s307 + $0x78] sm:$0xf]
      %v1850 = vld [vmem:[%s307 + $0x7c] sm:$0xf]
      %v1851 = vld [vmem:[%s307 + $0x80] sm:$0xf]
      %v1852 = vld [vmem:[%s307 + $0x84] sm:$0xf]
      %v1853 = vld [vmem:[%s307 + $0x88] sm:$0xf]
      %v1854 = vld [vmem:[%s307 + $0x8c] sm:$0xf]
      %v1855 = vld [vmem:[%s307 + $0x90] sm:$0xf]
      %v1856 = vld [vmem:[%s307 + $0x94] sm:$0xf]
      %v1857 = vld [vmem:[%s307 + $0x98] sm:$0xf]
      %v1858 = vld [vmem:[%s307 + $0x9c] sm:$0xf]
      %v1859 = vld [vmem:[%s307 + $0xa0] sm:$0xf]
      %v1860 = vld [vmem:[%s307 + $0xa4] sm:$0xf]
      %v1861 = vld [vmem:[%s307 + $0xa8] sm:$0xf]
      %v1862 = vld [vmem:[%s307 + $0xac] sm:$0xf]
      %v1863 = vld [vmem:[%s307 + $0xb0] sm:$0xf]
      %v1864 = vld [vmem:[%s307 + $0xb4] sm:$0xf]
      %v1865 = vld [vmem:[%s307 + $0xb8] sm:$0xf]
      %v1866 = vld [vmem:[%s307 + $0xbc] sm:$0xf]
      %v1867 = vld [vmem:[%s307 + $0xc0] sm:$0xf]
      %v1868 = vld [vmem:[%s307 + $0xc4] sm:$0xf]
      %v1869 = vld [vmem:[%s307 + $0xc8] sm:$0xf]
      %v1870 = vld [vmem:[%s307 + $0xcc] sm:$0xf]
      %v1871 = vld [vmem:[%s307 + $0xd0] sm:$0xf]
      %v1872 = vld [vmem:[%s307 + $0xd4] sm:$0xf]
      %v1873 = vld [vmem:[%s307 + $0xd8] sm:$0xf]
      %v1874 = vld [vmem:[%s307 + $0xdc] sm:$0xf]
      %v1875 = vld [vmem:[%s307 + $0xe0] sm:$0xf]
      %v1876 = vld [vmem:[%s307 + $0xe4] sm:$0xf]
      %v1877 = vld [vmem:[%s307 + $0xe8] sm:$0xf]
      %v1878 = vld [vmem:[%s307 + $0xec] sm:$0xf]
      %v1879 = vld [vmem:[%s307 + $0xf0] sm:$0xf]
      %v1880 = vld [vmem:[%s307 + $0xf4] sm:$0xf]
      %v1881 = vld [vmem:[%s307 + $0xf8] sm:$0xf]
      %v1882 = vld [vmem:[%s307 + $0xfc] sm:$0xf]
      %v1883 = vld [vmem:[%s307 + $0x100] sm:$0xf]
      %v1884 = vld [vmem:[%s307 + $0x104] sm:$0xf]
      %v1885 = vld [vmem:[%s307 + $0x108] sm:$0xf]
      %v1886 = vld [vmem:[%s307 + $0x10c] sm:$0xf]
      %v1887 = vld [vmem:[%s307 + $0x110] sm:$0xf]
      %v1888 = vld [vmem:[%s307 + $0x114] sm:$0xf]
      %v1889 = vld [vmem:[%s307 + $0x118] sm:$0xf]
      %v1890 = vld [vmem:[%s307 + $0x11c] sm:$0xf]
      %v1891 = vld [vmem:[%s307 + $0x120] sm:$0xf]
      %v1892 = vld [vmem:[%s307 + $0x124] sm:$0xf]
      %v1967 = vunpack.c.l.b16 %v1819
      %v1968 = vunpack.c.l.b16 %v1820
      %v1969 = vunpack.c.l.b16 %v1821
      %v1970 = vunpack.c.l.b16 %v1822
      %v1971 = vunpack.c.l.b16 %v1823
      %v1972 = vunpack.c.l.b16 %v1824
      %v1973 = vunpack.c.l.b16 %v1825
      %v1974 = vunpack.c.l.b16 %v1826
      %v1975 = vunpack.c.l.b16 %v1827
      %v1976 = vunpack.c.l.b16 %v1828
      %v1977 = vunpack.c.l.b16 %v1829
      %v1978 = vunpack.c.l.b16 %v1830
      %v1979 = vunpack.c.l.b16 %v1831
      %v1980 = vunpack.c.l.b16 %v1832
      %v1981 = vunpack.c.l.b16 %v1833
      %v1982 = vunpack.c.l.b16 %v1834
      %v1983 = vunpack.c.l.b16 %v1835
      %v1984 = vunpack.c.l.b16 %v1836
      %v1985 = vunpack.c.l.b16 %v1837
      %v1986 = vunpack.c.l.b16 %v1838
      %v1987 = vunpack.c.l.b16 %v1839
      %v1988 = vunpack.c.l.b16 %v1840
      %v1989 = vunpack.c.l.b16 %v1841
      %v1990 = vunpack.c.l.b16 %v1842
      %v1991 = vunpack.c.l.b16 %v1843
      %v1992 = vunpack.c.l.b16 %v1844
      %v1993 = vunpack.c.l.b16 %v1845
      %v1994 = vunpack.c.l.b16 %v1846
      %v1995 = vunpack.c.l.b16 %v1847
      %v1996 = vunpack.c.l.b16 %v1848
      %v1997 = vunpack.c.l.b16 %v1849
      %v1998 = vunpack.c.l.b16 %v1850
      %v1999 = vunpack.c.l.b16 %v1851
      %v2000 = vunpack.c.l.b16 %v1852
      %v2001 = vunpack.c.l.b16 %v1853
      %v2002 = vunpack.c.l.b16 %v1854
      %v2003 = vunpack.c.l.b16 %v1855
      %v2004 = vunpack.c.l.b16 %v1856
      %v2005 = vunpack.c.l.b16 %v1857
      %v2006 = vunpack.c.l.b16 %v1858
      %v2007 = vunpack.c.l.b16 %v1859
      %v2008 = vunpack.c.l.b16 %v1860
      %v2009 = vunpack.c.l.b16 %v1861
      %v2010 = vunpack.c.l.b16 %v1862
      %v2011 = vunpack.c.l.b16 %v1863
      %v2012 = vunpack.c.l.b16 %v1864
      %v2013 = vunpack.c.l.b16 %v1865
      %v2014 = vunpack.c.l.b16 %v1866
      %v2015 = vunpack.c.l.b16 %v1867
      %v2016 = vunpack.c.l.b16 %v1868
      %v2017 = vunpack.c.l.b16 %v1869
      %v2018 = vunpack.c.l.b16 %v1870
      %v2019 = vunpack.c.l.b16 %v1871
      %v2020 = vunpack.c.l.b16 %v1872
      %v2021 = vunpack.c.l.b16 %v1873
      %v2022 = vunpack.c.l.b16 %v1874
      %v2023 = vunpack.c.l.b16 %v1875
      %v2024 = vunpack.c.l.b16 %v1876
      %v2025 = vunpack.c.l.b16 %v1877
      %v2026 = vunpack.c.l.b16 %v1878
      %v2027 = vunpack.c.l.b16 %v1879
      %v2028 = vunpack.c.l.b16 %v1880
      %v2029 = vunpack.c.l.b16 %v1881
      %v2030 = vunpack.c.l.b16 %v1882
      %v2031 = vunpack.c.l.b16 %v1883
      %v2032 = vunpack.c.l.b16 %v1884
      %v2033 = vunpack.c.l.b16 %v1885
      %v2034 = vunpack.c.l.b16 %v1886
      %v2035 = vunpack.c.l.b16 %v1887
      %v2036 = vunpack.c.l.b16 %v1888
      %v2037 = vunpack.c.l.b16 %v1889
      %v2038 = vunpack.c.l.b16 %v1890
      %v2039 = vunpack.c.l.b16 %v1891
      %v2040 = vunpack.c.l.b16 %v1892
      %v2041 = vpack.c.b16 %v1968, %v1967
      %v2042 = vpack.c.b16 %v1970, %v1969
      %v2043 = vpack.c.b16 %v1972, %v1971
      %v2044 = vpack.c.b16 %v1974, %v1973
      %v2045 = vpack.c.b16 %v1976, %v1975
      %v2046 = vpack.c.b16 %v1978, %v1977
      %v2047 = vpack.c.b16 %v1980, %v1979
      %v2048 = vpack.c.b16 %v1982, %v1981
      %v2049 = vpack.c.b16 %v1984, %v1983
      %v2050 = vpack.c.b16 %v1986, %v1985
      %v2051 = vpack.c.b16 %v1988, %v1987
      %v2052 = vpack.c.b16 %v1990, %v1989
      %v2053 = vpack.c.b16 %v1992, %v1991
      %v2054 = vpack.c.b16 %v1994, %v1993
      %v2055 = vpack.c.b16 %v1996, %v1995
      %v2056 = vpack.c.b16 %v1998, %v1997
      %v2057 = vpack.c.b16 %v2000, %v1999
      %v2058 = vpack.c.b16 %v2002, %v2001
      %v2059 = vpack.c.b16 %v2004, %v2003
      %v2060 = vpack.c.b16 %v2006, %v2005
      %v2061 = vpack.c.b16 %v2008, %v2007
      %v2062 = vpack.c.b16 %v2010, %v2009
      %v2063 = vpack.c.b16 %v2012, %v2011
      %v2064 = vpack.c.b16 %v2014, %v2013
      %v2065 = vpack.c.b16 %v2016, %v2015
      %v2066 = vpack.c.b16 %v2018, %v2017
      %v2067 = vpack.c.b16 %v2020, %v2019
      %v2068 = vpack.c.b16 %v2022, %v2021
      %v2069 = vpack.c.b16 %v2024, %v2023
      %v2070 = vpack.c.b16 %v2026, %v2025
      %v2071 = vpack.c.b16 %v2028, %v2027
      %v2072 = vpack.c.b16 %v2030, %v2029
      %v2073 = vpack.c.b16 %v2032, %v2031
      %v2074 = vpack.c.b16 %v2034, %v2033
      %v2075 = vpack.c.b16 %v2036, %v2035
      %v2076 = vpack.c.b16 %v2038, %v2037
      %v2077 = vpack.c.b16 %v2040, %v2039
      %v2079 = vsel %vm605, %v2041, 0
      %v2082 = vsel %vm605, %v2042, 0
      %v2085 = vsel %vm605, %v2043, 0
      %v2088 = vsel %vm605, %v2044, 0
      %v2091 = vsel %vm605, %v2045, 0
      %v2094 = vsel %vm605, %v2046, 0
      %v2097 = vsel %vm605, %v2047, 0
      %v2100 = vsel %vm605, %v2048, 0
      %v2103 = vsel %vm605, %v2049, 0
      %v2106 = vsel %vm605, %v2050, 0
      %v2109 = vsel %vm605, %v2051, 0
      %v2112 = vsel %vm605, %v2052, 0
      %v2115 = vsel %vm605, %v2053, 0
      %v2118 = vsel %vm605, %v2054, 0
      %v2121 = vsel %vm605, %v2055, 0
      %v2124 = vsel %vm605, %v2056, 0
      %v2127 = vsel %vm605, %v2057, 0
      %v2130 = vsel %vm605, %v2058, 0
      %v2133 = vsel %vm605, %v2059, 0
      %v2136 = vsel %vm605, %v2060, 0
      %v2139 = vsel %vm605, %v2061, 0
      %v2142 = vsel %vm605, %v2062, 0
      %v2145 = vsel %vm605, %v2063, 0
      %v2148 = vsel %vm605, %v2064, 0
      %v2151 = vsel %vm605, %v2065, 0
      %v2154 = vsel %vm605, %v2066, 0
      %v2157 = vsel %vm605, %v2067, 0
      %v2160 = vsel %vm605, %v2068, 0
      %v2163 = vsel %vm605, %v2069, 0
      %v2166 = vsel %vm605, %v2070, 0
      %v2169 = vsel %vm605, %v2071, 0
      %v2172 = vsel %vm605, %v2072, 0
      %v2175 = vsel %vm605, %v2073, 0
      %v2178 = vsel %vm605, %v2074, 0
      %v2181 = vsel %vm605, %v2075, 0
      %v2184 = vsel %vm605, %v2076, 0
      %v2187 = vsel %vm605, %v2077, 0
      %2189 = vmatprep.subr.bf16.mxu0 0
      %2190 = vmatpush1.bf16.msra.mxu0 %v599
      %2191 = vmatprep.subr.bf16.mxu0 0
      %2192 = vmatpush1.bf16.msra.mxu0 %v600
      %2193 = vmatprep.subr.bf16.mxu0 0
      %2194 = vmatpush1.bf16.msra.mxu0 %v601
      %2195 = vmatprep.subr.bf16.mxu0 0
      %2196 = vmatpush1.bf16.msra.mxu0 0
      %2197 = vmatprep.subr.bf16.mxu0 0
      %2198 = vmatpush1.bf16.msra.mxu0 0
      %2199 = vmatprep.subr.bf16.mxu0 0
      %2200 = vmatpush1.bf16.msra.mxu0 0
      %2201 = vmatprep.subr.bf16.mxu0 0
      %2202 = vmatpush1.bf16.msra.mxu0 0
      %2203 = vmatprep.subr.bf16.mxu0 0
      %2204 = vmatpush1.bf16.msra.mxu0 0
      %2205 = vmatprep.subr.bf16.mxu0 0
      %2206 = vmatpush1.bf16.msra.mxu0 0
      %2207 = vmatprep.subr.bf16.mxu0 0
      %2208 = vmatpush1.bf16.msra.mxu0 0
      %2209 = vmatprep.subr.bf16.mxu0 0
      %2210 = vmatpush1.bf16.msra.mxu0 0
      %2211 = vmatprep.subr.bf16.mxu0 0
      %2212 = vmatpush1.bf16.msra.mxu0 0
      %2213 = vmatprep.subr.bf16.mxu0 0
      %2214 = vmatpush1.bf16.msra.mxu0 0
      %2215 = vmatprep.subr.bf16.mxu0 0
      %2216 = vmatpush1.bf16.msra.mxu0 0
      %2217 = vmatprep.subr.bf16.mxu0 0
      %2218 = vmatpush1.bf16.msra.mxu0 0
      %2219 = vmatprep.subr.bf16.mxu0 0
      %2220 = vmatpush1.bf16.msra.mxu0 0
      %2221 = vmatprep.mubr.bf16.mxu0 0
      %2222 = vmatmul.mubr.bf16.gmra.mrb[0].mxu0 %v2079
      %v2223 = vpop.f32.mrb[0].mxu0
      %v2224 = vadd.f32 0.0, %v2223
      %v2225 = vpop.f32.mrb[0].mxu0
      %v2226 = vpop.f32.mrb[0].mxu0
      %v2227 = vadd.f32 0.0, %v2226
      %v2228 = vpop.f32.mrb[0].mxu0
      %2229 = vmatprep.mubr.bf16.mxu0 0
      %2230 = vmatmul.mubr.bf16.gmra.mrb[0].mxu0 %v2082
      %v2231 = vpop.f32.mrb[0].mxu0
      %v2232 = vadd.f32 0.0, %v2231
      %v2233 = vpop.f32.mrb[0].mxu0
      %v2234 = vpop.f32.mrb[0].mxu0
      %v2235 = vadd.f32 0.0, %v2234
      %v2236 = vpop.f32.mrb[0].mxu0
      %2237 = vmatprep.mubr.bf16.mxu0 0
      %2238 = vmatmul.mubr.bf16.gmra.mrb[0].mxu0 %v2085
      %v2239 = vpop.f32.mrb[0].mxu0
      %v2240 = vadd.f32 0.0, %v2239
      %v2241 = vpop.f32.mrb[0].mxu0
      %v2242 = vpop.f32.mrb[0].mxu0
      %v2243 = vadd.f32 0.0, %v2242
      %v2244 = vpop.f32.mrb[0].mxu0
      %2245 = vmatprep.mubr.bf16.mxu0 0
      %2246 = vmatmul.mubr.bf16.gmra.mrb[0].mxu0 %v2088
      %v2247 = vpop.f32.mrb[0].mxu0
      %v2248 = vadd.f32 0.0, %v2247
      %v2249 = vpop.f32.mrb[0].mxu0
      %v2250 = vpop.f32.mrb[0].mxu0
      %v2251 = vadd.f32 0.0, %v2250
      %v2252 = vpop.f32.mrb[0].mxu0
      %2253 = vmatprep.mubr.bf16.mxu0 0
      %2254 = vmatmul.mubr.bf16.gmra.mrb[0].mxu0 %v2091
      %v2255 = vpop.f32.mrb[0].mxu0
      %v2256 = vadd.f32 0.0, %v2255
      %v2257 = vpop.f32.mrb[0].mxu0
      %v2258 = vpop.f32.mrb[0].mxu0
      %v2259 = vadd.f32 0.0, %v2258
      %v2260 = vpop.f32.mrb[0].mxu0
      %2261 = vmatprep.mubr.bf16.mxu0 0
      %2262 = vmatmul.mubr.bf16.gmra.mrb[0].mxu0 %v2094
      %v2263 = vpop.f32.mrb[0].mxu0
      %v2264 = vadd.f32 0.0, %v2263
      %v2265 = vpop.f32.mrb[0].mxu0
      %v2266 = vpop.f32.mrb[0].mxu0
      %v2267 = vadd.f32 0.0, %v2266
      %v2268 = vpop.f32.mrb[0].mxu0
      %2269 = vmatprep.mubr.bf16.mxu0 0
      %2270 = vmatmul.mubr.bf16.gmra.mrb[0].mxu0 %v2097
      %v2271 = vpop.f32.mrb[0].mxu0
      %v2272 = vadd.f32 0.0, %v2271
      %v2273 = vpop.f32.mrb[0].mxu0
      %v2274 = vpop.f32.mrb[0].mxu0
      %v2275 = vadd.f32 0.0, %v2274
      %v2276 = vpop.f32.mrb[0].mxu0
      %2277 = vmatprep.mubr.bf16.mxu0 0
      %2278 = vmatmul.mubr.bf16.gmra.mrb[0].mxu0 %v2100
      %v2279 = vpop.f32.mrb[0].mxu0
      %v2280 = vadd.f32 0.0, %v2279
      %v2281 = vpop.f32.mrb[0].mxu0
      %v2282 = vpop.f32.mrb[0].mxu0
      %v2283 = vadd.f32 0.0, %v2282
      %v2284 = vpop.f32.mrb[0].mxu0
      %2285 = vmatprep.mubr.bf16.mxu0 0
      %2286 = vmatmul.mubr.bf16.gmra.mrb[0].mxu0 %v2103
      %v2287 = vpop.f32.mrb[0].mxu0
      %v2288 = vadd.f32 0.0, %v2287
      %v2289 = vpop.f32.mrb[0].mxu0
      %v2290 = vpop.f32.mrb[0].mxu0
      %v2291 = vadd.f32 0.0, %v2290
      %v2292 = vpop.f32.mrb[0].mxu0
      %2293 = vmatprep.mubr.bf16.mxu0 0
      %2294 = vmatmul.mubr.bf16.gmra.mrb[0].mxu0 %v2106
      %v2295 = vpop.f32.mrb[0].mxu0
      %v2296 = vadd.f32 0.0, %v2295
      %v2297 = vpop.f32.mrb[0].mxu0
      %v2298 = vpop.f32.mrb[0].mxu0
      %v2299 = vadd.f32 0.0, %v2298
      %v2300 = vpop.f32.mrb[0].mxu0
      %2301 = vmatprep.mubr.bf16.mxu0 0
      %2302 = vmatmul.mubr.bf16.gmra.mrb[0].mxu0 %v2109
      %v2303 = vpop.f32.mrb[0].mxu0
      %v2304 = vadd.f32 0.0, %v2303
      %v2305 = vpop.f32.mrb[0].mxu0
      %v2306 = vpop.f32.mrb[0].mxu0
      %v2307 = vadd.f32 0.0, %v2306
      %v2308 = vpop.f32.mrb[0].mxu0
      %2309 = vmatprep.mubr.bf16.mxu0 0
      %2310 = vmatmul.mubr.bf16.gmra.mrb[0].mxu0 %v2112
      %v2311 = vpop.f32.mrb[0].mxu0
      %v2312 = vadd.f32 0.0, %v2311
      %v2313 = vpop.f32.mrb[0].mxu0
      %v2314 = vpop.f32.mrb[0].mxu0
      %v2315 = vadd.f32 0.0, %v2314
      %v2316 = vpop.f32.mrb[0].mxu0
      %2317 = vmatprep.mubr.bf16.mxu0 0
      %2318 = vmatmul.mubr.bf16.gmra.mrb[0].mxu0 %v2115
      %v2319 = vpop.f32.mrb[0].mxu0
      %v2320 = vadd.f32 0.0, %v2319
      %v2321 = vpop.f32.mrb[0].mxu0
      %v2322 = vpop.f32.mrb[0].mxu0
      %v2323 = vadd.f32 0.0, %v2322
      %v2324 = vpop.f32.mrb[0].mxu0
      %2325 = vmatprep.mubr.bf16.mxu0 0
      %2326 = vmatmul.mubr.bf16.gmra.mrb[0].mxu0 %v2118
      %v2327 = vpop.f32.mrb[0].mxu0
      %v2328 = vadd.f32 0.0, %v2327
      %v2329 = vpop.f32.mrb[0].mxu0
      %v2330 = vpop.f32.mrb[0].mxu0
      %v2331 = vadd.f32 0.0, %v2330
      %v2332 = vpop.f32.mrb[0].mxu0
      %2333 = vmatprep.mubr.bf16.mxu0 0
      %2334 = vmatmul.mubr.bf16.gmra.mrb[0].mxu0 %v2121
      %v2335 = vpop.f32.mrb[0].mxu0
      %v2336 = vadd.f32 0.0, %v2335
      %v2337 = vpop.f32.mrb[0].mxu0
      %v2338 = vpop.f32.mrb[0].mxu0
      %v2339 = vadd.f32 0.0, %v2338
      %v2340 = vpop.f32.mrb[0].mxu0
      %2341 = vmatprep.mubr.bf16.mxu0 0
      %2342 = vmatmul.mubr.bf16.gmra.mrb[0].mxu0 %v2124
      %v2343 = vpop.f32.mrb[0].mxu0
      %v2344 = vadd.f32 0.0, %v2343
      %v2345 = vpop.f32.mrb[0].mxu0
      %v2346 = vpop.f32.mrb[0].mxu0
      %v2347 = vadd.f32 0.0, %v2346
      %v2348 = vpop.f32.mrb[0].mxu0
      %2349 = vmatprep.mubr.bf16.mxu0 0
      %2350 = vmatmul.mubr.bf16.gmra.mrb[0].mxu0 %v2127
      %v2351 = vpop.f32.mrb[0].mxu0
      %v2352 = vadd.f32 0.0, %v2351
      %v2353 = vpop.f32.mrb[0].mxu0
      %v2354 = vpop.f32.mrb[0].mxu0
      %v2355 = vadd.f32 0.0, %v2354
      %v2356 = vpop.f32.mrb[0].mxu0
      %2357 = vmatprep.mubr.bf16.mxu0 0
      %2358 = vmatmul.mubr.bf16.gmra.mrb[0].mxu0 %v2130
      %v2359 = vpop.f32.mrb[0].mxu0
      %v2360 = vadd.f32 0.0, %v2359
      %v2361 = vpop.f32.mrb[0].mxu0
      %v2362 = vpop.f32.mrb[0].mxu0
      %v2363 = vadd.f32 0.0, %v2362
      %v2364 = vpop.f32.mrb[0].mxu0
      %2365 = vmatprep.mubr.bf16.mxu0 0
      %2366 = vmatmul.mubr.bf16.gmra.mrb[0].mxu0 %v2133
      %v2367 = vpop.f32.mrb[0].mxu0
      %v2368 = vadd.f32 0.0, %v2367
      %v2369 = vpop.f32.mrb[0].mxu0
      %v2370 = vpop.f32.mrb[0].mxu0
      %v2371 = vadd.f32 0.0, %v2370
      %v2372 = vpop.f32.mrb[0].mxu0
      %2373 = vmatprep.mubr.bf16.mxu0 0
      %2374 = vmatmul.mubr.bf16.gmra.mrb[0].mxu0 %v2136
      %v2375 = vpop.f32.mrb[0].mxu0
      %v2376 = vadd.f32 0.0, %v2375
      %v2377 = vpop.f32.mrb[0].mxu0
      %v2378 = vpop.f32.mrb[0].mxu0
      %v2379 = vadd.f32 0.0, %v2378
      %v2380 = vpop.f32.mrb[0].mxu0
      %2381 = vmatprep.mubr.bf16.mxu0 0
      %2382 = vmatmul.mubr.bf16.gmra.mrb[0].mxu0 %v2139
      %v2383 = vpop.f32.mrb[0].mxu0
      %v2384 = vadd.f32 0.0, %v2383
      %v2385 = vpop.f32.mrb[0].mxu0
      %v2386 = vpop.f32.mrb[0].mxu0
      %v2387 = vadd.f32 0.0, %v2386
      %v2388 = vpop.f32.mrb[0].mxu0
      %2389 = vmatprep.mubr.bf16.mxu0 0
      %2390 = vmatmul.mubr.bf16.gmra.mrb[0].mxu0 %v2142
      %v2391 = vpop.f32.mrb[0].mxu0
      %v2392 = vadd.f32 0.0, %v2391
      %v2393 = vpop.f32.mrb[0].mxu0
      %v2394 = vpop.f32.mrb[0].mxu0
      %v2395 = vadd.f32 0.0, %v2394
      %v2396 = vpop.f32.mrb[0].mxu0
      %2397 = vmatprep.mubr.bf16.mxu0 0
      %2398 = vmatmul.mubr.bf16.gmra.mrb[0].mxu0 %v2145
      %v2399 = vpop.f32.mrb[0].mxu0
      %v2400 = vadd.f32 0.0, %v2399
      %v2401 = vpop.f32.mrb[0].mxu0
      %v2402 = vpop.f32.mrb[0].mxu0
      %v2403 = vadd.f32 0.0, %v2402
      %v2404 = vpop.f32.mrb[0].mxu0
      %2405 = vmatprep.mubr.bf16.mxu0 0
      %2406 = vmatmul.mubr.bf16.gmra.mrb[0].mxu0 %v2148
      %v2407 = vpop.f32.mrb[0].mxu0
      %v2408 = vadd.f32 0.0, %v2407
      %v2409 = vpop.f32.mrb[0].mxu0
      %v2410 = vpop.f32.mrb[0].mxu0
      %v2411 = vadd.f32 0.0, %v2410
      %v2412 = vpop.f32.mrb[0].mxu0
      %2413 = vmatprep.mubr.bf16.mxu0 0
      %2414 = vmatmul.mubr.bf16.gmra.mrb[0].mxu0 %v2151
      %v2415 = vpop.f32.mrb[0].mxu0
      %v2416 = vadd.f32 0.0, %v2415
      %v2417 = vpop.f32.mrb[0].mxu0
      %v2418 = vpop.f32.mrb[0].mxu0
      %v2419 = vadd.f32 0.0, %v2418
      %v2420 = vpop.f32.mrb[0].mxu0
      %2421 = vmatprep.mubr.bf16.mxu0 0
      %2422 = vmatmul.mubr.bf16.gmra.mrb[0].mxu0 %v2154
      %v2423 = vpop.f32.mrb[0].mxu0
      %v2424 = vadd.f32 0.0, %v2423
      %v2425 = vpop.f32.mrb[0].mxu0
      %v2426 = vpop.f32.mrb[0].mxu0
      %v2427 = vadd.f32 0.0, %v2426
      %v2428 = vpop.f32.mrb[0].mxu0
      %2429 = vmatprep.mubr.bf16.mxu0 0
      %2430 = vmatmul.mubr.bf16.gmra.mrb[0].mxu0 %v2157
      %v2431 = vpop.f32.mrb[0].mxu0
      %v2432 = vadd.f32 0.0, %v2431
      %v2433 = vpop.f32.mrb[0].mxu0
      %v2434 = vpop.f32.mrb[0].mxu0
      %v2435 = vadd.f32 0.0, %v2434
      %v2436 = vpop.f32.mrb[0].mxu0
      %2437 = vmatprep.mubr.bf16.mxu0 0
      %2438 = vmatmul.mubr.bf16.gmra.mrb[0].mxu0 %v2160
      %v2439 = vpop.f32.mrb[0].mxu0
      %v2440 = vadd.f32 0.0, %v2439
      %v2441 = vpop.f32.mrb[0].mxu0
      %v2442 = vpop.f32.mrb[0].mxu0
      %v2443 = vadd.f32 0.0, %v2442
      %v2444 = vpop.f32.mrb[0].mxu0
      %2445 = vmatprep.mubr.bf16.mxu0 0
      %2446 = vmatmul.mubr.bf16.gmra.mrb[0].mxu0 %v2163
      %v2447 = vpop.f32.mrb[0].mxu0
      %v2448 = vadd.f32 0.0, %v2447
      %v2449 = vpop.f32.mrb[0].mxu0
      %v2450 = vpop.f32.mrb[0].mxu0
      %v2451 = vadd.f32 0.0, %v2450
      %v2452 = vpop.f32.mrb[0].mxu0
      %2453 = vmatprep.mubr.bf16.mxu0 0
      %2454 = vmatmul.mubr.bf16.gmra.mrb[0].mxu0 %v2166
      %v2455 = vpop.f32.mrb[0].mxu0
      %v2456 = vadd.f32 0.0, %v2455
      %v2457 = vpop.f32.mrb[0].mxu0
      %v2458 = vpop.f32.mrb[0].mxu0
      %v2459 = vadd.f32 0.0, %v2458
      %v2460 = vpop.f32.mrb[0].mxu0
      %2461 = vmatprep.mubr.bf16.mxu0 0
      %2462 = vmatmul.mubr.bf16.gmra.mrb[0].mxu0 %v2169
      %v2463 = vpop.f32.mrb[0].mxu0
      %v2464 = vadd.f32 0.0, %v2463
      %v2465 = vpop.f32.mrb[0].mxu0
      %v2466 = vpop.f32.mrb[0].mxu0
      %v2467 = vadd.f32 0.0, %v2466
      %v2468 = vpop.f32.mrb[0].mxu0
      %2469 = vmatprep.mubr.bf16.mxu0 0
      %2470 = vmatmul.mubr.bf16.gmra.mrb[0].mxu0 %v2172
      %v2471 = vpop.f32.mrb[0].mxu0
      %v2472 = vadd.f32 0.0, %v2471
      %v2473 = vpop.f32.mrb[0].mxu0
      %v2474 = vpop.f32.mrb[0].mxu0
      %v2475 = vadd.f32 0.0, %v2474
      %v2476 = vpop.f32.mrb[0].mxu0
      %2477 = vmatprep.mubr.bf16.mxu0 0
      %2478 = vmatmul.mubr.bf16.gmra.mrb[0].mxu0 %v2175
      %v2479 = vpop.f32.mrb[0].mxu0
      %v2480 = vadd.f32 0.0, %v2479
      %v2481 = vpop.f32.mrb[0].mxu0
      %v2482 = vpop.f32.mrb[0].mxu0
      %v2483 = vadd.f32 0.0, %v2482
      %v2484 = vpop.f32.mrb[0].mxu0
      %2485 = vmatprep.mubr.bf16.mxu0 0
      %2486 = vmatmul.mubr.bf16.gmra.mrb[0].mxu0 %v2178
      %v2487 = vpop.f32.mrb[0].mxu0
      %v2488 = vadd.f32 0.0, %v2487
      %v2489 = vpop.f32.mrb[0].mxu0
      %v2490 = vpop.f32.mrb[0].mxu0
      %v2491 = vadd.f32 0.0, %v2490
      %v2492 = vpop.f32.mrb[0].mxu0
      %2493 = vmatprep.mubr.bf16.mxu0 0
      %2494 = vmatmul.mubr.bf16.gmra.mrb[0].mxu0 %v2181
      %v2495 = vpop.f32.mrb[0].mxu0
      %v2496 = vadd.f32 0.0, %v2495
      %v2497 = vpop.f32.mrb[0].mxu0
      %v2498 = vpop.f32.mrb[0].mxu0
      %v2499 = vadd.f32 0.0, %v2498
      %v2500 = vpop.f32.mrb[0].mxu0
      %2501 = vmatprep.mubr.bf16.mxu0 0
      %2502 = vmatmul.mubr.bf16.gmra.mrb[0].mxu0 %v2184
      %v2503 = vpop.f32.mrb[0].mxu0
      %v2504 = vadd.f32 0.0, %v2503
      %v2505 = vpop.f32.mrb[0].mxu0
      %v2506 = vpop.f32.mrb[0].mxu0
      %v2507 = vadd.f32 0.0, %v2506
      %v2508 = vpop.f32.mrb[0].mxu0
      %2509 = vmatprep.mubr.bf16.mxu0 0
      %2510 = vmatmul.mubr.bf16.gmra.mrb[0].mxu0 %v2187
      %v2511 = vpop.f32.mrb[0].mxu0
      %v2512 = vadd.f32 0.0, %v2511
      %v2513 = vpop.f32.mrb[0].mxu0
      %v2514 = vpop.f32.mrb[0].mxu0
      %v2515 = vadd.f32 0.0, %v2514
      %v2516 = vpop.f32.mrb[0].mxu0
      %2517 = vdwg.mxu0
      %v2518 = vmax.f32 %v1745, %v2224
      %v2519 = vmax.f32 %v1746, %v2227
      %v2520 = vmax.f32 %v1747, %v2232
      %v2521 = vmax.f32 %v1748, %v2235
      %v2522 = vmax.f32 %v1749, %v2240
      %v2523 = vmax.f32 %v1750, %v2243
      %v2524 = vmax.f32 %v1751, %v2248
      %v2525 = vmax.f32 %v1752, %v2251
      %v2526 = vmax.f32 %v1753, %v2256
      %v2527 = vmax.f32 %v1754, %v2259
      %v2528 = vmax.f32 %v1755, %v2264
      %v2529 = vmax.f32 %v1756, %v2267
      %v2530 = vmax.f32 %v1757, %v2272
      %v2531 = vmax.f32 %v1758, %v2275
      %v2532 = vmax.f32 %v1759, %v2280
      %v2533 = vmax.f32 %v1760, %v2283
      %v2534 = vmax.f32 %v1761, %v2288
      %v2535 = vmax.f32 %v1762, %v2291
      %v2536 = vmax.f32 %v1763, %v2296
      %v2537 = vmax.f32 %v1764, %v2299
      %v2538 = vmax.f32 %v1765, %v2304
      %v2539 = vmax.f32 %v1766, %v2307
      %v2540 = vmax.f32 %v1767, %v2312
      %v2541 = vmax.f32 %v1768, %v2315
      %v2542 = vmax.f32 %v1769, %v2320
      %v2543 = vmax.f32 %v1770, %v2323
      %v2544 = vmax.f32 %v1771, %v2328
      %v2545 = vmax.f32 %v1772, %v2331
      %v2546 = vmax.f32 %v1773, %v2336
      %v2547 = vmax.f32 %v1774, %v2339
      %v2548 = vmax.f32 %v1775, %v2344
      %v2549 = vmax.f32 %v1776, %v2347
      %v2550 = vmax.f32 %v1777, %v2352
      %v2551 = vmax.f32 %v1778, %v2355
      %v2552 = vmax.f32 %v1779, %v2360
      %v2553 = vmax.f32 %v1780, %v2363
      %v2554 = vmax.f32 %v1781, %v2368
      %v2555 = vmax.f32 %v1782, %v2371
      %v2556 = vmax.f32 %v1783, %v2376
      %v2557 = vmax.f32 %v1784, %v2379
      %v2558 = vmax.f32 %v1785, %v2384
      %v2559 = vmax.f32 %v1786, %v2387
      %v2560 = vmax.f32 %v1787, %v2392
      %v2561 = vmax.f32 %v1788, %v2395
      %v2562 = vmax.f32 %v1789, %v2400
      %v2563 = vmax.f32 %v1790, %v2403
      %v2564 = vmax.f32 %v1791, %v2408
      %v2565 = vmax.f32 %v1792, %v2411
      %v2566 = vmax.f32 %v1793, %v2416
      %v2567 = vmax.f32 %v1794, %v2419
      %v2568 = vmax.f32 %v1795, %v2424
      %v2569 = vmax.f32 %v1796, %v2427
      %v2570 = vmax.f32 %v1797, %v2432
      %v2571 = vmax.f32 %v1798, %v2435
      %v2572 = vmax.f32 %v1799, %v2440
      %v2573 = vmax.f32 %v1800, %v2443
      %v2574 = vmax.f32 %v1801, %v2448
      %v2575 = vmax.f32 %v1802, %v2451
      %v2576 = vmax.f32 %v1803, %v2456
      %v2577 = vmax.f32 %v1804, %v2459
      %v2578 = vmax.f32 %v1805, %v2464
      %v2579 = vmax.f32 %v1806, %v2467
      %v2580 = vmax.f32 %v1807, %v2472
      %v2581 = vmax.f32 %v1808, %v2475
      %v2582 = vmax.f32 %v1809, %v2480
      %v2583 = vmax.f32 %v1810, %v2483
      %v2584 = vmax.f32 %v1811, %v2488
      %v2585 = vmax.f32 %v1812, %v2491
      %v2586 = vmax.f32 %v1813, %v2496
      %v2587 = vmax.f32 %v1814, %v2499
      %v2588 = vmax.f32 %v1815, %v2504
      %v2589 = vmax.f32 %v1816, %v2507
      %v2590 = vmax.f32 %v1817, %v2512
      %v2591 = vmax.f32 %v1818, %v2515
      %v2592 = vld [vmem:[%s313] sm:$0xf]
      %v2593 = vld [vmem:[%s313 + $0x4] sm:$0xf]
      %v2594 = vld [vmem:[%s313 + $0x8] sm:$0xf]
      %v2595 = vld [vmem:[%s313 + $0xc] sm:$0xf]
      %v2596 = vld [vmem:[%s313 + $0x10] sm:$0xf]
      %v2597 = vld [vmem:[%s313 + $0x14] sm:$0xf]
      %v2598 = vld [vmem:[%s313 + $0x18] sm:$0xf]
      %v2599 = vld [vmem:[%s313 + $0x1c] sm:$0xf]
      %v2600 = vld [vmem:[%s313 + $0x20] sm:$0xf]
      %v2601 = vld [vmem:[%s313 + $0x24] sm:$0xf]
      %v2602 = vld [vmem:[%s313 + $0x28] sm:$0xf]
      %v2603 = vld [vmem:[%s313 + $0x2c] sm:$0xf]
      %v2604 = vld [vmem:[%s313 + $0x30] sm:$0xf]
      %v2605 = vld [vmem:[%s313 + $0x34] sm:$0xf]
      %v2606 = vld [vmem:[%s313 + $0x38] sm:$0xf]
      %v2607 = vld [vmem:[%s313 + $0x3c] sm:$0xf]
      %v2608 = vld [vmem:[%s313 + $0x40] sm:$0xf]
      %v2609 = vld [vmem:[%s313 + $0x44] sm:$0xf]
      %v2610 = vld [vmem:[%s313 + $0x48] sm:$0xf]
      %v2611 = vld [vmem:[%s313 + $0x4c] sm:$0xf]
      %v2612 = vld [vmem:[%s313 + $0x50] sm:$0xf]
      %v2613 = vld [vmem:[%s313 + $0x54] sm:$0xf]
      %v2614 = vld [vmem:[%s313 + $0x58] sm:$0xf]
      %v2615 = vld [vmem:[%s313 + $0x5c] sm:$0xf]
      %v2616 = vld [vmem:[%s313 + $0x60] sm:$0xf]
      %v2617 = vld [vmem:[%s313 + $0x64] sm:$0xf]
      %v2618 = vld [vmem:[%s313 + $0x68] sm:$0xf]
      %v2619 = vld [vmem:[%s313 + $0x6c] sm:$0xf]
      %v2620 = vld [vmem:[%s313 + $0x70] sm:$0xf]
      %v2621 = vld [vmem:[%s313 + $0x74] sm:$0xf]
      %v2622 = vld [vmem:[%s313 + $0x78] sm:$0xf]
      %v2623 = vld [vmem:[%s313 + $0x7c] sm:$0xf]
      %v2624 = vld [vmem:[%s313 + $0x80] sm:$0xf]
      %v2625 = vld [vmem:[%s313 + $0x84] sm:$0xf]
      %v2626 = vld [vmem:[%s313 + $0x88] sm:$0xf]
      %v2627 = vld [vmem:[%s313 + $0x8c] sm:$0xf]
      %v2628 = vld [vmem:[%s313 + $0x90] sm:$0xf]
      %v2629 = vld [vmem:[%s313 + $0x94] sm:$0xf]
      %v2630 = vld [vmem:[%s313 + $0x98] sm:$0xf]
      %v2631 = vld [vmem:[%s313 + $0x9c] sm:$0xf]
      %v2632 = vld [vmem:[%s313 + $0xa0] sm:$0xf]
      %v2633 = vld [vmem:[%s313 + $0xa4] sm:$0xf]
      %v2634 = vld [vmem:[%s313 + $0xa8] sm:$0xf]
      %v2635 = vld [vmem:[%s313 + $0xac] sm:$0xf]
      %v2636 = vld [vmem:[%s313 + $0xb0] sm:$0xf]
      %v2637 = vld [vmem:[%s313 + $0xb4] sm:$0xf]
      %v2638 = vld [vmem:[%s313 + $0xb8] sm:$0xf]
      %v2639 = vld [vmem:[%s313 + $0xbc] sm:$0xf]
      %v2640 = vld [vmem:[%s313 + $0xc0] sm:$0xf]
      %v2641 = vld [vmem:[%s313 + $0xc4] sm:$0xf]
      %v2642 = vld [vmem:[%s313 + $0xc8] sm:$0xf]
      %v2643 = vld [vmem:[%s313 + $0xcc] sm:$0xf]
      %v2644 = vld [vmem:[%s313 + $0xd0] sm:$0xf]
      %v2645 = vld [vmem:[%s313 + $0xd4] sm:$0xf]
      %v2646 = vld [vmem:[%s313 + $0xd8] sm:$0xf]
      %v2647 = vld [vmem:[%s313 + $0xdc] sm:$0xf]
      %v2648 = vld [vmem:[%s313 + $0xe0] sm:$0xf]
      %v2649 = vld [vmem:[%s313 + $0xe4] sm:$0xf]
      %v2650 = vld [vmem:[%s313 + $0xe8] sm:$0xf]
      %v2651 = vld [vmem:[%s313 + $0xec] sm:$0xf]
      %v2652 = vld [vmem:[%s313 + $0xf0] sm:$0xf]
      %v2653 = vld [vmem:[%s313 + $0xf4] sm:$0xf]
      %v2654 = vld [vmem:[%s313 + $0xf8] sm:$0xf]
      %v2655 = vld [vmem:[%s313 + $0xfc] sm:$0xf]
      %v2656 = vld [vmem:[%s313 + $0x100] sm:$0xf]
      %v2657 = vld [vmem:[%s313 + $0x104] sm:$0xf]
      %v2658 = vld [vmem:[%s313 + $0x108] sm:$0xf]
      %v2659 = vld [vmem:[%s313 + $0x10c] sm:$0xf]
      %v2660 = vld [vmem:[%s313 + $0x110] sm:$0xf]
      %v2661 = vld [vmem:[%s313 + $0x114] sm:$0xf]
      %v2662 = vld [vmem:[%s313 + $0x118] sm:$0xf]
      %v2663 = vld [vmem:[%s313 + $0x11c] sm:$0xf]
      %v2664 = vld [vmem:[%s313 + $0x120] sm:$0xf]
      %v2665 = vld [vmem:[%s313 + $0x124] sm:$0xf]
      %v2740 = vunpack.c.l.b16 %v2592
      %v2741 = vunpack.c.l.b16 %v2593
      %v2742 = vunpack.c.l.b16 %v2594
      %v2743 = vunpack.c.l.b16 %v2595
      %v2744 = vunpack.c.l.b16 %v2596
      %v2745 = vunpack.c.l.b16 %v2597
      %v2746 = vunpack.c.l.b16 %v2598
      %v2747 = vunpack.c.l.b16 %v2599
      %v2748 = vunpack.c.l.b16 %v2600
      %v2749 = vunpack.c.l.b16 %v2601
      %v2750 = vunpack.c.l.b16 %v2602
      %v2751 = vunpack.c.l.b16 %v2603
      %v2752 = vunpack.c.l.b16 %v2604
      %v2753 = vunpack.c.l.b16 %v2605
      %v2754 = vunpack.c.l.b16 %v2606
      %v2755 = vunpack.c.l.b16 %v2607
      %v2756 = vunpack.c.l.b16 %v2608
      %v2757 = vunpack.c.l.b16 %v2609
      %v2758 = vunpack.c.l.b16 %v2610
      %v2759 = vunpack.c.l.b16 %v2611
      %v2760 = vunpack.c.l.b16 %v2612
      %v2761 = vunpack.c.l.b16 %v2613
      %v2762 = vunpack.c.l.b16 %v2614
      %v2763 = vunpack.c.l.b16 %v2615
      %v2764 = vunpack.c.l.b16 %v2616
      %v2765 = vunpack.c.l.b16 %v2617
      %v2766 = vunpack.c.l.b16 %v2618
      %v2767 = vunpack.c.l.b16 %v2619
      %v2768 = vunpack.c.l.b16 %v2620
      %v2769 = vunpack.c.l.b16 %v2621
      %v2770 = vunpack.c.l.b16 %v2622
      %v2771 = vunpack.c.l.b16 %v2623
      %v2772 = vunpack.c.l.b16 %v2624
      %v2773 = vunpack.c.l.b16 %v2625
      %v2774 = vunpack.c.l.b16 %v2626
      %v2775 = vunpack.c.l.b16 %v2627
      %v2776 = vunpack.c.l.b16 %v2628
      %v2777 = vunpack.c.l.b16 %v2629
      %v2778 = vunpack.c.l.b16 %v2630
      %v2779 = vunpack.c.l.b16 %v2631
      %v2780 = vunpack.c.l.b16 %v2632
      %v2781 = vunpack.c.l.b16 %v2633
      %v2782 = vunpack.c.l.b16 %v2634
      %v2783 = vunpack.c.l.b16 %v2635
      %v2784 = vunpack.c.l.b16 %v2636
      %v2785 = vunpack.c.l.b16 %v2637
      %v2786 = vunpack.c.l.b16 %v2638
      %v2787 = vunpack.c.l.b16 %v2639
      %v2788 = vunpack.c.l.b16 %v2640
      %v2789 = vunpack.c.l.b16 %v2641
      %v2790 = vunpack.c.l.b16 %v2642
      %v2791 = vunpack.c.l.b16 %v2643
      %v2792 = vunpack.c.l.b16 %v2644
      %v2793 = vunpack.c.l.b16 %v2645
      %v2794 = vunpack.c.l.b16 %v2646
      %v2795 = vunpack.c.l.b16 %v2647
      %v2796 = vunpack.c.l.b16 %v2648
      %v2797 = vunpack.c.l.b16 %v2649
      %v2798 = vunpack.c.l.b16 %v2650
      %v2799 = vunpack.c.l.b16 %v2651
      %v2800 = vunpack.c.l.b16 %v2652
      %v2801 = vunpack.c.l.b16 %v2653
      %v2802 = vunpack.c.l.b16 %v2654
      %v2803 = vunpack.c.l.b16 %v2655
      %v2804 = vunpack.c.l.b16 %v2656
      %v2805 = vunpack.c.l.b16 %v2657
      %v2806 = vunpack.c.l.b16 %v2658
      %v2807 = vunpack.c.l.b16 %v2659
      %v2808 = vunpack.c.l.b16 %v2660
      %v2809 = vunpack.c.l.b16 %v2661
      %v2810 = vunpack.c.l.b16 %v2662
      %v2811 = vunpack.c.l.b16 %v2663
      %v2812 = vunpack.c.l.b16 %v2664
      %v2813 = vunpack.c.l.b16 %v2665
      %v2814 = vpack.c.b16 %v2741, %v2740
      %v2815 = vpack.c.b16 %v2743, %v2742
      %v2816 = vpack.c.b16 %v2745, %v2744
      %v2817 = vpack.c.b16 %v2747, %v2746
      %v2818 = vpack.c.b16 %v2749, %v2748
      %v2819 = vpack.c.b16 %v2751, %v2750
      %v2820 = vpack.c.b16 %v2753, %v2752
      %v2821 = vpack.c.b16 %v2755, %v2754
      %v2822 = vpack.c.b16 %v2757, %v2756
      %v2823 = vpack.c.b16 %v2759, %v2758
      %v2824 = vpack.c.b16 %v2761, %v2760
      %v2825 = vpack.c.b16 %v2763, %v2762
      %v2826 = vpack.c.b16 %v2765, %v2764
      %v2827 = vpack.c.b16 %v2767, %v2766
      %v2828 = vpack.c.b16 %v2769, %v2768
      %v2829 = vpack.c.b16 %v2771, %v2770
      %v2830 = vpack.c.b16 %v2773, %v2772
      %v2831 = vpack.c.b16 %v2775, %v2774
      %v2832 = vpack.c.b16 %v2777, %v2776
      %v2833 = vpack.c.b16 %v2779, %v2778
      %v2834 = vpack.c.b16 %v2781, %v2780
      %v2835 = vpack.c.b16 %v2783, %v2782
      %v2836 = vpack.c.b16 %v2785, %v2784
      %v2837 = vpack.c.b16 %v2787, %v2786
      %v2838 = vpack.c.b16 %v2789, %v2788
      %v2839 = vpack.c.b16 %v2791, %v2790
      %v2840 = vpack.c.b16 %v2793, %v2792
      %v2841 = vpack.c.b16 %v2795, %v2794
      %v2842 = vpack.c.b16 %v2797, %v2796
      %v2843 = vpack.c.b16 %v2799, %v2798
      %v2844 = vpack.c.b16 %v2801, %v2800
      %v2845 = vpack.c.b16 %v2803, %v2802
      %v2846 = vpack.c.b16 %v2805, %v2804
      %v2847 = vpack.c.b16 %v2807, %v2806
      %v2848 = vpack.c.b16 %v2809, %v2808
      %v2849 = vpack.c.b16 %v2811, %v2810
      %v2850 = vpack.c.b16 %v2813, %v2812
      %v2852 = vsel %vm605, %v2814, 0
      %v2855 = vsel %vm605, %v2815, 0
      %v2858 = vsel %vm605, %v2816, 0
      %v2861 = vsel %vm605, %v2817, 0
      %v2864 = vsel %vm605, %v2818, 0
      %v2867 = vsel %vm605, %v2819, 0
      %v2870 = vsel %vm605, %v2820, 0
      %v2873 = vsel %vm605, %v2821, 0
      %v2876 = vsel %vm605, %v2822, 0
      %v2879 = vsel %vm605, %v2823, 0
      %v2882 = vsel %vm605, %v2824, 0
      %v2885 = vsel %vm605, %v2825, 0
      %v2888 = vsel %vm605, %v2826, 0
      %v2891 = vsel %vm605, %v2827, 0
      %v2894 = vsel %vm605, %v2828, 0
      %v2897 = vsel %vm605, %v2829, 0
      %v2900 = vsel %vm605, %v2830, 0
      %v2903 = vsel %vm605, %v2831, 0
      %v2906 = vsel %vm605, %v2832, 0
      %v2909 = vsel %vm605, %v2833, 0
      %v2912 = vsel %vm605, %v2834, 0
      %v2915 = vsel %vm605, %v2835, 0
      %v2918 = vsel %vm605, %v2836, 0
      %v2921 = vsel %vm605, %v2837, 0
      %v2924 = vsel %vm605, %v2838, 0
      %v2927 = vsel %vm605, %v2839, 0
      %v2930 = vsel %vm605, %v2840, 0
      %v2933 = vsel %vm605, %v2841, 0
      %v2936 = vsel %vm605, %v2842, 0
      %v2939 = vsel %vm605, %v2843, 0
      %v2942 = vsel %vm605, %v2844, 0
      %v2945 = vsel %vm605, %v2845, 0
      %v2948 = vsel %vm605, %v2846, 0
      %v2951 = vsel %vm605, %v2847, 0
      %v2954 = vsel %vm605, %v2848, 0
      %v2957 = vsel %vm605, %v2849, 0
      %v2960 = vsel %vm605, %v2850, 0
      %2962 = vmatprep.subr.bf16.mxu0 0
      %2963 = vmatpush1.bf16.msra.mxu0 %v599
      %2964 = vmatprep.subr.bf16.mxu0 0
      %2965 = vmatpush1.bf16.msra.mxu0 %v600
      %2966 = vmatprep.subr.bf16.mxu0 0
      %2967 = vmatpush1.bf16.msra.mxu0 %v601
      %2968 = vmatprep.subr.bf16.mxu0 0
      %2969 = vmatpush1.bf16.msra.mxu0 0
      %2970 = vmatprep.subr.bf16.mxu0 0
      %2971 = vmatpush1.bf16.msra.mxu0 0
      %2972 = vmatprep.subr.bf16.mxu0 0
      %2973 = vmatpush1.bf16.msra.mxu0 0
      %2974 = vmatprep.subr.bf16.mxu0 0
      %2975 = vmatpush1.bf16.msra.mxu0 0
      %2976 = vmatprep.subr.bf16.mxu0 0
      %2977 = vmatpush1.bf16.msra.mxu0 0
      %2978 = vmatprep.subr.bf16.mxu0 0
      %2979 = vmatpush1.bf16.msra.mxu0 0
      %2980 = vmatprep.subr.bf16.mxu0 0
      %2981 = vmatpush1.bf16.msra.mxu0 0
      %2982 = vmatprep.subr.bf16.mxu0 0
      %2983 = vmatpush1.bf16.msra.mxu0 0
      %2984 = vmatprep.subr.bf16.mxu0 0
      %2985 = vmatpush1.bf16.msra.mxu0 0
      %2986 = vmatprep.subr.bf16.mxu0 0
      %2987 = vmatpush1.bf16.msra.mxu0 0
      %2988 = vmatprep.subr.bf16.mxu0 0
      %2989 = vmatpush1.bf16.msra.mxu0 0
      %2990 = vmatprep.subr.bf16.mxu0 0
      %2991 = vmatpush1.bf16.msra.mxu0 0
      %2992 = vmatprep.subr.bf16.mxu0 0
      %2993 = vmatpush1.bf16.msra.mxu0 0
      %2994 = vmatprep.mubr.bf16.mxu0 0
      %2995 = vmatmul.mubr.bf16.gmra.mrb[0].mxu0 %v2852
      %v2996 = vpop.f32.mrb[0].mxu0
      %v2997 = vadd.f32 0.0, %v2996
      %v2998 = vpop.f32.mrb[0].mxu0
      %v2999 = vpop.f32.mrb[0].mxu0
      %v3000 = vadd.f32 0.0, %v2999
      %v3001 = vpop.f32.mrb[0].mxu0
      %3002 = vmatprep.mubr.bf16.mxu0 0
      %3003 = vmatmul.mubr.bf16.gmra.mrb[0].mxu0 %v2855
      %v3004 = vpop.f32.mrb[0].mxu0
      %v3005 = vadd.f32 0.0, %v3004
      %v3006 = vpop.f32.mrb[0].mxu0
      %v3007 = vpop.f32.mrb[0].mxu0
      %v3008 = vadd.f32 0.0, %v3007
      %v3009 = vpop.f32.mrb[0].mxu0
      %3010 = vmatprep.mubr.bf16.mxu0 0
      %3011 = vmatmul.mubr.bf16.gmra.mrb[0].mxu0 %v2858
      %v3012 = vpop.f32.mrb[0].mxu0
      %v3013 = vadd.f32 0.0, %v3012
      %v3014 = vpop.f32.mrb[0].mxu0
      %v3015 = vpop.f32.mrb[0].mxu0
      %v3016 = vadd.f32 0.0, %v3015
      %v3017 = vpop.f32.mrb[0].mxu0
      %3018 = vmatprep.mubr.bf16.mxu0 0
      %3019 = vmatmul.mubr.bf16.gmra.mrb[0].mxu0 %v2861
      %v3020 = vpop.f32.mrb[0].mxu0
      %v3021 = vadd.f32 0.0, %v3020
      %v3022 = vpop.f32.mrb[0].mxu0
      %v3023 = vpop.f32.mrb[0].mxu0
      %v3024 = vadd.f32 0.0, %v3023
      %v3025 = vpop.f32.mrb[0].mxu0
      %3026 = vmatprep.mubr.bf16.mxu0 0
      %3027 = vmatmul.mubr.bf16.gmra.mrb[0].mxu0 %v2864
      %v3028 = vpop.f32.mrb[0].mxu0
      %v3029 = vadd.f32 0.0, %v3028
      %v3030 = vpop.f32.mrb[0].mxu0
      %v3031 = vpop.f32.mrb[0].mxu0
      %v3032 = vadd.f32 0.0, %v3031
      %v3033 = vpop.f32.mrb[0].mxu0
      %3034 = vmatprep.mubr.bf16.mxu0 0
      %3035 = vmatmul.mubr.bf16.gmra.mrb[0].mxu0 %v2867
      %v3036 = vpop.f32.mrb[0].mxu0
      %v3037 = vadd.f32 0.0, %v3036
      %v3038 = vpop.f32.mrb[0].mxu0
      %v3039 = vpop.f32.mrb[0].mxu0
      %v3040 = vadd.f32 0.0, %v3039
      %v3041 = vpop.f32.mrb[0].mxu0
      %3042 = vmatprep.mubr.bf16.mxu0 0
      %3043 = vmatmul.mubr.bf16.gmra.mrb[0].mxu0 %v2870
      %v3044 = vpop.f32.mrb[0].mxu0
      %v3045 = vadd.f32 0.0, %v3044
      %v3046 = vpop.f32.mrb[0].mxu0
      %v3047 = vpop.f32.mrb[0].mxu0
      %v3048 = vadd.f32 0.0, %v3047
      %v3049 = vpop.f32.mrb[0].mxu0
      %3050 = vmatprep.mubr.bf16.mxu0 0
      %3051 = vmatmul.mubr.bf16.gmra.mrb[0].mxu0 %v2873
      %v3052 = vpop.f32.mrb[0].mxu0
      %v3053 = vadd.f32 0.0, %v3052
      %v3054 = vpop.f32.mrb[0].mxu0
      %v3055 = vpop.f32.mrb[0].mxu0
      %v3056 = vadd.f32 0.0, %v3055
      %v3057 = vpop.f32.mrb[0].mxu0
      %3058 = vmatprep.mubr.bf16.mxu0 0
      %3059 = vmatmul.mubr.bf16.gmra.mrb[0].mxu0 %v2876
      %v3060 = vpop.f32.mrb[0].mxu0
      %v3061 = vadd.f32 0.0, %v3060
      %v3062 = vpop.f32.mrb[0].mxu0
      %v3063 = vpop.f32.mrb[0].mxu0
      %v3064 = vadd.f32 0.0, %v3063
      %v3065 = vpop.f32.mrb[0].mxu0
      %3066 = vmatprep.mubr.bf16.mxu0 0
      %3067 = vmatmul.mubr.bf16.gmra.mrb[0].mxu0 %v2879
      %v3068 = vpop.f32.mrb[0].mxu0
      %v3069 = vadd.f32 0.0, %v3068
      %v3070 = vpop.f32.mrb[0].mxu0
      %v3071 = vpop.f32.mrb[0].mxu0
      %v3072 = vadd.f32 0.0, %v3071
      %v3073 = vpop.f32.mrb[0].mxu0
      %3074 = vmatprep.mubr.bf16.mxu0 0
      %3075 = vmatmul.mubr.bf16.gmra.mrb[0].mxu0 %v2882
      %v3076 = vpop.f32.mrb[0].mxu0
      %v3077 = vadd.f32 0.0, %v3076
      %v3078 = vpop.f32.mrb[0].mxu0
      %v3079 = vpop.f32.mrb[0].mxu0
      %v3080 = vadd.f32 0.0, %v3079
      %v3081 = vpop.f32.mrb[0].mxu0
      %3082 = vmatprep.mubr.bf16.mxu0 0
      %3083 = vmatmul.mubr.bf16.gmra.mrb[0].mxu0 %v2885
      %v3084 = vpop.f32.mrb[0].mxu0
      %v3085 = vadd.f32 0.0, %v3084
      %v3086 = vpop.f32.mrb[0].mxu0
      %v3087 = vpop.f32.mrb[0].mxu0
      %v3088 = vadd.f32 0.0, %v3087
      %v3089 = vpop.f32.mrb[0].mxu0
      %3090 = vmatprep.mubr.bf16.mxu0 0
      %3091 = vmatmul.mubr.bf16.gmra.mrb[0].mxu0 %v2888
      %v3092 = vpop.f32.mrb[0].mxu0
      %v3093 = vadd.f32 0.0, %v3092
      %v3094 = vpop.f32.mrb[0].mxu0
      %v3095 = vpop.f32.mrb[0].mxu0
      %v3096 = vadd.f32 0.0, %v3095
      %v3097 = vpop.f32.mrb[0].mxu0
      %3098 = vmatprep.mubr.bf16.mxu0 0
      %3099 = vmatmul.mubr.bf16.gmra.mrb[0].mxu0 %v2891
      %v3100 = vpop.f32.mrb[0].mxu0
      %v3101 = vadd.f32 0.0, %v3100
      %v3102 = vpop.f32.mrb[0].mxu0
      %v3103 = vpop.f32.mrb[0].mxu0
      %v3104 = vadd.f32 0.0, %v3103
      %v3105 = vpop.f32.mrb[0].mxu0
      %3106 = vmatprep.mubr.bf16.mxu0 0
      %3107 = vmatmul.mubr.bf16.gmra.mrb[0].mxu0 %v2894
      %v3108 = vpop.f32.mrb[0].mxu0
      %v3109 = vadd.f32 0.0, %v3108
      %v3110 = vpop.f32.mrb[0].mxu0
      %v3111 = vpop.f32.mrb[0].mxu0
      %v3112 = vadd.f32 0.0, %v3111
      %v3113 = vpop.f32.mrb[0].mxu0
      %3114 = vmatprep.mubr.bf16.mxu0 0
      %3115 = vmatmul.mubr.bf16.gmra.mrb[0].mxu0 %v2897
      %v3116 = vpop.f32.mrb[0].mxu0
      %v3117 = vadd.f32 0.0, %v3116
      %v3118 = vpop.f32.mrb[0].mxu0
      %v3119 = vpop.f32.mrb[0].mxu0
      %v3120 = vadd.f32 0.0, %v3119
      %v3121 = vpop.f32.mrb[0].mxu0
      %3122 = vmatprep.mubr.bf16.mxu0 0
      %3123 = vmatmul.mubr.bf16.gmra.mrb[0].mxu0 %v2900
      %v3124 = vpop.f32.mrb[0].mxu0
      %v3125 = vadd.f32 0.0, %v3124
      %v3126 = vpop.f32.mrb[0].mxu0
      %v3127 = vpop.f32.mrb[0].mxu0
      %v3128 = vadd.f32 0.0, %v3127
      %v3129 = vpop.f32.mrb[0].mxu0
      %3130 = vmatprep.mubr.bf16.mxu0 0
      %3131 = vmatmul.mubr.bf16.gmra.mrb[0].mxu0 %v2903
      %v3132 = vpop.f32.mrb[0].mxu0
      %v3133 = vadd.f32 0.0, %v3132
      %v3134 = vpop.f32.mrb[0].mxu0
      %v3135 = vpop.f32.mrb[0].mxu0
      %v3136 = vadd.f32 0.0, %v3135
      %v3137 = vpop.f32.mrb[0].mxu0
      %3138 = vmatprep.mubr.bf16.mxu0 0
      %3139 = vmatmul.mubr.bf16.gmra.mrb[0].mxu0 %v2906
      %v3140 = vpop.f32.mrb[0].mxu0
      %v3141 = vadd.f32 0.0, %v3140
      %v3142 = vpop.f32.mrb[0].mxu0
      %v3143 = vpop.f32.mrb[0].mxu0
      %v3144 = vadd.f32 0.0, %v3143
      %v3145 = vpop.f32.mrb[0].mxu0
      %3146 = vmatprep.mubr.bf16.mxu0 0
      %3147 = vmatmul.mubr.bf16.gmra.mrb[0].mxu0 %v2909
      %v3148 = vpop.f32.mrb[0].mxu0
      %v3149 = vadd.f32 0.0, %v3148
      %v3150 = vpop.f32.mrb[0].mxu0
      %v3151 = vpop.f32.mrb[0].mxu0
      %v3152 = vadd.f32 0.0, %v3151
      %v3153 = vpop.f32.mrb[0].mxu0
      %3154 = vmatprep.mubr.bf16.mxu0 0
      %3155 = vmatmul.mubr.bf16.gmra.mrb[0].mxu0 %v2912
      %v3156 = vpop.f32.mrb[0].mxu0
      %v3157 = vadd.f32 0.0, %v3156
      %v3158 = vpop.f32.mrb[0].mxu0
      %v3159 = vpop.f32.mrb[0].mxu0
      %v3160 = vadd.f32 0.0, %v3159
      %v3161 = vpop.f32.mrb[0].mxu0
      %3162 = vmatprep.mubr.bf16.mxu0 0
      %3163 = vmatmul.mubr.bf16.gmra.mrb[0].mxu0 %v2915
      %v3164 = vpop.f32.mrb[0].mxu0
      %v3165 = vadd.f32 0.0, %v3164
      %v3166 = vpop.f32.mrb[0].mxu0
      %v3167 = vpop.f32.mrb[0].mxu0
      %v3168 = vadd.f32 0.0, %v3167
      %v3169 = vpop.f32.mrb[0].mxu0
      %3170 = vmatprep.mubr.bf16.mxu0 0
      %3171 = vmatmul.mubr.bf16.gmra.mrb[0].mxu0 %v2918
      %v3172 = vpop.f32.mrb[0].mxu0
      %v3173 = vadd.f32 0.0, %v3172
      %v3174 = vpop.f32.mrb[0].mxu0
      %v3175 = vpop.f32.mrb[0].mxu0
      %v3176 = vadd.f32 0.0, %v3175
      %v3177 = vpop.f32.mrb[0].mxu0
      %3178 = vmatprep.mubr.bf16.mxu0 0
      %3179 = vmatmul.mubr.bf16.gmra.mrb[0].mxu0 %v2921
      %v3180 = vpop.f32.mrb[0].mxu0
      %v3181 = vadd.f32 0.0, %v3180
      %v3182 = vpop.f32.mrb[0].mxu0
      %v3183 = vpop.f32.mrb[0].mxu0
      %v3184 = vadd.f32 0.0, %v3183
      %v3185 = vpop.f32.mrb[0].mxu0
      %3186 = vmatprep.mubr.bf16.mxu0 0
      %3187 = vmatmul.mubr.bf16.gmra.mrb[0].mxu0 %v2924
      %v3188 = vpop.f32.mrb[0].mxu0
      %v3189 = vadd.f32 0.0, %v3188
      %v3190 = vpop.f32.mrb[0].mxu0
      %v3191 = vpop.f32.mrb[0].mxu0
      %v3192 = vadd.f32 0.0, %v3191
      %v3193 = vpop.f32.mrb[0].mxu0
      %3194 = vmatprep.mubr.bf16.mxu0 0
      %3195 = vmatmul.mubr.bf16.gmra.mrb[0].mxu0 %v2927
      %v3196 = vpop.f32.mrb[0].mxu0
      %v3197 = vadd.f32 0.0, %v3196
      %v3198 = vpop.f32.mrb[0].mxu0
      %v3199 = vpop.f32.mrb[0].mxu0
      %v3200 = vadd.f32 0.0, %v3199
      %v3201 = vpop.f32.mrb[0].mxu0
      %3202 = vmatprep.mubr.bf16.mxu0 0
      %3203 = vmatmul.mubr.bf16.gmra.mrb[0].mxu0 %v2930
      %v3204 = vpop.f32.mrb[0].mxu0
      %v3205 = vadd.f32 0.0, %v3204
      %v3206 = vpop.f32.mrb[0].mxu0
      %v3207 = vpop.f32.mrb[0].mxu0
      %v3208 = vadd.f32 0.0, %v3207
      %v3209 = vpop.f32.mrb[0].mxu0
      %3210 = vmatprep.mubr.bf16.mxu0 0
      %3211 = vmatmul.mubr.bf16.gmra.mrb[0].mxu0 %v2933
      %v3212 = vpop.f32.mrb[0].mxu0
      %v3213 = vadd.f32 0.0, %v3212
      %v3214 = vpop.f32.mrb[0].mxu0
      %v3215 = vpop.f32.mrb[0].mxu0
      %v3216 = vadd.f32 0.0, %v3215
      %v3217 = vpop.f32.mrb[0].mxu0
      %3218 = vmatprep.mubr.bf16.mxu0 0
      %3219 = vmatmul.mubr.bf16.gmra.mrb[0].mxu0 %v2936
      %v3220 = vpop.f32.mrb[0].mxu0
      %v3221 = vadd.f32 0.0, %v3220
      %v3222 = vpop.f32.mrb[0].mxu0
      %v3223 = vpop.f32.mrb[0].mxu0
      %v3224 = vadd.f32 0.0, %v3223
      %v3225 = vpop.f32.mrb[0].mxu0
      %3226 = vmatprep.mubr.bf16.mxu0 0
      %3227 = vmatmul.mubr.bf16.gmra.mrb[0].mxu0 %v2939
      %v3228 = vpop.f32.mrb[0].mxu0
      %v3229 = vadd.f32 0.0, %v3228
      %v3230 = vpop.f32.mrb[0].mxu0
      %v3231 = vpop.f32.mrb[0].mxu0
      %v3232 = vadd.f32 0.0, %v3231
      %v3233 = vpop.f32.mrb[0].mxu0
      %3234 = vmatprep.mubr.bf16.mxu0 0
      %3235 = vmatmul.mubr.bf16.gmra.mrb[0].mxu0 %v2942
      %v3236 = vpop.f32.mrb[0].mxu0
      %v3237 = vadd.f32 0.0, %v3236
      %v3238 = vpop.f32.mrb[0].mxu0
      %v3239 = vpop.f32.mrb[0].mxu0
      %v3240 = vadd.f32 0.0, %v3239
      %v3241 = vpop.f32.mrb[0].mxu0
      %3242 = vmatprep.mubr.bf16.mxu0 0
      %3243 = vmatmul.mubr.bf16.gmra.mrb[0].mxu0 %v2945
      %v3244 = vpop.f32.mrb[0].mxu0
      %v3245 = vadd.f32 0.0, %v3244
      %v3246 = vpop.f32.mrb[0].mxu0
      %v3247 = vpop.f32.mrb[0].mxu0
      %v3248 = vadd.f32 0.0, %v3247
      %v3249 = vpop.f32.mrb[0].mxu0
      %3250 = vmatprep.mubr.bf16.mxu0 0
      %3251 = vmatmul.mubr.bf16.gmra.mrb[0].mxu0 %v2948
      %v3252 = vpop.f32.mrb[0].mxu0
      %v3253 = vadd.f32 0.0, %v3252
      %v3254 = vpop.f32.mrb[0].mxu0
      %v3255 = vpop.f32.mrb[0].mxu0
      %v3256 = vadd.f32 0.0, %v3255
      %v3257 = vpop.f32.mrb[0].mxu0
      %3258 = vmatprep.mubr.bf16.mxu0 0
      %3259 = vmatmul.mubr.bf16.gmra.mrb[0].mxu0 %v2951
      %v3260 = vpop.f32.mrb[0].mxu0
      %v3261 = vadd.f32 0.0, %v3260
      %v3262 = vpop.f32.mrb[0].mxu0
      %v3263 = vpop.f32.mrb[0].mxu0
      %v3264 = vadd.f32 0.0, %v3263
      %v3265 = vpop.f32.mrb[0].mxu0
      %3266 = vmatprep.mubr.bf16.mxu0 0
      %3267 = vmatmul.mubr.bf16.gmra.mrb[0].mxu0 %v2954
      %v3268 = vpop.f32.mrb[0].mxu0
      %v3269 = vadd.f32 0.0, %v3268
      %v3270 = vpop.f32.mrb[0].mxu0
      %v3271 = vpop.f32.mrb[0].mxu0
      %v3272 = vadd.f32 0.0, %v3271
      %v3273 = vpop.f32.mrb[0].mxu0
      %3274 = vmatprep.mubr.bf16.mxu0 0
      %3275 = vmatmul.mubr.bf16.gmra.mrb[0].mxu0 %v2957
      %v3276 = vpop.f32.mrb[0].mxu0
      %v3277 = vadd.f32 0.0, %v3276
      %v3278 = vpop.f32.mrb[0].mxu0
      %v3279 = vpop.f32.mrb[0].mxu0
      %v3280 = vadd.f32 0.0, %v3279
      %v3281 = vpop.f32.mrb[0].mxu0
      %3282 = vmatprep.mubr.bf16.mxu0 0
      %3283 = vmatmul.mubr.bf16.gmra.mrb[0].mxu0 %v2960
      %v3284 = vpop.f32.mrb[0].mxu0
      %v3285 = vadd.f32 0.0, %v3284
      %v3286 = vpop.f32.mrb[0].mxu0
      %v3287 = vpop.f32.mrb[0].mxu0
      %v3288 = vadd.f32 0.0, %v3287
      %v3289 = vpop.f32.mrb[0].mxu0
      %3290 = vdwg.mxu0
      %v3291 = vmax.f32 %v2518, %v2997
      %v3292 = vmax.f32 %v2519, %v3000
      %v3293 = vmax.f32 %v2520, %v3005
      %v3294 = vmax.f32 %v2521, %v3008
      %v3295 = vmax.f32 %v2522, %v3013
      %v3296 = vmax.f32 %v2523, %v3016
      %v3297 = vmax.f32 %v2524, %v3021
      %v3298 = vmax.f32 %v2525, %v3024
      %v3299 = vmax.f32 %v2526, %v3029
      %v3300 = vmax.f32 %v2527, %v3032
      %v3301 = vmax.f32 %v2528, %v3037
      %v3302 = vmax.f32 %v2529, %v3040
      %v3303 = vmax.f32 %v2530, %v3045
      %v3304 = vmax.f32 %v2531, %v3048
      %v3305 = vmax.f32 %v2532, %v3053
      %v3306 = vmax.f32 %v2533, %v3056
      %v3307 = vmax.f32 %v2534, %v3061
      %v3308 = vmax.f32 %v2535, %v3064
      %v3309 = vmax.f32 %v2536, %v3069
      %v3310 = vmax.f32 %v2537, %v3072
      %v3311 = vmax.f32 %v2538, %v3077
      %v3312 = vmax.f32 %v2539, %v3080
      %v3313 = vmax.f32 %v2540, %v3085
      %v3314 = vmax.f32 %v2541, %v3088
      %v3315 = vmax.f32 %v2542, %v3093
      %v3316 = vmax.f32 %v2543, %v3096
      %v3317 = vmax.f32 %v2544, %v3101
      %v3318 = vmax.f32 %v2545, %v3104
      %v3319 = vmax.f32 %v2546, %v3109
      %v3320 = vmax.f32 %v2547, %v3112
      %v3321 = vmax.f32 %v2548, %v3117
      %v3322 = vmax.f32 %v2549, %v3120
      %v3323 = vmax.f32 %v2550, %v3125
      %v3324 = vmax.f32 %v2551, %v3128
      %v3325 = vmax.f32 %v2552, %v3133
      %v3326 = vmax.f32 %v2553, %v3136
      %v3327 = vmax.f32 %v2554, %v3141
      %v3328 = vmax.f32 %v2555, %v3144
      %v3329 = vmax.f32 %v2556, %v3149
      %v3330 = vmax.f32 %v2557, %v3152
      %v3331 = vmax.f32 %v2558, %v3157
      %v3332 = vmax.f32 %v2559, %v3160
      %v3333 = vmax.f32 %v2560, %v3165
      %v3334 = vmax.f32 %v2561, %v3168
      %v3335 = vmax.f32 %v2562, %v3173
      %v3336 = vmax.f32 %v2563, %v3176
      %v3337 = vmax.f32 %v2564, %v3181
      %v3338 = vmax.f32 %v2565, %v3184
      %v3339 = vmax.f32 %v2566, %v3189
      %v3340 = vmax.f32 %v2567, %v3192
      %v3341 = vmax.f32 %v2568, %v3197
      %v3342 = vmax.f32 %v2569, %v3200
      %v3343 = vmax.f32 %v2570, %v3205
      %v3344 = vmax.f32 %v2571, %v3208
      %v3345 = vmax.f32 %v2572, %v3213
      %v3346 = vmax.f32 %v2573, %v3216
      %v3347 = vmax.f32 %v2574, %v3221
      %v3348 = vmax.f32 %v2575, %v3224
      %v3349 = vmax.f32 %v2576, %v3229
      %v3350 = vmax.f32 %v2577, %v3232
      %v3351 = vmax.f32 %v2578, %v3237
      %v3352 = vmax.f32 %v2579, %v3240
      %v3353 = vmax.f32 %v2580, %v3245
      %v3354 = vmax.f32 %v2581, %v3248
      %v3355 = vmax.f32 %v2582, %v3253
      %v3356 = vmax.f32 %v2583, %v3256
      %v3357 = vmax.f32 %v2584, %v3261
      %v3358 = vmax.f32 %v2585, %v3264
      %v3359 = vmax.f32 %v2586, %v3269
      %v3360 = vmax.f32 %v2587, %v3272
      %v3361 = vmax.f32 %v2588, %v3277
      %v3362 = vmax.f32 %v2589, %v3280
      %v3363 = vmax.f32 %v2590, %v3285
      %v3364 = vmax.f32 %v2591, %v3288
      %v3365 = vld [vmem:[%s5] sm:$0x1]
      %v3367 = vlaneseq
      %v3368 = vshrl.u32 %v3367, 7
      %v3369 = vsub.s32 0, %v3368
      %v3370 = vrot.slane %v3365, %v3369
      %v3372 = vadd.f32 %v3291, %v3370
      %v3373 = vadd.f32 %v3292, %v3370
      %v3374 = vadd.f32 %v3293, %v3370
      %v3375 = vadd.f32 %v3294, %v3370
      %v3376 = vadd.f32 %v3295, %v3370
      %v3377 = vadd.f32 %v3296, %v3370
      %v3378 = vadd.f32 %v3297, %v3370
      %v3379 = vadd.f32 %v3298, %v3370
      %v3380 = vadd.f32 %v3299, %v3370
      %v3381 = vadd.f32 %v3300, %v3370
      %v3382 = vadd.f32 %v3301, %v3370
      %v3383 = vadd.f32 %v3302, %v3370
      %v3384 = vadd.f32 %v3303, %v3370
      %v3385 = vadd.f32 %v3304, %v3370
      %v3386 = vadd.f32 %v3305, %v3370
      %v3387 = vadd.f32 %v3306, %v3370
      %v3388 = vadd.f32 %v3307, %v3370
      %v3389 = vadd.f32 %v3308, %v3370
      %v3390 = vadd.f32 %v3309, %v3370
      %v3391 = vadd.f32 %v3310, %v3370
      %v3392 = vadd.f32 %v3311, %v3370
      %v3393 = vadd.f32 %v3312, %v3370
      %v3394 = vadd.f32 %v3313, %v3370
      %v3395 = vadd.f32 %v3314, %v3370
      %v3396 = vadd.f32 %v3315, %v3370
      %v3397 = vadd.f32 %v3316, %v3370
      %v3398 = vadd.f32 %v3317, %v3370
      %v3399 = vadd.f32 %v3318, %v3370
      %v3400 = vadd.f32 %v3319, %v3370
      %v3401 = vadd.f32 %v3320, %v3370
      %v3402 = vadd.f32 %v3321, %v3370
      %v3403 = vadd.f32 %v3322, %v3370
      %v3404 = vadd.f32 %v3323, %v3370
      %v3405 = vadd.f32 %v3324, %v3370
      %v3406 = vadd.f32 %v3325, %v3370
      %v3407 = vadd.f32 %v3326, %v3370
      %v3408 = vadd.f32 %v3327, %v3370
      %v3409 = vadd.f32 %v3328, %v3370
      %v3410 = vadd.f32 %v3329, %v3370
      %v3411 = vadd.f32 %v3330, %v3370
      %v3412 = vadd.f32 %v3331, %v3370
      %v3413 = vadd.f32 %v3332, %v3370
      %v3414 = vadd.f32 %v3333, %v3370
      %v3415 = vadd.f32 %v3334, %v3370
      %v3416 = vadd.f32 %v3335, %v3370
      %v3417 = vadd.f32 %v3336, %v3370
      %v3418 = vadd.f32 %v3337, %v3370
      %v3419 = vadd.f32 %v3338, %v3370
      %v3420 = vadd.f32 %v3339, %v3370
      %v3421 = vadd.f32 %v3340, %v3370
      %v3422 = vadd.f32 %v3341, %v3370
      %v3423 = vadd.f32 %v3342, %v3370
      %v3424 = vadd.f32 %v3343, %v3370
      %v3425 = vadd.f32 %v3344, %v3370
      %v3426 = vadd.f32 %v3345, %v3370
      %v3427 = vadd.f32 %v3346, %v3370
      %v3428 = vadd.f32 %v3347, %v3370
      %v3429 = vadd.f32 %v3348, %v3370
      %v3430 = vadd.f32 %v3349, %v3370
      %v3431 = vadd.f32 %v3350, %v3370
      %v3432 = vadd.f32 %v3351, %v3370
      %v3433 = vadd.f32 %v3352, %v3370
      %v3434 = vadd.f32 %v3353, %v3370
      %v3435 = vadd.f32 %v3354, %v3370
      %v3436 = vadd.f32 %v3355, %v3370
      %v3437 = vadd.f32 %v3356, %v3370
      %v3438 = vadd.f32 %v3357, %v3370
      %v3439 = vadd.f32 %v3358, %v3370
      %v3440 = vadd.f32 %v3359, %v3370
      %v3441 = vadd.f32 %v3360, %v3370
      %v3442 = vadd.f32 %v3361, %v3370
      %v3443 = vadd.f32 %v3362, %v3370
      %v3444 = vadd.f32 %v3363, %v3370
      %v3445 = vadd.f32 %v3364, %v3370
      %v3446 = vmax.f32 %v3372, 0.0
      %v3447 = vmax.f32 %v3373, 0.0
      %v3448 = vmax.f32 %v3374, 0.0
      %v3449 = vmax.f32 %v3375, 0.0
      %v3450 = vmax.f32 %v3376, 0.0
      %v3451 = vmax.f32 %v3377, 0.0
      %v3452 = vmax.f32 %v3378, 0.0
      %v3453 = vmax.f32 %v3379, 0.0
      %v3454 = vmax.f32 %v3380, 0.0
      %v3455 = vmax.f32 %v3381, 0.0
      %v3456 = vmax.f32 %v3382, 0.0
      %v3457 = vmax.f32 %v3383, 0.0
      %v3458 = vmax.f32 %v3384, 0.0
      %v3459 = vmax.f32 %v3385, 0.0
      %v3460 = vmax.f32 %v3386, 0.0
      %v3461 = vmax.f32 %v3387, 0.0
      %v3462 = vmax.f32 %v3388, 0.0
      %v3463 = vmax.f32 %v3389, 0.0
      %v3464 = vmax.f32 %v3390, 0.0
      %v3465 = vmax.f32 %v3391, 0.0
      %v3466 = vmax.f32 %v3392, 0.0
      %v3467 = vmax.f32 %v3393, 0.0
      %v3468 = vmax.f32 %v3394, 0.0
      %v3469 = vmax.f32 %v3395, 0.0
      %v3470 = vmax.f32 %v3396, 0.0
      %v3471 = vmax.f32 %v3397, 0.0
      %v3472 = vmax.f32 %v3398, 0.0
      %v3473 = vmax.f32 %v3399, 0.0
      %v3474 = vmax.f32 %v3400, 0.0
      %v3475 = vmax.f32 %v3401, 0.0
      %v3476 = vmax.f32 %v3402, 0.0
      %v3477 = vmax.f32 %v3403, 0.0
      %v3478 = vmax.f32 %v3404, 0.0
      %v3479 = vmax.f32 %v3405, 0.0
      %v3480 = vmax.f32 %v3406, 0.0
      %v3481 = vmax.f32 %v3407, 0.0
      %v3482 = vmax.f32 %v3408, 0.0
      %v3483 = vmax.f32 %v3409, 0.0
      %v3484 = vmax.f32 %v3410, 0.0
      %v3485 = vmax.f32 %v3411, 0.0
      %v3486 = vmax.f32 %v3412, 0.0
      %v3487 = vmax.f32 %v3413, 0.0
      %v3488 = vmax.f32 %v3414, 0.0
      %v3489 = vmax.f32 %v3415, 0.0
      %v3490 = vmax.f32 %v3416, 0.0
      %v3491 = vmax.f32 %v3417, 0.0
      %v3492 = vmax.f32 %v3418, 0.0
      %v3493 = vmax.f32 %v3419, 0.0
      %v3494 = vmax.f32 %v3420, 0.0
      %v3495 = vmax.f32 %v3421, 0.0
      %v3496 = vmax.f32 %v3422, 0.0
      %v3497 = vmax.f32 %v3423, 0.0
      %v3498 = vmax.f32 %v3424, 0.0
      %v3499 = vmax.f32 %v3425, 0.0
      %v3500 = vmax.f32 %v3426, 0.0
      %v3501 = vmax.f32 %v3427, 0.0
      %v3502 = vmax.f32 %v3428, 0.0
      %v3503 = vmax.f32 %v3429, 0.0
      %v3504 = vmax.f32 %v3430, 0.0
      %v3505 = vmax.f32 %v3431, 0.0
      %v3506 = vmax.f32 %v3432, 0.0
      %v3507 = vmax.f32 %v3433, 0.0
      %v3508 = vmax.f32 %v3434, 0.0
      %v3509 = vmax.f32 %v3435, 0.0
      %v3510 = vmax.f32 %v3436, 0.0
      %v3511 = vmax.f32 %v3437, 0.0
      %v3512 = vmax.f32 %v3438, 0.0
      %v3513 = vmax.f32 %v3439, 0.0
      %v3514 = vmax.f32 %v3440, 0.0
      %v3515 = vmax.f32 %v3441, 0.0
      %v3516 = vmax.f32 %v3442, 0.0
      %v3517 = vmax.f32 %v3443, 0.0
      %v3518 = vmax.f32 %v3444, 0.0
      %v3519 = vmax.f32 %v3445, 0.0
      %vm3520 = vcmask 261120
      %3521 = vst.msk [vmem:[%s319] sm:$0xff] %vm3520, %v3446
      %3522 = vst.msk [vmem:[%s319 + $0x8] sm:$0xff] %vm3520, %v3447
      %3523 = vst.msk [vmem:[%s319 + $0x10] sm:$0xff] %vm3520, %v3448
      %3524 = vst.msk [vmem:[%s319 + $0x18] sm:$0xff] %vm3520, %v3449
      %3525 = vst.msk [vmem:[%s319 + $0x20] sm:$0xff] %vm3520, %v3450
      %3526 = vst.msk [vmem:[%s319 + $0x28] sm:$0xff] %vm3520, %v3451
      %3527 = vst.msk [vmem:[%s319 + $0x30] sm:$0xff] %vm3520, %v3452
      %3528 = vst.msk [vmem:[%s319 + $0x38] sm:$0xff] %vm3520, %v3453
      %3529 = vst.msk [vmem:[%s319 + $0x40] sm:$0xff] %vm3520, %v3454
      %3530 = vst.msk [vmem:[%s319 + $0x48] sm:$0xff] %vm3520, %v3455
      %3531 = vst.msk [vmem:[%s319 + $0x50] sm:$0xff] %vm3520, %v3456
      %3532 = vst.msk [vmem:[%s319 + $0x58] sm:$0xff] %vm3520, %v3457
      %3533 = vst.msk [vmem:[%s319 + $0x60] sm:$0xff] %vm3520, %v3458
      %3534 = vst.msk [vmem:[%s319 + $0x68] sm:$0xff] %vm3520, %v3459
      %3535 = vst.msk [vmem:[%s319 + $0x70] sm:$0xff] %vm3520, %v3460
      %3536 = vst.msk [vmem:[%s319 + $0x78] sm:$0xff] %vm3520, %v3461
      %3537 = vst.msk [vmem:[%s319 + $0x80] sm:$0xff] %vm3520, %v3462
      %3538 = vst.msk [vmem:[%s319 + $0x88] sm:$0xff] %vm3520, %v3463
      %3539 = vst.msk [vmem:[%s319 + $0x90] sm:$0xff] %vm3520, %v3464
      %3540 = vst.msk [vmem:[%s319 + $0x98] sm:$0xff] %vm3520, %v3465
      %3541 = vst.msk [vmem:[%s319 + $0xa0] sm:$0xff] %vm3520, %v3466
      %3542 = vst.msk [vmem:[%s319 + $0xa8] sm:$0xff] %vm3520, %v3467
      %3543 = vst.msk [vmem:[%s319 + $0xb0] sm:$0xff] %vm3520, %v3468
      %3544 = vst.msk [vmem:[%s319 + $0xb8] sm:$0xff] %vm3520, %v3469
      %3545 = vst.msk [vmem:[%s319 + $0xc0] sm:$0xff] %vm3520, %v3470
      %3546 = vst.msk [vmem:[%s319 + $0xc8] sm:$0xff] %vm3520, %v3471
      %3547 = vst.msk [vmem:[%s319 + $0xd0] sm:$0xff] %vm3520, %v3472
      %3548 = vst.msk [vmem:[%s319 + $0xd8] sm:$0xff] %vm3520, %v3473
      %3549 = vst.msk [vmem:[%s319 + $0xe0] sm:$0xff] %vm3520, %v3474
      %3550 = vst.msk [vmem:[%s319 + $0xe8] sm:$0xff] %vm3520, %v3475
      %3551 = vst.msk [vmem:[%s319 + $0xf0] sm:$0xff] %vm3520, %v3476
      %3552 = vst.msk [vmem:[%s319 + $0xf8] sm:$0xff] %vm3520, %v3477
      %3553 = vst.msk [vmem:[%s319 + $0x100] sm:$0xff] %vm3520, %v3478
      %3554 = vst.msk [vmem:[%s319 + $0x108] sm:$0xff] %vm3520, %v3479
      %3555 = vst.msk [vmem:[%s319 + $0x110] sm:$0xff] %vm3520, %v3480
      %3556 = vst.msk [vmem:[%s319 + $0x118] sm:$0xff] %vm3520, %v3481
      %3557 = vst.msk [vmem:[%s319 + $0x120] sm:$0xff] %vm3520, %v3482
      %3558 = vst.msk [vmem:[%s319 + $0x128] sm:$0xff] %vm3520, %v3483
      %3559 = vst.msk [vmem:[%s319 + $0x130] sm:$0xff] %vm3520, %v3484
      %3560 = vst.msk [vmem:[%s319 + $0x138] sm:$0xff] %vm3520, %v3485
      %3561 = vst.msk [vmem:[%s319 + $0x140] sm:$0xff] %vm3520, %v3486
      %3562 = vst.msk [vmem:[%s319 + $0x148] sm:$0xff] %vm3520, %v3487
      %3563 = vst.msk [vmem:[%s319 + $0x150] sm:$0xff] %vm3520, %v3488
      %3564 = vst.msk [vmem:[%s319 + $0x158] sm:$0xff] %vm3520, %v3489
      %3565 = vst.msk [vmem:[%s319 + $0x160] sm:$0xff] %vm3520, %v3490
      %3566 = vst.msk [vmem:[%s319 + $0x168] sm:$0xff] %vm3520, %v3491
      %3567 = vst.msk [vmem:[%s319 + $0x170] sm:$0xff] %vm3520, %v3492
      %3568 = vst.msk [vmem:[%s319 + $0x178] sm:$0xff] %vm3520, %v3493
      %3569 = vst.msk [vmem:[%s319 + $0x180] sm:$0xff] %vm3520, %v3494
      %3570 = vst.msk [vmem:[%s319 + $0x188] sm:$0xff] %vm3520, %v3495
      %3571 = vst.msk [vmem:[%s319 + $0x190] sm:$0xff] %vm3520, %v3496
      %3572 = vst.msk [vmem:[%s319 + $0x198] sm:$0xff] %vm3520, %v3497
      %3573 = vst.msk [vmem:[%s319 + $0x1a0] sm:$0xff] %vm3520, %v3498
      %3574 = vst.msk [vmem:[%s319 + $0x1a8] sm:$0xff] %vm3520, %v3499
      %3575 = vst.msk [vmem:[%s319 + $0x1b0] sm:$0xff] %vm3520, %v3500
      %3576 = vst.msk [vmem:[%s319 + $0x1b8] sm:$0xff] %vm3520, %v3501
      %3577 = vst.msk [vmem:[%s319 + $0x1c0] sm:$0xff] %vm3520, %v3502
      %3578 = vst.msk [vmem:[%s319 + $0x1c8] sm:$0xff] %vm3520, %v3503
      %3579 = vst.msk [vmem:[%s319 + $0x1d0] sm:$0xff] %vm3520, %v3504
      %3580 = vst.msk [vmem:[%s319 + $0x1d8] sm:$0xff] %vm3520, %v3505
      %3581 = vst.msk [vmem:[%s319 + $0x1e0] sm:$0xff] %vm3520, %v3506
      %3582 = vst.msk [vmem:[%s319 + $0x1e8] sm:$0xff] %vm3520, %v3507
      %3583 = vst.msk [vmem:[%s319 + $0x1f0] sm:$0xff] %vm3520, %v3508
      %3584 = vst.msk [vmem:[%s319 + $0x1f8] sm:$0xff] %vm3520, %v3509
      %3585 = vst.msk [vmem:[%s319 + $0x200] sm:$0xff] %vm3520, %v3510
      %3586 = vst.msk [vmem:[%s319 + $0x208] sm:$0xff] %vm3520, %v3511
      %3587 = vst.msk [vmem:[%s319 + $0x210] sm:$0xff] %vm3520, %v3512
      %3588 = vst.msk [vmem:[%s319 + $0x218] sm:$0xff] %vm3520, %v3513
      %3589 = vst.msk [vmem:[%s319 + $0x220] sm:$0xff] %vm3520, %v3514
      %3590 = vst.msk [vmem:[%s319 + $0x228] sm:$0xff] %vm3520, %v3515
      %3591 = vst.msk [vmem:[%s319 + $0x230] sm:$0xff] %vm3520, %v3516
      %3592 = vst.msk [vmem:[%s319 + $0x238] sm:$0xff] %vm3520, %v3517
      %3593 = vst.msk [vmem:[%s319 + $0x240] sm:$0xff] %vm3520, %v3518
      %3594 = vst.msk [vmem:[%s319 + $0x248] sm:$0xff] %vm3520, %v3519
      %s3595 = smul.u32 74, %s17
      %p3596 = scmp.lt.s32.totalorder %s3595, 295
      %s3597 = scalar_select %p3596, %s3595, 295
      %s3598 = smul.addr %s3597, 8
      %s3599 = scalar_lea.vmem %s6, %s3598
      // Predicated region
      $region45: #{convnn_forward.4} parent=43 // pred_check
        %p3600 = pneg %p181
      $region46: #{convnn_forward.4} parent=43 // pred_check_branch
        %3602 = sbr.rel (%p3600) target = $region48
      $region47: #{convnn_forward.4} parent=43 // pred_region
        %s3603 = smul.u32 74, %s17
      $region48: #{convnn_forward.4} parent=43 // pred_fallthru
        _
    $region44: #{convnn_forward.4} parent=5 // pred_fallthru
      _
    %p3604 = scmp.le.s32.totalorder 2, %s12
    // Predicated region
    $region49: #{convnn_forward.4} parent=5 // pred_check
      %p3605 = pneg %p3604
    $region50: #{convnn_forward.4} parent=5 // pred_check_branch
      %3607 = sbr.rel (%p3605) target = $region52
    $region51: #{convnn_forward.4} parent=5 // pred_region
      %s3608 = ssub.s32 %s12, 2
      // Predicated region
      $region53: #{convnn_forward.4} parent=51 // pred_check
        %p3609 = pneg %p187
      $region54: #{convnn_forward.4} parent=51 // pred_check_branch
        %3611 = sbr.rel (%p3609) target = $region56
      $region55: #{convnn_forward.4} parent=51 // pred_region
        %s3612 = smul.u32 74, %s18
        %p3613 = scmp.lt.s32.totalorder %s3612, 295
        %s3614 = scalar_select %p3613, %s3612, 295
        %s3615 = smul.addr %s3614, 8
        %s3616 = scalar_lea.vmem %s6, %s3615
      $region56: #{convnn_forward.4} parent=51 // pred_fallthru
        _
    $region52: #{convnn_forward.4} parent=5 // pred_fallthru
      _
  $region6: #{convnn_forward.4} parent=0 // loop_footer
    %s16 = sadd.s32 1, %s12
  $region7: #{convnn_forward.4} parent=0 // loop_footer_branch
    %11 = sbr.rel target = $region3
  $region8: #{convnn_forward.4} parent=0 // loop_exit
    _

// kernel: convnn_forward.5
$region0: #{convnn_forward.5}
  #allocation0 [shape = 'u32[]', space=smem, size = 0x4, offset = 0x4, fixed_abs, tag = 'smem constant byte address 0x4 - core index']
  #allocation1 [shape = 'u32[144,128]{1,0:T(1,128)}', space=vmem, size = 0x12000, scoped, tag = 'internal scratch']
  %s0 = inlined_call_operand.vmem [shape: bf16[512,288], index: 0, kind: input, shape index: {}]
  %s1 = inlined_call_operand.vmem [shape: bf16[512,288], index: 1, kind: input, shape index: {}]
  %s2 = inlined_call_operand.vmem [shape: bf16[512,288], index: 2, kind: input, shape index: {}]
  %s3 = inlined_call_operand.vmem [shape: bf16[512,288], index: 3, kind: input, shape index: {}]
  %s4 = inlined_call_operand.vmem [shape: bf16[288,16], index: 4, kind: input, shape index: {}]
  %s5 = inlined_call_operand.vmem [shape: f32[1,16], index: 5, kind: input, shape index: {}]
  %s6 = inlined_call_operand.vmem [shape: f32[512,16], index: 6, kind: output, shape index: {}]
  %s7 = sld [smem:[#allocation0]]
  $region57: #{convnn_forward.5} parent=0
    _
  %s9 = ssub.s32 1, %s7
  %s10 = scalar_select 0, %s9, %s7
  loop: start=0, step=1, limit=4
  $region2: #{convnn_forward.5} parent=0 // loop_pre_header
    _
  $region3: #{convnn_forward.5} parent=0 // loop_header
    %s12 = sphi 0, %s16
    %p13 = scmp.ge.s32.totalorder %s12, 4
    %s22 = sphi 0, %s24
    %s25 = sphi 0, %s22
    %s26 = sphi 0, %s25
    %s42 = sphi 0, %s26
    %s48 = sphi 0, %s50
    %s51 = sphi 0, %s48
    %s52 = sphi 0, %s51
    %s68 = sphi 0, %s52
    %s74 = sphi 0, %s76
    %s77 = sphi 0, %s74
    %s78 = sphi 0, %s77
    %s94 = sphi 0, %s78
    %s100 = sphi 0, %s102
    %s103 = sphi 0, %s100
    %s104 = sphi 0, %s103
    %s120 = sphi 0, %s104
    %s124 = sphi 0, %s124
    %s126 = sphi 0, %s124
    %s127 = sphi 0, %s126
    %s141 = sphi 0, %s127
    %s145 = sphi 0, %s145
    %s147 = sphi 0, %s145
    %s148 = sphi 0, %s147
    %s162 = sphi 0, %s148
    %s168 = sphi 0, %s170
    %s171 = sphi 0, %s168
    %s172 = sphi 0, %s171
    %s188 = sphi 0, %s172
  $region4: #{convnn_forward.5} parent=0 // loop_header_branch
    %15 = sbr.rel (%p13) target = $region8
  $region5: #{convnn_forward.5} parent=0 // loop_body
    %s17 = ssub.s32 %s12, 1
    %s18 = ssub.s32 %s12, 2
    %s19 = sadd.s32 %s12, 1
    %s20 = ssub.s32 %s12, %s19
    %p21 = scmp.eq.s32.totalorder %s20, 0
    %s23 = sadd.s32 %s22, 1
    %s24 = scalar_select %p21, %s22, %s23
    %p27 = pneg %p21
    %p28 = scmp.eq.s32.totalorder %s12, 1
    %p29 = por %p27, %p28
    %p30 = scmp.ne.s32.totalorder %s22, %s25
    %p31 = scmp.eq.s32.totalorder %s12, 0
    %p32 = por %p30, %p31
    %p33 = scmp.ne.s32.totalorder %s22, %s25
    %p34 = scmp.eq.s32.totalorder %s17, 1
    %p35 = por %p33, %p34
    %p36 = scmp.ne.s32.totalorder %s25, %s26
    %p37 = scmp.eq.s32.totalorder %s17, 0
    %p38 = por %p36, %p37
    %p39 = scmp.ne.s32.totalorder %s25, %s26
    %p40 = scmp.eq.s32.totalorder %s18, 1
    %p41 = por %p39, %p40
    %p43 = scmp.ne.s32.totalorder %s26, %s42
    %p44 = scmp.eq.s32.totalorder %s18, 0
    %p45 = por %p43, %p44
    %s46 = ssub.s32 %s12, %s19
    %p47 = scmp.eq.s32.totalorder %s46, 0
    %s49 = sadd.s32 %s48, 1
    %s50 = scalar_select %p47, %s48, %s49
    %p53 = pneg %p47
    %p54 = scmp.eq.s32.totalorder %s12, 1
    %p55 = por %p53, %p54
    %p56 = scmp.ne.s32.totalorder %s48, %s51
    %p57 = scmp.eq.s32.totalorder %s12, 0
    %p58 = por %p56, %p57
    %p59 = scmp.ne.s32.totalorder %s48, %s51
    %p60 = scmp.eq.s32.totalorder %s17, 1
    %p61 = por %p59, %p60
    %p62 = scmp.ne.s32.totalorder %s51, %s52
    %p63 = scmp.eq.s32.totalorder %s17, 0
    %p64 = por %p62, %p63
    %p65 = scmp.ne.s32.totalorder %s51, %s52
    %p66 = scmp.eq.s32.totalorder %s18, 1
    %p67 = por %p65, %p66
    %p69 = scmp.ne.s32.totalorder %s52, %s68
    %p70 = scmp.eq.s32.totalorder %s18, 0
    %p71 = por %p69, %p70
    %s72 = ssub.s32 %s12, %s19
    %p73 = scmp.eq.s32.totalorder %s72, 0
    %s75 = sadd.s32 %s74, 1
    %s76 = scalar_select %p73, %s74, %s75
    %p79 = pneg %p73
    %p80 = scmp.eq.s32.totalorder %s12, 1
    %p81 = por %p79, %p80
    %p82 = scmp.ne.s32.totalorder %s74, %s77
    %p83 = scmp.eq.s32.totalorder %s12, 0
    %p84 = por %p82, %p83
    %p85 = scmp.ne.s32.totalorder %s74, %s77
    %p86 = scmp.eq.s32.totalorder %s17, 1
    %p87 = por %p85, %p86
    %p88 = scmp.ne.s32.totalorder %s77, %s78
    %p89 = scmp.eq.s32.totalorder %s17, 0
    %p90 = por %p88, %p89
    %p91 = scmp.ne.s32.totalorder %s77, %s78
    %p92 = scmp.eq.s32.totalorder %s18, 1
    %p93 = por %p91, %p92
    %p95 = scmp.ne.s32.totalorder %s78, %s94
    %p96 = scmp.eq.s32.totalorder %s18, 0
    %p97 = por %p95, %p96
    %s98 = ssub.s32 %s12, %s19
    %p99 = scmp.eq.s32.totalorder %s98, 0
    %s101 = sadd.s32 %s100, 1
    %s102 = scalar_select %p99, %s100, %s101
    %p105 = pneg %p99
    %p106 = scmp.eq.s32.totalorder %s12, 1
    %p107 = por %p105, %p106
    %p108 = scmp.ne.s32.totalorder %s100, %s103
    %p109 = scmp.eq.s32.totalorder %s12, 0
    %p110 = por %p108, %p109
    %p111 = scmp.ne.s32.totalorder %s100, %s103
    %p112 = scmp.eq.s32.totalorder %s17, 1
    %p113 = por %p111, %p112
    %p114 = scmp.ne.s32.totalorder %s103, %s104
    %p115 = scmp.eq.s32.totalorder %s17, 0
    %p116 = por %p114, %p115
    %p117 = scmp.ne.s32.totalorder %s103, %s104
    %p118 = scmp.eq.s32.totalorder %s18, 1
    %p119 = por %p117, %p118
    %p121 = scmp.ne.s32.totalorder %s104, %s120
    %p122 = scmp.eq.s32.totalorder %s18, 0
    %p123 = por %p121, %p122
    %s125 = sadd.s32 %s124, 1
    %p128 = scmp.eq.s32.totalorder %s12, 1
    %p129 = scmp.ne.s32.totalorder %s124, %s126
    %p130 = scmp.eq.s32.totalorder %s12, 0
    %p131 = por %p129, %p130
    %p132 = scmp.ne.s32.totalorder %s124, %s126
    %p133 = scmp.eq.s32.totalorder %s17, 1
    %p134 = por %p132, %p133
    %p135 = scmp.ne.s32.totalorder %s126, %s127
    %p136 = scmp.eq.s32.totalorder %s17, 0
    %p137 = por %p135, %p136
    %p138 = scmp.ne.s32.totalorder %s126, %s127
    %p139 = scmp.eq.s32.totalorder %s18, 1
    %p140 = por %p138, %p139
    %p142 = scmp.ne.s32.totalorder %s127, %s141
    %p143 = scmp.eq.s32.totalorder %s18, 0
    %p144 = por %p142, %p143
    %s146 = sadd.s32 %s145, 1
    %p149 = scmp.eq.s32.totalorder %s12, 1
    %p150 = scmp.ne.s32.totalorder %s145, %s147
    %p151 = scmp.eq.s32.totalorder %s12, 0
    %p152 = por %p150, %p151
    %p153 = scmp.ne.s32.totalorder %s145, %s147
    %p154 = scmp.eq.s32.totalorder %s17, 1
    %p155 = por %p153, %p154
    %p156 = scmp.ne.s32.totalorder %s147, %s148
    %p157 = scmp.eq.s32.totalorder %s17, 0
    %p158 = por %p156, %p157
    %p159 = scmp.ne.s32.totalorder %s147, %s148
    %p160 = scmp.eq.s32.totalorder %s18, 1
    %p161 = por %p159, %p160
    %p163 = scmp.ne.s32.totalorder %s148, %s162
    %p164 = scmp.eq.s32.totalorder %s18, 0
    %p165 = por %p163, %p164
    %s166 = ssub.s32 %s12, %s19
    %p167 = scmp.eq.s32.totalorder %s166, 0
    %s169 = sadd.s32 %s168, 1
    %s170 = scalar_select %p167, %s168, %s169
    %p173 = pneg %p167
    %p174 = scmp.eq.s32.totalorder %s12, 1
    %p175 = por %p173, %p174
    %p176 = scmp.ne.s32.totalorder %s168, %s171
    %p177 = scmp.eq.s32.totalorder %s12, 0
    %p178 = por %p176, %p177
    %p179 = scmp.ne.s32.totalorder %s168, %s171
    %p180 = scmp.eq.s32.totalorder %s17, 1
    %p181 = por %p179, %p180
    %p182 = scmp.ne.s32.totalorder %s171, %s172
    %p183 = scmp.eq.s32.totalorder %s17, 0
    %p184 = por %p182, %p183
    %p185 = scmp.ne.s32.totalorder %s171, %s172
    %p186 = scmp.eq.s32.totalorder %s18, 1
    %p187 = por %p185, %p186
    %p189 = scmp.ne.s32.totalorder %s172, %s188
    %p190 = scmp.eq.s32.totalorder %s18, 0
    %p191 = por %p189, %p190
    %p192 = scmp.le.s32.totalorder 1, %s12
    %p193 = scmp.lt.s32.totalorder %s12, 3
    %p194 = pnand %p192, %p193
    %p195 = pneg %p194
    // Predicated region
    $region9: #{convnn_forward.5} parent=5 // pred_check
      _
    $region10: #{convnn_forward.5} parent=5 // pred_check_branch
      %197 = sbr.rel (%p194) target = $region12
    $region11: #{convnn_forward.5} parent=5 // pred_region
      %s198 = ssub.s32 %s12, 1
      // Predicated region
      $region13: #{convnn_forward.5} parent=11 // pred_check
        %p199 = pneg %p137
      $region14: #{convnn_forward.5} parent=11 // pred_check_branch
        %201 = sbr.rel (%p199) target = $region16
      $region15: #{convnn_forward.5} parent=11 // pred_region
        _
      $region16: #{convnn_forward.5} parent=11 // pred_fallthru
        _
      // Predicated region
      $region17: #{convnn_forward.5} parent=11 // pred_check
        %p202 = pneg %p158
      $region18: #{convnn_forward.5} parent=11 // pred_check_branch
        %204 = sbr.rel (%p202) target = $region20
      $region19: #{convnn_forward.5} parent=11 // pred_region
        _
      $region20: #{convnn_forward.5} parent=11 // pred_fallthru
        _
    $region12: #{convnn_forward.5} parent=5 // pred_fallthru
      _
    %p205 = scmp.lt.s32.totalorder %s12, 2
    // Predicated region
    $region21: #{convnn_forward.5} parent=5 // pred_check
      %p206 = pneg %p205
    $region22: #{convnn_forward.5} parent=5 // pred_check_branch
      %208 = sbr.rel (%p206) target = $region24
    $region23: #{convnn_forward.5} parent=5 // pred_region
      // Predicated region
      $region25: #{convnn_forward.5} parent=23 // pred_check
        %p209 = pneg %p32
      $region26: #{convnn_forward.5} parent=23 // pred_check_branch
        %211 = sbr.rel (%p209) target = $region28
      $region27: #{convnn_forward.5} parent=23 // pred_region
        %s212 = smul.u32 32, %s12
        %p213 = scmp.lt.s32.totalorder %s212, 63
        %s214 = scalar_select %p213, %s212, 63
        %s215 = smul.addr %s214, 3
        %s216 = smul.addr %s215, 4
        %s217 = scalar_lea.vmem %s0, %s216
        %s218 = smul.u32 32, %s12
      $region28: #{convnn_forward.5} parent=23 // pred_fallthru
        _
      // Predicated region
      $region29: #{convnn_forward.5} parent=23 // pred_check
        %p219 = pneg %p58
      $region30: #{convnn_forward.5} parent=23 // pred_check_branch
        %221 = sbr.rel (%p219) target = $region32
      $region31: #{convnn_forward.5} parent=23 // pred_region
        %s222 = smul.u32 32, %s12
        %p223 = scmp.lt.s32.totalorder %s222, 63
        %s224 = scalar_select %p223, %s222, 63
        %s225 = smul.addr %s224, 3
        %s226 = smul.addr %s225, 4
        %s227 = scalar_lea.vmem %s1, %s226
        %s228 = smul.u32 32, %s12
      $region32: #{convnn_forward.5} parent=23 // pred_fallthru
        _
      // Predicated region
      $region33: #{convnn_forward.5} parent=23 // pred_check
        %p229 = pneg %p84
      $region34: #{convnn_forward.5} parent=23 // pred_check_branch
        %231 = sbr.rel (%p229) target = $region36
      $region35: #{convnn_forward.5} parent=23 // pred_region
        %s232 = smul.u32 32, %s12
        %p233 = scmp.lt.s32.totalorder %s232, 63
        %s234 = scalar_select %p233, %s232, 63
        %s235 = smul.addr %s234, 3
        %s236 = smul.addr %s235, 4
        %s237 = scalar_lea.vmem %s2, %s236
        %s238 = smul.u32 32, %s12
      $region36: #{convnn_forward.5} parent=23 // pred_fallthru
        _
      // Predicated region
      $region37: #{convnn_forward.5} parent=23 // pred_check
        %p239 = pneg %p110
      $region38: #{convnn_forward.5} parent=23 // pred_check_branch
        %241 = sbr.rel (%p239) target = $region40
      $region39: #{convnn_forward.5} parent=23 // pred_region
        %s242 = smul.u32 32, %s12
        %p243 = scmp.lt.s32.totalorder %s242, 63
        %s244 = scalar_select %p243, %s242, 63
        %s245 = smul.addr %s244, 3
        %s246 = smul.addr %s245, 4
        %s247 = scalar_lea.vmem %s3, %s246
        %s248 = smul.u32 32, %s12
      $region40: #{convnn_forward.5} parent=23 // pred_fallthru
        _
    $region24: #{convnn_forward.5} parent=5 // pred_fallthru
      _
    %p249 = scmp.le.s32.totalorder 1, %s12
    %p250 = scmp.lt.s32.totalorder %s12, 3
    %p251 = pnand %p249, %p250
    %p252 = pneg %p251
    // Predicated region
    $region41: #{convnn_forward.5} parent=5 // pred_check
      _
    $region42: #{convnn_forward.5} parent=5 // pred_check_branch
      %254 = sbr.rel (%p251) target = $region44
    $region43: #{convnn_forward.5} parent=5 // pred_region
      %s255 = ssub.s32 %s12, 1
      %s256 = smul.u32 32, %s17
      %p257 = scmp.lt.s32.totalorder %s256, 63
      %s258 = scalar_select %p257, %s256, 63
      %s259 = smul.addr %s258, 3
      %s260 = smul.addr %s259, 4
      %s261 = scalar_lea.vmem %s0, %s260
      %p262 = pneg %p38
      %p263 = pneg %p35
      %s264 = smul.u32 32, %s17
      %p265 = scmp.lt.s32.totalorder %s264, 63
      %s266 = scalar_select %p265, %s264, 63
      %s267 = smul.addr %s266, 3
      %s268 = smul.addr %s267, 4
      %s269 = scalar_lea.vmem %s1, %s268
      %p270 = pneg %p64
      %p271 = pneg %p61
      %s272 = smul.u32 32, %s17
      %p273 = scmp.lt.s32.totalorder %s272, 63
      %s274 = scalar_select %p273, %s272, 63
      %s275 = smul.addr %s274, 3
      %s276 = smul.addr %s275, 4
      %s277 = scalar_lea.vmem %s2, %s276
      %p278 = pneg %p90
      %p279 = pneg %p87
      %s280 = smul.u32 32, %s17
      %p281 = scmp.lt.s32.totalorder %s280, 63
      %s282 = scalar_select %p281, %s280, 63
      %s283 = smul.addr %s282, 3
      %s284 = smul.addr %s283, 4
      %s285 = scalar_lea.vmem %s3, %s284
      %p286 = pneg %p116
      %p287 = pneg %p113
      %p288 = pneg %p137
      %p289 = pneg %p134
      %p290 = pneg %p158
      %p291 = pneg %p155
      %p292 = pneg %p184
      %p293 = pneg %p181
      %s294 = smul.u32 32, %s17
      %p295 = scmp.lt.s32.totalorder %s294, 63
      %s296 = scalar_select %p295, %s294, 63
      %s297 = smul.addr %s296, 8
      %s298 = scalar_lea.vmem %s6, %s297
      %s299 = smul.u32 32, %s17
      %p300 = scmp.lt.s32.totalorder %s299, 63
      %s301 = scalar_select %p300, %s299, 63
      %s302 = smul.addr %s301, 3
      %s303 = smul.addr %s302, 4
      %s304 = scalar_lea.vmem %s0, %s303
      %s305 = smul.u32 32, %s17
      %s306 = smul.u32 32, %s17
      %p307 = scmp.lt.s32.totalorder %s306, 63
      %s308 = scalar_select %p307, %s306, 63
      %s309 = smul.addr %s308, 3
      %s310 = smul.addr %s309, 4
      %s311 = scalar_lea.vmem %s1, %s310
      %s312 = smul.u32 32, %s17
      %s313 = smul.u32 32, %s17
      %p314 = scmp.lt.s32.totalorder %s313, 63
      %s315 = scalar_select %p314, %s313, 63
      %s316 = smul.addr %s315, 3
      %s317 = smul.addr %s316, 4
      %s318 = scalar_lea.vmem %s2, %s317
      %s319 = smul.u32 32, %s17
      %s320 = smul.u32 32, %s17
      %p321 = scmp.lt.s32.totalorder %s320, 63
      %s322 = scalar_select %p321, %s320, 63
      %s323 = smul.addr %s322, 3
      %s324 = smul.addr %s323, 4
      %s325 = scalar_lea.vmem %s3, %s324
      %s326 = smul.u32 32, %s17
      %s327 = smul.u32 32, %s17
      %p328 = scmp.lt.s32.totalorder %s327, 63
      %s329 = scalar_select %p328, %s327, 63
      %s330 = smul.addr %s329, 8
      %s331 = scalar_lea.vmem %s6, %s330
      %s332 = smul.u32 32, %s17
      %v334 = vld [vmem:[%s4] sm:$0xf]
      %v335 = vld [vmem:[%s4 + $0x4] sm:$0xf]
      %v336 = vld [vmem:[%s4 + $0x8] sm:$0xf]
      %v337 = vld [vmem:[%s4 + $0xc] sm:$0xf]
      %v338 = vld [vmem:[%s4 + $0x10] sm:$0xf]
      %v339 = vld [vmem:[%s4 + $0x14] sm:$0xf]
      %v340 = vld [vmem:[%s4 + $0x18] sm:$0xf]
      %v341 = vld [vmem:[%s4 + $0x1c] sm:$0xf]
      %v342 = vld [vmem:[%s4 + $0x20] sm:$0xf]
      %v343 = vld [vmem:[%s4 + $0x24] sm:$0xf]
      %v344 = vld [vmem:[%s4 + $0x28] sm:$0xf]
      %v345 = vld [vmem:[%s4 + $0x2c] sm:$0xf]
      %v346 = vld [vmem:[%s4 + $0x30] sm:$0xf]
      %v347 = vld [vmem:[%s4 + $0x34] sm:$0xf]
      %v348 = vld [vmem:[%s4 + $0x38] sm:$0xf]
      %v349 = vld [vmem:[%s4 + $0x3c] sm:$0xf]
      %v350 = vld [vmem:[%s4 + $0x40] sm:$0xf]
      %v351 = vld [vmem:[%s4 + $0x44] sm:$0xf]
      %v352 = vld [vmem:[%s4 + $0x48] sm:$0xf]
      %v353 = vld [vmem:[%s4 + $0x4c] sm:$0xf]
      %v354 = vld [vmem:[%s4 + $0x50] sm:$0xf]
      %v355 = vld [vmem:[%s4 + $0x54] sm:$0xf]
      %v356 = vld [vmem:[%s4 + $0x58] sm:$0xf]
      %v357 = vld [vmem:[%s4 + $0x5c] sm:$0xf]
      %v358 = vld [vmem:[%s4 + $0x60] sm:$0xf]
      %v359 = vld [vmem:[%s4 + $0x64] sm:$0xf]
      %v360 = vld [vmem:[%s4 + $0x68] sm:$0xf]
      %v361 = vld [vmem:[%s4 + $0x6c] sm:$0xf]
      %v362 = vld [vmem:[%s4 + $0x70] sm:$0xf]
      %v363 = vld [vmem:[%s4 + $0x74] sm:$0xf]
      %v364 = vld [vmem:[%s4 + $0x78] sm:$0xf]
      %v365 = vld [vmem:[%s4 + $0x7c] sm:$0xf]
      %v366 = vld [vmem:[%s4 + $0x80] sm:$0xf]
      %v367 = vld [vmem:[%s4 + $0x84] sm:$0xf]
      %v368 = vld [vmem:[%s4 + $0x88] sm:$0xf]
      %v369 = vld [vmem:[%s4 + $0x8c] sm:$0xf]
      %v370 = vld [vmem:[%s304] sm:$0xff]
      %v371 = vld [vmem:[%s304 + $0x8] sm:$0xf]
      %v372 = vld [vmem:[%s304 + $0xc] sm:$0xff]
      %v373 = vld [vmem:[%s304 + $0x14] sm:$0xf]
      %v374 = vld [vmem:[%s304 + $0x18] sm:$0xff]
      %v375 = vld [vmem:[%s304 + $0x20] sm:$0xf]
      %v376 = vld [vmem:[%s304 + $0x24] sm:$0xff]
      %v377 = vld [vmem:[%s304 + $0x2c] sm:$0xf]
      %v378 = vld [vmem:[%s304 + $0x30] sm:$0xff]
      %v379 = vld [vmem:[%s304 + $0x38] sm:$0xf]
      %v380 = vld [vmem:[%s304 + $0x3c] sm:$0xff]
      %v381 = vld [vmem:[%s304 + $0x44] sm:$0xf]
      %v382 = vld [vmem:[%s304 + $0x48] sm:$0xff]
      %v383 = vld [vmem:[%s304 + $0x50] sm:$0xf]
      %v384 = vld [vmem:[%s304 + $0x54] sm:$0xff]
      %v385 = vld [vmem:[%s304 + $0x5c] sm:$0xf]
      %v386 = vld [vmem:[%s304 + $0x60] sm:$0xff]
      %v387 = vld [vmem:[%s304 + $0x68] sm:$0xf]
      %v388 = vld [vmem:[%s304 + $0x6c] sm:$0xff]
      %v389 = vld [vmem:[%s304 + $0x74] sm:$0xf]
      %v390 = vld [vmem:[%s304 + $0x78] sm:$0xff]
      %v391 = vld [vmem:[%s304 + $0x80] sm:$0xf]
      %v392 = vld [vmem:[%s304 + $0x84] sm:$0xff]
      %v393 = vld [vmem:[%s304 + $0x8c] sm:$0xf]
      %v394 = vld [vmem:[%s304 + $0x90] sm:$0xff]
      %v395 = vld [vmem:[%s304 + $0x98] sm:$0xf]
      %v396 = vld [vmem:[%s304 + $0x9c] sm:$0xff]
      %v397 = vld [vmem:[%s304 + $0xa4] sm:$0xf]
      %v398 = vld [vmem:[%s304 + $0xa8] sm:$0xff]
      %v399 = vld [vmem:[%s304 + $0xb0] sm:$0xf]
      %v400 = vld [vmem:[%s304 + $0xb4] sm:$0xff]
      %v401 = vld [vmem:[%s304 + $0xbc] sm:$0xf]
      %v402 = vld [vmem:[%s304 + $0xc0] sm:$0xff]
      %v403 = vld [vmem:[%s304 + $0xc8] sm:$0xf]
      %v404 = vld [vmem:[%s304 + $0xcc] sm:$0xff]
      %v405 = vld [vmem:[%s304 + $0xd4] sm:$0xf]
      %v406 = vld [vmem:[%s304 + $0xd8] sm:$0xff]
      %v407 = vld [vmem:[%s304 + $0xe0] sm:$0xf]
      %v408 = vld [vmem:[%s304 + $0xe4] sm:$0xff]
      %v409 = vld [vmem:[%s304 + $0xec] sm:$0xf]
      %v410 = vld [vmem:[%s304 + $0xf0] sm:$0xff]
      %v411 = vld [vmem:[%s304 + $0xf8] sm:$0xf]
      %v412 = vld [vmem:[%s304 + $0xfc] sm:$0xff]
      %v413 = vld [vmem:[%s304 + $0x104] sm:$0xf]
      %v414 = vld [vmem:[%s304 + $0x108] sm:$0xff]
      %v415 = vld [vmem:[%s304 + $0x110] sm:$0xf]
      %v416 = vld [vmem:[%s304 + $0x114] sm:$0xff]
      %v417 = vld [vmem:[%s304 + $0x11c] sm:$0xf]
      %v418 = vld [vmem:[%s304 + $0x120] sm:$0xff]
      %v419 = vld [vmem:[%s304 + $0x128] sm:$0xf]
      %v420 = vld [vmem:[%s304 + $0x12c] sm:$0xff]
      %v421 = vld [vmem:[%s304 + $0x134] sm:$0xf]
      %v422 = vld [vmem:[%s304 + $0x138] sm:$0xff]
      %v423 = vld [vmem:[%s304 + $0x140] sm:$0xf]
      %v424 = vld [vmem:[%s304 + $0x144] sm:$0xff]
      %v425 = vld [vmem:[%s304 + $0x14c] sm:$0xf]
      %v426 = vld [vmem:[%s304 + $0x150] sm:$0xff]
      %v427 = vld [vmem:[%s304 + $0x158] sm:$0xf]
      %v428 = vld [vmem:[%s304 + $0x15c] sm:$0xff]
      %v429 = vld [vmem:[%s304 + $0x164] sm:$0xf]
      %v430 = vld [vmem:[%s304 + $0x168] sm:$0xff]
      %v431 = vld [vmem:[%s304 + $0x170] sm:$0xf]
      %v432 = vld [vmem:[%s304 + $0x174] sm:$0xff]
      %v433 = vld [vmem:[%s304 + $0x17c] sm:$0xf]
      %v498 = vunpack.c.l.b16 %v370
      %v499 = vunpack.c.h.b16 %v370
      %v500 = vunpack.c.l.b16 %v371
      %v501 = vunpack.c.l.b16 %v372
      %v502 = vunpack.c.h.b16 %v372
      %v503 = vunpack.c.l.b16 %v373
      %v504 = vunpack.c.l.b16 %v374
      %v505 = vunpack.c.h.b16 %v374
      %v506 = vunpack.c.l.b16 %v375
      %v507 = vunpack.c.l.b16 %v376
      %v508 = vunpack.c.h.b16 %v376
      %v509 = vunpack.c.l.b16 %v377
      %v510 = vunpack.c.l.b16 %v378
      %v511 = vunpack.c.h.b16 %v378
      %v512 = vunpack.c.l.b16 %v379
      %v513 = vunpack.c.l.b16 %v380
      %v514 = vunpack.c.h.b16 %v380
      %v515 = vunpack.c.l.b16 %v381
      %v516 = vunpack.c.l.b16 %v382
      %v517 = vunpack.c.h.b16 %v382
      %v518 = vunpack.c.l.b16 %v383
      %v519 = vunpack.c.l.b16 %v384
      %v520 = vunpack.c.h.b16 %v384
      %v521 = vunpack.c.l.b16 %v385
      %v522 = vunpack.c.l.b16 %v386
      %v523 = vunpack.c.h.b16 %v386
      %v524 = vunpack.c.l.b16 %v387
      %v525 = vunpack.c.l.b16 %v388
      %v526 = vunpack.c.h.b16 %v388
      %v527 = vunpack.c.l.b16 %v389
      %v528 = vunpack.c.l.b16 %v390
      %v529 = vunpack.c.h.b16 %v390
      %v530 = vunpack.c.l.b16 %v391
      %v531 = vunpack.c.l.b16 %v392
      %v532 = vunpack.c.h.b16 %v392
      %v533 = vunpack.c.l.b16 %v393
      %v534 = vunpack.c.l.b16 %v394
      %v535 = vunpack.c.h.b16 %v394
      %v536 = vunpack.c.l.b16 %v395
      %v537 = vunpack.c.l.b16 %v396
      %v538 = vunpack.c.h.b16 %v396
      %v539 = vunpack.c.l.b16 %v397
      %v540 = vunpack.c.l.b16 %v398
      %v541 = vunpack.c.h.b16 %v398
      %v542 = vunpack.c.l.b16 %v399
      %v543 = vunpack.c.l.b16 %v400
      %v544 = vunpack.c.h.b16 %v400
      %v545 = vunpack.c.l.b16 %v401
      %v546 = vunpack.c.l.b16 %v402
      %v547 = vunpack.c.h.b16 %v402
      %v548 = vunpack.c.l.b16 %v403
      %v549 = vunpack.c.l.b16 %v404
      %v550 = vunpack.c.h.b16 %v404
      %v551 = vunpack.c.l.b16 %v405
      %v552 = vunpack.c.l.b16 %v406
      %v553 = vunpack.c.h.b16 %v406
      %v554 = vunpack.c.l.b16 %v407
      %v555 = vunpack.c.l.b16 %v408
      %v556 = vunpack.c.h.b16 %v408
      %v557 = vunpack.c.l.b16 %v409
      %v558 = vunpack.c.l.b16 %v410
      %v559 = vunpack.c.h.b16 %v410
      %v560 = vunpack.c.l.b16 %v411
      %v561 = vunpack.c.l.b16 %v412
      %v562 = vunpack.c.h.b16 %v412
      %v563 = vunpack.c.l.b16 %v413
      %v564 = vunpack.c.l.b16 %v414
      %v565 = vunpack.c.h.b16 %v414
      %v566 = vunpack.c.l.b16 %v415
      %v567 = vunpack.c.l.b16 %v416
      %v568 = vunpack.c.h.b16 %v416
      %v569 = vunpack.c.l.b16 %v417
      %v570 = vunpack.c.l.b16 %v418
      %v571 = vunpack.c.h.b16 %v418
      %v572 = vunpack.c.l.b16 %v419
      %v573 = vunpack.c.l.b16 %v420
      %v574 = vunpack.c.h.b16 %v420
      %v575 = vunpack.c.l.b16 %v421
      %v576 = vunpack.c.l.b16 %v422
      %v577 = vunpack.c.h.b16 %v422
      %v578 = vunpack.c.l.b16 %v423
      %v579 = vunpack.c.l.b16 %v424
      %v580 = vunpack.c.h.b16 %v424
      %v581 = vunpack.c.l.b16 %v425
      %v582 = vunpack.c.l.b16 %v426
      %v583 = vunpack.c.h.b16 %v426
      %v584 = vunpack.c.l.b16 %v427
      %v585 = vunpack.c.l.b16 %v428
      %v586 = vunpack.c.h.b16 %v428
      %v587 = vunpack.c.l.b16 %v429
      %v588 = vunpack.c.l.b16 %v430
      %v589 = vunpack.c.h.b16 %v430
      %v590 = vunpack.c.l.b16 %v431
      %v591 = vunpack.c.l.b16 %v432
      %v592 = vunpack.c.h.b16 %v432
      %v593 = vunpack.c.l.b16 %v433
      %v594 = vpack.c.b16 %v501, %v498
      %v595 = vpack.c.b16 %v502, %v499
      %v596 = vpack.c.b16 %v503, %v500
      %v597 = vpack.c.b16 %v507, %v504
      %v598 = vpack.c.b16 %v508, %v505
      %v599 = vpack.c.b16 %v509, %v506
      %v600 = vpack.c.b16 %v513, %v510
      %v601 = vpack.c.b16 %v514, %v511
      %v602 = vpack.c.b16 %v515, %v512
      %v603 = vpack.c.b16 %v519, %v516
      %v604 = vpack.c.b16 %v520, %v517
      %v605 = vpack.c.b16 %v521, %v518
      %v606 = vpack.c.b16 %v525, %v522
      %v607 = vpack.c.b16 %v526, %v523
      %v608 = vpack.c.b16 %v527, %v524
      %v609 = vpack.c.b16 %v531, %v528
      %v610 = vpack.c.b16 %v532, %v529
      %v611 = vpack.c.b16 %v533, %v530
      %v612 = vpack.c.b16 %v537, %v534
      %v613 = vpack.c.b16 %v538, %v535
      %v614 = vpack.c.b16 %v539, %v536
      %v615 = vpack.c.b16 %v543, %v540
      %v616 = vpack.c.b16 %v544, %v541
      %v617 = vpack.c.b16 %v545, %v542
      %v618 = vpack.c.b16 %v549, %v546
      %v619 = vpack.c.b16 %v550, %v547
      %v620 = vpack.c.b16 %v551, %v548
      %v621 = vpack.c.b16 %v555, %v552
      %v622 = vpack.c.b16 %v556, %v553
      %v623 = vpack.c.b16 %v557, %v554
      %v624 = vpack.c.b16 %v561, %v558
      %v625 = vpack.c.b16 %v562, %v559
      %v626 = vpack.c.b16 %v563, %v560
      %v627 = vpack.c.b16 %v567, %v564
      %v628 = vpack.c.b16 %v568, %v565
      %v629 = vpack.c.b16 %v569, %v566
      %v630 = vpack.c.b16 %v573, %v570
      %v631 = vpack.c.b16 %v574, %v571
      %v632 = vpack.c.b16 %v575, %v572
      %v633 = vpack.c.b16 %v579, %v576
      %v634 = vpack.c.b16 %v580, %v577
      %v635 = vpack.c.b16 %v581, %v578
      %v636 = vpack.c.b16 %v585, %v582
      %v637 = vpack.c.b16 %v586, %v583
      %v638 = vpack.c.b16 %v587, %v584
      %v639 = vpack.c.b16 %v591, %v588
      %v640 = vpack.c.b16 %v592, %v589
      %v641 = vpack.c.b16 %v593, %v590
      %v710 = vunpack.c.l.b16 %v334
      %v711 = vunpack.c.l.b16 %v335
      %v712 = vunpack.c.l.b16 %v336
      %v713 = vunpack.c.l.b16 %v337
      %v714 = vunpack.c.l.b16 %v338
      %v715 = vunpack.c.l.b16 %v339
      %v716 = vunpack.c.l.b16 %v340
      %v717 = vunpack.c.l.b16 %v341
      %v718 = vunpack.c.l.b16 %v342
      %v719 = vunpack.c.l.b16 %v343
      %v720 = vunpack.c.l.b16 %v344
      %v721 = vunpack.c.l.b16 %v345
      %v722 = vunpack.c.l.b16 %v346
      %v723 = vunpack.c.l.b16 %v347
      %v724 = vunpack.c.l.b16 %v348
      %v725 = vunpack.c.l.b16 %v349
      %v726 = vunpack.c.l.b16 %v350
      %v727 = vunpack.c.l.b16 %v351
      %v728 = vunpack.c.l.b16 %v352
      %v729 = vunpack.c.l.b16 %v353
      %v730 = vunpack.c.l.b16 %v354
      %v731 = vunpack.c.l.b16 %v355
      %v732 = vunpack.c.l.b16 %v356
      %v733 = vunpack.c.l.b16 %v357
      %v734 = vunpack.c.l.b16 %v358
      %v735 = vunpack.c.l.b16 %v359
      %v736 = vunpack.c.l.b16 %v360
      %v737 = vunpack.c.l.b16 %v361
      %v738 = vunpack.c.l.b16 %v362
      %v739 = vunpack.c.l.b16 %v363
      %v740 = vunpack.c.l.b16 %v364
      %v741 = vunpack.c.l.b16 %v365
      %v742 = vunpack.c.l.b16 %v366
      %v743 = vunpack.c.l.b16 %v367
      %v744 = vunpack.c.l.b16 %v368
      %v745 = vunpack.c.l.b16 %v369
      %v746 = vpack.c.b16 %v711, %v710
      %v747 = vpack.c.b16 %v713, %v712
      %v748 = vpack.c.b16 %v715, %v714
      %v749 = vpack.c.b16 %v717, %v716
      %v750 = vpack.c.b16 %v719, %v718
      %v751 = vpack.c.b16 %v721, %v720
      %v752 = vpack.c.b16 %v723, %v722
      %v753 = vpack.c.b16 %v725, %v724
      %v754 = vpack.c.b16 %v727, %v726
      %v755 = vpack.c.b16 %v729, %v728
      %v756 = vpack.c.b16 %v731, %v730
      %v757 = vpack.c.b16 %v733, %v732
      %v758 = vpack.c.b16 %v735, %v734
      %v759 = vpack.c.b16 %v737, %v736
      %v760 = vpack.c.b16 %v739, %v738
      %v761 = vpack.c.b16 %v741, %v740
      %v762 = vpack.c.b16 %v743, %v742
      %v763 = vpack.c.b16 %v745, %v744
      %vm782 = vcmask 261120
      %v784 = vsel %vm782, %v596, 0
      %v787 = vsel %vm782, %v599, 0
      %v790 = vsel %vm782, %v602, 0
      %v793 = vsel %vm782, %v605, 0
      %v796 = vsel %vm782, %v608, 0
      %v799 = vsel %vm782, %v611, 0
      %v802 = vsel %vm782, %v614, 0
      %v805 = vsel %vm782, %v617, 0
      %v808 = vsel %vm782, %v620, 0
      %v811 = vsel %vm782, %v623, 0
      %v814 = vsel %vm782, %v626, 0
      %v817 = vsel %vm782, %v629, 0
      %v820 = vsel %vm782, %v632, 0
      %v823 = vsel %vm782, %v635, 0
      %v826 = vsel %vm782, %v638, 0
      %v829 = vsel %vm782, %v641, 0
      %831 = vmatprep.subr.bf16.mxu0 0
      %832 = vmatpush1.bf16.msra.mxu0 %v746
      %833 = vmatprep.subr.bf16.mxu0 0
      %834 = vmatpush1.bf16.msra.mxu0 %v747
      %835 = vmatprep.subr.bf16.mxu0 0
      %836 = vmatpush1.bf16.msra.mxu0 %v748
      %837 = vmatprep.subr.bf16.mxu0 0
      %838 = vmatpush1.bf16.msra.mxu0 %v749
      %839 = vmatprep.subr.bf16.mxu0 0
      %840 = vmatpush1.bf16.msra.mxu0 %v750
      %841 = vmatprep.subr.bf16.mxu0 0
      %842 = vmatpush1.bf16.msra.mxu0 %v751
      %843 = vmatprep.subr.bf16.mxu0 0
      %844 = vmatpush1.bf16.msra.mxu0 %v752
      %845 = vmatprep.subr.bf16.mxu0 0
      %846 = vmatpush1.bf16.msra.mxu0 %v753
      %847 = vmatprep.subr.bf16.mxu0 0
      %848 = vmatpush1.bf16.msra.mxu0 %v754
      %849 = vmatprep.subr.bf16.mxu0 0
      %850 = vmatpush1.bf16.msra.mxu0 %v755
      %851 = vmatprep.subr.bf16.mxu0 0
      %852 = vmatpush1.bf16.msra.mxu0 %v756
      %853 = vmatprep.subr.bf16.mxu0 0
      %854 = vmatpush1.bf16.msra.mxu0 %v757
      %855 = vmatprep.subr.bf16.mxu0 0
      %856 = vmatpush1.bf16.msra.mxu0 %v758
      %857 = vmatprep.subr.bf16.mxu0 0
      %858 = vmatpush1.bf16.msra.mxu0 %v759
      %859 = vmatprep.subr.bf16.mxu0 0
      %860 = vmatpush1.bf16.msra.mxu0 %v760
      %861 = vmatprep.subr.bf16.mxu0 0
      %862 = vmatpush1.bf16.msra.mxu0 %v761
      %863 = vmatprep.mubr.bf16.mxu0 %v595
      %864 = vmatmul.mubr.bf16.gmra.mrb[0].mxu0 %v594
      %v865 = vpop.f32.mrb[0].mxu0
      %v866 = vadd.f32 0.0, %v865
      %v867 = vpop.f32.mrb[0].mxu0
      %v868 = vpop.f32.mrb[0].mxu0
      %v869 = vadd.f32 0.0, %v868
      %v870 = vpop.f32.mrb[0].mxu0
      %871 = vmatprep.mubr.bf16.mxu0 %v598
      %872 = vmatmul.mubr.bf16.gmra.mrb[0].mxu0 %v597
      %v873 = vpop.f32.mrb[0].mxu0
      %v874 = vadd.f32 0.0, %v873
      %v875 = vpop.f32.mrb[0].mxu0
      %v876 = vpop.f32.mrb[0].mxu0
      %v877 = vadd.f32 0.0, %v876
      %v878 = vpop.f32.mrb[0].mxu0
      %879 = vmatprep.mubr.bf16.mxu0 %v601
      %880 = vmatmul.mubr.bf16.gmra.mrb[0].mxu0 %v600
      %v881 = vpop.f32.mrb[0].mxu0
      %v882 = vadd.f32 0.0, %v881
      %v883 = vpop.f32.mrb[0].mxu0
      %v884 = vpop.f32.mrb[0].mxu0
      %v885 = vadd.f32 0.0, %v884
      %v886 = vpop.f32.mrb[0].mxu0
      %887 = vmatprep.mubr.bf16.mxu0 %v604
      %888 = vmatmul.mubr.bf16.gmra.mrb[0].mxu0 %v603
      %v889 = vpop.f32.mrb[0].mxu0
      %v890 = vadd.f32 0.0, %v889
      %v891 = vpop.f32.mrb[0].mxu0
      %v892 = vpop.f32.mrb[0].mxu0
      %v893 = vadd.f32 0.0, %v892
      %v894 = vpop.f32.mrb[0].mxu0
      %895 = vmatprep.mubr.bf16.mxu0 %v607
      %896 = vmatmul.mubr.bf16.gmra.mrb[0].mxu0 %v606
      %v897 = vpop.f32.mrb[0].mxu0
      %v898 = vadd.f32 0.0, %v897
      %v899 = vpop.f32.mrb[0].mxu0
      %v900 = vpop.f32.mrb[0].mxu0
      %v901 = vadd.f32 0.0, %v900
      %v902 = vpop.f32.mrb[0].mxu0
      %903 = vmatprep.mubr.bf16.mxu0 %v610
      %904 = vmatmul.mubr.bf16.gmra.mrb[0].mxu0 %v609
      %v905 = vpop.f32.mrb[0].mxu0
      %v906 = vadd.f32 0.0, %v905
      %v907 = vpop.f32.mrb[0].mxu0
      %v908 = vpop.f32.mrb[0].mxu0
      %v909 = vadd.f32 0.0, %v908
      %v910 = vpop.f32.mrb[0].mxu0
      %911 = vmatprep.mubr.bf16.mxu0 %v613
      %912 = vmatmul.mubr.bf16.gmra.mrb[0].mxu0 %v612
      %v913 = vpop.f32.mrb[0].mxu0
      %v914 = vadd.f32 0.0, %v913
      %v915 = vpop.f32.mrb[0].mxu0
      %v916 = vpop.f32.mrb[0].mxu0
      %v917 = vadd.f32 0.0, %v916
      %v918 = vpop.f32.mrb[0].mxu0
      %919 = vmatprep.mubr.bf16.mxu0 %v616
      %920 = vmatmul.mubr.bf16.gmra.mrb[0].mxu0 %v615
      %v921 = vpop.f32.mrb[0].mxu0
      %v922 = vadd.f32 0.0, %v921
      %v923 = vpop.f32.mrb[0].mxu0
      %v924 = vpop.f32.mrb[0].mxu0
      %v925 = vadd.f32 0.0, %v924
      %v926 = vpop.f32.mrb[0].mxu0
      %927 = vmatprep.mubr.bf16.mxu0 %v619
      %928 = vmatmul.mubr.bf16.gmra.mrb[0].mxu0 %v618
      %v929 = vpop.f32.mrb[0].mxu0
      %v930 = vadd.f32 0.0, %v929
      %v931 = vpop.f32.mrb[0].mxu0
      %v932 = vpop.f32.mrb[0].mxu0
      %v933 = vadd.f32 0.0, %v932
      %v934 = vpop.f32.mrb[0].mxu0
      %935 = vmatprep.mubr.bf16.mxu0 %v622
      %936 = vmatmul.mubr.bf16.gmra.mrb[0].mxu0 %v621
      %v937 = vpop.f32.mrb[0].mxu0
      %v938 = vadd.f32 0.0, %v937
      %v939 = vpop.f32.mrb[0].mxu0
      %v940 = vpop.f32.mrb[0].mxu0
      %v941 = vadd.f32 0.0, %v940
      %v942 = vpop.f32.mrb[0].mxu0
      %943 = vmatprep.mubr.bf16.mxu0 %v625
      %944 = vmatmul.mubr.bf16.gmra.mrb[0].mxu0 %v624
      %v945 = vpop.f32.mrb[0].mxu0
      %v946 = vadd.f32 0.0, %v945
      %v947 = vpop.f32.mrb[0].mxu0
      %v948 = vpop.f32.mrb[0].mxu0
      %v949 = vadd.f32 0.0, %v948
      %v950 = vpop.f32.mrb[0].mxu0
      %951 = vmatprep.mubr.bf16.mxu0 %v628
      %952 = vmatmul.mubr.bf16.gmra.mrb[0].mxu0 %v627
      %v953 = vpop.f32.mrb[0].mxu0
      %v954 = vadd.f32 0.0, %v953
      %v955 = vpop.f32.mrb[0].mxu0
      %v956 = vpop.f32.mrb[0].mxu0
      %v957 = vadd.f32 0.0, %v956
      %v958 = vpop.f32.mrb[0].mxu0
      %959 = vmatprep.mubr.bf16.mxu0 %v631
      %960 = vmatmul.mubr.bf16.gmra.mrb[0].mxu0 %v630
      %v961 = vpop.f32.mrb[0].mxu0
      %v962 = vadd.f32 0.0, %v961
      %v963 = vpop.f32.mrb[0].mxu0
      %v964 = vpop.f32.mrb[0].mxu0
      %v965 = vadd.f32 0.0, %v964
      %v966 = vpop.f32.mrb[0].mxu0
      %967 = vmatprep.mubr.bf16.mxu0 %v634
      %968 = vmatmul.mubr.bf16.gmra.mrb[0].mxu0 %v633
      %v969 = vpop.f32.mrb[0].mxu0
      %v970 = vadd.f32 0.0, %v969
      %v971 = vpop.f32.mrb[0].mxu0
      %v972 = vpop.f32.mrb[0].mxu0
      %v973 = vadd.f32 0.0, %v972
      %v974 = vpop.f32.mrb[0].mxu0
      %975 = vmatprep.mubr.bf16.mxu0 %v637
      %976 = vmatmul.mubr.bf16.gmra.mrb[0].mxu0 %v636
      %v977 = vpop.f32.mrb[0].mxu0
      %v978 = vadd.f32 0.0, %v977
      %v979 = vpop.f32.mrb[0].mxu0
      %v980 = vpop.f32.mrb[0].mxu0
      %v981 = vadd.f32 0.0, %v980
      %v982 = vpop.f32.mrb[0].mxu0
      %983 = vmatprep.mubr.bf16.mxu0 %v640
      %984 = vmatmul.mubr.bf16.gmra.mrb[0].mxu0 %v639
      %v985 = vpop.f32.mrb[0].mxu0
      %v986 = vadd.f32 0.0, %v985
      %v987 = vpop.f32.mrb[0].mxu0
      %v988 = vpop.f32.mrb[0].mxu0
      %v989 = vadd.f32 0.0, %v988
      %v990 = vpop.f32.mrb[0].mxu0
      %991 = vdwg.mxu0
      %992 = vmatprep.subr.bf16.mxu0 0
      %993 = vmatpush1.bf16.msra.mxu0 %v762
      %994 = vmatprep.subr.bf16.mxu0 0
      %995 = vmatpush1.bf16.msra.mxu0 %v763
      %996 = vmatprep.subr.bf16.mxu0 0
      %997 = vmatpush1.bf16.msra.mxu0 0
      %998 = vmatprep.subr.bf16.mxu0 0
      %999 = vmatpush1.bf16.msra.mxu0 0
      %1000 = vmatprep.subr.bf16.mxu0 0
      %1001 = vmatpush1.bf16.msra.mxu0 0
      %1002 = vmatprep.subr.bf16.mxu0 0
      %1003 = vmatpush1.bf16.msra.mxu0 0
      %1004 = vmatprep.subr.bf16.mxu0 0
      %1005 = vmatpush1.bf16.msra.mxu0 0
      %1006 = vmatprep.subr.bf16.mxu0 0
      %1007 = vmatpush1.bf16.msra.mxu0 0
      %1008 = vmatprep.subr.bf16.mxu0 0
      %1009 = vmatpush1.bf16.msra.mxu0 0
      %1010 = vmatprep.subr.bf16.mxu0 0
      %1011 = vmatpush1.bf16.msra.mxu0 0
      %1012 = vmatprep.subr.bf16.mxu0 0
      %1013 = vmatpush1.bf16.msra.mxu0 0
      %1014 = vmatprep.subr.bf16.mxu0 0
      %1015 = vmatpush1.bf16.msra.mxu0 0
      %1016 = vmatprep.subr.bf16.mxu0 0
      %1017 = vmatpush1.bf16.msra.mxu0 0
      %1018 = vmatprep.subr.bf16.mxu0 0
      %1019 = vmatpush1.bf16.msra.mxu0 0
      %1020 = vmatprep.subr.bf16.mxu0 0
      %1021 = vmatpush1.bf16.msra.mxu0 0
      %1022 = vmatprep.subr.bf16.mxu0 0
      %1023 = vmatpush1.bf16.msra.mxu0 0
      %1024 = vmatprep.mubr.bf16.mxu0 0
      %1025 = vmatmul.mubr.bf16.gmra.mrb[0].mxu0 %v784
      %v1026 = vpop.f32.mrb[0].mxu0
      %v1027 = vadd.f32 %v866, %v1026
      %v1028 = vpop.f32.mrb[0].mxu0
      %v1029 = vpop.f32.mrb[0].mxu0
      %v1030 = vadd.f32 %v869, %v1029
      %v1031 = vpop.f32.mrb[0].mxu0
      %1032 = vmatprep.mubr.bf16.mxu0 0
      %1033 = vmatmul.mubr.bf16.gmra.mrb[0].mxu0 %v787
      %v1034 = vpop.f32.mrb[0].mxu0
      %v1035 = vadd.f32 %v874, %v1034
      %v1036 = vpop.f32.mrb[0].mxu0
      %v1037 = vpop.f32.mrb[0].mxu0
      %v1038 = vadd.f32 %v877, %v1037
      %v1039 = vpop.f32.mrb[0].mxu0
      %1040 = vmatprep.mubr.bf16.mxu0 0
      %1041 = vmatmul.mubr.bf16.gmra.mrb[0].mxu0 %v790
      %v1042 = vpop.f32.mrb[0].mxu0
      %v1043 = vadd.f32 %v882, %v1042
      %v1044 = vpop.f32.mrb[0].mxu0
      %v1045 = vpop.f32.mrb[0].mxu0
      %v1046 = vadd.f32 %v885, %v1045
      %v1047 = vpop.f32.mrb[0].mxu0
      %1048 = vmatprep.mubr.bf16.mxu0 0
      %1049 = vmatmul.mubr.bf16.gmra.mrb[0].mxu0 %v793
      %v1050 = vpop.f32.mrb[0].mxu0
      %v1051 = vadd.f32 %v890, %v1050
      %v1052 = vpop.f32.mrb[0].mxu0
      %v1053 = vpop.f32.mrb[0].mxu0
      %v1054 = vadd.f32 %v893, %v1053
      %v1055 = vpop.f32.mrb[0].mxu0
      %1056 = vmatprep.mubr.bf16.mxu0 0
      %1057 = vmatmul.mubr.bf16.gmra.mrb[0].mxu0 %v796
      %v1058 = vpop.f32.mrb[0].mxu0
      %v1059 = vadd.f32 %v898, %v1058
      %v1060 = vpop.f32.mrb[0].mxu0
      %v1061 = vpop.f32.mrb[0].mxu0
      %v1062 = vadd.f32 %v901, %v1061
      %v1063 = vpop.f32.mrb[0].mxu0
      %1064 = vmatprep.mubr.bf16.mxu0 0
      %1065 = vmatmul.mubr.bf16.gmra.mrb[0].mxu0 %v799
      %v1066 = vpop.f32.mrb[0].mxu0
      %v1067 = vadd.f32 %v906, %v1066
      %v1068 = vpop.f32.mrb[0].mxu0
      %v1069 = vpop.f32.mrb[0].mxu0
      %v1070 = vadd.f32 %v909, %v1069
      %v1071 = vpop.f32.mrb[0].mxu0
      %1072 = vmatprep.mubr.bf16.mxu0 0
      %1073 = vmatmul.mubr.bf16.gmra.mrb[0].mxu0 %v802
      %v1074 = vpop.f32.mrb[0].mxu0
      %v1075 = vadd.f32 %v914, %v1074
      %v1076 = vpop.f32.mrb[0].mxu0
      %v1077 = vpop.f32.mrb[0].mxu0
      %v1078 = vadd.f32 %v917, %v1077
      %v1079 = vpop.f32.mrb[0].mxu0
      %1080 = vmatprep.mubr.bf16.mxu0 0
      %1081 = vmatmul.mubr.bf16.gmra.mrb[0].mxu0 %v805
      %v1082 = vpop.f32.mrb[0].mxu0
      %v1083 = vadd.f32 %v922, %v1082
      %v1084 = vpop.f32.mrb[0].mxu0
      %v1085 = vpop.f32.mrb[0].mxu0
      %v1086 = vadd.f32 %v925, %v1085
      %v1087 = vpop.f32.mrb[0].mxu0
      %1088 = vmatprep.mubr.bf16.mxu0 0
      %1089 = vmatmul.mubr.bf16.gmra.mrb[0].mxu0 %v808
      %v1090 = vpop.f32.mrb[0].mxu0
      %v1091 = vadd.f32 %v930, %v1090
      %v1092 = vpop.f32.mrb[0].mxu0
      %v1093 = vpop.f32.mrb[0].mxu0
      %v1094 = vadd.f32 %v933, %v1093
      %v1095 = vpop.f32.mrb[0].mxu0
      %1096 = vmatprep.mubr.bf16.mxu0 0
      %1097 = vmatmul.mubr.bf16.gmra.mrb[0].mxu0 %v811
      %v1098 = vpop.f32.mrb[0].mxu0
      %v1099 = vadd.f32 %v938, %v1098
      %v1100 = vpop.f32.mrb[0].mxu0
      %v1101 = vpop.f32.mrb[0].mxu0
      %v1102 = vadd.f32 %v941, %v1101
      %v1103 = vpop.f32.mrb[0].mxu0
      %1104 = vmatprep.mubr.bf16.mxu0 0
      %1105 = vmatmul.mubr.bf16.gmra.mrb[0].mxu0 %v814
      %v1106 = vpop.f32.mrb[0].mxu0
      %v1107 = vadd.f32 %v946, %v1106
      %v1108 = vpop.f32.mrb[0].mxu0
      %v1109 = vpop.f32.mrb[0].mxu0
      %v1110 = vadd.f32 %v949, %v1109
      %v1111 = vpop.f32.mrb[0].mxu0
      %1112 = vmatprep.mubr.bf16.mxu0 0
      %1113 = vmatmul.mubr.bf16.gmra.mrb[0].mxu0 %v817
      %v1114 = vpop.f32.mrb[0].mxu0
      %v1115 = vadd.f32 %v954, %v1114
      %v1116 = vpop.f32.mrb[0].mxu0
      %v1117 = vpop.f32.mrb[0].mxu0
      %v1118 = vadd.f32 %v957, %v1117
      %v1119 = vpop.f32.mrb[0].mxu0
      %1120 = vmatprep.mubr.bf16.mxu0 0
      %1121 = vmatmul.mubr.bf16.gmra.mrb[0].mxu0 %v820
      %v1122 = vpop.f32.mrb[0].mxu0
      %v1123 = vadd.f32 %v962, %v1122
      %v1124 = vpop.f32.mrb[0].mxu0
      %v1125 = vpop.f32.mrb[0].mxu0
      %v1126 = vadd.f32 %v965, %v1125
      %v1127 = vpop.f32.mrb[0].mxu0
      %1128 = vmatprep.mubr.bf16.mxu0 0
      %1129 = vmatmul.mubr.bf16.gmra.mrb[0].mxu0 %v823
      %v1130 = vpop.f32.mrb[0].mxu0
      %v1131 = vadd.f32 %v970, %v1130
      %v1132 = vpop.f32.mrb[0].mxu0
      %v1133 = vpop.f32.mrb[0].mxu0
      %v1134 = vadd.f32 %v973, %v1133
      %v1135 = vpop.f32.mrb[0].mxu0
      %1136 = vmatprep.mubr.bf16.mxu0 0
      %1137 = vmatmul.mubr.bf16.gmra.mrb[0].mxu0 %v826
      %v1138 = vpop.f32.mrb[0].mxu0
      %v1139 = vadd.f32 %v978, %v1138
      %v1140 = vpop.f32.mrb[0].mxu0
      %v1141 = vpop.f32.mrb[0].mxu0
      %v1142 = vadd.f32 %v981, %v1141
      %v1143 = vpop.f32.mrb[0].mxu0
      %1144 = vmatprep.mubr.bf16.mxu0 0
      %1145 = vmatmul.mubr.bf16.gmra.mrb[0].mxu0 %v829
      %v1146 = vpop.f32.mrb[0].mxu0
      %v1147 = vadd.f32 %v986, %v1146
      %v1148 = vpop.f32.mrb[0].mxu0
      %v1149 = vpop.f32.mrb[0].mxu0
      %v1150 = vadd.f32 %v989, %v1149
      %v1151 = vpop.f32.mrb[0].mxu0
      %1152 = vdwg.mxu0
      %v1153 = vld [vmem:[%s311] sm:$0xff]
      %v1154 = vld [vmem:[%s311 + $0x8] sm:$0xf]
      %v1155 = vld [vmem:[%s311 + $0xc] sm:$0xff]
      %v1156 = vld [vmem:[%s311 + $0x14] sm:$0xf]
      %v1157 = vld [vmem:[%s311 + $0x18] sm:$0xff]
      %v1158 = vld [vmem:[%s311 + $0x20] sm:$0xf]
      %v1159 = vld [vmem:[%s311 + $0x24] sm:$0xff]
      %v1160 = vld [vmem:[%s311 + $0x2c] sm:$0xf]
      %v1161 = vld [vmem:[%s311 + $0x30] sm:$0xff]
      %v1162 = vld [vmem:[%s311 + $0x38] sm:$0xf]
      %v1163 = vld [vmem:[%s311 + $0x3c] sm:$0xff]
      %v1164 = vld [vmem:[%s311 + $0x44] sm:$0xf]
      %v1165 = vld [vmem:[%s311 + $0x48] sm:$0xff]
      %v1166 = vld [vmem:[%s311 + $0x50] sm:$0xf]
      %v1167 = vld [vmem:[%s311 + $0x54] sm:$0xff]
      %v1168 = vld [vmem:[%s311 + $0x5c] sm:$0xf]
      %v1169 = vld [vmem:[%s311 + $0x60] sm:$0xff]
      %v1170 = vld [vmem:[%s311 + $0x68] sm:$0xf]
      %v1171 = vld [vmem:[%s311 + $0x6c] sm:$0xff]
      %v1172 = vld [vmem:[%s311 + $0x74] sm:$0xf]
      %v1173 = vld [vmem:[%s311 + $0x78] sm:$0xff]
      %v1174 = vld [vmem:[%s311 + $0x80] sm:$0xf]
      %v1175 = vld [vmem:[%s311 + $0x84] sm:$0xff]
      %v1176 = vld [vmem:[%s311 + $0x8c] sm:$0xf]
      %v1177 = vld [vmem:[%s311 + $0x90] sm:$0xff]
      %v1178 = vld [vmem:[%s311 + $0x98] sm:$0xf]
      %v1179 = vld [vmem:[%s311 + $0x9c] sm:$0xff]
      %v1180 = vld [vmem:[%s311 + $0xa4] sm:$0xf]
      %v1181 = vld [vmem:[%s311 + $0xa8] sm:$0xff]
      %v1182 = vld [vmem:[%s311 + $0xb0] sm:$0xf]
      %v1183 = vld [vmem:[%s311 + $0xb4] sm:$0xff]
      %v1184 = vld [vmem:[%s311 + $0xbc] sm:$0xf]
      %v1185 = vld [vmem:[%s311 + $0xc0] sm:$0xff]
      %v1186 = vld [vmem:[%s311 + $0xc8] sm:$0xf]
      %v1187 = vld [vmem:[%s311 + $0xcc] sm:$0xff]
      %v1188 = vld [vmem:[%s311 + $0xd4] sm:$0xf]
      %v1189 = vld [vmem:[%s311 + $0xd8] sm:$0xff]
      %v1190 = vld [vmem:[%s311 + $0xe0] sm:$0xf]
      %v1191 = vld [vmem:[%s311 + $0xe4] sm:$0xff]
      %v1192 = vld [vmem:[%s311 + $0xec] sm:$0xf]
      %v1193 = vld [vmem:[%s311 + $0xf0] sm:$0xff]
      %v1194 = vld [vmem:[%s311 + $0xf8] sm:$0xf]
      %v1195 = vld [vmem:[%s311 + $0xfc] sm:$0xff]
      %v1196 = vld [vmem:[%s311 + $0x104] sm:$0xf]
      %v1197 = vld [vmem:[%s311 + $0x108] sm:$0xff]
      %v1198 = vld [vmem:[%s311 + $0x110] sm:$0xf]
      %v1199 = vld [vmem:[%s311 + $0x114] sm:$0xff]
      %v1200 = vld [vmem:[%s311 + $0x11c] sm:$0xf]
      %v1201 = vld [vmem:[%s311 + $0x120] sm:$0xff]
      %v1202 = vld [vmem:[%s311 + $0x128] sm:$0xf]
      %v1203 = vld [vmem:[%s311 + $0x12c] sm:$0xff]
      %v1204 = vld [vmem:[%s311 + $0x134] sm:$0xf]
      %v1205 = vld [vmem:[%s311 + $0x138] sm:$0xff]
      %v1206 = vld [vmem:[%s311 + $0x140] sm:$0xf]
      %v1207 = vld [vmem:[%s311 + $0x144] sm:$0xff]
      %v1208 = vld [vmem:[%s311 + $0x14c] sm:$0xf]
      %v1209 = vld [vmem:[%s311 + $0x150] sm:$0xff]
      %v1210 = vld [vmem:[%s311 + $0x158] sm:$0xf]
      %v1211 = vld [vmem:[%s311 + $0x15c] sm:$0xff]
      %v1212 = vld [vmem:[%s311 + $0x164] sm:$0xf]
      %v1213 = vld [vmem:[%s311 + $0x168] sm:$0xff]
      %v1214 = vld [vmem:[%s311 + $0x170] sm:$0xf]
      %v1215 = vld [vmem:[%s311 + $0x174] sm:$0xff]
      %v1216 = vld [vmem:[%s311 + $0x17c] sm:$0xf]
      %v1281 = vunpack.c.l.b16 %v1153
      %v1282 = vunpack.c.h.b16 %v1153
      %v1283 = vunpack.c.l.b16 %v1154
      %v1284 = vunpack.c.l.b16 %v1155
      %v1285 = vunpack.c.h.b16 %v1155
      %v1286 = vunpack.c.l.b16 %v1156
      %v1287 = vunpack.c.l.b16 %v1157
      %v1288 = vunpack.c.h.b16 %v1157
      %v1289 = vunpack.c.l.b16 %v1158
      %v1290 = vunpack.c.l.b16 %v1159
      %v1291 = vunpack.c.h.b16 %v1159
      %v1292 = vunpack.c.l.b16 %v1160
      %v1293 = vunpack.c.l.b16 %v1161
      %v1294 = vunpack.c.h.b16 %v1161
      %v1295 = vunpack.c.l.b16 %v1162
      %v1296 = vunpack.c.l.b16 %v1163
      %v1297 = vunpack.c.h.b16 %v1163
      %v1298 = vunpack.c.l.b16 %v1164
      %v1299 = vunpack.c.l.b16 %v1165
      %v1300 = vunpack.c.h.b16 %v1165
      %v1301 = vunpack.c.l.b16 %v1166
      %v1302 = vunpack.c.l.b16 %v1167
      %v1303 = vunpack.c.h.b16 %v1167
      %v1304 = vunpack.c.l.b16 %v1168
      %v1305 = vunpack.c.l.b16 %v1169
      %v1306 = vunpack.c.h.b16 %v1169
      %v1307 = vunpack.c.l.b16 %v1170
      %v1308 = vunpack.c.l.b16 %v1171
      %v1309 = vunpack.c.h.b16 %v1171
      %v1310 = vunpack.c.l.b16 %v1172
      %v1311 = vunpack.c.l.b16 %v1173
      %v1312 = vunpack.c.h.b16 %v1173
      %v1313 = vunpack.c.l.b16 %v1174
      %v1314 = vunpack.c.l.b16 %v1175
      %v1315 = vunpack.c.h.b16 %v1175
      %v1316 = vunpack.c.l.b16 %v1176
      %v1317 = vunpack.c.l.b16 %v1177
      %v1318 = vunpack.c.h.b16 %v1177
      %v1319 = vunpack.c.l.b16 %v1178
      %v1320 = vunpack.c.l.b16 %v1179
      %v1321 = vunpack.c.h.b16 %v1179
      %v1322 = vunpack.c.l.b16 %v1180
      %v1323 = vunpack.c.l.b16 %v1181
      %v1324 = vunpack.c.h.b16 %v1181
      %v1325 = vunpack.c.l.b16 %v1182
      %v1326 = vunpack.c.l.b16 %v1183
      %v1327 = vunpack.c.h.b16 %v1183
      %v1328 = vunpack.c.l.b16 %v1184
      %v1329 = vunpack.c.l.b16 %v1185
      %v1330 = vunpack.c.h.b16 %v1185
      %v1331 = vunpack.c.l.b16 %v1186
      %v1332 = vunpack.c.l.b16 %v1187
      %v1333 = vunpack.c.h.b16 %v1187
      %v1334 = vunpack.c.l.b16 %v1188
      %v1335 = vunpack.c.l.b16 %v1189
      %v1336 = vunpack.c.h.b16 %v1189
      %v1337 = vunpack.c.l.b16 %v1190
      %v1338 = vunpack.c.l.b16 %v1191
      %v1339 = vunpack.c.h.b16 %v1191
      %v1340 = vunpack.c.l.b16 %v1192
      %v1341 = vunpack.c.l.b16 %v1193
      %v1342 = vunpack.c.h.b16 %v1193
      %v1343 = vunpack.c.l.b16 %v1194
      %v1344 = vunpack.c.l.b16 %v1195
      %v1345 = vunpack.c.h.b16 %v1195
      %v1346 = vunpack.c.l.b16 %v1196
      %v1347 = vunpack.c.l.b16 %v1197
      %v1348 = vunpack.c.h.b16 %v1197
      %v1349 = vunpack.c.l.b16 %v1198
      %v1350 = vunpack.c.l.b16 %v1199
      %v1351 = vunpack.c.h.b16 %v1199
      %v1352 = vunpack.c.l.b16 %v1200
      %v1353 = vunpack.c.l.b16 %v1201
      %v1354 = vunpack.c.h.b16 %v1201
      %v1355 = vunpack.c.l.b16 %v1202
      %v1356 = vunpack.c.l.b16 %v1203
      %v1357 = vunpack.c.h.b16 %v1203
      %v1358 = vunpack.c.l.b16 %v1204
      %v1359 = vunpack.c.l.b16 %v1205
      %v1360 = vunpack.c.h.b16 %v1205
      %v1361 = vunpack.c.l.b16 %v1206
      %v1362 = vunpack.c.l.b16 %v1207
      %v1363 = vunpack.c.h.b16 %v1207
      %v1364 = vunpack.c.l.b16 %v1208
      %v1365 = vunpack.c.l.b16 %v1209
      %v1366 = vunpack.c.h.b16 %v1209
      %v1367 = vunpack.c.l.b16 %v1210
      %v1368 = vunpack.c.l.b16 %v1211
      %v1369 = vunpack.c.h.b16 %v1211
      %v1370 = vunpack.c.l.b16 %v1212
      %v1371 = vunpack.c.l.b16 %v1213
      %v1372 = vunpack.c.h.b16 %v1213
      %v1373 = vunpack.c.l.b16 %v1214
      %v1374 = vunpack.c.l.b16 %v1215
      %v1375 = vunpack.c.h.b16 %v1215
      %v1376 = vunpack.c.l.b16 %v1216
      %v1377 = vpack.c.b16 %v1284, %v1281
      %v1378 = vpack.c.b16 %v1285, %v1282
      %v1379 = vpack.c.b16 %v1286, %v1283
      %v1380 = vpack.c.b16 %v1290, %v1287
      %v1381 = vpack.c.b16 %v1291, %v1288
      %v1382 = vpack.c.b16 %v1292, %v1289
      %v1383 = vpack.c.b16 %v1296, %v1293
      %v1384 = vpack.c.b16 %v1297, %v1294
      %v1385 = vpack.c.b16 %v1298, %v1295
      %v1386 = vpack.c.b16 %v1302, %v1299
      %v1387 = vpack.c.b16 %v1303, %v1300
      %v1388 = vpack.c.b16 %v1304, %v1301
      %v1389 = vpack.c.b16 %v1308, %v1305
      %v1390 = vpack.c.b16 %v1309, %v1306
      %v1391 = vpack.c.b16 %v1310, %v1307
      %v1392 = vpack.c.b16 %v1314, %v1311
      %v1393 = vpack.c.b16 %v1315, %v1312
      %v1394 = vpack.c.b16 %v1316, %v1313
      %v1395 = vpack.c.b16 %v1320, %v1317
      %v1396 = vpack.c.b16 %v1321, %v1318
      %v1397 = vpack.c.b16 %v1322, %v1319
      %v1398 = vpack.c.b16 %v1326, %v1323
      %v1399 = vpack.c.b16 %v1327, %v1324
      %v1400 = vpack.c.b16 %v1328, %v1325
      %v1401 = vpack.c.b16 %v1332, %v1329
      %v1402 = vpack.c.b16 %v1333, %v1330
      %v1403 = vpack.c.b16 %v1334, %v1331
      %v1404 = vpack.c.b16 %v1338, %v1335
      %v1405 = vpack.c.b16 %v1339, %v1336
      %v1406 = vpack.c.b16 %v1340, %v1337
      %v1407 = vpack.c.b16 %v1344, %v1341
      %v1408 = vpack.c.b16 %v1345, %v1342
      %v1409 = vpack.c.b16 %v1346, %v1343
      %v1410 = vpack.c.b16 %v1350, %v1347
      %v1411 = vpack.c.b16 %v1351, %v1348
      %v1412 = vpack.c.b16 %v1352, %v1349
      %v1413 = vpack.c.b16 %v1356, %v1353
      %v1414 = vpack.c.b16 %v1357, %v1354
      %v1415 = vpack.c.b16 %v1358, %v1355
      %v1416 = vpack.c.b16 %v1362, %v1359
      %v1417 = vpack.c.b16 %v1363, %v1360
      %v1418 = vpack.c.b16 %v1364, %v1361
      %v1419 = vpack.c.b16 %v1368, %v1365
      %v1420 = vpack.c.b16 %v1369, %v1366
      %v1421 = vpack.c.b16 %v1370, %v1367
      %v1422 = vpack.c.b16 %v1374, %v1371
      %v1423 = vpack.c.b16 %v1375, %v1372
      %v1424 = vpack.c.b16 %v1376, %v1373
      %v1458 = vsel %vm782, %v1379, 0
      %v1461 = vsel %vm782, %v1382, 0
      %v1464 = vsel %vm782, %v1385, 0
      %v1467 = vsel %vm782, %v1388, 0
      %v1470 = vsel %vm782, %v1391, 0
      %v1473 = vsel %vm782, %v1394, 0
      %v1476 = vsel %vm782, %v1397, 0
      %v1479 = vsel %vm782, %v1400, 0
      %v1482 = vsel %vm782, %v1403, 0
      %v1485 = vsel %vm782, %v1406, 0
      %v1488 = vsel %vm782, %v1409, 0
      %v1491 = vsel %vm782, %v1412, 0
      %v1494 = vsel %vm782, %v1415, 0
      %v1497 = vsel %vm782, %v1418, 0
      %v1500 = vsel %vm782, %v1421, 0
      %v1503 = vsel %vm782, %v1424, 0
      %1505 = vmatprep.subr.bf16.mxu0 0
      %1506 = vmatpush1.bf16.msra.mxu0 %v746
      %1507 = vmatprep.subr.bf16.mxu0 0
      %1508 = vmatpush1.bf16.msra.mxu0 %v747
      %1509 = vmatprep.subr.bf16.mxu0 0
      %1510 = vmatpush1.bf16.msra.mxu0 %v748
      %1511 = vmatprep.subr.bf16.mxu0 0
      %1512 = vmatpush1.bf16.msra.mxu0 %v749
      %1513 = vmatprep.subr.bf16.mxu0 0
      %1514 = vmatpush1.bf16.msra.mxu0 %v750
      %1515 = vmatprep.subr.bf16.mxu0 0
      %1516 = vmatpush1.bf16.msra.mxu0 %v751
      %1517 = vmatprep.subr.bf16.mxu0 0
      %1518 = vmatpush1.bf16.msra.mxu0 %v752
      %1519 = vmatprep.subr.bf16.mxu0 0
      %1520 = vmatpush1.bf16.msra.mxu0 %v753
      %1521 = vmatprep.subr.bf16.mxu0 0
      %1522 = vmatpush1.bf16.msra.mxu0 %v754
      %1523 = vmatprep.subr.bf16.mxu0 0
      %1524 = vmatpush1.bf16.msra.mxu0 %v755
      %1525 = vmatprep.subr.bf16.mxu0 0
      %1526 = vmatpush1.bf16.msra.mxu0 %v756
      %1527 = vmatprep.subr.bf16.mxu0 0
      %1528 = vmatpush1.bf16.msra.mxu0 %v757
      %1529 = vmatprep.subr.bf16.mxu0 0
      %1530 = vmatpush1.bf16.msra.mxu0 %v758
      %1531 = vmatprep.subr.bf16.mxu0 0
      %1532 = vmatpush1.bf16.msra.mxu0 %v759
      %1533 = vmatprep.subr.bf16.mxu0 0
      %1534 = vmatpush1.bf16.msra.mxu0 %v760
      %1535 = vmatprep.subr.bf16.mxu0 0
      %1536 = vmatpush1.bf16.msra.mxu0 %v761
      %1537 = vmatprep.mubr.bf16.mxu0 %v1378
      %1538 = vmatmul.mubr.bf16.gmra.mrb[0].mxu0 %v1377
      %v1539 = vpop.f32.mrb[0].mxu0
      %v1540 = vadd.f32 0.0, %v1539
      %v1541 = vpop.f32.mrb[0].mxu0
      %v1542 = vpop.f32.mrb[0].mxu0
      %v1543 = vadd.f32 0.0, %v1542
      %v1544 = vpop.f32.mrb[0].mxu0
      %1545 = vmatprep.mubr.bf16.mxu0 %v1381
      %1546 = vmatmul.mubr.bf16.gmra.mrb[0].mxu0 %v1380
      %v1547 = vpop.f32.mrb[0].mxu0
      %v1548 = vadd.f32 0.0, %v1547
      %v1549 = vpop.f32.mrb[0].mxu0
      %v1550 = vpop.f32.mrb[0].mxu0
      %v1551 = vadd.f32 0.0, %v1550
      %v1552 = vpop.f32.mrb[0].mxu0
      %1553 = vmatprep.mubr.bf16.mxu0 %v1384
      %1554 = vmatmul.mubr.bf16.gmra.mrb[0].mxu0 %v1383
      %v1555 = vpop.f32.mrb[0].mxu0
      %v1556 = vadd.f32 0.0, %v1555
      %v1557 = vpop.f32.mrb[0].mxu0
      %v1558 = vpop.f32.mrb[0].mxu0
      %v1559 = vadd.f32 0.0, %v1558
      %v1560 = vpop.f32.mrb[0].mxu0
      %1561 = vmatprep.mubr.bf16.mxu0 %v1387
      %1562 = vmatmul.mubr.bf16.gmra.mrb[0].mxu0 %v1386
      %v1563 = vpop.f32.mrb[0].mxu0
      %v1564 = vadd.f32 0.0, %v1563
      %v1565 = vpop.f32.mrb[0].mxu0
      %v1566 = vpop.f32.mrb[0].mxu0
      %v1567 = vadd.f32 0.0, %v1566
      %v1568 = vpop.f32.mrb[0].mxu0
      %1569 = vmatprep.mubr.bf16.mxu0 %v1390
      %1570 = vmatmul.mubr.bf16.gmra.mrb[0].mxu0 %v1389
      %v1571 = vpop.f32.mrb[0].mxu0
      %v1572 = vadd.f32 0.0, %v1571
      %v1573 = vpop.f32.mrb[0].mxu0
      %v1574 = vpop.f32.mrb[0].mxu0
      %v1575 = vadd.f32 0.0, %v1574
      %v1576 = vpop.f32.mrb[0].mxu0
      %1577 = vmatprep.mubr.bf16.mxu0 %v1393
      %1578 = vmatmul.mubr.bf16.gmra.mrb[0].mxu0 %v1392
      %v1579 = vpop.f32.mrb[0].mxu0
      %v1580 = vadd.f32 0.0, %v1579
      %v1581 = vpop.f32.mrb[0].mxu0
      %v1582 = vpop.f32.mrb[0].mxu0
      %v1583 = vadd.f32 0.0, %v1582
      %v1584 = vpop.f32.mrb[0].mxu0
      %1585 = vmatprep.mubr.bf16.mxu0 %v1396
      %1586 = vmatmul.mubr.bf16.gmra.mrb[0].mxu0 %v1395
      %v1587 = vpop.f32.mrb[0].mxu0
      %v1588 = vadd.f32 0.0, %v1587
      %v1589 = vpop.f32.mrb[0].mxu0
      %v1590 = vpop.f32.mrb[0].mxu0
      %v1591 = vadd.f32 0.0, %v1590
      %v1592 = vpop.f32.mrb[0].mxu0
      %1593 = vmatprep.mubr.bf16.mxu0 %v1399
      %1594 = vmatmul.mubr.bf16.gmra.mrb[0].mxu0 %v1398
      %v1595 = vpop.f32.mrb[0].mxu0
      %v1596 = vadd.f32 0.0, %v1595
      %v1597 = vpop.f32.mrb[0].mxu0
      %v1598 = vpop.f32.mrb[0].mxu0
      %v1599 = vadd.f32 0.0, %v1598
      %v1600 = vpop.f32.mrb[0].mxu0
      %1601 = vmatprep.mubr.bf16.mxu0 %v1402
      %1602 = vmatmul.mubr.bf16.gmra.mrb[0].mxu0 %v1401
      %v1603 = vpop.f32.mrb[0].mxu0
      %v1604 = vadd.f32 0.0, %v1603
      %v1605 = vpop.f32.mrb[0].mxu0
      %v1606 = vpop.f32.mrb[0].mxu0
      %v1607 = vadd.f32 0.0, %v1606
      %v1608 = vpop.f32.mrb[0].mxu0
      %1609 = vmatprep.mubr.bf16.mxu0 %v1405
      %1610 = vmatmul.mubr.bf16.gmra.mrb[0].mxu0 %v1404
      %v1611 = vpop.f32.mrb[0].mxu0
      %v1612 = vadd.f32 0.0, %v1611
      %v1613 = vpop.f32.mrb[0].mxu0
      %v1614 = vpop.f32.mrb[0].mxu0
      %v1615 = vadd.f32 0.0, %v1614
      %v1616 = vpop.f32.mrb[0].mxu0
      %1617 = vmatprep.mubr.bf16.mxu0 %v1408
      %1618 = vmatmul.mubr.bf16.gmra.mrb[0].mxu0 %v1407
      %v1619 = vpop.f32.mrb[0].mxu0
      %v1620 = vadd.f32 0.0, %v1619
      %v1621 = vpop.f32.mrb[0].mxu0
      %v1622 = vpop.f32.mrb[0].mxu0
      %v1623 = vadd.f32 0.0, %v1622
      %v1624 = vpop.f32.mrb[0].mxu0
      %1625 = vmatprep.mubr.bf16.mxu0 %v1411
      %1626 = vmatmul.mubr.bf16.gmra.mrb[0].mxu0 %v1410
      %v1627 = vpop.f32.mrb[0].mxu0
      %v1628 = vadd.f32 0.0, %v1627
      %v1629 = vpop.f32.mrb[0].mxu0
      %v1630 = vpop.f32.mrb[0].mxu0
      %v1631 = vadd.f32 0.0, %v1630
      %v1632 = vpop.f32.mrb[0].mxu0
      %1633 = vmatprep.mubr.bf16.mxu0 %v1414
      %1634 = vmatmul.mubr.bf16.gmra.mrb[0].mxu0 %v1413
      %v1635 = vpop.f32.mrb[0].mxu0
      %v1636 = vadd.f32 0.0, %v1635
      %v1637 = vpop.f32.mrb[0].mxu0
      %v1638 = vpop.f32.mrb[0].mxu0
      %v1639 = vadd.f32 0.0, %v1638
      %v1640 = vpop.f32.mrb[0].mxu0
      %1641 = vmatprep.mubr.bf16.mxu0 %v1417
      %1642 = vmatmul.mubr.bf16.gmra.mrb[0].mxu0 %v1416
      %v1643 = vpop.f32.mrb[0].mxu0
      %v1644 = vadd.f32 0.0, %v1643
      %v1645 = vpop.f32.mrb[0].mxu0
      %v1646 = vpop.f32.mrb[0].mxu0
      %v1647 = vadd.f32 0.0, %v1646
      %v1648 = vpop.f32.mrb[0].mxu0
      %1649 = vmatprep.mubr.bf16.mxu0 %v1420
      %1650 = vmatmul.mubr.bf16.gmra.mrb[0].mxu0 %v1419
      %v1651 = vpop.f32.mrb[0].mxu0
      %v1652 = vadd.f32 0.0, %v1651
      %v1653 = vpop.f32.mrb[0].mxu0
      %v1654 = vpop.f32.mrb[0].mxu0
      %v1655 = vadd.f32 0.0, %v1654
      %v1656 = vpop.f32.mrb[0].mxu0
      %1657 = vmatprep.mubr.bf16.mxu0 %v1423
      %1658 = vmatmul.mubr.bf16.gmra.mrb[0].mxu0 %v1422
      %v1659 = vpop.f32.mrb[0].mxu0
      %v1660 = vadd.f32 0.0, %v1659
      %v1661 = vpop.f32.mrb[0].mxu0
      %v1662 = vpop.f32.mrb[0].mxu0
      %v1663 = vadd.f32 0.0, %v1662
      %v1664 = vpop.f32.mrb[0].mxu0
      %1665 = vdwg.mxu0
      %1666 = vmatprep.subr.bf16.mxu0 0
      %1667 = vmatpush1.bf16.msra.mxu0 %v762
      %1668 = vmatprep.subr.bf16.mxu0 0
      %1669 = vmatpush1.bf16.msra.mxu0 %v763
      %1670 = vmatprep.subr.bf16.mxu0 0
      %1671 = vmatpush1.bf16.msra.mxu0 0
      %1672 = vmatprep.subr.bf16.mxu0 0
      %1673 = vmatpush1.bf16.msra.mxu0 0
      %1674 = vmatprep.subr.bf16.mxu0 0
      %1675 = vmatpush1.bf16.msra.mxu0 0
      %1676 = vmatprep.subr.bf16.mxu0 0
      %1677 = vmatpush1.bf16.msra.mxu0 0
      %1678 = vmatprep.subr.bf16.mxu0 0
      %1679 = vmatpush1.bf16.msra.mxu0 0
      %1680 = vmatprep.subr.bf16.mxu0 0
      %1681 = vmatpush1.bf16.msra.mxu0 0
      %1682 = vmatprep.subr.bf16.mxu0 0
      %1683 = vmatpush1.bf16.msra.mxu0 0
      %1684 = vmatprep.subr.bf16.mxu0 0
      %1685 = vmatpush1.bf16.msra.mxu0 0
      %1686 = vmatprep.subr.bf16.mxu0 0
      %1687 = vmatpush1.bf16.msra.mxu0 0
      %1688 = vmatprep.subr.bf16.mxu0 0
      %1689 = vmatpush1.bf16.msra.mxu0 0
      %1690 = vmatprep.subr.bf16.mxu0 0
      %1691 = vmatpush1.bf16.msra.mxu0 0
      %1692 = vmatprep.subr.bf16.mxu0 0
      %1693 = vmatpush1.bf16.msra.mxu0 0
      %1694 = vmatprep.subr.bf16.mxu0 0
      %1695 = vmatpush1.bf16.msra.mxu0 0
      %1696 = vmatprep.subr.bf16.mxu0 0
      %1697 = vmatpush1.bf16.msra.mxu0 0
      %1698 = vmatprep.mubr.bf16.mxu0 0
      %1699 = vmatmul.mubr.bf16.gmra.mrb[0].mxu0 %v1458
      %v1700 = vpop.f32.mrb[0].mxu0
      %v1701 = vadd.f32 %v1540, %v1700
      %v1702 = vpop.f32.mrb[0].mxu0
      %v1703 = vpop.f32.mrb[0].mxu0
      %v1704 = vadd.f32 %v1543, %v1703
      %v1705 = vpop.f32.mrb[0].mxu0
      %1706 = vmatprep.mubr.bf16.mxu0 0
      %1707 = vmatmul.mubr.bf16.gmra.mrb[0].mxu0 %v1461
      %v1708 = vpop.f32.mrb[0].mxu0
      %v1709 = vadd.f32 %v1548, %v1708
      %v1710 = vpop.f32.mrb[0].mxu0
      %v1711 = vpop.f32.mrb[0].mxu0
      %v1712 = vadd.f32 %v1551, %v1711
      %v1713 = vpop.f32.mrb[0].mxu0
      %1714 = vmatprep.mubr.bf16.mxu0 0
      %1715 = vmatmul.mubr.bf16.gmra.mrb[0].mxu0 %v1464
      %v1716 = vpop.f32.mrb[0].mxu0
      %v1717 = vadd.f32 %v1556, %v1716
      %v1718 = vpop.f32.mrb[0].mxu0
      %v1719 = vpop.f32.mrb[0].mxu0
      %v1720 = vadd.f32 %v1559, %v1719
      %v1721 = vpop.f32.mrb[0].mxu0
      %1722 = vmatprep.mubr.bf16.mxu0 0
      %1723 = vmatmul.mubr.bf16.gmra.mrb[0].mxu0 %v1467
      %v1724 = vpop.f32.mrb[0].mxu0
      %v1725 = vadd.f32 %v1564, %v1724
      %v1726 = vpop.f32.mrb[0].mxu0
      %v1727 = vpop.f32.mrb[0].mxu0
      %v1728 = vadd.f32 %v1567, %v1727
      %v1729 = vpop.f32.mrb[0].mxu0
      %1730 = vmatprep.mubr.bf16.mxu0 0
      %1731 = vmatmul.mubr.bf16.gmra.mrb[0].mxu0 %v1470
      %v1732 = vpop.f32.mrb[0].mxu0
      %v1733 = vadd.f32 %v1572, %v1732
      %v1734 = vpop.f32.mrb[0].mxu0
      %v1735 = vpop.f32.mrb[0].mxu0
      %v1736 = vadd.f32 %v1575, %v1735
      %v1737 = vpop.f32.mrb[0].mxu0
      %1738 = vmatprep.mubr.bf16.mxu0 0
      %1739 = vmatmul.mubr.bf16.gmra.mrb[0].mxu0 %v1473
      %v1740 = vpop.f32.mrb[0].mxu0
      %v1741 = vadd.f32 %v1580, %v1740
      %v1742 = vpop.f32.mrb[0].mxu0
      %v1743 = vpop.f32.mrb[0].mxu0
      %v1744 = vadd.f32 %v1583, %v1743
      %v1745 = vpop.f32.mrb[0].mxu0
      %1746 = vmatprep.mubr.bf16.mxu0 0
      %1747 = vmatmul.mubr.bf16.gmra.mrb[0].mxu0 %v1476
      %v1748 = vpop.f32.mrb[0].mxu0
      %v1749 = vadd.f32 %v1588, %v1748
      %v1750 = vpop.f32.mrb[0].mxu0
      %v1751 = vpop.f32.mrb[0].mxu0
      %v1752 = vadd.f32 %v1591, %v1751
      %v1753 = vpop.f32.mrb[0].mxu0
      %1754 = vmatprep.mubr.bf16.mxu0 0
      %1755 = vmatmul.mubr.bf16.gmra.mrb[0].mxu0 %v1479
      %v1756 = vpop.f32.mrb[0].mxu0
      %v1757 = vadd.f32 %v1596, %v1756
      %v1758 = vpop.f32.mrb[0].mxu0
      %v1759 = vpop.f32.mrb[0].mxu0
      %v1760 = vadd.f32 %v1599, %v1759
      %v1761 = vpop.f32.mrb[0].mxu0
      %1762 = vmatprep.mubr.bf16.mxu0 0
      %1763 = vmatmul.mubr.bf16.gmra.mrb[0].mxu0 %v1482
      %v1764 = vpop.f32.mrb[0].mxu0
      %v1765 = vadd.f32 %v1604, %v1764
      %v1766 = vpop.f32.mrb[0].mxu0
      %v1767 = vpop.f32.mrb[0].mxu0
      %v1768 = vadd.f32 %v1607, %v1767
      %v1769 = vpop.f32.mrb[0].mxu0
      %1770 = vmatprep.mubr.bf16.mxu0 0
      %1771 = vmatmul.mubr.bf16.gmra.mrb[0].mxu0 %v1485
      %v1772 = vpop.f32.mrb[0].mxu0
      %v1773 = vadd.f32 %v1612, %v1772
      %v1774 = vpop.f32.mrb[0].mxu0
      %v1775 = vpop.f32.mrb[0].mxu0
      %v1776 = vadd.f32 %v1615, %v1775
      %v1777 = vpop.f32.mrb[0].mxu0
      %1778 = vmatprep.mubr.bf16.mxu0 0
      %1779 = vmatmul.mubr.bf16.gmra.mrb[0].mxu0 %v1488
      %v1780 = vpop.f32.mrb[0].mxu0
      %v1781 = vadd.f32 %v1620, %v1780
      %v1782 = vpop.f32.mrb[0].mxu0
      %v1783 = vpop.f32.mrb[0].mxu0
      %v1784 = vadd.f32 %v1623, %v1783
      %v1785 = vpop.f32.mrb[0].mxu0
      %1786 = vmatprep.mubr.bf16.mxu0 0
      %1787 = vmatmul.mubr.bf16.gmra.mrb[0].mxu0 %v1491
      %v1788 = vpop.f32.mrb[0].mxu0
      %v1789 = vadd.f32 %v1628, %v1788
      %v1790 = vpop.f32.mrb[0].mxu0
      %v1791 = vpop.f32.mrb[0].mxu0
      %v1792 = vadd.f32 %v1631, %v1791
      %v1793 = vpop.f32.mrb[0].mxu0
      %1794 = vmatprep.mubr.bf16.mxu0 0
      %1795 = vmatmul.mubr.bf16.gmra.mrb[0].mxu0 %v1494
      %v1796 = vpop.f32.mrb[0].mxu0
      %v1797 = vadd.f32 %v1636, %v1796
      %v1798 = vpop.f32.mrb[0].mxu0
      %v1799 = vpop.f32.mrb[0].mxu0
      %v1800 = vadd.f32 %v1639, %v1799
      %v1801 = vpop.f32.mrb[0].mxu0
      %1802 = vmatprep.mubr.bf16.mxu0 0
      %1803 = vmatmul.mubr.bf16.gmra.mrb[0].mxu0 %v1497
      %v1804 = vpop.f32.mrb[0].mxu0
      %v1805 = vadd.f32 %v1644, %v1804
      %v1806 = vpop.f32.mrb[0].mxu0
      %v1807 = vpop.f32.mrb[0].mxu0
      %v1808 = vadd.f32 %v1647, %v1807
      %v1809 = vpop.f32.mrb[0].mxu0
      %1810 = vmatprep.mubr.bf16.mxu0 0
      %1811 = vmatmul.mubr.bf16.gmra.mrb[0].mxu0 %v1500
      %v1812 = vpop.f32.mrb[0].mxu0
      %v1813 = vadd.f32 %v1652, %v1812
      %v1814 = vpop.f32.mrb[0].mxu0
      %v1815 = vpop.f32.mrb[0].mxu0
      %v1816 = vadd.f32 %v1655, %v1815
      %v1817 = vpop.f32.mrb[0].mxu0
      %1818 = vmatprep.mubr.bf16.mxu0 0
      %1819 = vmatmul.mubr.bf16.gmra.mrb[0].mxu0 %v1503
      %v1820 = vpop.f32.mrb[0].mxu0
      %v1821 = vadd.f32 %v1660, %v1820
      %v1822 = vpop.f32.mrb[0].mxu0
      %v1823 = vpop.f32.mrb[0].mxu0
      %v1824 = vadd.f32 %v1663, %v1823
      %v1825 = vpop.f32.mrb[0].mxu0
      %1826 = vdwg.mxu0
      %v1827 = vmax.f32 %v1027, %v1701
      %v1828 = vmax.f32 %v1030, %v1704
      %v1829 = vmax.f32 %v1035, %v1709
      %v1830 = vmax.f32 %v1038, %v1712
      %v1831 = vmax.f32 %v1043, %v1717
      %v1832 = vmax.f32 %v1046, %v1720
      %v1833 = vmax.f32 %v1051, %v1725
      %v1834 = vmax.f32 %v1054, %v1728
      %v1835 = vmax.f32 %v1059, %v1733
      %v1836 = vmax.f32 %v1062, %v1736
      %v1837 = vmax.f32 %v1067, %v1741
      %v1838 = vmax.f32 %v1070, %v1744
      %v1839 = vmax.f32 %v1075, %v1749
      %v1840 = vmax.f32 %v1078, %v1752
      %v1841 = vmax.f32 %v1083, %v1757
      %v1842 = vmax.f32 %v1086, %v1760
      %v1843 = vmax.f32 %v1091, %v1765
      %v1844 = vmax.f32 %v1094, %v1768
      %v1845 = vmax.f32 %v1099, %v1773
      %v1846 = vmax.f32 %v1102, %v1776
      %v1847 = vmax.f32 %v1107, %v1781
      %v1848 = vmax.f32 %v1110, %v1784
      %v1849 = vmax.f32 %v1115, %v1789
      %v1850 = vmax.f32 %v1118, %v1792
      %v1851 = vmax.f32 %v1123, %v1797
      %v1852 = vmax.f32 %v1126, %v1800
      %v1853 = vmax.f32 %v1131, %v1805
      %v1854 = vmax.f32 %v1134, %v1808
      %v1855 = vmax.f32 %v1139, %v1813
      %v1856 = vmax.f32 %v1142, %v1816
      %v1857 = vmax.f32 %v1147, %v1821
      %v1858 = vmax.f32 %v1150, %v1824
      %v1859 = vld [vmem:[%s318] sm:$0xff]
      %v1860 = vld [vmem:[%s318 + $0x8] sm:$0xf]
      %v1861 = vld [vmem:[%s318 + $0xc] sm:$0xff]
      %v1862 = vld [vmem:[%s318 + $0x14] sm:$0xf]
      %v1863 = vld [vmem:[%s318 + $0x18] sm:$0xff]
      %v1864 = vld [vmem:[%s318 + $0x20] sm:$0xf]
      %v1865 = vld [vmem:[%s318 + $0x24] sm:$0xff]
      %v1866 = vld [vmem:[%s318 + $0x2c] sm:$0xf]
      %v1867 = vld [vmem:[%s318 + $0x30] sm:$0xff]
      %v1868 = vld [vmem:[%s318 + $0x38] sm:$0xf]
      %v1869 = vld [vmem:[%s318 + $0x3c] sm:$0xff]
      %v1870 = vld [vmem:[%s318 + $0x44] sm:$0xf]
      %v1871 = vld [vmem:[%s318 + $0x48] sm:$0xff]
      %v1872 = vld [vmem:[%s318 + $0x50] sm:$0xf]
      %v1873 = vld [vmem:[%s318 + $0x54] sm:$0xff]
      %v1874 = vld [vmem:[%s318 + $0x5c] sm:$0xf]
      %v1875 = vld [vmem:[%s318 + $0x60] sm:$0xff]
      %v1876 = vld [vmem:[%s318 + $0x68] sm:$0xf]
      %v1877 = vld [vmem:[%s318 + $0x6c] sm:$0xff]
      %v1878 = vld [vmem:[%s318 + $0x74] sm:$0xf]
      %v1879 = vld [vmem:[%s318 + $0x78] sm:$0xff]
      %v1880 = vld [vmem:[%s318 + $0x80] sm:$0xf]
      %v1881 = vld [vmem:[%s318 + $0x84] sm:$0xff]
      %v1882 = vld [vmem:[%s318 + $0x8c] sm:$0xf]
      %v1883 = vld [vmem:[%s318 + $0x90] sm:$0xff]
      %v1884 = vld [vmem:[%s318 + $0x98] sm:$0xf]
      %v1885 = vld [vmem:[%s318 + $0x9c] sm:$0xff]
      %v1886 = vld [vmem:[%s318 + $0xa4] sm:$0xf]
      %v1887 = vld [vmem:[%s318 + $0xa8] sm:$0xff]
      %v1888 = vld [vmem:[%s318 + $0xb0] sm:$0xf]
      %v1889 = vld [vmem:[%s318 + $0xb4] sm:$0xff]
      %v1890 = vld [vmem:[%s318 + $0xbc] sm:$0xf]
      %v1891 = vld [vmem:[%s318 + $0xc0] sm:$0xff]
      %v1892 = vld [vmem:[%s318 + $0xc8] sm:$0xf]
      %v1893 = vld [vmem:[%s318 + $0xcc] sm:$0xff]
      %v1894 = vld [vmem:[%s318 + $0xd4] sm:$0xf]
      %v1895 = vld [vmem:[%s318 + $0xd8] sm:$0xff]
      %v1896 = vld [vmem:[%s318 + $0xe0] sm:$0xf]
      %v1897 = vld [vmem:[%s318 + $0xe4] sm:$0xff]
      %v1898 = vld [vmem:[%s318 + $0xec] sm:$0xf]
      %v1899 = vld [vmem:[%s318 + $0xf0] sm:$0xff]
      %v1900 = vld [vmem:[%s318 + $0xf8] sm:$0xf]
      %v1901 = vld [vmem:[%s318 + $0xfc] sm:$0xff]
      %v1902 = vld [vmem:[%s318 + $0x104] sm:$0xf]
      %v1903 = vld [vmem:[%s318 + $0x108] sm:$0xff]
      %v1904 = vld [vmem:[%s318 + $0x110] sm:$0xf]
      %v1905 = vld [vmem:[%s318 + $0x114] sm:$0xff]
      %v1906 = vld [vmem:[%s318 + $0x11c] sm:$0xf]
      %v1907 = vld [vmem:[%s318 + $0x120] sm:$0xff]
      %v1908 = vld [vmem:[%s318 + $0x128] sm:$0xf]
      %v1909 = vld [vmem:[%s318 + $0x12c] sm:$0xff]
      %v1910 = vld [vmem:[%s318 + $0x134] sm:$0xf]
      %v1911 = vld [vmem:[%s318 + $0x138] sm:$0xff]
      %v1912 = vld [vmem:[%s318 + $0x140] sm:$0xf]
      %v1913 = vld [vmem:[%s318 + $0x144] sm:$0xff]
      %v1914 = vld [vmem:[%s318 + $0x14c] sm:$0xf]
      %v1915 = vld [vmem:[%s318 + $0x150] sm:$0xff]
      %v1916 = vld [vmem:[%s318 + $0x158] sm:$0xf]
      %v1917 = vld [vmem:[%s318 + $0x15c] sm:$0xff]
      %v1918 = vld [vmem:[%s318 + $0x164] sm:$0xf]
      %v1919 = vld [vmem:[%s318 + $0x168] sm:$0xff]
      %v1920 = vld [vmem:[%s318 + $0x170] sm:$0xf]
      %v1921 = vld [vmem:[%s318 + $0x174] sm:$0xff]
      %v1922 = vld [vmem:[%s318 + $0x17c] sm:$0xf]
      %v1987 = vunpack.c.l.b16 %v1859
      %v1988 = vunpack.c.h.b16 %v1859
      %v1989 = vunpack.c.l.b16 %v1860
      %v1990 = vunpack.c.l.b16 %v1861
      %v1991 = vunpack.c.h.b16 %v1861
      %v1992 = vunpack.c.l.b16 %v1862
      %v1993 = vunpack.c.l.b16 %v1863
      %v1994 = vunpack.c.h.b16 %v1863
      %v1995 = vunpack.c.l.b16 %v1864
      %v1996 = vunpack.c.l.b16 %v1865
      %v1997 = vunpack.c.h.b16 %v1865
      %v1998 = vunpack.c.l.b16 %v1866
      %v1999 = vunpack.c.l.b16 %v1867
      %v2000 = vunpack.c.h.b16 %v1867
      %v2001 = vunpack.c.l.b16 %v1868
      %v2002 = vunpack.c.l.b16 %v1869
      %v2003 = vunpack.c.h.b16 %v1869
      %v2004 = vunpack.c.l.b16 %v1870
      %v2005 = vunpack.c.l.b16 %v1871
      %v2006 = vunpack.c.h.b16 %v1871
      %v2007 = vunpack.c.l.b16 %v1872
      %v2008 = vunpack.c.l.b16 %v1873
      %v2009 = vunpack.c.h.b16 %v1873
      %v2010 = vunpack.c.l.b16 %v1874
      %v2011 = vunpack.c.l.b16 %v1875
      %v2012 = vunpack.c.h.b16 %v1875
      %v2013 = vunpack.c.l.b16 %v1876
      %v2014 = vunpack.c.l.b16 %v1877
      %v2015 = vunpack.c.h.b16 %v1877
      %v2016 = vunpack.c.l.b16 %v1878
      %v2017 = vunpack.c.l.b16 %v1879
      %v2018 = vunpack.c.h.b16 %v1879
      %v2019 = vunpack.c.l.b16 %v1880
      %v2020 = vunpack.c.l.b16 %v1881
      %v2021 = vunpack.c.h.b16 %v1881
      %v2022 = vunpack.c.l.b16 %v1882
      %v2023 = vunpack.c.l.b16 %v1883
      %v2024 = vunpack.c.h.b16 %v1883
      %v2025 = vunpack.c.l.b16 %v1884
      %v2026 = vunpack.c.l.b16 %v1885
      %v2027 = vunpack.c.h.b16 %v1885
      %v2028 = vunpack.c.l.b16 %v1886
      %v2029 = vunpack.c.l.b16 %v1887
      %v2030 = vunpack.c.h.b16 %v1887
      %v2031 = vunpack.c.l.b16 %v1888
      %v2032 = vunpack.c.l.b16 %v1889
      %v2033 = vunpack.c.h.b16 %v1889
      %v2034 = vunpack.c.l.b16 %v1890
      %v2035 = vunpack.c.l.b16 %v1891
      %v2036 = vunpack.c.h.b16 %v1891
      %v2037 = vunpack.c.l.b16 %v1892
      %v2038 = vunpack.c.l.b16 %v1893
      %v2039 = vunpack.c.h.b16 %v1893
      %v2040 = vunpack.c.l.b16 %v1894
      %v2041 = vunpack.c.l.b16 %v1895
      %v2042 = vunpack.c.h.b16 %v1895
      %v2043 = vunpack.c.l.b16 %v1896
      %v2044 = vunpack.c.l.b16 %v1897
      %v2045 = vunpack.c.h.b16 %v1897
      %v2046 = vunpack.c.l.b16 %v1898
      %v2047 = vunpack.c.l.b16 %v1899
      %v2048 = vunpack.c.h.b16 %v1899
      %v2049 = vunpack.c.l.b16 %v1900
      %v2050 = vunpack.c.l.b16 %v1901
      %v2051 = vunpack.c.h.b16 %v1901
      %v2052 = vunpack.c.l.b16 %v1902
      %v2053 = vunpack.c.l.b16 %v1903
      %v2054 = vunpack.c.h.b16 %v1903
      %v2055 = vunpack.c.l.b16 %v1904
      %v2056 = vunpack.c.l.b16 %v1905
      %v2057 = vunpack.c.h.b16 %v1905
      %v2058 = vunpack.c.l.b16 %v1906
      %v2059 = vunpack.c.l.b16 %v1907
      %v2060 = vunpack.c.h.b16 %v1907
      %v2061 = vunpack.c.l.b16 %v1908
      %v2062 = vunpack.c.l.b16 %v1909
      %v2063 = vunpack.c.h.b16 %v1909
      %v2064 = vunpack.c.l.b16 %v1910
      %v2065 = vunpack.c.l.b16 %v1911
      %v2066 = vunpack.c.h.b16 %v1911
      %v2067 = vunpack.c.l.b16 %v1912
      %v2068 = vunpack.c.l.b16 %v1913
      %v2069 = vunpack.c.h.b16 %v1913
      %v2070 = vunpack.c.l.b16 %v1914
      %v2071 = vunpack.c.l.b16 %v1915
      %v2072 = vunpack.c.h.b16 %v1915
      %v2073 = vunpack.c.l.b16 %v1916
      %v2074 = vunpack.c.l.b16 %v1917
      %v2075 = vunpack.c.h.b16 %v1917
      %v2076 = vunpack.c.l.b16 %v1918
      %v2077 = vunpack.c.l.b16 %v1919
      %v2078 = vunpack.c.h.b16 %v1919
      %v2079 = vunpack.c.l.b16 %v1920
      %v2080 = vunpack.c.l.b16 %v1921
      %v2081 = vunpack.c.h.b16 %v1921
      %v2082 = vunpack.c.l.b16 %v1922
      %v2083 = vpack.c.b16 %v1990, %v1987
      %v2084 = vpack.c.b16 %v1991, %v1988
      %v2085 = vpack.c.b16 %v1992, %v1989
      %v2086 = vpack.c.b16 %v1996, %v1993
      %v2087 = vpack.c.b16 %v1997, %v1994
      %v2088 = vpack.c.b16 %v1998, %v1995
      %v2089 = vpack.c.b16 %v2002, %v1999
      %v2090 = vpack.c.b16 %v2003, %v2000
      %v2091 = vpack.c.b16 %v2004, %v2001
      %v2092 = vpack.c.b16 %v2008, %v2005
      %v2093 = vpack.c.b16 %v2009, %v2006
      %v2094 = vpack.c.b16 %v2010, %v2007
      %v2095 = vpack.c.b16 %v2014, %v2011
      %v2096 = vpack.c.b16 %v2015, %v2012
      %v2097 = vpack.c.b16 %v2016, %v2013
      %v2098 = vpack.c.b16 %v2020, %v2017
      %v2099 = vpack.c.b16 %v2021, %v2018
      %v2100 = vpack.c.b16 %v2022, %v2019
      %v2101 = vpack.c.b16 %v2026, %v2023
      %v2102 = vpack.c.b16 %v2027, %v2024
      %v2103 = vpack.c.b16 %v2028, %v2025
      %v2104 = vpack.c.b16 %v2032, %v2029
      %v2105 = vpack.c.b16 %v2033, %v2030
      %v2106 = vpack.c.b16 %v2034, %v2031
      %v2107 = vpack.c.b16 %v2038, %v2035
      %v2108 = vpack.c.b16 %v2039, %v2036
      %v2109 = vpack.c.b16 %v2040, %v2037
      %v2110 = vpack.c.b16 %v2044, %v2041
      %v2111 = vpack.c.b16 %v2045, %v2042
      %v2112 = vpack.c.b16 %v2046, %v2043
      %v2113 = vpack.c.b16 %v2050, %v2047
      %v2114 = vpack.c.b16 %v2051, %v2048
      %v2115 = vpack.c.b16 %v2052, %v2049
      %v2116 = vpack.c.b16 %v2056, %v2053
      %v2117 = vpack.c.b16 %v2057, %v2054
      %v2118 = vpack.c.b16 %v2058, %v2055
      %v2119 = vpack.c.b16 %v2062, %v2059
      %v2120 = vpack.c.b16 %v2063, %v2060
      %v2121 = vpack.c.b16 %v2064, %v2061
      %v2122 = vpack.c.b16 %v2068, %v2065
      %v2123 = vpack.c.b16 %v2069, %v2066
      %v2124 = vpack.c.b16 %v2070, %v2067
      %v2125 = vpack.c.b16 %v2074, %v2071
      %v2126 = vpack.c.b16 %v2075, %v2072
      %v2127 = vpack.c.b16 %v2076, %v2073
      %v2128 = vpack.c.b16 %v2080, %v2077
      %v2129 = vpack.c.b16 %v2081, %v2078
      %v2130 = vpack.c.b16 %v2082, %v2079
      %v2164 = vsel %vm782, %v2085, 0
      %v2167 = vsel %vm782, %v2088, 0
      %v2170 = vsel %vm782, %v2091, 0
      %v2173 = vsel %vm782, %v2094, 0
      %v2176 = vsel %vm782, %v2097, 0
      %v2179 = vsel %vm782, %v2100, 0
      %v2182 = vsel %vm782, %v2103, 0
      %v2185 = vsel %vm782, %v2106, 0
      %v2188 = vsel %vm782, %v2109, 0
      %v2191 = vsel %vm782, %v2112, 0
      %v2194 = vsel %vm782, %v2115, 0
      %v2197 = vsel %vm782, %v2118, 0
      %v2200 = vsel %vm782, %v2121, 0
      %v2203 = vsel %vm782, %v2124, 0
      %v2206 = vsel %vm782, %v2127, 0
      %v2209 = vsel %vm782, %v2130, 0
      %2211 = vmatprep.subr.bf16.mxu0 0
      %2212 = vmatpush1.bf16.msra.mxu0 %v746
      %2213 = vmatprep.subr.bf16.mxu0 0
      %2214 = vmatpush1.bf16.msra.mxu0 %v747
      %2215 = vmatprep.subr.bf16.mxu0 0
      %2216 = vmatpush1.bf16.msra.mxu0 %v748
      %2217 = vmatprep.subr.bf16.mxu0 0
      %2218 = vmatpush1.bf16.msra.mxu0 %v749
      %2219 = vmatprep.subr.bf16.mxu0 0
      %2220 = vmatpush1.bf16.msra.mxu0 %v750
      %2221 = vmatprep.subr.bf16.mxu0 0
      %2222 = vmatpush1.bf16.msra.mxu0 %v751
      %2223 = vmatprep.subr.bf16.mxu0 0
      %2224 = vmatpush1.bf16.msra.mxu0 %v752
      %2225 = vmatprep.subr.bf16.mxu0 0
      %2226 = vmatpush1.bf16.msra.mxu0 %v753
      %2227 = vmatprep.subr.bf16.mxu0 0
      %2228 = vmatpush1.bf16.msra.mxu0 %v754
      %2229 = vmatprep.subr.bf16.mxu0 0
      %2230 = vmatpush1.bf16.msra.mxu0 %v755
      %2231 = vmatprep.subr.bf16.mxu0 0
      %2232 = vmatpush1.bf16.msra.mxu0 %v756
      %2233 = vmatprep.subr.bf16.mxu0 0
      %2234 = vmatpush1.bf16.msra.mxu0 %v757
      %2235 = vmatprep.subr.bf16.mxu0 0
      %2236 = vmatpush1.bf16.msra.mxu0 %v758
      %2237 = vmatprep.subr.bf16.mxu0 0
      %2238 = vmatpush1.bf16.msra.mxu0 %v759
      %2239 = vmatprep.subr.bf16.mxu0 0
      %2240 = vmatpush1.bf16.msra.mxu0 %v760
      %2241 = vmatprep.subr.bf16.mxu0 0
      %2242 = vmatpush1.bf16.msra.mxu0 %v761
      %2243 = vmatprep.mubr.bf16.mxu0 %v2084
      %2244 = vmatmul.mubr.bf16.gmra.mrb[0].mxu0 %v2083
      %v2245 = vpop.f32.mrb[0].mxu0
      %v2246 = vadd.f32 0.0, %v2245
      %v2247 = vpop.f32.mrb[0].mxu0
      %v2248 = vpop.f32.mrb[0].mxu0
      %v2249 = vadd.f32 0.0, %v2248
      %v2250 = vpop.f32.mrb[0].mxu0
      %2251 = vmatprep.mubr.bf16.mxu0 %v2087
      %2252 = vmatmul.mubr.bf16.gmra.mrb[0].mxu0 %v2086
      %v2253 = vpop.f32.mrb[0].mxu0
      %v2254 = vadd.f32 0.0, %v2253
      %v2255 = vpop.f32.mrb[0].mxu0
      %v2256 = vpop.f32.mrb[0].mxu0
      %v2257 = vadd.f32 0.0, %v2256
      %v2258 = vpop.f32.mrb[0].mxu0
      %2259 = vmatprep.mubr.bf16.mxu0 %v2090
      %2260 = vmatmul.mubr.bf16.gmra.mrb[0].mxu0 %v2089
      %v2261 = vpop.f32.mrb[0].mxu0
      %v2262 = vadd.f32 0.0, %v2261
      %v2263 = vpop.f32.mrb[0].mxu0
      %v2264 = vpop.f32.mrb[0].mxu0
      %v2265 = vadd.f32 0.0, %v2264
      %v2266 = vpop.f32.mrb[0].mxu0
      %2267 = vmatprep.mubr.bf16.mxu0 %v2093
      %2268 = vmatmul.mubr.bf16.gmra.mrb[0].mxu0 %v2092
      %v2269 = vpop.f32.mrb[0].mxu0
      %v2270 = vadd.f32 0.0, %v2269
      %v2271 = vpop.f32.mrb[0].mxu0
      %v2272 = vpop.f32.mrb[0].mxu0
      %v2273 = vadd.f32 0.0, %v2272
      %v2274 = vpop.f32.mrb[0].mxu0
      %2275 = vmatprep.mubr.bf16.mxu0 %v2096
      %2276 = vmatmul.mubr.bf16.gmra.mrb[0].mxu0 %v2095
      %v2277 = vpop.f32.mrb[0].mxu0
      %v2278 = vadd.f32 0.0, %v2277
      %v2279 = vpop.f32.mrb[0].mxu0
      %v2280 = vpop.f32.mrb[0].mxu0
      %v2281 = vadd.f32 0.0, %v2280
      %v2282 = vpop.f32.mrb[0].mxu0
      %2283 = vmatprep.mubr.bf16.mxu0 %v2099
      %2284 = vmatmul.mubr.bf16.gmra.mrb[0].mxu0 %v2098
      %v2285 = vpop.f32.mrb[0].mxu0
      %v2286 = vadd.f32 0.0, %v2285
      %v2287 = vpop.f32.mrb[0].mxu0
      %v2288 = vpop.f32.mrb[0].mxu0
      %v2289 = vadd.f32 0.0, %v2288
      %v2290 = vpop.f32.mrb[0].mxu0
      %2291 = vmatprep.mubr.bf16.mxu0 %v2102
      %2292 = vmatmul.mubr.bf16.gmra.mrb[0].mxu0 %v2101
      %v2293 = vpop.f32.mrb[0].mxu0
      %v2294 = vadd.f32 0.0, %v2293
      %v2295 = vpop.f32.mrb[0].mxu0
      %v2296 = vpop.f32.mrb[0].mxu0
      %v2297 = vadd.f32 0.0, %v2296
      %v2298 = vpop.f32.mrb[0].mxu0
      %2299 = vmatprep.mubr.bf16.mxu0 %v2105
      %2300 = vmatmul.mubr.bf16.gmra.mrb[0].mxu0 %v2104
      %v2301 = vpop.f32.mrb[0].mxu0
      %v2302 = vadd.f32 0.0, %v2301
      %v2303 = vpop.f32.mrb[0].mxu0
      %v2304 = vpop.f32.mrb[0].mxu0
      %v2305 = vadd.f32 0.0, %v2304
      %v2306 = vpop.f32.mrb[0].mxu0
      %2307 = vmatprep.mubr.bf16.mxu0 %v2108
      %2308 = vmatmul.mubr.bf16.gmra.mrb[0].mxu0 %v2107
      %v2309 = vpop.f32.mrb[0].mxu0
      %v2310 = vadd.f32 0.0, %v2309
      %v2311 = vpop.f32.mrb[0].mxu0
      %v2312 = vpop.f32.mrb[0].mxu0
      %v2313 = vadd.f32 0.0, %v2312
      %v2314 = vpop.f32.mrb[0].mxu0
      %2315 = vmatprep.mubr.bf16.mxu0 %v2111
      %2316 = vmatmul.mubr.bf16.gmra.mrb[0].mxu0 %v2110
      %v2317 = vpop.f32.mrb[0].mxu0
      %v2318 = vadd.f32 0.0, %v2317
      %v2319 = vpop.f32.mrb[0].mxu0
      %v2320 = vpop.f32.mrb[0].mxu0
      %v2321 = vadd.f32 0.0, %v2320
      %v2322 = vpop.f32.mrb[0].mxu0
      %2323 = vmatprep.mubr.bf16.mxu0 %v2114
      %2324 = vmatmul.mubr.bf16.gmra.mrb[0].mxu0 %v2113
      %v2325 = vpop.f32.mrb[0].mxu0
      %v2326 = vadd.f32 0.0, %v2325
      %v2327 = vpop.f32.mrb[0].mxu0
      %v2328 = vpop.f32.mrb[0].mxu0
      %v2329 = vadd.f32 0.0, %v2328
      %v2330 = vpop.f32.mrb[0].mxu0
      %2331 = vmatprep.mubr.bf16.mxu0 %v2117
      %2332 = vmatmul.mubr.bf16.gmra.mrb[0].mxu0 %v2116
      %v2333 = vpop.f32.mrb[0].mxu0
      %v2334 = vadd.f32 0.0, %v2333
      %v2335 = vpop.f32.mrb[0].mxu0
      %v2336 = vpop.f32.mrb[0].mxu0
      %v2337 = vadd.f32 0.0, %v2336
      %v2338 = vpop.f32.mrb[0].mxu0
      %2339 = vmatprep.mubr.bf16.mxu0 %v2120
      %2340 = vmatmul.mubr.bf16.gmra.mrb[0].mxu0 %v2119
      %v2341 = vpop.f32.mrb[0].mxu0
      %v2342 = vadd.f32 0.0, %v2341
      %v2343 = vpop.f32.mrb[0].mxu0
      %v2344 = vpop.f32.mrb[0].mxu0
      %v2345 = vadd.f32 0.0, %v2344
      %v2346 = vpop.f32.mrb[0].mxu0
      %2347 = vmatprep.mubr.bf16.mxu0 %v2123
      %2348 = vmatmul.mubr.bf16.gmra.mrb[0].mxu0 %v2122
      %v2349 = vpop.f32.mrb[0].mxu0
      %v2350 = vadd.f32 0.0, %v2349
      %v2351 = vpop.f32.mrb[0].mxu0
      %v2352 = vpop.f32.mrb[0].mxu0
      %v2353 = vadd.f32 0.0, %v2352
      %v2354 = vpop.f32.mrb[0].mxu0
      %2355 = vmatprep.mubr.bf16.mxu0 %v2126
      %2356 = vmatmul.mubr.bf16.gmra.mrb[0].mxu0 %v2125
      %v2357 = vpop.f32.mrb[0].mxu0
      %v2358 = vadd.f32 0.0, %v2357
      %v2359 = vpop.f32.mrb[0].mxu0
      %v2360 = vpop.f32.mrb[0].mxu0
      %v2361 = vadd.f32 0.0, %v2360
      %v2362 = vpop.f32.mrb[0].mxu0
      %2363 = vmatprep.mubr.bf16.mxu0 %v2129
      %2364 = vmatmul.mubr.bf16.gmra.mrb[0].mxu0 %v2128
      %v2365 = vpop.f32.mrb[0].mxu0
      %v2366 = vadd.f32 0.0, %v2365
      %v2367 = vpop.f32.mrb[0].mxu0
      %v2368 = vpop.f32.mrb[0].mxu0
      %v2369 = vadd.f32 0.0, %v2368
      %v2370 = vpop.f32.mrb[0].mxu0
      %2371 = vdwg.mxu0
      %2372 = vmatprep.subr.bf16.mxu0 0
      %2373 = vmatpush1.bf16.msra.mxu0 %v762
      %2374 = vmatprep.subr.bf16.mxu0 0
      %2375 = vmatpush1.bf16.msra.mxu0 %v763
      %2376 = vmatprep.subr.bf16.mxu0 0
      %2377 = vmatpush1.bf16.msra.mxu0 0
      %2378 = vmatprep.subr.bf16.mxu0 0
      %2379 = vmatpush1.bf16.msra.mxu0 0
      %2380 = vmatprep.subr.bf16.mxu0 0
      %2381 = vmatpush1.bf16.msra.mxu0 0
      %2382 = vmatprep.subr.bf16.mxu0 0
      %2383 = vmatpush1.bf16.msra.mxu0 0
      %2384 = vmatprep.subr.bf16.mxu0 0
      %2385 = vmatpush1.bf16.msra.mxu0 0
      %2386 = vmatprep.subr.bf16.mxu0 0
      %2387 = vmatpush1.bf16.msra.mxu0 0
      %2388 = vmatprep.subr.bf16.mxu0 0
      %2389 = vmatpush1.bf16.msra.mxu0 0
      %2390 = vmatprep.subr.bf16.mxu0 0
      %2391 = vmatpush1.bf16.msra.mxu0 0
      %2392 = vmatprep.subr.bf16.mxu0 0
      %2393 = vmatpush1.bf16.msra.mxu0 0
      %2394 = vmatprep.subr.bf16.mxu0 0
      %2395 = vmatpush1.bf16.msra.mxu0 0
      %2396 = vmatprep.subr.bf16.mxu0 0
      %2397 = vmatpush1.bf16.msra.mxu0 0
      %2398 = vmatprep.subr.bf16.mxu0 0
      %2399 = vmatpush1.bf16.msra.mxu0 0
      %2400 = vmatprep.subr.bf16.mxu0 0
      %2401 = vmatpush1.bf16.msra.mxu0 0
      %2402 = vmatprep.subr.bf16.mxu0 0
      %2403 = vmatpush1.bf16.msra.mxu0 0
      %2404 = vmatprep.mubr.bf16.mxu0 0
      %2405 = vmatmul.mubr.bf16.gmra.mrb[0].mxu0 %v2164
      %v2406 = vpop.f32.mrb[0].mxu0
      %v2407 = vadd.f32 %v2246, %v2406
      %v2408 = vpop.f32.mrb[0].mxu0
      %v2409 = vpop.f32.mrb[0].mxu0
      %v2410 = vadd.f32 %v2249, %v2409
      %v2411 = vpop.f32.mrb[0].mxu0
      %2412 = vmatprep.mubr.bf16.mxu0 0
      %2413 = vmatmul.mubr.bf16.gmra.mrb[0].mxu0 %v2167
      %v2414 = vpop.f32.mrb[0].mxu0
      %v2415 = vadd.f32 %v2254, %v2414
      %v2416 = vpop.f32.mrb[0].mxu0
      %v2417 = vpop.f32.mrb[0].mxu0
      %v2418 = vadd.f32 %v2257, %v2417
      %v2419 = vpop.f32.mrb[0].mxu0
      %2420 = vmatprep.mubr.bf16.mxu0 0
      %2421 = vmatmul.mubr.bf16.gmra.mrb[0].mxu0 %v2170
      %v2422 = vpop.f32.mrb[0].mxu0
      %v2423 = vadd.f32 %v2262, %v2422
      %v2424 = vpop.f32.mrb[0].mxu0
      %v2425 = vpop.f32.mrb[0].mxu0
      %v2426 = vadd.f32 %v2265, %v2425
      %v2427 = vpop.f32.mrb[0].mxu0
      %2428 = vmatprep.mubr.bf16.mxu0 0
      %2429 = vmatmul.mubr.bf16.gmra.mrb[0].mxu0 %v2173
      %v2430 = vpop.f32.mrb[0].mxu0
      %v2431 = vadd.f32 %v2270, %v2430
      %v2432 = vpop.f32.mrb[0].mxu0
      %v2433 = vpop.f32.mrb[0].mxu0
      %v2434 = vadd.f32 %v2273, %v2433
      %v2435 = vpop.f32.mrb[0].mxu0
      %2436 = vmatprep.mubr.bf16.mxu0 0
      %2437 = vmatmul.mubr.bf16.gmra.mrb[0].mxu0 %v2176
      %v2438 = vpop.f32.mrb[0].mxu0
      %v2439 = vadd.f32 %v2278, %v2438
      %v2440 = vpop.f32.mrb[0].mxu0
      %v2441 = vpop.f32.mrb[0].mxu0
      %v2442 = vadd.f32 %v2281, %v2441
      %v2443 = vpop.f32.mrb[0].mxu0
      %2444 = vmatprep.mubr.bf16.mxu0 0
      %2445 = vmatmul.mubr.bf16.gmra.mrb[0].mxu0 %v2179
      %v2446 = vpop.f32.mrb[0].mxu0
      %v2447 = vadd.f32 %v2286, %v2446
      %v2448 = vpop.f32.mrb[0].mxu0
      %v2449 = vpop.f32.mrb[0].mxu0
      %v2450 = vadd.f32 %v2289, %v2449
      %v2451 = vpop.f32.mrb[0].mxu0
      %2452 = vmatprep.mubr.bf16.mxu0 0
      %2453 = vmatmul.mubr.bf16.gmra.mrb[0].mxu0 %v2182
      %v2454 = vpop.f32.mrb[0].mxu0
      %v2455 = vadd.f32 %v2294, %v2454
      %v2456 = vpop.f32.mrb[0].mxu0
      %v2457 = vpop.f32.mrb[0].mxu0
      %v2458 = vadd.f32 %v2297, %v2457
      %v2459 = vpop.f32.mrb[0].mxu0
      %2460 = vmatprep.mubr.bf16.mxu0 0
      %2461 = vmatmul.mubr.bf16.gmra.mrb[0].mxu0 %v2185
      %v2462 = vpop.f32.mrb[0].mxu0
      %v2463 = vadd.f32 %v2302, %v2462
      %v2464 = vpop.f32.mrb[0].mxu0
      %v2465 = vpop.f32.mrb[0].mxu0
      %v2466 = vadd.f32 %v2305, %v2465
      %v2467 = vpop.f32.mrb[0].mxu0
      %2468 = vmatprep.mubr.bf16.mxu0 0
      %2469 = vmatmul.mubr.bf16.gmra.mrb[0].mxu0 %v2188
      %v2470 = vpop.f32.mrb[0].mxu0
      %v2471 = vadd.f32 %v2310, %v2470
      %v2472 = vpop.f32.mrb[0].mxu0
      %v2473 = vpop.f32.mrb[0].mxu0
      %v2474 = vadd.f32 %v2313, %v2473
      %v2475 = vpop.f32.mrb[0].mxu0
      %2476 = vmatprep.mubr.bf16.mxu0 0
      %2477 = vmatmul.mubr.bf16.gmra.mrb[0].mxu0 %v2191
      %v2478 = vpop.f32.mrb[0].mxu0
      %v2479 = vadd.f32 %v2318, %v2478
      %v2480 = vpop.f32.mrb[0].mxu0
      %v2481 = vpop.f32.mrb[0].mxu0
      %v2482 = vadd.f32 %v2321, %v2481
      %v2483 = vpop.f32.mrb[0].mxu0
      %2484 = vmatprep.mubr.bf16.mxu0 0
      %2485 = vmatmul.mubr.bf16.gmra.mrb[0].mxu0 %v2194
      %v2486 = vpop.f32.mrb[0].mxu0
      %v2487 = vadd.f32 %v2326, %v2486
      %v2488 = vpop.f32.mrb[0].mxu0
      %v2489 = vpop.f32.mrb[0].mxu0
      %v2490 = vadd.f32 %v2329, %v2489
      %v2491 = vpop.f32.mrb[0].mxu0
      %2492 = vmatprep.mubr.bf16.mxu0 0
      %2493 = vmatmul.mubr.bf16.gmra.mrb[0].mxu0 %v2197
      %v2494 = vpop.f32.mrb[0].mxu0
      %v2495 = vadd.f32 %v2334, %v2494
      %v2496 = vpop.f32.mrb[0].mxu0
      %v2497 = vpop.f32.mrb[0].mxu0
      %v2498 = vadd.f32 %v2337, %v2497
      %v2499 = vpop.f32.mrb[0].mxu0
      %2500 = vmatprep.mubr.bf16.mxu0 0
      %2501 = vmatmul.mubr.bf16.gmra.mrb[0].mxu0 %v2200
      %v2502 = vpop.f32.mrb[0].mxu0
      %v2503 = vadd.f32 %v2342, %v2502
      %v2504 = vpop.f32.mrb[0].mxu0
      %v2505 = vpop.f32.mrb[0].mxu0
      %v2506 = vadd.f32 %v2345, %v2505
      %v2507 = vpop.f32.mrb[0].mxu0
      %2508 = vmatprep.mubr.bf16.mxu0 0
      %2509 = vmatmul.mubr.bf16.gmra.mrb[0].mxu0 %v2203
      %v2510 = vpop.f32.mrb[0].mxu0
      %v2511 = vadd.f32 %v2350, %v2510
      %v2512 = vpop.f32.mrb[0].mxu0
      %v2513 = vpop.f32.mrb[0].mxu0
      %v2514 = vadd.f32 %v2353, %v2513
      %v2515 = vpop.f32.mrb[0].mxu0
      %2516 = vmatprep.mubr.bf16.mxu0 0
      %2517 = vmatmul.mubr.bf16.gmra.mrb[0].mxu0 %v2206
      %v2518 = vpop.f32.mrb[0].mxu0
      %v2519 = vadd.f32 %v2358, %v2518
      %v2520 = vpop.f32.mrb[0].mxu0
      %v2521 = vpop.f32.mrb[0].mxu0
      %v2522 = vadd.f32 %v2361, %v2521
      %v2523 = vpop.f32.mrb[0].mxu0
      %2524 = vmatprep.mubr.bf16.mxu0 0
      %2525 = vmatmul.mubr.bf16.gmra.mrb[0].mxu0 %v2209
      %v2526 = vpop.f32.mrb[0].mxu0
      %v2527 = vadd.f32 %v2366, %v2526
      %v2528 = vpop.f32.mrb[0].mxu0
      %v2529 = vpop.f32.mrb[0].mxu0
      %v2530 = vadd.f32 %v2369, %v2529
      %v2531 = vpop.f32.mrb[0].mxu0
      %2532 = vdwg.mxu0
      %v2533 = vmax.f32 %v1827, %v2407
      %v2534 = vmax.f32 %v1828, %v2410
      %v2535 = vmax.f32 %v1829, %v2415
      %v2536 = vmax.f32 %v1830, %v2418
      %v2537 = vmax.f32 %v1831, %v2423
      %v2538 = vmax.f32 %v1832, %v2426
      %v2539 = vmax.f32 %v1833, %v2431
      %v2540 = vmax.f32 %v1834, %v2434
      %v2541 = vmax.f32 %v1835, %v2439
      %v2542 = vmax.f32 %v1836, %v2442
      %v2543 = vmax.f32 %v1837, %v2447
      %v2544 = vmax.f32 %v1838, %v2450
      %v2545 = vmax.f32 %v1839, %v2455
      %v2546 = vmax.f32 %v1840, %v2458
      %v2547 = vmax.f32 %v1841, %v2463
      %v2548 = vmax.f32 %v1842, %v2466
      %v2549 = vmax.f32 %v1843, %v2471
      %v2550 = vmax.f32 %v1844, %v2474
      %v2551 = vmax.f32 %v1845, %v2479
      %v2552 = vmax.f32 %v1846, %v2482
      %v2553 = vmax.f32 %v1847, %v2487
      %v2554 = vmax.f32 %v1848, %v2490
      %v2555 = vmax.f32 %v1849, %v2495
      %v2556 = vmax.f32 %v1850, %v2498
      %v2557 = vmax.f32 %v1851, %v2503
      %v2558 = vmax.f32 %v1852, %v2506
      %v2559 = vmax.f32 %v1853, %v2511
      %v2560 = vmax.f32 %v1854, %v2514
      %v2561 = vmax.f32 %v1855, %v2519
      %v2562 = vmax.f32 %v1856, %v2522
      %v2563 = vmax.f32 %v1857, %v2527
      %v2564 = vmax.f32 %v1858, %v2530
      %v2565 = vld [vmem:[%s325] sm:$0xff]
      %v2566 = vld [vmem:[%s325 + $0x8] sm:$0xf]
      %v2567 = vld [vmem:[%s325 + $0xc] sm:$0xff]
      %v2568 = vld [vmem:[%s325 + $0x14] sm:$0xf]
      %v2569 = vld [vmem:[%s325 + $0x18] sm:$0xff]
      %v2570 = vld [vmem:[%s325 + $0x20] sm:$0xf]
      %v2571 = vld [vmem:[%s325 + $0x24] sm:$0xff]
      %v2572 = vld [vmem:[%s325 + $0x2c] sm:$0xf]
      %v2573 = vld [vmem:[%s325 + $0x30] sm:$0xff]
      %v2574 = vld [vmem:[%s325 + $0x38] sm:$0xf]
      %v2575 = vld [vmem:[%s325 + $0x3c] sm:$0xff]
      %v2576 = vld [vmem:[%s325 + $0x44] sm:$0xf]
      %v2577 = vld [vmem:[%s325 + $0x48] sm:$0xff]
      %v2578 = vld [vmem:[%s325 + $0x50] sm:$0xf]
      %v2579 = vld [vmem:[%s325 + $0x54] sm:$0xff]
      %v2580 = vld [vmem:[%s325 + $0x5c] sm:$0xf]
      %v2581 = vld [vmem:[%s325 + $0x60] sm:$0xff]
      %v2582 = vld [vmem:[%s325 + $0x68] sm:$0xf]
      %v2583 = vld [vmem:[%s325 + $0x6c] sm:$0xff]
      %v2584 = vld [vmem:[%s325 + $0x74] sm:$0xf]
      %v2585 = vld [vmem:[%s325 + $0x78] sm:$0xff]
      %v2586 = vld [vmem:[%s325 + $0x80] sm:$0xf]
      %v2587 = vld [vmem:[%s325 + $0x84] sm:$0xff]
      %v2588 = vld [vmem:[%s325 + $0x8c] sm:$0xf]
      %v2589 = vld [vmem:[%s325 + $0x90] sm:$0xff]
      %v2590 = vld [vmem:[%s325 + $0x98] sm:$0xf]
      %v2591 = vld [vmem:[%s325 + $0x9c] sm:$0xff]
      %v2592 = vld [vmem:[%s325 + $0xa4] sm:$0xf]
      %v2593 = vld [vmem:[%s325 + $0xa8] sm:$0xff]
      %v2594 = vld [vmem:[%s325 + $0xb0] sm:$0xf]
      %v2595 = vld [vmem:[%s325 + $0xb4] sm:$0xff]
      %v2596 = vld [vmem:[%s325 + $0xbc] sm:$0xf]
      %v2597 = vld [vmem:[%s325 + $0xc0] sm:$0xff]
      %v2598 = vld [vmem:[%s325 + $0xc8] sm:$0xf]
      %v2599 = vld [vmem:[%s325 + $0xcc] sm:$0xff]
      %v2600 = vld [vmem:[%s325 + $0xd4] sm:$0xf]
      %v2601 = vld [vmem:[%s325 + $0xd8] sm:$0xff]
      %v2602 = vld [vmem:[%s325 + $0xe0] sm:$0xf]
      %v2603 = vld [vmem:[%s325 + $0xe4] sm:$0xff]
      %v2604 = vld [vmem:[%s325 + $0xec] sm:$0xf]
      %v2605 = vld [vmem:[%s325 + $0xf0] sm:$0xff]
      %v2606 = vld [vmem:[%s325 + $0xf8] sm:$0xf]
      %v2607 = vld [vmem:[%s325 + $0xfc] sm:$0xff]
      %v2608 = vld [vmem:[%s325 + $0x104] sm:$0xf]
      %v2609 = vld [vmem:[%s325 + $0x108] sm:$0xff]
      %v2610 = vld [vmem:[%s325 + $0x110] sm:$0xf]
      %v2611 = vld [vmem:[%s325 + $0x114] sm:$0xff]
      %v2612 = vld [vmem:[%s325 + $0x11c] sm:$0xf]
      %v2613 = vld [vmem:[%s325 + $0x120] sm:$0xff]
      %v2614 = vld [vmem:[%s325 + $0x128] sm:$0xf]
      %v2615 = vld [vmem:[%s325 + $0x12c] sm:$0xff]
      %v2616 = vld [vmem:[%s325 + $0x134] sm:$0xf]
      %v2617 = vld [vmem:[%s325 + $0x138] sm:$0xff]
      %v2618 = vld [vmem:[%s325 + $0x140] sm:$0xf]
      %v2619 = vld [vmem:[%s325 + $0x144] sm:$0xff]
      %v2620 = vld [vmem:[%s325 + $0x14c] sm:$0xf]
      %v2621 = vld [vmem:[%s325 + $0x150] sm:$0xff]
      %v2622 = vld [vmem:[%s325 + $0x158] sm:$0xf]
      %v2623 = vld [vmem:[%s325 + $0x15c] sm:$0xff]
      %v2624 = vld [vmem:[%s325 + $0x164] sm:$0xf]
      %v2625 = vld [vmem:[%s325 + $0x168] sm:$0xff]
      %v2626 = vld [vmem:[%s325 + $0x170] sm:$0xf]
      %v2627 = vld [vmem:[%s325 + $0x174] sm:$0xff]
      %v2628 = vld [vmem:[%s325 + $0x17c] sm:$0xf]
      %v2693 = vunpack.c.l.b16 %v2565
      %v2694 = vunpack.c.h.b16 %v2565
      %v2695 = vunpack.c.l.b16 %v2566
      %v2696 = vunpack.c.l.b16 %v2567
      %v2697 = vunpack.c.h.b16 %v2567
      %v2698 = vunpack.c.l.b16 %v2568
      %v2699 = vunpack.c.l.b16 %v2569
      %v2700 = vunpack.c.h.b16 %v2569
      %v2701 = vunpack.c.l.b16 %v2570
      %v2702 = vunpack.c.l.b16 %v2571
      %v2703 = vunpack.c.h.b16 %v2571
      %v2704 = vunpack.c.l.b16 %v2572
      %v2705 = vunpack.c.l.b16 %v2573
      %v2706 = vunpack.c.h.b16 %v2573
      %v2707 = vunpack.c.l.b16 %v2574
      %v2708 = vunpack.c.l.b16 %v2575
      %v2709 = vunpack.c.h.b16 %v2575
      %v2710 = vunpack.c.l.b16 %v2576
      %v2711 = vunpack.c.l.b16 %v2577
      %v2712 = vunpack.c.h.b16 %v2577
      %v2713 = vunpack.c.l.b16 %v2578
      %v2714 = vunpack.c.l.b16 %v2579
      %v2715 = vunpack.c.h.b16 %v2579
      %v2716 = vunpack.c.l.b16 %v2580
      %v2717 = vunpack.c.l.b16 %v2581
      %v2718 = vunpack.c.h.b16 %v2581
      %v2719 = vunpack.c.l.b16 %v2582
      %v2720 = vunpack.c.l.b16 %v2583
      %v2721 = vunpack.c.h.b16 %v2583
      %v2722 = vunpack.c.l.b16 %v2584
      %v2723 = vunpack.c.l.b16 %v2585
      %v2724 = vunpack.c.h.b16 %v2585
      %v2725 = vunpack.c.l.b16 %v2586
      %v2726 = vunpack.c.l.b16 %v2587
      %v2727 = vunpack.c.h.b16 %v2587
      %v2728 = vunpack.c.l.b16 %v2588
      %v2729 = vunpack.c.l.b16 %v2589
      %v2730 = vunpack.c.h.b16 %v2589
      %v2731 = vunpack.c.l.b16 %v2590
      %v2732 = vunpack.c.l.b16 %v2591
      %v2733 = vunpack.c.h.b16 %v2591
      %v2734 = vunpack.c.l.b16 %v2592
      %v2735 = vunpack.c.l.b16 %v2593
      %v2736 = vunpack.c.h.b16 %v2593
      %v2737 = vunpack.c.l.b16 %v2594
      %v2738 = vunpack.c.l.b16 %v2595
      %v2739 = vunpack.c.h.b16 %v2595
      %v2740 = vunpack.c.l.b16 %v2596
      %v2741 = vunpack.c.l.b16 %v2597
      %v2742 = vunpack.c.h.b16 %v2597
      %v2743 = vunpack.c.l.b16 %v2598
      %v2744 = vunpack.c.l.b16 %v2599
      %v2745 = vunpack.c.h.b16 %v2599
      %v2746 = vunpack.c.l.b16 %v2600
      %v2747 = vunpack.c.l.b16 %v2601
      %v2748 = vunpack.c.h.b16 %v2601
      %v2749 = vunpack.c.l.b16 %v2602
      %v2750 = vunpack.c.l.b16 %v2603
      %v2751 = vunpack.c.h.b16 %v2603
      %v2752 = vunpack.c.l.b16 %v2604
      %v2753 = vunpack.c.l.b16 %v2605
      %v2754 = vunpack.c.h.b16 %v2605
      %v2755 = vunpack.c.l.b16 %v2606
      %v2756 = vunpack.c.l.b16 %v2607
      %v2757 = vunpack.c.h.b16 %v2607
      %v2758 = vunpack.c.l.b16 %v2608
      %v2759 = vunpack.c.l.b16 %v2609
      %v2760 = vunpack.c.h.b16 %v2609
      %v2761 = vunpack.c.l.b16 %v2610
      %v2762 = vunpack.c.l.b16 %v2611
      %v2763 = vunpack.c.h.b16 %v2611
      %v2764 = vunpack.c.l.b16 %v2612
      %v2765 = vunpack.c.l.b16 %v2613
      %v2766 = vunpack.c.h.b16 %v2613
      %v2767 = vunpack.c.l.b16 %v2614
      %v2768 = vunpack.c.l.b16 %v2615
      %v2769 = vunpack.c.h.b16 %v2615
      %v2770 = vunpack.c.l.b16 %v2616
      %v2771 = vunpack.c.l.b16 %v2617
      %v2772 = vunpack.c.h.b16 %v2617
      %v2773 = vunpack.c.l.b16 %v2618
      %v2774 = vunpack.c.l.b16 %v2619
      %v2775 = vunpack.c.h.b16 %v2619
      %v2776 = vunpack.c.l.b16 %v2620
      %v2777 = vunpack.c.l.b16 %v2621
      %v2778 = vunpack.c.h.b16 %v2621
      %v2779 = vunpack.c.l.b16 %v2622
      %v2780 = vunpack.c.l.b16 %v2623
      %v2781 = vunpack.c.h.b16 %v2623
      %v2782 = vunpack.c.l.b16 %v2624
      %v2783 = vunpack.c.l.b16 %v2625
      %v2784 = vunpack.c.h.b16 %v2625
      %v2785 = vunpack.c.l.b16 %v2626
      %v2786 = vunpack.c.l.b16 %v2627
      %v2787 = vunpack.c.h.b16 %v2627
      %v2788 = vunpack.c.l.b16 %v2628
      %v2789 = vpack.c.b16 %v2696, %v2693
      %v2790 = vpack.c.b16 %v2697, %v2694
      %v2791 = vpack.c.b16 %v2698, %v2695
      %v2792 = vpack.c.b16 %v2702, %v2699
      %v2793 = vpack.c.b16 %v2703, %v2700
      %v2794 = vpack.c.b16 %v2704, %v2701
      %v2795 = vpack.c.b16 %v2708, %v2705
      %v2796 = vpack.c.b16 %v2709, %v2706
      %v2797 = vpack.c.b16 %v2710, %v2707
      %v2798 = vpack.c.b16 %v2714, %v2711
      %v2799 = vpack.c.b16 %v2715, %v2712
      %v2800 = vpack.c.b16 %v2716, %v2713
      %v2801 = vpack.c.b16 %v2720, %v2717
      %v2802 = vpack.c.b16 %v2721, %v2718
      %v2803 = vpack.c.b16 %v2722, %v2719
      %v2804 = vpack.c.b16 %v2726, %v2723
      %v2805 = vpack.c.b16 %v2727, %v2724
      %v2806 = vpack.c.b16 %v2728, %v2725
      %v2807 = vpack.c.b16 %v2732, %v2729
      %v2808 = vpack.c.b16 %v2733, %v2730
      %v2809 = vpack.c.b16 %v2734, %v2731
      %v2810 = vpack.c.b16 %v2738, %v2735
      %v2811 = vpack.c.b16 %v2739, %v2736
      %v2812 = vpack.c.b16 %v2740, %v2737
      %v2813 = vpack.c.b16 %v2744, %v2741
      %v2814 = vpack.c.b16 %v2745, %v2742
      %v2815 = vpack.c.b16 %v2746, %v2743
      %v2816 = vpack.c.b16 %v2750, %v2747
      %v2817 = vpack.c.b16 %v2751, %v2748
      %v2818 = vpack.c.b16 %v2752, %v2749
      %v2819 = vpack.c.b16 %v2756, %v2753
      %v2820 = vpack.c.b16 %v2757, %v2754
      %v2821 = vpack.c.b16 %v2758, %v2755
      %v2822 = vpack.c.b16 %v2762, %v2759
      %v2823 = vpack.c.b16 %v2763, %v2760
      %v2824 = vpack.c.b16 %v2764, %v2761
      %v2825 = vpack.c.b16 %v2768, %v2765
      %v2826 = vpack.c.b16 %v2769, %v2766
      %v2827 = vpack.c.b16 %v2770, %v2767
      %v2828 = vpack.c.b16 %v2774, %v2771
      %v2829 = vpack.c.b16 %v2775, %v2772
      %v2830 = vpack.c.b16 %v2776, %v2773
      %v2831 = vpack.c.b16 %v2780, %v2777
      %v2832 = vpack.c.b16 %v2781, %v2778
      %v2833 = vpack.c.b16 %v2782, %v2779
      %v2834 = vpack.c.b16 %v2786, %v2783
      %v2835 = vpack.c.b16 %v2787, %v2784
      %v2836 = vpack.c.b16 %v2788, %v2785
      %v2870 = vsel %vm782, %v2791, 0
      %v2873 = vsel %vm782, %v2794, 0
      %v2876 = vsel %vm782, %v2797, 0
      %v2879 = vsel %vm782, %v2800, 0
      %v2882 = vsel %vm782, %v2803, 0
      %v2885 = vsel %vm782, %v2806, 0
      %v2888 = vsel %vm782, %v2809, 0
      %v2891 = vsel %vm782, %v2812, 0
      %v2894 = vsel %vm782, %v2815, 0
      %v2897 = vsel %vm782, %v2818, 0
      %v2900 = vsel %vm782, %v2821, 0
      %v2903 = vsel %vm782, %v2824, 0
      %v2906 = vsel %vm782, %v2827, 0
      %v2909 = vsel %vm782, %v2830, 0
      %v2912 = vsel %vm782, %v2833, 0
      %v2915 = vsel %vm782, %v2836, 0
      %2917 = vmatprep.subr.bf16.mxu0 0
      %2918 = vmatpush1.bf16.msra.mxu0 %v746
      %2919 = vmatprep.subr.bf16.mxu0 0
      %2920 = vmatpush1.bf16.msra.mxu0 %v747
      %2921 = vmatprep.subr.bf16.mxu0 0
      %2922 = vmatpush1.bf16.msra.mxu0 %v748
      %2923 = vmatprep.subr.bf16.mxu0 0
      %2924 = vmatpush1.bf16.msra.mxu0 %v749
      %2925 = vmatprep.subr.bf16.mxu0 0
      %2926 = vmatpush1.bf16.msra.mxu0 %v750
      %2927 = vmatprep.subr.bf16.mxu0 0
      %2928 = vmatpush1.bf16.msra.mxu0 %v751
      %2929 = vmatprep.subr.bf16.mxu0 0
      %2930 = vmatpush1.bf16.msra.mxu0 %v752
      %2931 = vmatprep.subr.bf16.mxu0 0
      %2932 = vmatpush1.bf16.msra.mxu0 %v753
      %2933 = vmatprep.subr.bf16.mxu0 0
      %2934 = vmatpush1.bf16.msra.mxu0 %v754
      %2935 = vmatprep.subr.bf16.mxu0 0
      %2936 = vmatpush1.bf16.msra.mxu0 %v755
      %2937 = vmatprep.subr.bf16.mxu0 0
      %2938 = vmatpush1.bf16.msra.mxu0 %v756
      %2939 = vmatprep.subr.bf16.mxu0 0
      %2940 = vmatpush1.bf16.msra.mxu0 %v757
      %2941 = vmatprep.subr.bf16.mxu0 0
      %2942 = vmatpush1.bf16.msra.mxu0 %v758
      %2943 = vmatprep.subr.bf16.mxu0 0
      %2944 = vmatpush1.bf16.msra.mxu0 %v759
      %2945 = vmatprep.subr.bf16.mxu0 0
      %2946 = vmatpush1.bf16.msra.mxu0 %v760
      %2947 = vmatprep.subr.bf16.mxu0 0
      %2948 = vmatpush1.bf16.msra.mxu0 %v761
      %2949 = vmatprep.mubr.bf16.mxu0 %v2790
      %2950 = vmatmul.mubr.bf16.gmra.mrb[0].mxu0 %v2789
      %v2951 = vpop.f32.mrb[0].mxu0
      %v2952 = vadd.f32 0.0, %v2951
      %v2953 = vpop.f32.mrb[0].mxu0
      %v2954 = vpop.f32.mrb[0].mxu0
      %v2955 = vadd.f32 0.0, %v2954
      %v2956 = vpop.f32.mrb[0].mxu0
      %2957 = vmatprep.mubr.bf16.mxu0 %v2793
      %2958 = vmatmul.mubr.bf16.gmra.mrb[0].mxu0 %v2792
      %v2959 = vpop.f32.mrb[0].mxu0
      %v2960 = vadd.f32 0.0, %v2959
      %v2961 = vpop.f32.mrb[0].mxu0
      %v2962 = vpop.f32.mrb[0].mxu0
      %v2963 = vadd.f32 0.0, %v2962
      %v2964 = vpop.f32.mrb[0].mxu0
      %2965 = vmatprep.mubr.bf16.mxu0 %v2796
      %2966 = vmatmul.mubr.bf16.gmra.mrb[0].mxu0 %v2795
      %v2967 = vpop.f32.mrb[0].mxu0
      %v2968 = vadd.f32 0.0, %v2967
      %v2969 = vpop.f32.mrb[0].mxu0
      %v2970 = vpop.f32.mrb[0].mxu0
      %v2971 = vadd.f32 0.0, %v2970
      %v2972 = vpop.f32.mrb[0].mxu0
      %2973 = vmatprep.mubr.bf16.mxu0 %v2799
      %2974 = vmatmul.mubr.bf16.gmra.mrb[0].mxu0 %v2798
      %v2975 = vpop.f32.mrb[0].mxu0
      %v2976 = vadd.f32 0.0, %v2975
      %v2977 = vpop.f32.mrb[0].mxu0
      %v2978 = vpop.f32.mrb[0].mxu0
      %v2979 = vadd.f32 0.0, %v2978
      %v2980 = vpop.f32.mrb[0].mxu0
      %2981 = vmatprep.mubr.bf16.mxu0 %v2802
      %2982 = vmatmul.mubr.bf16.gmra.mrb[0].mxu0 %v2801
      %v2983 = vpop.f32.mrb[0].mxu0
      %v2984 = vadd.f32 0.0, %v2983
      %v2985 = vpop.f32.mrb[0].mxu0
      %v2986 = vpop.f32.mrb[0].mxu0
      %v2987 = vadd.f32 0.0, %v2986
      %v2988 = vpop.f32.mrb[0].mxu0
      %2989 = vmatprep.mubr.bf16.mxu0 %v2805
      %2990 = vmatmul.mubr.bf16.gmra.mrb[0].mxu0 %v2804
      %v2991 = vpop.f32.mrb[0].mxu0
      %v2992 = vadd.f32 0.0, %v2991
      %v2993 = vpop.f32.mrb[0].mxu0
      %v2994 = vpop.f32.mrb[0].mxu0
      %v2995 = vadd.f32 0.0, %v2994
      %v2996 = vpop.f32.mrb[0].mxu0
      %2997 = vmatprep.mubr.bf16.mxu0 %v2808
      %2998 = vmatmul.mubr.bf16.gmra.mrb[0].mxu0 %v2807
      %v2999 = vpop.f32.mrb[0].mxu0
      %v3000 = vadd.f32 0.0, %v2999
      %v3001 = vpop.f32.mrb[0].mxu0
      %v3002 = vpop.f32.mrb[0].mxu0
      %v3003 = vadd.f32 0.0, %v3002
      %v3004 = vpop.f32.mrb[0].mxu0
      %3005 = vmatprep.mubr.bf16.mxu0 %v2811
      %3006 = vmatmul.mubr.bf16.gmra.mrb[0].mxu0 %v2810
      %v3007 = vpop.f32.mrb[0].mxu0
      %v3008 = vadd.f32 0.0, %v3007
      %v3009 = vpop.f32.mrb[0].mxu0
      %v3010 = vpop.f32.mrb[0].mxu0
      %v3011 = vadd.f32 0.0, %v3010
      %v3012 = vpop.f32.mrb[0].mxu0
      %3013 = vmatprep.mubr.bf16.mxu0 %v2814
      %3014 = vmatmul.mubr.bf16.gmra.mrb[0].mxu0 %v2813
      %v3015 = vpop.f32.mrb[0].mxu0
      %v3016 = vadd.f32 0.0, %v3015
      %v3017 = vpop.f32.mrb[0].mxu0
      %v3018 = vpop.f32.mrb[0].mxu0
      %v3019 = vadd.f32 0.0, %v3018
      %v3020 = vpop.f32.mrb[0].mxu0
      %3021 = vmatprep.mubr.bf16.mxu0 %v2817
      %3022 = vmatmul.mubr.bf16.gmra.mrb[0].mxu0 %v2816
      %v3023 = vpop.f32.mrb[0].mxu0
      %v3024 = vadd.f32 0.0, %v3023
      %v3025 = vpop.f32.mrb[0].mxu0
      %v3026 = vpop.f32.mrb[0].mxu0
      %v3027 = vadd.f32 0.0, %v3026
      %v3028 = vpop.f32.mrb[0].mxu0
      %3029 = vmatprep.mubr.bf16.mxu0 %v2820
      %3030 = vmatmul.mubr.bf16.gmra.mrb[0].mxu0 %v2819
      %v3031 = vpop.f32.mrb[0].mxu0
      %v3032 = vadd.f32 0.0, %v3031
      %v3033 = vpop.f32.mrb[0].mxu0
      %v3034 = vpop.f32.mrb[0].mxu0
      %v3035 = vadd.f32 0.0, %v3034
      %v3036 = vpop.f32.mrb[0].mxu0
      %3037 = vmatprep.mubr.bf16.mxu0 %v2823
      %3038 = vmatmul.mubr.bf16.gmra.mrb[0].mxu0 %v2822
      %v3039 = vpop.f32.mrb[0].mxu0
      %v3040 = vadd.f32 0.0, %v3039
      %v3041 = vpop.f32.mrb[0].mxu0
      %v3042 = vpop.f32.mrb[0].mxu0
      %v3043 = vadd.f32 0.0, %v3042
      %v3044 = vpop.f32.mrb[0].mxu0
      %3045 = vmatprep.mubr.bf16.mxu0 %v2826
      %3046 = vmatmul.mubr.bf16.gmra.mrb[0].mxu0 %v2825
      %v3047 = vpop.f32.mrb[0].mxu0
      %v3048 = vadd.f32 0.0, %v3047
      %v3049 = vpop.f32.mrb[0].mxu0
      %v3050 = vpop.f32.mrb[0].mxu0
      %v3051 = vadd.f32 0.0, %v3050
      %v3052 = vpop.f32.mrb[0].mxu0
      %3053 = vmatprep.mubr.bf16.mxu0 %v2829
      %3054 = vmatmul.mubr.bf16.gmra.mrb[0].mxu0 %v2828
      %v3055 = vpop.f32.mrb[0].mxu0
      %v3056 = vadd.f32 0.0, %v3055
      %v3057 = vpop.f32.mrb[0].mxu0
      %v3058 = vpop.f32.mrb[0].mxu0
      %v3059 = vadd.f32 0.0, %v3058
      %v3060 = vpop.f32.mrb[0].mxu0
      %3061 = vmatprep.mubr.bf16.mxu0 %v2832
      %3062 = vmatmul.mubr.bf16.gmra.mrb[0].mxu0 %v2831
      %v3063 = vpop.f32.mrb[0].mxu0
      %v3064 = vadd.f32 0.0, %v3063
      %v3065 = vpop.f32.mrb[0].mxu0
      %v3066 = vpop.f32.mrb[0].mxu0
      %v3067 = vadd.f32 0.0, %v3066
      %v3068 = vpop.f32.mrb[0].mxu0
      %3069 = vmatprep.mubr.bf16.mxu0 %v2835
      %3070 = vmatmul.mubr.bf16.gmra.mrb[0].mxu0 %v2834
      %v3071 = vpop.f32.mrb[0].mxu0
      %v3072 = vadd.f32 0.0, %v3071
      %v3073 = vpop.f32.mrb[0].mxu0
      %v3074 = vpop.f32.mrb[0].mxu0
      %v3075 = vadd.f32 0.0, %v3074
      %v3076 = vpop.f32.mrb[0].mxu0
      %3077 = vdwg.mxu0
      %3078 = vmatprep.subr.bf16.mxu0 0
      %3079 = vmatpush1.bf16.msra.mxu0 %v762
      %3080 = vmatprep.subr.bf16.mxu0 0
      %3081 = vmatpush1.bf16.msra.mxu0 %v763
      %3082 = vmatprep.subr.bf16.mxu0 0
      %3083 = vmatpush1.bf16.msra.mxu0 0
      %3084 = vmatprep.subr.bf16.mxu0 0
      %3085 = vmatpush1.bf16.msra.mxu0 0
      %3086 = vmatprep.subr.bf16.mxu0 0
      %3087 = vmatpush1.bf16.msra.mxu0 0
      %3088 = vmatprep.subr.bf16.mxu0 0
      %3089 = vmatpush1.bf16.msra.mxu0 0
      %3090 = vmatprep.subr.bf16.mxu0 0
      %3091 = vmatpush1.bf16.msra.mxu0 0
      %3092 = vmatprep.subr.bf16.mxu0 0
      %3093 = vmatpush1.bf16.msra.mxu0 0
      %3094 = vmatprep.subr.bf16.mxu0 0
      %3095 = vmatpush1.bf16.msra.mxu0 0
      %3096 = vmatprep.subr.bf16.mxu0 0
      %3097 = vmatpush1.bf16.msra.mxu0 0
      %3098 = vmatprep.subr.bf16.mxu0 0
      %3099 = vmatpush1.bf16.msra.mxu0 0
      %3100 = vmatprep.subr.bf16.mxu0 0
      %3101 = vmatpush1.bf16.msra.mxu0 0
      %3102 = vmatprep.subr.bf16.mxu0 0
      %3103 = vmatpush1.bf16.msra.mxu0 0
      %3104 = vmatprep.subr.bf16.mxu0 0
      %3105 = vmatpush1.bf16.msra.mxu0 0
      %3106 = vmatprep.subr.bf16.mxu0 0
      %3107 = vmatpush1.bf16.msra.mxu0 0
      %3108 = vmatprep.subr.bf16.mxu0 0
      %3109 = vmatpush1.bf16.msra.mxu0 0
      %3110 = vmatprep.mubr.bf16.mxu0 0
      %3111 = vmatmul.mubr.bf16.gmra.mrb[0].mxu0 %v2870
      %v3112 = vpop.f32.mrb[0].mxu0
      %v3113 = vadd.f32 %v2952, %v3112
      %v3114 = vpop.f32.mrb[0].mxu0
      %v3115 = vpop.f32.mrb[0].mxu0
      %v3116 = vadd.f32 %v2955, %v3115
      %v3117 = vpop.f32.mrb[0].mxu0
      %3118 = vmatprep.mubr.bf16.mxu0 0
      %3119 = vmatmul.mubr.bf16.gmra.mrb[0].mxu0 %v2873
      %v3120 = vpop.f32.mrb[0].mxu0
      %v3121 = vadd.f32 %v2960, %v3120
      %v3122 = vpop.f32.mrb[0].mxu0
      %v3123 = vpop.f32.mrb[0].mxu0
      %v3124 = vadd.f32 %v2963, %v3123
      %v3125 = vpop.f32.mrb[0].mxu0
      %3126 = vmatprep.mubr.bf16.mxu0 0
      %3127 = vmatmul.mubr.bf16.gmra.mrb[0].mxu0 %v2876
      %v3128 = vpop.f32.mrb[0].mxu0
      %v3129 = vadd.f32 %v2968, %v3128
      %v3130 = vpop.f32.mrb[0].mxu0
      %v3131 = vpop.f32.mrb[0].mxu0
      %v3132 = vadd.f32 %v2971, %v3131
      %v3133 = vpop.f32.mrb[0].mxu0
      %3134 = vmatprep.mubr.bf16.mxu0 0
      %3135 = vmatmul.mubr.bf16.gmra.mrb[0].mxu0 %v2879
      %v3136 = vpop.f32.mrb[0].mxu0
      %v3137 = vadd.f32 %v2976, %v3136
      %v3138 = vpop.f32.mrb[0].mxu0
      %v3139 = vpop.f32.mrb[0].mxu0
      %v3140 = vadd.f32 %v2979, %v3139
      %v3141 = vpop.f32.mrb[0].mxu0
      %3142 = vmatprep.mubr.bf16.mxu0 0
      %3143 = vmatmul.mubr.bf16.gmra.mrb[0].mxu0 %v2882
      %v3144 = vpop.f32.mrb[0].mxu0
      %v3145 = vadd.f32 %v2984, %v3144
      %v3146 = vpop.f32.mrb[0].mxu0
      %v3147 = vpop.f32.mrb[0].mxu0
      %v3148 = vadd.f32 %v2987, %v3147
      %v3149 = vpop.f32.mrb[0].mxu0
      %3150 = vmatprep.mubr.bf16.mxu0 0
      %3151 = vmatmul.mubr.bf16.gmra.mrb[0].mxu0 %v2885
      %v3152 = vpop.f32.mrb[0].mxu0
      %v3153 = vadd.f32 %v2992, %v3152
      %v3154 = vpop.f32.mrb[0].mxu0
      %v3155 = vpop.f32.mrb[0].mxu0
      %v3156 = vadd.f32 %v2995, %v3155
      %v3157 = vpop.f32.mrb[0].mxu0
      %3158 = vmatprep.mubr.bf16.mxu0 0
      %3159 = vmatmul.mubr.bf16.gmra.mrb[0].mxu0 %v2888
      %v3160 = vpop.f32.mrb[0].mxu0
      %v3161 = vadd.f32 %v3000, %v3160
      %v3162 = vpop.f32.mrb[0].mxu0
      %v3163 = vpop.f32.mrb[0].mxu0
      %v3164 = vadd.f32 %v3003, %v3163
      %v3165 = vpop.f32.mrb[0].mxu0
      %3166 = vmatprep.mubr.bf16.mxu0 0
      %3167 = vmatmul.mubr.bf16.gmra.mrb[0].mxu0 %v2891
      %v3168 = vpop.f32.mrb[0].mxu0
      %v3169 = vadd.f32 %v3008, %v3168
      %v3170 = vpop.f32.mrb[0].mxu0
      %v3171 = vpop.f32.mrb[0].mxu0
      %v3172 = vadd.f32 %v3011, %v3171
      %v3173 = vpop.f32.mrb[0].mxu0
      %3174 = vmatprep.mubr.bf16.mxu0 0
      %3175 = vmatmul.mubr.bf16.gmra.mrb[0].mxu0 %v2894
      %v3176 = vpop.f32.mrb[0].mxu0
      %v3177 = vadd.f32 %v3016, %v3176
      %v3178 = vpop.f32.mrb[0].mxu0
      %v3179 = vpop.f32.mrb[0].mxu0
      %v3180 = vadd.f32 %v3019, %v3179
      %v3181 = vpop.f32.mrb[0].mxu0
      %3182 = vmatprep.mubr.bf16.mxu0 0
      %3183 = vmatmul.mubr.bf16.gmra.mrb[0].mxu0 %v2897
      %v3184 = vpop.f32.mrb[0].mxu0
      %v3185 = vadd.f32 %v3024, %v3184
      %v3186 = vpop.f32.mrb[0].mxu0
      %v3187 = vpop.f32.mrb[0].mxu0
      %v3188 = vadd.f32 %v3027, %v3187
      %v3189 = vpop.f32.mrb[0].mxu0
      %3190 = vmatprep.mubr.bf16.mxu0 0
      %3191 = vmatmul.mubr.bf16.gmra.mrb[0].mxu0 %v2900
      %v3192 = vpop.f32.mrb[0].mxu0
      %v3193 = vadd.f32 %v3032, %v3192
      %v3194 = vpop.f32.mrb[0].mxu0
      %v3195 = vpop.f32.mrb[0].mxu0
      %v3196 = vadd.f32 %v3035, %v3195
      %v3197 = vpop.f32.mrb[0].mxu0
      %3198 = vmatprep.mubr.bf16.mxu0 0
      %3199 = vmatmul.mubr.bf16.gmra.mrb[0].mxu0 %v2903
      %v3200 = vpop.f32.mrb[0].mxu0
      %v3201 = vadd.f32 %v3040, %v3200
      %v3202 = vpop.f32.mrb[0].mxu0
      %v3203 = vpop.f32.mrb[0].mxu0
      %v3204 = vadd.f32 %v3043, %v3203
      %v3205 = vpop.f32.mrb[0].mxu0
      %3206 = vmatprep.mubr.bf16.mxu0 0
      %3207 = vmatmul.mubr.bf16.gmra.mrb[0].mxu0 %v2906
      %v3208 = vpop.f32.mrb[0].mxu0
      %v3209 = vadd.f32 %v3048, %v3208
      %v3210 = vpop.f32.mrb[0].mxu0
      %v3211 = vpop.f32.mrb[0].mxu0
      %v3212 = vadd.f32 %v3051, %v3211
      %v3213 = vpop.f32.mrb[0].mxu0
      %3214 = vmatprep.mubr.bf16.mxu0 0
      %3215 = vmatmul.mubr.bf16.gmra.mrb[0].mxu0 %v2909
      %v3216 = vpop.f32.mrb[0].mxu0
      %v3217 = vadd.f32 %v3056, %v3216
      %v3218 = vpop.f32.mrb[0].mxu0
      %v3219 = vpop.f32.mrb[0].mxu0
      %v3220 = vadd.f32 %v3059, %v3219
      %v3221 = vpop.f32.mrb[0].mxu0
      %3222 = vmatprep.mubr.bf16.mxu0 0
      %3223 = vmatmul.mubr.bf16.gmra.mrb[0].mxu0 %v2912
      %v3224 = vpop.f32.mrb[0].mxu0
      %v3225 = vadd.f32 %v3064, %v3224
      %v3226 = vpop.f32.mrb[0].mxu0
      %v3227 = vpop.f32.mrb[0].mxu0
      %v3228 = vadd.f32 %v3067, %v3227
      %v3229 = vpop.f32.mrb[0].mxu0
      %3230 = vmatprep.mubr.bf16.mxu0 0
      %3231 = vmatmul.mubr.bf16.gmra.mrb[0].mxu0 %v2915
      %v3232 = vpop.f32.mrb[0].mxu0
      %v3233 = vadd.f32 %v3072, %v3232
      %v3234 = vpop.f32.mrb[0].mxu0
      %v3235 = vpop.f32.mrb[0].mxu0
      %v3236 = vadd.f32 %v3075, %v3235
      %v3237 = vpop.f32.mrb[0].mxu0
      %3238 = vdwg.mxu0
      %v3239 = vmax.f32 %v2533, %v3113
      %v3240 = vmax.f32 %v2534, %v3116
      %v3241 = vmax.f32 %v2535, %v3121
      %v3242 = vmax.f32 %v2536, %v3124
      %v3243 = vmax.f32 %v2537, %v3129
      %v3244 = vmax.f32 %v2538, %v3132
      %v3245 = vmax.f32 %v2539, %v3137
      %v3246 = vmax.f32 %v2540, %v3140
      %v3247 = vmax.f32 %v2541, %v3145
      %v3248 = vmax.f32 %v2542, %v3148
      %v3249 = vmax.f32 %v2543, %v3153
      %v3250 = vmax.f32 %v2544, %v3156
      %v3251 = vmax.f32 %v2545, %v3161
      %v3252 = vmax.f32 %v2546, %v3164
      %v3253 = vmax.f32 %v2547, %v3169
      %v3254 = vmax.f32 %v2548, %v3172
      %v3255 = vmax.f32 %v2549, %v3177
      %v3256 = vmax.f32 %v2550, %v3180
      %v3257 = vmax.f32 %v2551, %v3185
      %v3258 = vmax.f32 %v2552, %v3188
      %v3259 = vmax.f32 %v2553, %v3193
      %v3260 = vmax.f32 %v2554, %v3196
      %v3261 = vmax.f32 %v2555, %v3201
      %v3262 = vmax.f32 %v2556, %v3204
      %v3263 = vmax.f32 %v2557, %v3209
      %v3264 = vmax.f32 %v2558, %v3212
      %v3265 = vmax.f32 %v2559, %v3217
      %v3266 = vmax.f32 %v2560, %v3220
      %v3267 = vmax.f32 %v2561, %v3225
      %v3268 = vmax.f32 %v2562, %v3228
      %v3269 = vmax.f32 %v2563, %v3233
      %v3270 = vmax.f32 %v2564, %v3236
      %v3271 = vld [vmem:[%s5] sm:$0x1]
      %v3273 = vlaneseq
      %v3274 = vshrl.u32 %v3273, 7
      %v3275 = vsub.s32 0, %v3274
      %v3276 = vrot.slane %v3271, %v3275
      %v3278 = vadd.f32 %v3239, %v3276
      %v3279 = vadd.f32 %v3240, %v3276
      %v3280 = vadd.f32 %v3241, %v3276
      %v3281 = vadd.f32 %v3242, %v3276
      %v3282 = vadd.f32 %v3243, %v3276
      %v3283 = vadd.f32 %v3244, %v3276
      %v3284 = vadd.f32 %v3245, %v3276
      %v3285 = vadd.f32 %v3246, %v3276
      %v3286 = vadd.f32 %v3247, %v3276
      %v3287 = vadd.f32 %v3248, %v3276
      %v3288 = vadd.f32 %v3249, %v3276
      %v3289 = vadd.f32 %v3250, %v3276
      %v3290 = vadd.f32 %v3251, %v3276
      %v3291 = vadd.f32 %v3252, %v3276
      %v3292 = vadd.f32 %v3253, %v3276
      %v3293 = vadd.f32 %v3254, %v3276
      %v3294 = vadd.f32 %v3255, %v3276
      %v3295 = vadd.f32 %v3256, %v3276
      %v3296 = vadd.f32 %v3257, %v3276
      %v3297 = vadd.f32 %v3258, %v3276
      %v3298 = vadd.f32 %v3259, %v3276
      %v3299 = vadd.f32 %v3260, %v3276
      %v3300 = vadd.f32 %v3261, %v3276
      %v3301 = vadd.f32 %v3262, %v3276
      %v3302 = vadd.f32 %v3263, %v3276
      %v3303 = vadd.f32 %v3264, %v3276
      %v3304 = vadd.f32 %v3265, %v3276
      %v3305 = vadd.f32 %v3266, %v3276
      %v3306 = vadd.f32 %v3267, %v3276
      %v3307 = vadd.f32 %v3268, %v3276
      %v3308 = vadd.f32 %v3269, %v3276
      %v3309 = vadd.f32 %v3270, %v3276
      %v3310 = vmax.f32 %v3278, 0.0
      %v3311 = vmax.f32 %v3279, 0.0
      %v3312 = vmax.f32 %v3280, 0.0
      %v3313 = vmax.f32 %v3281, 0.0
      %v3314 = vmax.f32 %v3282, 0.0
      %v3315 = vmax.f32 %v3283, 0.0
      %v3316 = vmax.f32 %v3284, 0.0
      %v3317 = vmax.f32 %v3285, 0.0
      %v3318 = vmax.f32 %v3286, 0.0
      %v3319 = vmax.f32 %v3287, 0.0
      %v3320 = vmax.f32 %v3288, 0.0
      %v3321 = vmax.f32 %v3289, 0.0
      %v3322 = vmax.f32 %v3290, 0.0
      %v3323 = vmax.f32 %v3291, 0.0
      %v3324 = vmax.f32 %v3292, 0.0
      %v3325 = vmax.f32 %v3293, 0.0
      %v3326 = vmax.f32 %v3294, 0.0
      %v3327 = vmax.f32 %v3295, 0.0
      %v3328 = vmax.f32 %v3296, 0.0
      %v3329 = vmax.f32 %v3297, 0.0
      %v3330 = vmax.f32 %v3298, 0.0
      %v3331 = vmax.f32 %v3299, 0.0
      %v3332 = vmax.f32 %v3300, 0.0
      %v3333 = vmax.f32 %v3301, 0.0
      %v3334 = vmax.f32 %v3302, 0.0
      %v3335 = vmax.f32 %v3303, 0.0
      %v3336 = vmax.f32 %v3304, 0.0
      %v3337 = vmax.f32 %v3305, 0.0
      %v3338 = vmax.f32 %v3306, 0.0
      %v3339 = vmax.f32 %v3307, 0.0
      %v3340 = vmax.f32 %v3308, 0.0
      %v3341 = vmax.f32 %v3309, 0.0
      %vm3342 = vcmask 130048
      %3343 = vst.msk [vmem:[%s331] sm:$0xff] %vm3342, %v3310
      %3344 = vst.msk [vmem:[%s331 + $0x8] sm:$0xff] %vm3342, %v3311
      %3345 = vst.msk [vmem:[%s331 + $0x10] sm:$0xff] %vm3342, %v3312
      %3346 = vst.msk [vmem:[%s331 + $0x18] sm:$0xff] %vm3342, %v3313
      %3347 = vst.msk [vmem:[%s331 + $0x20] sm:$0xff] %vm3342, %v3314
      %3348 = vst.msk [vmem:[%s331 + $0x28] sm:$0xff] %vm3342, %v3315
      %3349 = vst.msk [vmem:[%s331 + $0x30] sm:$0xff] %vm3342, %v3316
      %3350 = vst.msk [vmem:[%s331 + $0x38] sm:$0xff] %vm3342, %v3317
      %3351 = vst.msk [vmem:[%s331 + $0x40] sm:$0xff] %vm3342, %v3318
      %3352 = vst.msk [vmem:[%s331 + $0x48] sm:$0xff] %vm3342, %v3319
      %3353 = vst.msk [vmem:[%s331 + $0x50] sm:$0xff] %vm3342, %v3320
      %3354 = vst.msk [vmem:[%s331 + $0x58] sm:$0xff] %vm3342, %v3321
      %3355 = vst.msk [vmem:[%s331 + $0x60] sm:$0xff] %vm3342, %v3322
      %3356 = vst.msk [vmem:[%s331 + $0x68] sm:$0xff] %vm3342, %v3323
      %3357 = vst.msk [vmem:[%s331 + $0x70] sm:$0xff] %vm3342, %v3324
      %3358 = vst.msk [vmem:[%s331 + $0x78] sm:$0xff] %vm3342, %v3325
      %3359 = vst.msk [vmem:[%s331 + $0x80] sm:$0xff] %vm3342, %v3326
      %3360 = vst.msk [vmem:[%s331 + $0x88] sm:$0xff] %vm3342, %v3327
      %3361 = vst.msk [vmem:[%s331 + $0x90] sm:$0xff] %vm3342, %v3328
      %3362 = vst.msk [vmem:[%s331 + $0x98] sm:$0xff] %vm3342, %v3329
      %3363 = vst.msk [vmem:[%s331 + $0xa0] sm:$0xff] %vm3342, %v3330
      %3364 = vst.msk [vmem:[%s331 + $0xa8] sm:$0xff] %vm3342, %v3331
      %3365 = vst.msk [vmem:[%s331 + $0xb0] sm:$0xff] %vm3342, %v3332
      %3366 = vst.msk [vmem:[%s331 + $0xb8] sm:$0xff] %vm3342, %v3333
      %3367 = vst.msk [vmem:[%s331 + $0xc0] sm:$0xff] %vm3342, %v3334
      %3368 = vst.msk [vmem:[%s331 + $0xc8] sm:$0xff] %vm3342, %v3335
      %3369 = vst.msk [vmem:[%s331 + $0xd0] sm:$0xff] %vm3342, %v3336
      %3370 = vst.msk [vmem:[%s331 + $0xd8] sm:$0xff] %vm3342, %v3337
      %3371 = vst.msk [vmem:[%s331 + $0xe0] sm:$0xff] %vm3342, %v3338
      %3372 = vst.msk [vmem:[%s331 + $0xe8] sm:$0xff] %vm3342, %v3339
      %3373 = vst.msk [vmem:[%s331 + $0xf0] sm:$0xff] %vm3342, %v3340
      %3374 = vst.msk [vmem:[%s331 + $0xf8] sm:$0xff] %vm3342, %v3341
      %s3375 = smul.u32 32, %s17
      %p3376 = scmp.lt.s32.totalorder %s3375, 63
      %s3377 = scalar_select %p3376, %s3375, 63
      %s3378 = smul.addr %s3377, 8
      %s3379 = scalar_lea.vmem %s6, %s3378
      // Predicated region
      $region45: #{convnn_forward.5} parent=43 // pred_check
        %p3380 = pneg %p181
      $region46: #{convnn_forward.5} parent=43 // pred_check_branch
        %3382 = sbr.rel (%p3380) target = $region48
      $region47: #{convnn_forward.5} parent=43 // pred_region
        %s3383 = smul.u32 32, %s17
      $region48: #{convnn_forward.5} parent=43 // pred_fallthru
        _
    $region44: #{convnn_forward.5} parent=5 // pred_fallthru
      _
    %p3384 = scmp.le.s32.totalorder 2, %s12
    // Predicated region
    $region49: #{convnn_forward.5} parent=5 // pred_check
      %p3385 = pneg %p3384
    $region50: #{convnn_forward.5} parent=5 // pred_check_branch
      %3387 = sbr.rel (%p3385) target = $region52
    $region51: #{convnn_forward.5} parent=5 // pred_region
      %s3388 = ssub.s32 %s12, 2
      // Predicated region
      $region53: #{convnn_forward.5} parent=51 // pred_check
        %p3389 = pneg %p187
      $region54: #{convnn_forward.5} parent=51 // pred_check_branch
        %3391 = sbr.rel (%p3389) target = $region56
      $region55: #{convnn_forward.5} parent=51 // pred_region
        %s3392 = smul.u32 32, %s18
        %p3393 = scmp.lt.s32.totalorder %s3392, 63
        %s3394 = scalar_select %p3393, %s3392, 63
        %s3395 = smul.addr %s3394, 8
        %s3396 = scalar_lea.vmem %s6, %s3395
      $region56: #{convnn_forward.5} parent=51 // pred_fallthru
        _
    $region52: #{convnn_forward.5} parent=5 // pred_fallthru
      _
  $region6: #{convnn_forward.5} parent=0 // loop_footer
    %s16 = sadd.s32 1, %s12
  $region7: #{convnn_forward.5} parent=0 // loop_footer_branch
    %11 = sbr.rel target = $region3
  $region8: #{convnn_forward.5} parent=0 // loop_exit
    _

// kernel: convnn_forward.6
$region0: #{convnn_forward.6}
  #allocation0 [shape = 'u32[]', space=smem, size = 0x4, offset = 0x4, fixed_abs, tag = 'smem constant byte address 0x4 - core index']
  #allocation1 [shape = 'u32[144,128]{1,0:T(1,128)}', space=vmem, size = 0x12000, scoped, tag = 'internal scratch']
  %s0 = inlined_call_operand.vmem [shape: bf16[112,144], index: 0, kind: input, shape index: {}]
  %s1 = inlined_call_operand.vmem [shape: bf16[112,144], index: 1, kind: input, shape index: {}]
  %s2 = inlined_call_operand.vmem [shape: bf16[112,144], index: 2, kind: input, shape index: {}]
  %s3 = inlined_call_operand.vmem [shape: bf16[112,144], index: 3, kind: input, shape index: {}]
  %s4 = inlined_call_operand.vmem [shape: bf16[144,16], index: 4, kind: input, shape index: {}]
  %s5 = inlined_call_operand.vmem [shape: f32[1,16], index: 5, kind: input, shape index: {}]
  %s6 = inlined_call_operand.vmem [shape: f32[112,16], index: 6, kind: output, shape index: {}]
  %s7 = sld [smem:[#allocation0]]
  $region34: #{convnn_forward.6} parent=0
    _
  %s9 = ssub.s32 1, %s7
  %s10 = scalar_select 0, %s9, %s7
  // Predicated region
  $region2: #{convnn_forward.6} parent=0 // pred_check
    _
  $region3: #{convnn_forward.6} parent=0 // pred_check_branch
    %12 = sbr.rel (0) target = $region5
  $region4: #{convnn_forward.6} parent=0 // pred_region
    _
  $region5: #{convnn_forward.6} parent=0 // pred_fallthru
    _
  // Predicated region
  $region6: #{convnn_forward.6} parent=0 // pred_check
    _
  $region7: #{convnn_forward.6} parent=0 // pred_check_branch
    %14 = sbr.rel (0) target = $region9
  $region8: #{convnn_forward.6} parent=0 // pred_region
    _
  $region9: #{convnn_forward.6} parent=0 // pred_fallthru
    _
  // Predicated region
  $region10: #{convnn_forward.6} parent=0 // pred_check
    _
  $region11: #{convnn_forward.6} parent=0 // pred_check_branch
    %16 = sbr.rel (0) target = $region13
  $region12: #{convnn_forward.6} parent=0 // pred_region
    _
  $region13: #{convnn_forward.6} parent=0 // pred_fallthru
    _
  // Predicated region
  $region14: #{convnn_forward.6} parent=0 // pred_check
    _
  $region15: #{convnn_forward.6} parent=0 // pred_check_branch
    %18 = sbr.rel (0) target = $region17
  $region16: #{convnn_forward.6} parent=0 // pred_region
    _
  $region17: #{convnn_forward.6} parent=0 // pred_fallthru
    _
  // Predicated region
  $region18: #{convnn_forward.6} parent=0 // pred_check
    _
  $region19: #{convnn_forward.6} parent=0 // pred_check_branch
    %20 = sbr.rel (0) target = $region21
  $region20: #{convnn_forward.6} parent=0 // pred_region
    _
  $region21: #{convnn_forward.6} parent=0 // pred_fallthru
    _
  // Predicated region
  $region22: #{convnn_forward.6} parent=0 // pred_check
    _
  $region23: #{convnn_forward.6} parent=0 // pred_check_branch
    %22 = sbr.rel (0) target = $region25
  $region24: #{convnn_forward.6} parent=0 // pred_region
    _
  $region25: #{convnn_forward.6} parent=0 // pred_fallthru
    _
  %v24 = vld [vmem:[%s4] sm:$0xf]
  %v25 = vld [vmem:[%s4 + $0x4] sm:$0xf]
  %v26 = vld [vmem:[%s4 + $0x8] sm:$0xf]
  %v27 = vld [vmem:[%s4 + $0xc] sm:$0xf]
  %v28 = vld [vmem:[%s4 + $0x10] sm:$0xf]
  %v29 = vld [vmem:[%s4 + $0x14] sm:$0xf]
  %v30 = vld [vmem:[%s4 + $0x18] sm:$0xf]
  %v31 = vld [vmem:[%s4 + $0x1c] sm:$0xf]
  %v32 = vld [vmem:[%s4 + $0x20] sm:$0xf]
  %v33 = vld [vmem:[%s4 + $0x24] sm:$0xf]
  %v34 = vld [vmem:[%s4 + $0x28] sm:$0xf]
  %v35 = vld [vmem:[%s4 + $0x2c] sm:$0xf]
  %v36 = vld [vmem:[%s4 + $0x30] sm:$0xf]
  %v37 = vld [vmem:[%s4 + $0x34] sm:$0xf]
  %v38 = vld [vmem:[%s4 + $0x38] sm:$0xf]
  %v39 = vld [vmem:[%s4 + $0x3c] sm:$0xf]
  %v40 = vld [vmem:[%s4 + $0x40] sm:$0xf]
  %v41 = vld [vmem:[%s4 + $0x44] sm:$0xf]
  %v42 = vld [vmem:[%s0] sm:$0xff]
  %v43 = vld [vmem:[%s0 + $0x8] sm:$0xff]
  %v44 = vld [vmem:[%s0 + $0x10] sm:$0xff]
  %v45 = vld [vmem:[%s0 + $0x18] sm:$0xff]
  %v46 = vld [vmem:[%s0 + $0x20] sm:$0xff]
  %v47 = vld [vmem:[%s0 + $0x28] sm:$0xff]
  %v48 = vld [vmem:[%s0 + $0x30] sm:$0xff]
  %v49 = vld [vmem:[%s0 + $0x38] sm:$0xff]
  %v50 = vld [vmem:[%s0 + $0x40] sm:$0xff]
  %v51 = vld [vmem:[%s0 + $0x48] sm:$0xff]
  %v52 = vld [vmem:[%s0 + $0x50] sm:$0xff]
  %v53 = vld [vmem:[%s0 + $0x58] sm:$0xff]
  %v54 = vld [vmem:[%s0 + $0x60] sm:$0xff]
  %v55 = vld [vmem:[%s0 + $0x68] sm:$0xff]
  %v70 = vunpack.c.l.b16 %v42
  %v71 = vunpack.c.h.b16 %v42
  %v72 = vunpack.c.l.b16 %v43
  %v73 = vunpack.c.h.b16 %v43
  %v74 = vunpack.c.l.b16 %v44
  %v75 = vunpack.c.h.b16 %v44
  %v76 = vunpack.c.l.b16 %v45
  %v77 = vunpack.c.h.b16 %v45
  %v78 = vunpack.c.l.b16 %v46
  %v79 = vunpack.c.h.b16 %v46
  %v80 = vunpack.c.l.b16 %v47
  %v81 = vunpack.c.h.b16 %v47
  %v82 = vunpack.c.l.b16 %v48
  %v83 = vunpack.c.h.b16 %v48
  %v84 = vunpack.c.l.b16 %v49
  %v85 = vunpack.c.h.b16 %v49
  %v86 = vunpack.c.l.b16 %v50
  %v87 = vunpack.c.h.b16 %v50
  %v88 = vunpack.c.l.b16 %v51
  %v89 = vunpack.c.h.b16 %v51
  %v90 = vunpack.c.l.b16 %v52
  %v91 = vunpack.c.h.b16 %v52
  %v92 = vunpack.c.l.b16 %v53
  %v93 = vunpack.c.h.b16 %v53
  %v94 = vunpack.c.l.b16 %v54
  %v95 = vunpack.c.h.b16 %v54
  %v96 = vunpack.c.l.b16 %v55
  %v97 = vunpack.c.h.b16 %v55
  %v98 = vpack.c.b16 %v72, %v70
  %v99 = vpack.c.b16 %v73, %v71
  %v100 = vpack.c.b16 %v76, %v74
  %v101 = vpack.c.b16 %v77, %v75
  %v102 = vpack.c.b16 %v80, %v78
  %v103 = vpack.c.b16 %v81, %v79
  %v104 = vpack.c.b16 %v84, %v82
  %v105 = vpack.c.b16 %v85, %v83
  %v106 = vpack.c.b16 %v88, %v86
  %v107 = vpack.c.b16 %v89, %v87
  %v108 = vpack.c.b16 %v92, %v90
  %v109 = vpack.c.b16 %v93, %v91
  %v110 = vpack.c.b16 %v96, %v94
  %v111 = vpack.c.b16 %v97, %v95
  %v137 = vunpack.c.l.b16 %v24
  %v138 = vunpack.c.l.b16 %v25
  %v139 = vunpack.c.l.b16 %v26
  %v140 = vunpack.c.l.b16 %v27
  %v141 = vunpack.c.l.b16 %v28
  %v142 = vunpack.c.l.b16 %v29
  %v143 = vunpack.c.l.b16 %v30
  %v144 = vunpack.c.l.b16 %v31
  %v145 = vunpack.c.l.b16 %v32
  %v146 = vunpack.c.l.b16 %v33
  %v147 = vunpack.c.l.b16 %v34
  %v148 = vunpack.c.l.b16 %v35
  %v149 = vunpack.c.l.b16 %v36
  %v150 = vunpack.c.l.b16 %v37
  %v151 = vunpack.c.l.b16 %v38
  %v152 = vunpack.c.l.b16 %v39
  %v153 = vunpack.c.l.b16 %v40
  %v154 = vunpack.c.l.b16 %v41
  %v155 = vpack.c.b16 %v138, %v137
  %v156 = vpack.c.b16 %v140, %v139
  %v157 = vpack.c.b16 %v142, %v141
  %v158 = vpack.c.b16 %v144, %v143
  %v159 = vpack.c.b16 %v146, %v145
  %v160 = vpack.c.b16 %v148, %v147
  %v161 = vpack.c.b16 %v150, %v149
  %v162 = vpack.c.b16 %v152, %v151
  %v163 = vpack.c.b16 %v154, %v153
  %vm173 = vcmask 130048
  %v175 = vsel %vm173, %v99, 0
  %v178 = vsel %vm173, %v101, 0
  %v181 = vsel %vm173, %v103, 0
  %v184 = vsel %vm173, %v105, 0
  %v187 = vsel %vm173, %v107, 0
  %v190 = vsel %vm173, %v109, 0
  %v193 = vsel %vm173, %v111, 0
  %195 = vmatprep.subr.bf16.mxu0 0
  %196 = vmatpush1.bf16.msra.mxu0 %v155
  %197 = vmatprep.subr.bf16.mxu0 0
  %198 = vmatpush1.bf16.msra.mxu0 %v156
  %199 = vmatprep.subr.bf16.mxu0 0
  %200 = vmatpush1.bf16.msra.mxu0 %v157
  %201 = vmatprep.subr.bf16.mxu0 0
  %202 = vmatpush1.bf16.msra.mxu0 %v158
  %203 = vmatprep.subr.bf16.mxu0 0
  %204 = vmatpush1.bf16.msra.mxu0 %v159
  %205 = vmatprep.subr.bf16.mxu0 0
  %206 = vmatpush1.bf16.msra.mxu0 %v160
  %207 = vmatprep.subr.bf16.mxu0 0
  %208 = vmatpush1.bf16.msra.mxu0 %v161
  %209 = vmatprep.subr.bf16.mxu0 0
  %210 = vmatpush1.bf16.msra.mxu0 %v162
  %211 = vmatprep.subr.bf16.mxu0 0
  %212 = vmatpush1.bf16.msra.mxu0 %v163
  %213 = vmatprep.subr.bf16.mxu0 0
  %214 = vmatpush1.bf16.msra.mxu0 0
  %215 = vmatprep.subr.bf16.mxu0 0
  %216 = vmatpush1.bf16.msra.mxu0 0
  %217 = vmatprep.subr.bf16.mxu0 0
  %218 = vmatpush1.bf16.msra.mxu0 0
  %219 = vmatprep.subr.bf16.mxu0 0
  %220 = vmatpush1.bf16.msra.mxu0 0
  %221 = vmatprep.subr.bf16.mxu0 0
  %222 = vmatpush1.bf16.msra.mxu0 0
  %223 = vmatprep.subr.bf16.mxu0 0
  %224 = vmatpush1.bf16.msra.mxu0 0
  %225 = vmatprep.subr.bf16.mxu0 0
  %226 = vmatpush1.bf16.msra.mxu0 0
  %227 = vmatprep.mubr.bf16.mxu0 %v175
  %228 = vmatmul.mubr.bf16.gmra.mrb[0].mxu0 %v98
  %v229 = vpop.f32.mrb[0].mxu0
  %v230 = vadd.f32 0.0, %v229
  %v231 = vpop.f32.mrb[0].mxu0
  %v232 = vpop.f32.mrb[0].mxu0
  %v233 = vadd.f32 0.0, %v232
  %v234 = vpop.f32.mrb[0].mxu0
  %235 = vmatprep.mubr.bf16.mxu0 %v178
  %236 = vmatmul.mubr.bf16.gmra.mrb[0].mxu0 %v100
  %v237 = vpop.f32.mrb[0].mxu0
  %v238 = vadd.f32 0.0, %v237
  %v239 = vpop.f32.mrb[0].mxu0
  %v240 = vpop.f32.mrb[0].mxu0
  %v241 = vadd.f32 0.0, %v240
  %v242 = vpop.f32.mrb[0].mxu0
  %243 = vmatprep.mubr.bf16.mxu0 %v181
  %244 = vmatmul.mubr.bf16.gmra.mrb[0].mxu0 %v102
  %v245 = vpop.f32.mrb[0].mxu0
  %v246 = vadd.f32 0.0, %v245
  %v247 = vpop.f32.mrb[0].mxu0
  %v248 = vpop.f32.mrb[0].mxu0
  %v249 = vadd.f32 0.0, %v248
  %v250 = vpop.f32.mrb[0].mxu0
  %251 = vmatprep.mubr.bf16.mxu0 %v184
  %252 = vmatmul.mubr.bf16.gmra.mrb[0].mxu0 %v104
  %v253 = vpop.f32.mrb[0].mxu0
  %v254 = vadd.f32 0.0, %v253
  %v255 = vpop.f32.mrb[0].mxu0
  %v256 = vpop.f32.mrb[0].mxu0
  %v257 = vadd.f32 0.0, %v256
  %v258 = vpop.f32.mrb[0].mxu0
  %259 = vmatprep.mubr.bf16.mxu0 %v187
  %260 = vmatmul.mubr.bf16.gmra.mrb[0].mxu0 %v106
  %v261 = vpop.f32.mrb[0].mxu0
  %v262 = vadd.f32 0.0, %v261
  %v263 = vpop.f32.mrb[0].mxu0
  %v264 = vpop.f32.mrb[0].mxu0
  %v265 = vadd.f32 0.0, %v264
  %v266 = vpop.f32.mrb[0].mxu0
  %267 = vmatprep.mubr.bf16.mxu0 %v190
  %268 = vmatmul.mubr.bf16.gmra.mrb[0].mxu0 %v108
  %v269 = vpop.f32.mrb[0].mxu0
  %v270 = vadd.f32 0.0, %v269
  %v271 = vpop.f32.mrb[0].mxu0
  %v272 = vpop.f32.mrb[0].mxu0
  %v273 = vadd.f32 0.0, %v272
  %v274 = vpop.f32.mrb[0].mxu0
  %275 = vmatprep.mubr.bf16.mxu0 %v193
  %276 = vmatmul.mubr.bf16.gmra.mrb[0].mxu0 %v110
  %v277 = vpop.f32.mrb[0].mxu0
  %v278 = vadd.f32 0.0, %v277
  %v279 = vpop.f32.mrb[0].mxu0
  %v280 = vpop.f32.mrb[0].mxu0
  %v281 = vadd.f32 0.0, %v280
  %v282 = vpop.f32.mrb[0].mxu0
  %283 = vdwg.mxu0
  %v284 = vld [vmem:[%s1] sm:$0xff]
  %v285 = vld [vmem:[%s1 + $0x8] sm:$0xff]
  %v286 = vld [vmem:[%s1 + $0x10] sm:$0xff]
  %v287 = vld [vmem:[%s1 + $0x18] sm:$0xff]
  %v288 = vld [vmem:[%s1 + $0x20] sm:$0xff]
  %v289 = vld [vmem:[%s1 + $0x28] sm:$0xff]
  %v290 = vld [vmem:[%s1 + $0x30] sm:$0xff]
  %v291 = vld [vmem:[%s1 + $0x38] sm:$0xff]
  %v292 = vld [vmem:[%s1 + $0x40] sm:$0xff]
  %v293 = vld [vmem:[%s1 + $0x48] sm:$0xff]
  %v294 = vld [vmem:[%s1 + $0x50] sm:$0xff]
  %v295 = vld [vmem:[%s1 + $0x58] sm:$0xff]
  %v296 = vld [vmem:[%s1 + $0x60] sm:$0xff]
  %v297 = vld [vmem:[%s1 + $0x68] sm:$0xff]
  %v312 = vunpack.c.l.b16 %v284
  %v313 = vunpack.c.h.b16 %v284
  %v314 = vunpack.c.l.b16 %v285
  %v315 = vunpack.c.h.b16 %v285
  %v316 = vunpack.c.l.b16 %v286
  %v317 = vunpack.c.h.b16 %v286
  %v318 = vunpack.c.l.b16 %v287
  %v319 = vunpack.c.h.b16 %v287
  %v320 = vunpack.c.l.b16 %v288
  %v321 = vunpack.c.h.b16 %v288
  %v322 = vunpack.c.l.b16 %v289
  %v323 = vunpack.c.h.b16 %v289
  %v324 = vunpack.c.l.b16 %v290
  %v325 = vunpack.c.h.b16 %v290
  %v326 = vunpack.c.l.b16 %v291
  %v327 = vunpack.c.h.b16 %v291
  %v328 = vunpack.c.l.b16 %v292
  %v329 = vunpack.c.h.b16 %v292
  %v330 = vunpack.c.l.b16 %v293
  %v331 = vunpack.c.h.b16 %v293
  %v332 = vunpack.c.l.b16 %v294
  %v333 = vunpack.c.h.b16 %v294
  %v334 = vunpack.c.l.b16 %v295
  %v335 = vunpack.c.h.b16 %v295
  %v336 = vunpack.c.l.b16 %v296
  %v337 = vunpack.c.h.b16 %v296
  %v338 = vunpack.c.l.b16 %v297
  %v339 = vunpack.c.h.b16 %v297
  %v340 = vpack.c.b16 %v314, %v312
  %v341 = vpack.c.b16 %v315, %v313
  %v342 = vpack.c.b16 %v318, %v316
  %v343 = vpack.c.b16 %v319, %v317
  %v344 = vpack.c.b16 %v322, %v320
  %v345 = vpack.c.b16 %v323, %v321
  %v346 = vpack.c.b16 %v326, %v324
  %v347 = vpack.c.b16 %v327, %v325
  %v348 = vpack.c.b16 %v330, %v328
  %v349 = vpack.c.b16 %v331, %v329
  %v350 = vpack.c.b16 %v334, %v332
  %v351 = vpack.c.b16 %v335, %v333
  %v352 = vpack.c.b16 %v338, %v336
  %v353 = vpack.c.b16 %v339, %v337
  %v362 = vsel %vm173, %v341, 0
  %v365 = vsel %vm173, %v343, 0
  %v368 = vsel %vm173, %v345, 0
  %v371 = vsel %vm173, %v347, 0
  %v374 = vsel %vm173, %v349, 0
  %v377 = vsel %vm173, %v351, 0
  %v380 = vsel %vm173, %v353, 0
  %382 = vmatprep.subr.bf16.mxu0 0
  %383 = vmatpush1.bf16.msra.mxu0 %v155
  %384 = vmatprep.subr.bf16.mxu0 0
  %385 = vmatpush1.bf16.msra.mxu0 %v156
  %386 = vmatprep.subr.bf16.mxu0 0
  %387 = vmatpush1.bf16.msra.mxu0 %v157
  %388 = vmatprep.subr.bf16.mxu0 0
  %389 = vmatpush1.bf16.msra.mxu0 %v158
  %390 = vmatprep.subr.bf16.mxu0 0
  %391 = vmatpush1.bf16.msra.mxu0 %v159
  %392 = vmatprep.subr.bf16.mxu0 0
  %393 = vmatpush1.bf16.msra.mxu0 %v160
  %394 = vmatprep.subr.bf16.mxu0 0
  %395 = vmatpush1.bf16.msra.mxu0 %v161
  %396 = vmatprep.subr.bf16.mxu0 0
  %397 = vmatpush1.bf16.msra.mxu0 %v162
  %398 = vmatprep.subr.bf16.mxu0 0
  %399 = vmatpush1.bf16.msra.mxu0 %v163
  %400 = vmatprep.subr.bf16.mxu0 0
  %401 = vmatpush1.bf16.msra.mxu0 0
  %402 = vmatprep.subr.bf16.mxu0 0
  %403 = vmatpush1.bf16.msra.mxu0 0
  %404 = vmatprep.subr.bf16.mxu0 0
  %405 = vmatpush1.bf16.msra.mxu0 0
  %406 = vmatprep.subr.bf16.mxu0 0
  %407 = vmatpush1.bf16.msra.mxu0 0
  %408 = vmatprep.subr.bf16.mxu0 0
  %409 = vmatpush1.bf16.msra.mxu0 0
  %410 = vmatprep.subr.bf16.mxu0 0
  %411 = vmatpush1.bf16.msra.mxu0 0
  %412 = vmatprep.subr.bf16.mxu0 0
  %413 = vmatpush1.bf16.msra.mxu0 0
  %414 = vmatprep.mubr.bf16.mxu0 %v362
  %415 = vmatmul.mubr.bf16.gmra.mrb[0].mxu0 %v340
  %v416 = vpop.f32.mrb[0].mxu0
  %v417 = vadd.f32 0.0, %v416
  %v418 = vpop.f32.mrb[0].mxu0
  %v419 = vpop.f32.mrb[0].mxu0
  %v420 = vadd.f32 0.0, %v419
  %v421 = vpop.f32.mrb[0].mxu0
  %422 = vmatprep.mubr.bf16.mxu0 %v365
  %423 = vmatmul.mubr.bf16.gmra.mrb[0].mxu0 %v342
  %v424 = vpop.f32.mrb[0].mxu0
  %v425 = vadd.f32 0.0, %v424
  %v426 = vpop.f32.mrb[0].mxu0
  %v427 = vpop.f32.mrb[0].mxu0
  %v428 = vadd.f32 0.0, %v427
  %v429 = vpop.f32.mrb[0].mxu0
  %430 = vmatprep.mubr.bf16.mxu0 %v368
  %431 = vmatmul.mubr.bf16.gmra.mrb[0].mxu0 %v344
  %v432 = vpop.f32.mrb[0].mxu0
  %v433 = vadd.f32 0.0, %v432
  %v434 = vpop.f32.mrb[0].mxu0
  %v435 = vpop.f32.mrb[0].mxu0
  %v436 = vadd.f32 0.0, %v435
  %v437 = vpop.f32.mrb[0].mxu0
  %438 = vmatprep.mubr.bf16.mxu0 %v371
  %439 = vmatmul.mubr.bf16.gmra.mrb[0].mxu0 %v346
  %v440 = vpop.f32.mrb[0].mxu0
  %v441 = vadd.f32 0.0, %v440
  %v442 = vpop.f32.mrb[0].mxu0
  %v443 = vpop.f32.mrb[0].mxu0
  %v444 = vadd.f32 0.0, %v443
  %v445 = vpop.f32.mrb[0].mxu0
  %446 = vmatprep.mubr.bf16.mxu0 %v374
  %447 = vmatmul.mubr.bf16.gmra.mrb[0].mxu0 %v348
  %v448 = vpop.f32.mrb[0].mxu0
  %v449 = vadd.f32 0.0, %v448
  %v450 = vpop.f32.mrb[0].mxu0
  %v451 = vpop.f32.mrb[0].mxu0
  %v452 = vadd.f32 0.0, %v451
  %v453 = vpop.f32.mrb[0].mxu0
  %454 = vmatprep.mubr.bf16.mxu0 %v377
  %455 = vmatmul.mubr.bf16.gmra.mrb[0].mxu0 %v350
  %v456 = vpop.f32.mrb[0].mxu0
  %v457 = vadd.f32 0.0, %v456
  %v458 = vpop.f32.mrb[0].mxu0
  %v459 = vpop.f32.mrb[0].mxu0
  %v460 = vadd.f32 0.0, %v459
  %v461 = vpop.f32.mrb[0].mxu0
  %462 = vmatprep.mubr.bf16.mxu0 %v380
  %463 = vmatmul.mubr.bf16.gmra.mrb[0].mxu0 %v352
  %v464 = vpop.f32.mrb[0].mxu0
  %v465 = vadd.f32 0.0, %v464
  %v466 = vpop.f32.mrb[0].mxu0
  %v467 = vpop.f32.mrb[0].mxu0
  %v468 = vadd.f32 0.0, %v467
  %v469 = vpop.f32.mrb[0].mxu0
  %470 = vdwg.mxu0
  %v471 = vmax.f32 %v230, %v417
  %v472 = vmax.f32 %v233, %v420
  %v473 = vmax.f32 %v238, %v425
  %v474 = vmax.f32 %v241, %v428
  %v475 = vmax.f32 %v246, %v433
  %v476 = vmax.f32 %v249, %v436
  %v477 = vmax.f32 %v254, %v441
  %v478 = vmax.f32 %v257, %v444
  %v479 = vmax.f32 %v262, %v449
  %v480 = vmax.f32 %v265, %v452
  %v481 = vmax.f32 %v270, %v457
  %v482 = vmax.f32 %v273, %v460
  %v483 = vmax.f32 %v278, %v465
  %v484 = vmax.f32 %v281, %v468
  %v485 = vld [vmem:[%s2] sm:$0xff]
  %v486 = vld [vmem:[%s2 + $0x8] sm:$0xff]
  %v487 = vld [vmem:[%s2 + $0x10] sm:$0xff]
  %v488 = vld [vmem:[%s2 + $0x18] sm:$0xff]
  %v489 = vld [vmem:[%s2 + $0x20] sm:$0xff]
  %v490 = vld [vmem:[%s2 + $0x28] sm:$0xff]
  %v491 = vld [vmem:[%s2 + $0x30] sm:$0xff]
  %v492 = vld [vmem:[%s2 + $0x38] sm:$0xff]
  %v493 = vld [vmem:[%s2 + $0x40] sm:$0xff]
  %v494 = vld [vmem:[%s2 + $0x48] sm:$0xff]
  %v495 = vld [vmem:[%s2 + $0x50] sm:$0xff]
  %v496 = vld [vmem:[%s2 + $0x58] sm:$0xff]
  %v497 = vld [vmem:[%s2 + $0x60] sm:$0xff]
  %v498 = vld [vmem:[%s2 + $0x68] sm:$0xff]
  %v513 = vunpack.c.l.b16 %v485
  %v514 = vunpack.c.h.b16 %v485
  %v515 = vunpack.c.l.b16 %v486
  %v516 = vunpack.c.h.b16 %v486
  %v517 = vunpack.c.l.b16 %v487
  %v518 = vunpack.c.h.b16 %v487
  %v519 = vunpack.c.l.b16 %v488
  %v520 = vunpack.c.h.b16 %v488
  %v521 = vunpack.c.l.b16 %v489
  %v522 = vunpack.c.h.b16 %v489
  %v523 = vunpack.c.l.b16 %v490
  %v524 = vunpack.c.h.b16 %v490
  %v525 = vunpack.c.l.b16 %v491
  %v526 = vunpack.c.h.b16 %v491
  %v527 = vunpack.c.l.b16 %v492
  %v528 = vunpack.c.h.b16 %v492
  %v529 = vunpack.c.l.b16 %v493
  %v530 = vunpack.c.h.b16 %v493
  %v531 = vunpack.c.l.b16 %v494
  %v532 = vunpack.c.h.b16 %v494
  %v533 = vunpack.c.l.b16 %v495
  %v534 = vunpack.c.h.b16 %v495
  %v535 = vunpack.c.l.b16 %v496
  %v536 = vunpack.c.h.b16 %v496
  %v537 = vunpack.c.l.b16 %v497
  %v538 = vunpack.c.h.b16 %v497
  %v539 = vunpack.c.l.b16 %v498
  %v540 = vunpack.c.h.b16 %v498
  %v541 = vpack.c.b16 %v515, %v513
  %v542 = vpack.c.b16 %v516, %v514
  %v543 = vpack.c.b16 %v519, %v517
  %v544 = vpack.c.b16 %v520, %v518
  %v545 = vpack.c.b16 %v523, %v521
  %v546 = vpack.c.b16 %v524, %v522
  %v547 = vpack.c.b16 %v527, %v525
  %v548 = vpack.c.b16 %v528, %v526
  %v549 = vpack.c.b16 %v531, %v529
  %v550 = vpack.c.b16 %v532, %v530
  %v551 = vpack.c.b16 %v535, %v533
  %v552 = vpack.c.b16 %v536, %v534
  %v553 = vpack.c.b16 %v539, %v537
  %v554 = vpack.c.b16 %v540, %v538
  %v563 = vsel %vm173, %v542, 0
  %v566 = vsel %vm173, %v544, 0
  %v569 = vsel %vm173, %v546, 0
  %v572 = vsel %vm173, %v548, 0
  %v575 = vsel %vm173, %v550, 0
  %v578 = vsel %vm173, %v552, 0
  %v581 = vsel %vm173, %v554, 0
  %583 = vmatprep.subr.bf16.mxu0 0
  %584 = vmatpush1.bf16.msra.mxu0 %v155
  %585 = vmatprep.subr.bf16.mxu0 0
  %586 = vmatpush1.bf16.msra.mxu0 %v156
  %587 = vmatprep.subr.bf16.mxu0 0
  %588 = vmatpush1.bf16.msra.mxu0 %v157
  %589 = vmatprep.subr.bf16.mxu0 0
  %590 = vmatpush1.bf16.msra.mxu0 %v158
  %591 = vmatprep.subr.bf16.mxu0 0
  %592 = vmatpush1.bf16.msra.mxu0 %v159
  %593 = vmatprep.subr.bf16.mxu0 0
  %594 = vmatpush1.bf16.msra.mxu0 %v160
  %595 = vmatprep.subr.bf16.mxu0 0
  %596 = vmatpush1.bf16.msra.mxu0 %v161
  %597 = vmatprep.subr.bf16.mxu0 0
  %598 = vmatpush1.bf16.msra.mxu0 %v162
  %599 = vmatprep.subr.bf16.mxu0 0
  %600 = vmatpush1.bf16.msra.mxu0 %v163
  %601 = vmatprep.subr.bf16.mxu0 0
  %602 = vmatpush1.bf16.msra.mxu0 0
  %603 = vmatprep.subr.bf16.mxu0 0
  %604 = vmatpush1.bf16.msra.mxu0 0
  %605 = vmatprep.subr.bf16.mxu0 0
  %606 = vmatpush1.bf16.msra.mxu0 0
  %607 = vmatprep.subr.bf16.mxu0 0
  %608 = vmatpush1.bf16.msra.mxu0 0
  %609 = vmatprep.subr.bf16.mxu0 0
  %610 = vmatpush1.bf16.msra.mxu0 0
  %611 = vmatprep.subr.bf16.mxu0 0
  %612 = vmatpush1.bf16.msra.mxu0 0
  %613 = vmatprep.subr.bf16.mxu0 0
  %614 = vmatpush1.bf16.msra.mxu0 0
  %615 = vmatprep.mubr.bf16.mxu0 %v563
  %616 = vmatmul.mubr.bf16.gmra.mrb[0].mxu0 %v541
  %v617 = vpop.f32.mrb[0].mxu0
  %v618 = vadd.f32 0.0, %v617
  %v619 = vpop.f32.mrb[0].mxu0
  %v620 = vpop.f32.mrb[0].mxu0
  %v621 = vadd.f32 0.0, %v620
  %v622 = vpop.f32.mrb[0].mxu0
  %623 = vmatprep.mubr.bf16.mxu0 %v566
  %624 = vmatmul.mubr.bf16.gmra.mrb[0].mxu0 %v543
  %v625 = vpop.f32.mrb[0].mxu0
  %v626 = vadd.f32 0.0, %v625
  %v627 = vpop.f32.mrb[0].mxu0
  %v628 = vpop.f32.mrb[0].mxu0
  %v629 = vadd.f32 0.0, %v628
  %v630 = vpop.f32.mrb[0].mxu0
  %631 = vmatprep.mubr.bf16.mxu0 %v569
  %632 = vmatmul.mubr.bf16.gmra.mrb[0].mxu0 %v545
  %v633 = vpop.f32.mrb[0].mxu0
  %v634 = vadd.f32 0.0, %v633
  %v635 = vpop.f32.mrb[0].mxu0
  %v636 = vpop.f32.mrb[0].mxu0
  %v637 = vadd.f32 0.0, %v636
  %v638 = vpop.f32.mrb[0].mxu0
  %639 = vmatprep.mubr.bf16.mxu0 %v572
  %640 = vmatmul.mubr.bf16.gmra.mrb[0].mxu0 %v547
  %v641 = vpop.f32.mrb[0].mxu0
  %v642 = vadd.f32 0.0, %v641
  %v643 = vpop.f32.mrb[0].mxu0
  %v644 = vpop.f32.mrb[0].mxu0
  %v645 = vadd.f32 0.0, %v644
  %v646 = vpop.f32.mrb[0].mxu0
  %647 = vmatprep.mubr.bf16.mxu0 %v575
  %648 = vmatmul.mubr.bf16.gmra.mrb[0].mxu0 %v549
  %v649 = vpop.f32.mrb[0].mxu0
  %v650 = vadd.f32 0.0, %v649
  %v651 = vpop.f32.mrb[0].mxu0
  %v652 = vpop.f32.mrb[0].mxu0
  %v653 = vadd.f32 0.0, %v652
  %v654 = vpop.f32.mrb[0].mxu0
  %655 = vmatprep.mubr.bf16.mxu0 %v578
  %656 = vmatmul.mubr.bf16.gmra.mrb[0].mxu0 %v551
  %v657 = vpop.f32.mrb[0].mxu0
  %v658 = vadd.f32 0.0, %v657
  %v659 = vpop.f32.mrb[0].mxu0
  %v660 = vpop.f32.mrb[0].mxu0
  %v661 = vadd.f32 0.0, %v660
  %v662 = vpop.f32.mrb[0].mxu0
  %663 = vmatprep.mubr.bf16.mxu0 %v581
  %664 = vmatmul.mubr.bf16.gmra.mrb[0].mxu0 %v553
  %v665 = vpop.f32.mrb[0].mxu0
  %v666 = vadd.f32 0.0, %v665
  %v667 = vpop.f32.mrb[0].mxu0
  %v668 = vpop.f32.mrb[0].mxu0
  %v669 = vadd.f32 0.0, %v668
  %v670 = vpop.f32.mrb[0].mxu0
  %671 = vdwg.mxu0
  %v672 = vmax.f32 %v471, %v618
  %v673 = vmax.f32 %v472, %v621
  %v674 = vmax.f32 %v473, %v626
  %v675 = vmax.f32 %v474, %v629
  %v676 = vmax.f32 %v475, %v634
  %v677 = vmax.f32 %v476, %v637
  %v678 = vmax.f32 %v477, %v642
  %v679 = vmax.f32 %v478, %v645
  %v680 = vmax.f32 %v479, %v650
  %v681 = vmax.f32 %v480, %v653
  %v682 = vmax.f32 %v481, %v658
  %v683 = vmax.f32 %v482, %v661
  %v684 = vmax.f32 %v483, %v666
  %v685 = vmax.f32 %v484, %v669
  %v686 = vld [vmem:[%s3] sm:$0xff]
  %v687 = vld [vmem:[%s3 + $0x8] sm:$0xff]
  %v688 = vld [vmem:[%s3 + $0x10] sm:$0xff]
  %v689 = vld [vmem:[%s3 + $0x18] sm:$0xff]
  %v690 = vld [vmem:[%s3 + $0x20] sm:$0xff]
  %v691 = vld [vmem:[%s3 + $0x28] sm:$0xff]
  %v692 = vld [vmem:[%s3 + $0x30] sm:$0xff]
  %v693 = vld [vmem:[%s3 + $0x38] sm:$0xff]
  %v694 = vld [vmem:[%s3 + $0x40] sm:$0xff]
  %v695 = vld [vmem:[%s3 + $0x48] sm:$0xff]
  %v696 = vld [vmem:[%s3 + $0x50] sm:$0xff]
  %v697 = vld [vmem:[%s3 + $0x58] sm:$0xff]
  %v698 = vld [vmem:[%s3 + $0x60] sm:$0xff]
  %v699 = vld [vmem:[%s3 + $0x68] sm:$0xff]
  %v714 = vunpack.c.l.b16 %v686
  %v715 = vunpack.c.h.b16 %v686
  %v716 = vunpack.c.l.b16 %v687
  %v717 = vunpack.c.h.b16 %v687
  %v718 = vunpack.c.l.b16 %v688
  %v719 = vunpack.c.h.b16 %v688
  %v720 = vunpack.c.l.b16 %v689
  %v721 = vunpack.c.h.b16 %v689
  %v722 = vunpack.c.l.b16 %v690
  %v723 = vunpack.c.h.b16 %v690
  %v724 = vunpack.c.l.b16 %v691
  %v725 = vunpack.c.h.b16 %v691
  %v726 = vunpack.c.l.b16 %v692
  %v727 = vunpack.c.h.b16 %v692
  %v728 = vunpack.c.l.b16 %v693
  %v729 = vunpack.c.h.b16 %v693
  %v730 = vunpack.c.l.b16 %v694
  %v731 = vunpack.c.h.b16 %v694
  %v732 = vunpack.c.l.b16 %v695
  %v733 = vunpack.c.h.b16 %v695
  %v734 = vunpack.c.l.b16 %v696
  %v735 = vunpack.c.h.b16 %v696
  %v736 = vunpack.c.l.b16 %v697
  %v737 = vunpack.c.h.b16 %v697
  %v738 = vunpack.c.l.b16 %v698
  %v739 = vunpack.c.h.b16 %v698
  %v740 = vunpack.c.l.b16 %v699
  %v741 = vunpack.c.h.b16 %v699
  %v742 = vpack.c.b16 %v716, %v714
  %v743 = vpack.c.b16 %v717, %v715
  %v744 = vpack.c.b16 %v720, %v718
  %v745 = vpack.c.b16 %v721, %v719
  %v746 = vpack.c.b16 %v724, %v722
  %v747 = vpack.c.b16 %v725, %v723
  %v748 = vpack.c.b16 %v728, %v726
  %v749 = vpack.c.b16 %v729, %v727
  %v750 = vpack.c.b16 %v732, %v730
  %v751 = vpack.c.b16 %v733, %v731
  %v752 = vpack.c.b16 %v736, %v734
  %v753 = vpack.c.b16 %v737, %v735
  %v754 = vpack.c.b16 %v740, %v738
  %v755 = vpack.c.b16 %v741, %v739
  %v764 = vsel %vm173, %v743, 0
  %v767 = vsel %vm173, %v745, 0
  %v770 = vsel %vm173, %v747, 0
  %v773 = vsel %vm173, %v749, 0
  %v776 = vsel %vm173, %v751, 0
  %v779 = vsel %vm173, %v753, 0
  %v782 = vsel %vm173, %v755, 0
  %784 = vmatprep.subr.bf16.mxu0 0
  %785 = vmatpush1.bf16.msra.mxu0 %v155
  %786 = vmatprep.subr.bf16.mxu0 0
  %787 = vmatpush1.bf16.msra.mxu0 %v156
  %788 = vmatprep.subr.bf16.mxu0 0
  %789 = vmatpush1.bf16.msra.mxu0 %v157
  %790 = vmatprep.subr.bf16.mxu0 0
  %791 = vmatpush1.bf16.msra.mxu0 %v158
  %792 = vmatprep.subr.bf16.mxu0 0
  %793 = vmatpush1.bf16.msra.mxu0 %v159
  %794 = vmatprep.subr.bf16.mxu0 0
  %795 = vmatpush1.bf16.msra.mxu0 %v160
  %796 = vmatprep.subr.bf16.mxu0 0
  %797 = vmatpush1.bf16.msra.mxu0 %v161
  %798 = vmatprep.subr.bf16.mxu0 0
  %799 = vmatpush1.bf16.msra.mxu0 %v162
  %800 = vmatprep.subr.bf16.mxu0 0
  %801 = vmatpush1.bf16.msra.mxu0 %v163
  %802 = vmatprep.subr.bf16.mxu0 0
  %803 = vmatpush1.bf16.msra.mxu0 0
  %804 = vmatprep.subr.bf16.mxu0 0
  %805 = vmatpush1.bf16.msra.mxu0 0
  %806 = vmatprep.subr.bf16.mxu0 0
  %807 = vmatpush1.bf16.msra.mxu0 0
  %808 = vmatprep.subr.bf16.mxu0 0
  %809 = vmatpush1.bf16.msra.mxu0 0
  %810 = vmatprep.subr.bf16.mxu0 0
  %811 = vmatpush1.bf16.msra.mxu0 0
  %812 = vmatprep.subr.bf16.mxu0 0
  %813 = vmatpush1.bf16.msra.mxu0 0
  %814 = vmatprep.subr.bf16.mxu0 0
  %815 = vmatpush1.bf16.msra.mxu0 0
  %816 = vmatprep.mubr.bf16.mxu0 %v764
  %817 = vmatmul.mubr.bf16.gmra.mrb[0].mxu0 %v742
  %v818 = vpop.f32.mrb[0].mxu0
  %v819 = vadd.f32 0.0, %v818
  %v820 = vpop.f32.mrb[0].mxu0
  %v821 = vpop.f32.mrb[0].mxu0
  %v822 = vadd.f32 0.0, %v821
  %v823 = vpop.f32.mrb[0].mxu0
  %824 = vmatprep.mubr.bf16.mxu0 %v767
  %825 = vmatmul.mubr.bf16.gmra.mrb[0].mxu0 %v744
  %v826 = vpop.f32.mrb[0].mxu0
  %v827 = vadd.f32 0.0, %v826
  %v828 = vpop.f32.mrb[0].mxu0
  %v829 = vpop.f32.mrb[0].mxu0
  %v830 = vadd.f32 0.0, %v829
  %v831 = vpop.f32.mrb[0].mxu0
  %832 = vmatprep.mubr.bf16.mxu0 %v770
  %833 = vmatmul.mubr.bf16.gmra.mrb[0].mxu0 %v746
  %v834 = vpop.f32.mrb[0].mxu0
  %v835 = vadd.f32 0.0, %v834
  %v836 = vpop.f32.mrb[0].mxu0
  %v837 = vpop.f32.mrb[0].mxu0
  %v838 = vadd.f32 0.0, %v837
  %v839 = vpop.f32.mrb[0].mxu0
  %840 = vmatprep.mubr.bf16.mxu0 %v773
  %841 = vmatmul.mubr.bf16.gmra.mrb[0].mxu0 %v748
  %v842 = vpop.f32.mrb[0].mxu0
  %v843 = vadd.f32 0.0, %v842
  %v844 = vpop.f32.mrb[0].mxu0
  %v845 = vpop.f32.mrb[0].mxu0
  %v846 = vadd.f32 0.0, %v845
  %v847 = vpop.f32.mrb[0].mxu0
  %848 = vmatprep.mubr.bf16.mxu0 %v776
  %849 = vmatmul.mubr.bf16.gmra.mrb[0].mxu0 %v750
  %v850 = vpop.f32.mrb[0].mxu0
  %v851 = vadd.f32 0.0, %v850
  %v852 = vpop.f32.mrb[0].mxu0
  %v853 = vpop.f32.mrb[0].mxu0
  %v854 = vadd.f32 0.0, %v853
  %v855 = vpop.f32.mrb[0].mxu0
  %856 = vmatprep.mubr.bf16.mxu0 %v779
  %857 = vmatmul.mubr.bf16.gmra.mrb[0].mxu0 %v752
  %v858 = vpop.f32.mrb[0].mxu0
  %v859 = vadd.f32 0.0, %v858
  %v860 = vpop.f32.mrb[0].mxu0
  %v861 = vpop.f32.mrb[0].mxu0
  %v862 = vadd.f32 0.0, %v861
  %v863 = vpop.f32.mrb[0].mxu0
  %864 = vmatprep.mubr.bf16.mxu0 %v782
  %865 = vmatmul.mubr.bf16.gmra.mrb[0].mxu0 %v754
  %v866 = vpop.f32.mrb[0].mxu0
  %v867 = vadd.f32 0.0, %v866
  %v868 = vpop.f32.mrb[0].mxu0
  %v869 = vpop.f32.mrb[0].mxu0
  %v870 = vadd.f32 0.0, %v869
  %v871 = vpop.f32.mrb[0].mxu0
  %872 = vdwg.mxu0
  %v873 = vmax.f32 %v672, %v819
  %v874 = vmax.f32 %v673, %v822
  %v875 = vmax.f32 %v674, %v827
  %v876 = vmax.f32 %v675, %v830
  %v877 = vmax.f32 %v676, %v835
  %v878 = vmax.f32 %v677, %v838
  %v879 = vmax.f32 %v678, %v843
  %v880 = vmax.f32 %v679, %v846
  %v881 = vmax.f32 %v680, %v851
  %v882 = vmax.f32 %v681, %v854
  %v883 = vmax.f32 %v682, %v859
  %v884 = vmax.f32 %v683, %v862
  %v885 = vmax.f32 %v684, %v867
  %v886 = vmax.f32 %v685, %v870
  %v887 = vld [vmem:[%s5] sm:$0x1]
  %v889 = vlaneseq
  %v890 = vshrl.u32 %v889, 7
  %v891 = vsub.s32 0, %v890
  %v892 = vrot.slane %v887, %v891
  %v894 = vadd.f32 %v873, %v892
  %v895 = vadd.f32 %v874, %v892
  %v896 = vadd.f32 %v875, %v892
  %v897 = vadd.f32 %v876, %v892
  %v898 = vadd.f32 %v877, %v892
  %v899 = vadd.f32 %v878, %v892
  %v900 = vadd.f32 %v879, %v892
  %v901 = vadd.f32 %v880, %v892
  %v902 = vadd.f32 %v881, %v892
  %v903 = vadd.f32 %v882, %v892
  %v904 = vadd.f32 %v883, %v892
  %v905 = vadd.f32 %v884, %v892
  %v906 = vadd.f32 %v885, %v892
  %v907 = vadd.f32 %v886, %v892
  %v908 = vmax.f32 %v894, 0.0
  %v909 = vmax.f32 %v895, 0.0
  %v910 = vmax.f32 %v896, 0.0
  %v911 = vmax.f32 %v897, 0.0
  %v912 = vmax.f32 %v898, 0.0
  %v913 = vmax.f32 %v899, 0.0
  %v914 = vmax.f32 %v900, 0.0
  %v915 = vmax.f32 %v901, 0.0
  %v916 = vmax.f32 %v902, 0.0
  %v917 = vmax.f32 %v903, 0.0
  %v918 = vmax.f32 %v904, 0.0
  %v919 = vmax.f32 %v905, 0.0
  %v920 = vmax.f32 %v906, 0.0
  %v921 = vmax.f32 %v907, 0.0
  %922 = vst.msk [vmem:[%s6] sm:$0xff] %vm173, %v908
  %923 = vst.msk [vmem:[%s6 + $0x8] sm:$0xff] %vm173, %v909
  %924 = vst.msk [vmem:[%s6 + $0x10] sm:$0xff] %vm173, %v910
  %925 = vst.msk [vmem:[%s6 + $0x18] sm:$0xff] %vm173, %v911
  %926 = vst.msk [vmem:[%s6 + $0x20] sm:$0xff] %vm173, %v912
  %927 = vst.msk [vmem:[%s6 + $0x28] sm:$0xff] %vm173, %v913
  %928 = vst.msk [vmem:[%s6 + $0x30] sm:$0xff] %vm173, %v914
  %929 = vst.msk [vmem:[%s6 + $0x38] sm:$0xff] %vm173, %v915
  %930 = vst.msk [vmem:[%s6 + $0x40] sm:$0xff] %vm173, %v916
  %931 = vst.msk [vmem:[%s6 + $0x48] sm:$0xff] %vm173, %v917
  %932 = vst.msk [vmem:[%s6 + $0x50] sm:$0xff] %vm173, %v918
  %933 = vst.msk [vmem:[%s6 + $0x58] sm:$0xff] %vm173, %v919
  %934 = vst.msk [vmem:[%s6 + $0x60] sm:$0xff] %vm173, %v920
  %935 = vst.msk [vmem:[%s6 + $0x68] sm:$0xff] %vm173, %v921
  // Predicated region
  $region26: #{convnn_forward.6} parent=0 // pred_check
    _
  $region27: #{convnn_forward.6} parent=0 // pred_check_branch
    %937 = sbr.rel (0) target = $region29
  $region28: #{convnn_forward.6} parent=0 // pred_region
    _
  $region29: #{convnn_forward.6} parent=0 // pred_fallthru
    _
  // Predicated region
  $region30: #{convnn_forward.6} parent=0 // pred_check
    _
  $region31: #{convnn_forward.6} parent=0 // pred_check_branch
    %939 = sbr.rel (0) target = $region33
  $region32: #{convnn_forward.6} parent=0 // pred_region
    _
  $region33: #{convnn_forward.6} parent=0 // pred_fallthru
    _

// kernel: convnn_forward.7
$region0: #{convnn_forward.7}
  #allocation0 [shape = 'u32[]', space=smem, size = 0x4, offset = 0x4, fixed_abs, tag = 'smem constant byte address 0x4 - core index']
  #allocation1 [shape = 'u32[144,128]{1,0:T(1,128)}', space=vmem, size = 0x12000, scoped, tag = 'internal scratch']
  %s0 = inlined_call_operand.vmem [shape: f32[8,784], index: 0, kind: input, shape index: {}]
  %s1 = inlined_call_operand.vmem [shape: bf16[784,128], index: 1, kind: input, shape index: {}]
  %s2 = inlined_call_operand.vmem [shape: f32[1,128], index: 2, kind: input, shape index: {}]
  %s3 = inlined_call_operand.vmem [shape: bf16[128,128], index: 3, kind: input, shape index: {}]
  %s4 = inlined_call_operand.vmem [shape: f32[1,128], index: 4, kind: input, shape index: {}]
  %s5 = inlined_call_operand.vmem [shape: bf16[128,128], index: 5, kind: input, shape index: {}]
  %s6 = inlined_call_operand.vmem [shape: f32[1,128], index: 6, kind: input, shape index: {}]
  %s7 = inlined_call_operand.vmem [shape: f32[8,128], index: 7, kind: output, shape index: {}]
  %s8 = sld [smem:[#allocation0]]
  $region38: #{convnn_forward.7} parent=0
    _
  %s10 = ssub.s32 1, %s8
  %s11 = scalar_select 0, %s10, %s8
  // Predicated region
  $region2: #{convnn_forward.7} parent=0 // pred_check
    _
  $region3: #{convnn_forward.7} parent=0 // pred_check_branch
    %13 = sbr.rel (0) target = $region5
  $region4: #{convnn_forward.7} parent=0 // pred_region
    _
  $region5: #{convnn_forward.7} parent=0 // pred_fallthru
    _
  // Predicated region
  $region6: #{convnn_forward.7} parent=0 // pred_check
    _
  $region7: #{convnn_forward.7} parent=0 // pred_check_branch
    %15 = sbr.rel (0) target = $region9
  $region8: #{convnn_forward.7} parent=0 // pred_region
    _
  $region9: #{convnn_forward.7} parent=0 // pred_fallthru
    _
  // Predicated region
  $region10: #{convnn_forward.7} parent=0 // pred_check
    _
  $region11: #{convnn_forward.7} parent=0 // pred_check_branch
    %17 = sbr.rel (0) target = $region13
  $region12: #{convnn_forward.7} parent=0 // pred_region
    _
  $region13: #{convnn_forward.7} parent=0 // pred_fallthru
    _
  // Predicated region
  $region14: #{convnn_forward.7} parent=0 // pred_check
    _
  $region15: #{convnn_forward.7} parent=0 // pred_check_branch
    %19 = sbr.rel (0) target = $region17
  $region16: #{convnn_forward.7} parent=0 // pred_region
    _
  $region17: #{convnn_forward.7} parent=0 // pred_fallthru
    _
  // Predicated region
  $region18: #{convnn_forward.7} parent=0 // pred_check
    _
  $region19: #{convnn_forward.7} parent=0 // pred_check_branch
    %21 = sbr.rel (0) target = $region21
  $region20: #{convnn_forward.7} parent=0 // pred_region
    _
  $region21: #{convnn_forward.7} parent=0 // pred_fallthru
    _
  // Predicated region
  $region22: #{convnn_forward.7} parent=0 // pred_check
    _
  $region23: #{convnn_forward.7} parent=0 // pred_check_branch
    %23 = sbr.rel (0) target = $region25
  $region24: #{convnn_forward.7} parent=0 // pred_region
    _
  $region25: #{convnn_forward.7} parent=0 // pred_fallthru
    _
  // Predicated region
  $region26: #{convnn_forward.7} parent=0 // pred_check
    _
  $region27: #{convnn_forward.7} parent=0 // pred_check_branch
    %25 = sbr.rel (0) target = $region29
  $region28: #{convnn_forward.7} parent=0 // pred_region
    _
  $region29: #{convnn_forward.7} parent=0 // pred_fallthru
    _
  %v27 = vld [vmem:[%s0] sm:$0xff]
  %v28 = vld [vmem:[%s0 + $0x8] sm:$0xff]
  %v29 = vld [vmem:[%s0 + $0x10] sm:$0xff]
  %v30 = vld [vmem:[%s0 + $0x18] sm:$0xff]
  %v31 = vld [vmem:[%s0 + $0x20] sm:$0xff]
  %v32 = vld [vmem:[%s0 + $0x28] sm:$0xff]
  %v33 = vld [vmem:[%s0 + $0x30] sm:$0xff]
  %v34 = vpack.c.bf16 %v27, %v27
  %v35 = vpack.c.bf16 %v28, %v28
  %v36 = vpack.c.bf16 %v29, %v29
  %v37 = vpack.c.bf16 %v30, %v30
  %v38 = vpack.c.bf16 %v31, %v31
  %v39 = vpack.c.bf16 %v32, %v32
  %v40 = vpack.c.bf16 %v33, %v33
  %v41 = vld [vmem:[%s1] sm:$0xf]
  %v42 = vld [vmem:[%s1 + $0x4] sm:$0xf]
  %v43 = vld [vmem:[%s1 + $0x8] sm:$0xf]
  %v44 = vld [vmem:[%s1 + $0xc] sm:$0xf]
  %v45 = vld [vmem:[%s1 + $0x10] sm:$0xf]
  %v46 = vld [vmem:[%s1 + $0x14] sm:$0xf]
  %v47 = vld [vmem:[%s1 + $0x18] sm:$0xf]
  %v48 = vld [vmem:[%s1 + $0x1c] sm:$0xf]
  %v49 = vld [vmem:[%s1 + $0x20] sm:$0xf]
  %v50 = vld [vmem:[%s1 + $0x24] sm:$0xf]
  %v51 = vld [vmem:[%s1 + $0x28] sm:$0xf]
  %v52 = vld [vmem:[%s1 + $0x2c] sm:$0xf]
  %v53 = vld [vmem:[%s1 + $0x30] sm:$0xf]
  %v54 = vld [vmem:[%s1 + $0x34] sm:$0xf]
  %v55 = vld [vmem:[%s1 + $0x38] sm:$0xf]
  %v56 = vld [vmem:[%s1 + $0x3c] sm:$0xf]
  %v57 = vld [vmem:[%s1 + $0x40] sm:$0xf]
  %v58 = vld [vmem:[%s1 + $0x44] sm:$0xf]
  %v59 = vld [vmem:[%s1 + $0x48] sm:$0xf]
  %v60 = vld [vmem:[%s1 + $0x4c] sm:$0xf]
  %v61 = vld [vmem:[%s1 + $0x50] sm:$0xf]
  %v62 = vld [vmem:[%s1 + $0x54] sm:$0xf]
  %v63 = vld [vmem:[%s1 + $0x58] sm:$0xf]
  %v64 = vld [vmem:[%s1 + $0x5c] sm:$0xf]
  %v65 = vld [vmem:[%s1 + $0x60] sm:$0xf]
  %v66 = vld [vmem:[%s1 + $0x64] sm:$0xf]
  %v67 = vld [vmem:[%s1 + $0x68] sm:$0xf]
  %v68 = vld [vmem:[%s1 + $0x6c] sm:$0xf]
  %v69 = vld [vmem:[%s1 + $0x70] sm:$0xf]
  %v70 = vld [vmem:[%s1 + $0x74] sm:$0xf]
  %v71 = vld [vmem:[%s1 + $0x78] sm:$0xf]
  %v72 = vld [vmem:[%s1 + $0x7c] sm:$0xf]
  %v73 = vld [vmem:[%s1 + $0x80] sm:$0xf]
  %v74 = vld [vmem:[%s1 + $0x84] sm:$0xf]
  %v75 = vld [vmem:[%s1 + $0x88] sm:$0xf]
  %v76 = vld [vmem:[%s1 + $0x8c] sm:$0xf]
  %v77 = vld [vmem:[%s1 + $0x90] sm:$0xf]
  %v78 = vld [vmem:[%s1 + $0x94] sm:$0xf]
  %v79 = vld [vmem:[%s1 + $0x98] sm:$0xf]
  %v80 = vld [vmem:[%s1 + $0x9c] sm:$0xf]
  %v81 = vld [vmem:[%s1 + $0xa0] sm:$0xf]
  %v82 = vld [vmem:[%s1 + $0xa4] sm:$0xf]
  %v83 = vld [vmem:[%s1 + $0xa8] sm:$0xf]
  %v84 = vld [vmem:[%s1 + $0xac] sm:$0xf]
  %v85 = vld [vmem:[%s1 + $0xb0] sm:$0xf]
  %v86 = vld [vmem:[%s1 + $0xb4] sm:$0xf]
  %v87 = vld [vmem:[%s1 + $0xb8] sm:$0xf]
  %v88 = vld [vmem:[%s1 + $0xbc] sm:$0xf]
  %v89 = vld [vmem:[%s1 + $0xc0] sm:$0xf]
  %v90 = vld [vmem:[%s1 + $0xc4] sm:$0xf]
  %v91 = vld [vmem:[%s1 + $0xc8] sm:$0xf]
  %v92 = vld [vmem:[%s1 + $0xcc] sm:$0xf]
  %v93 = vld [vmem:[%s1 + $0xd0] sm:$0xf]
  %v94 = vld [vmem:[%s1 + $0xd4] sm:$0xf]
  %v95 = vld [vmem:[%s1 + $0xd8] sm:$0xf]
  %v96 = vld [vmem:[%s1 + $0xdc] sm:$0xf]
  %v97 = vld [vmem:[%s1 + $0xe0] sm:$0xf]
  %v98 = vld [vmem:[%s1 + $0xe4] sm:$0xf]
  %v99 = vld [vmem:[%s1 + $0xe8] sm:$0xf]
  %v100 = vld [vmem:[%s1 + $0xec] sm:$0xf]
  %v101 = vld [vmem:[%s1 + $0xf0] sm:$0xf]
  %v102 = vld [vmem:[%s1 + $0xf4] sm:$0xf]
  %v103 = vld [vmem:[%s1 + $0xf8] sm:$0xf]
  %v104 = vld [vmem:[%s1 + $0xfc] sm:$0xf]
  %v105 = vld [vmem:[%s1 + $0x100] sm:$0xf]
  %v106 = vld [vmem:[%s1 + $0x104] sm:$0xf]
  %v107 = vld [vmem:[%s1 + $0x108] sm:$0xf]
  %v108 = vld [vmem:[%s1 + $0x10c] sm:$0xf]
  %v109 = vld [vmem:[%s1 + $0x110] sm:$0xf]
  %v110 = vld [vmem:[%s1 + $0x114] sm:$0xf]
  %v111 = vld [vmem:[%s1 + $0x118] sm:$0xf]
  %v112 = vld [vmem:[%s1 + $0x11c] sm:$0xf]
  %v113 = vld [vmem:[%s1 + $0x120] sm:$0xf]
  %v114 = vld [vmem:[%s1 + $0x124] sm:$0xf]
  %v115 = vld [vmem:[%s1 + $0x128] sm:$0xf]
  %v116 = vld [vmem:[%s1 + $0x12c] sm:$0xf]
  %v117 = vld [vmem:[%s1 + $0x130] sm:$0xf]
  %v118 = vld [vmem:[%s1 + $0x134] sm:$0xf]
  %v119 = vld [vmem:[%s1 + $0x138] sm:$0xf]
  %v120 = vld [vmem:[%s1 + $0x13c] sm:$0xf]
  %v121 = vld [vmem:[%s1 + $0x140] sm:$0xf]
  %v122 = vld [vmem:[%s1 + $0x144] sm:$0xf]
  %v123 = vld [vmem:[%s1 + $0x148] sm:$0xf]
  %v124 = vld [vmem:[%s1 + $0x14c] sm:$0xf]
  %v125 = vld [vmem:[%s1 + $0x150] sm:$0xf]
  %v126 = vld [vmem:[%s1 + $0x154] sm:$0xf]
  %v127 = vld [vmem:[%s1 + $0x158] sm:$0xf]
  %v128 = vld [vmem:[%s1 + $0x15c] sm:$0xf]
  %v129 = vld [vmem:[%s1 + $0x160] sm:$0xf]
  %v130 = vld [vmem:[%s1 + $0x164] sm:$0xf]
  %v131 = vld [vmem:[%s1 + $0x168] sm:$0xf]
  %v132 = vld [vmem:[%s1 + $0x16c] sm:$0xf]
  %v133 = vld [vmem:[%s1 + $0x170] sm:$0xf]
  %v134 = vld [vmem:[%s1 + $0x174] sm:$0xf]
  %v135 = vld [vmem:[%s1 + $0x178] sm:$0xf]
  %v136 = vld [vmem:[%s1 + $0x17c] sm:$0xf]
  %v137 = vld [vmem:[%s1 + $0x180] sm:$0xf]
  %v138 = vld [vmem:[%s1 + $0x184] sm:$0xf]
  %v139 = vld [vmem:[%s2] sm:$0x1]
  %v141 = vlaneseq
  %v142 = vshrl.u32 %v141, 7
  %v143 = vsub.s32 0, %v142
  %v144 = vrot.slane %v139, %v143
  %v244 = vunpack.c.l.b16 %v41
  %v245 = vunpack.c.l.b16 %v42
  %v246 = vunpack.c.l.b16 %v43
  %v247 = vunpack.c.l.b16 %v44
  %v248 = vunpack.c.l.b16 %v45
  %v249 = vunpack.c.l.b16 %v46
  %v250 = vunpack.c.l.b16 %v47
  %v251 = vunpack.c.l.b16 %v48
  %v252 = vunpack.c.l.b16 %v49
  %v253 = vunpack.c.l.b16 %v50
  %v254 = vunpack.c.l.b16 %v51
  %v255 = vunpack.c.l.b16 %v52
  %v256 = vunpack.c.l.b16 %v53
  %v257 = vunpack.c.l.b16 %v54
  %v258 = vunpack.c.l.b16 %v55
  %v259 = vunpack.c.l.b16 %v56
  %v260 = vunpack.c.l.b16 %v57
  %v261 = vunpack.c.l.b16 %v58
  %v262 = vunpack.c.l.b16 %v59
  %v263 = vunpack.c.l.b16 %v60
  %v264 = vunpack.c.l.b16 %v61
  %v265 = vunpack.c.l.b16 %v62
  %v266 = vunpack.c.l.b16 %v63
  %v267 = vunpack.c.l.b16 %v64
  %v268 = vunpack.c.l.b16 %v65
  %v269 = vunpack.c.l.b16 %v66
  %v270 = vunpack.c.l.b16 %v67
  %v271 = vunpack.c.l.b16 %v68
  %v272 = vunpack.c.l.b16 %v69
  %v273 = vunpack.c.l.b16 %v70
  %v274 = vunpack.c.l.b16 %v71
  %v275 = vunpack.c.l.b16 %v72
  %v276 = vunpack.c.l.b16 %v73
  %v277 = vunpack.c.l.b16 %v74
  %v278 = vunpack.c.l.b16 %v75
  %v279 = vunpack.c.l.b16 %v76
  %v280 = vunpack.c.l.b16 %v77
  %v281 = vunpack.c.l.b16 %v78
  %v282 = vunpack.c.l.b16 %v79
  %v283 = vunpack.c.l.b16 %v80
  %v284 = vunpack.c.l.b16 %v81
  %v285 = vunpack.c.l.b16 %v82
  %v286 = vunpack.c.l.b16 %v83
  %v287 = vunpack.c.l.b16 %v84
  %v288 = vunpack.c.l.b16 %v85
  %v289 = vunpack.c.l.b16 %v86
  %v290 = vunpack.c.l.b16 %v87
  %v291 = vunpack.c.l.b16 %v88
  %v292 = vunpack.c.l.b16 %v89
  %v293 = vunpack.c.l.b16 %v90
  %v294 = vunpack.c.l.b16 %v91
  %v295 = vunpack.c.l.b16 %v92
  %v296 = vunpack.c.l.b16 %v93
  %v297 = vunpack.c.l.b16 %v94
  %v298 = vunpack.c.l.b16 %v95
  %v299 = vunpack.c.l.b16 %v96
  %v300 = vunpack.c.l.b16 %v97
  %v301 = vunpack.c.l.b16 %v98
  %v302 = vunpack.c.l.b16 %v99
  %v303 = vunpack.c.l.b16 %v100
  %v304 = vunpack.c.l.b16 %v101
  %v305 = vunpack.c.l.b16 %v102
  %v306 = vunpack.c.l.b16 %v103
  %v307 = vunpack.c.l.b16 %v104
  %v308 = vunpack.c.l.b16 %v105
  %v309 = vunpack.c.l.b16 %v106
  %v310 = vunpack.c.l.b16 %v107
  %v311 = vunpack.c.l.b16 %v108
  %v312 = vunpack.c.l.b16 %v109
  %v313 = vunpack.c.l.b16 %v110
  %v314 = vunpack.c.l.b16 %v111
  %v315 = vunpack.c.l.b16 %v112
  %v316 = vunpack.c.l.b16 %v113
  %v317 = vunpack.c.l.b16 %v114
  %v318 = vunpack.c.l.b16 %v115
  %v319 = vunpack.c.l.b16 %v116
  %v320 = vunpack.c.l.b16 %v117
  %v321 = vunpack.c.l.b16 %v118
  %v322 = vunpack.c.l.b16 %v119
  %v323 = vunpack.c.l.b16 %v120
  %v324 = vunpack.c.l.b16 %v121
  %v325 = vunpack.c.l.b16 %v122
  %v326 = vunpack.c.l.b16 %v123
  %v327 = vunpack.c.l.b16 %v124
  %v328 = vunpack.c.l.b16 %v125
  %v329 = vunpack.c.l.b16 %v126
  %v330 = vunpack.c.l.b16 %v127
  %v331 = vunpack.c.l.b16 %v128
  %v332 = vunpack.c.l.b16 %v129
  %v333 = vunpack.c.l.b16 %v130
  %v334 = vunpack.c.l.b16 %v131
  %v335 = vunpack.c.l.b16 %v132
  %v336 = vunpack.c.l.b16 %v133
  %v337 = vunpack.c.l.b16 %v134
  %v338 = vunpack.c.l.b16 %v135
  %v339 = vunpack.c.l.b16 %v136
  %v340 = vunpack.c.l.b16 %v137
  %v341 = vunpack.c.l.b16 %v138
  %v342 = vpack.c.b16 %v245, %v244
  %v343 = vpack.c.b16 %v247, %v246
  %v344 = vpack.c.b16 %v249, %v248
  %v345 = vpack.c.b16 %v251, %v250
  %v346 = vpack.c.b16 %v253, %v252
  %v347 = vpack.c.b16 %v255, %v254
  %v348 = vpack.c.b16 %v257, %v256
  %v349 = vpack.c.b16 %v259, %v258
  %v350 = vpack.c.b16 %v261, %v260
  %v351 = vpack.c.b16 %v263, %v262
  %v352 = vpack.c.b16 %v265, %v264
  %v353 = vpack.c.b16 %v267, %v266
  %v354 = vpack.c.b16 %v269, %v268
  %v355 = vpack.c.b16 %v271, %v270
  %v356 = vpack.c.b16 %v273, %v272
  %v357 = vpack.c.b16 %v275, %v274
  %v358 = vpack.c.b16 %v277, %v276
  %v359 = vpack.c.b16 %v279, %v278
  %v360 = vpack.c.b16 %v281, %v280
  %v361 = vpack.c.b16 %v283, %v282
  %v362 = vpack.c.b16 %v285, %v284
  %v363 = vpack.c.b16 %v287, %v286
  %v364 = vpack.c.b16 %v289, %v288
  %v365 = vpack.c.b16 %v291, %v290
  %v366 = vpack.c.b16 %v293, %v292
  %v367 = vpack.c.b16 %v295, %v294
  %v368 = vpack.c.b16 %v297, %v296
  %v369 = vpack.c.b16 %v299, %v298
  %v370 = vpack.c.b16 %v301, %v300
  %v371 = vpack.c.b16 %v303, %v302
  %v372 = vpack.c.b16 %v305, %v304
  %v373 = vpack.c.b16 %v307, %v306
  %v374 = vpack.c.b16 %v309, %v308
  %v375 = vpack.c.b16 %v311, %v310
  %v376 = vpack.c.b16 %v313, %v312
  %v377 = vpack.c.b16 %v315, %v314
  %v378 = vpack.c.b16 %v317, %v316
  %v379 = vpack.c.b16 %v319, %v318
  %v380 = vpack.c.b16 %v321, %v320
  %v381 = vpack.c.b16 %v323, %v322
  %v382 = vpack.c.b16 %v325, %v324
  %v383 = vpack.c.b16 %v327, %v326
  %v384 = vpack.c.b16 %v329, %v328
  %v385 = vpack.c.b16 %v331, %v330
  %v386 = vpack.c.b16 %v333, %v332
  %v387 = vpack.c.b16 %v335, %v334
  %v388 = vpack.c.b16 %v337, %v336
  %v389 = vpack.c.b16 %v339, %v338
  %v390 = vpack.c.b16 %v341, %v340
  %vm440 = vcmask 130048
  %v442 = vsel %vm440, %v40, 0
  %444 = vmatprep.subr.bf16.mxu0 0
  %445 = vmatpush1.bf16.msra.mxu0 %v342
  %446 = vmatprep.subr.bf16.mxu0 0
  %447 = vmatpush1.bf16.msra.mxu0 %v343
  %448 = vmatprep.subr.bf16.mxu0 0
  %449 = vmatpush1.bf16.msra.mxu0 %v344
  %450 = vmatprep.subr.bf16.mxu0 0
  %451 = vmatpush1.bf16.msra.mxu0 %v345
  %452 = vmatprep.subr.bf16.mxu0 0
  %453 = vmatpush1.bf16.msra.mxu0 %v346
  %454 = vmatprep.subr.bf16.mxu0 0
  %455 = vmatpush1.bf16.msra.mxu0 %v347
  %456 = vmatprep.subr.bf16.mxu0 0
  %457 = vmatpush1.bf16.msra.mxu0 %v348
  %458 = vmatprep.subr.bf16.mxu0 0
  %459 = vmatpush1.bf16.msra.mxu0 %v349
  %460 = vmatprep.subr.bf16.mxu0 0
  %461 = vmatpush1.bf16.msra.mxu0 %v350
  %462 = vmatprep.subr.bf16.mxu0 0
  %463 = vmatpush1.bf16.msra.mxu0 %v351
  %464 = vmatprep.subr.bf16.mxu0 0
  %465 = vmatpush1.bf16.msra.mxu0 %v352
  %466 = vmatprep.subr.bf16.mxu0 0
  %467 = vmatpush1.bf16.msra.mxu0 %v353
  %468 = vmatprep.subr.bf16.mxu0 0
  %469 = vmatpush1.bf16.msra.mxu0 %v354
  %470 = vmatprep.subr.bf16.mxu0 0
  %471 = vmatpush1.bf16.msra.mxu0 %v355
  %472 = vmatprep.subr.bf16.mxu0 0
  %473 = vmatpush1.bf16.msra.mxu0 %v356
  %474 = vmatprep.subr.bf16.mxu0 0
  %475 = vmatpush1.bf16.msra.mxu0 %v357
  %476 = vmatprep.mubr.bf16.mxu0 %v35
  %477 = vmatmul.mubr.bf16.gmra.mrb[0].mxu0 %v34
  %v478 = vpop.f32.mrb[0].mxu0
  %v479 = vadd.f32 %v144, %v478
  %v480 = vpop.f32.mrb[0].mxu0
  %v481 = vpop.f32.mrb[0].mxu0
  %v482 = vpop.f32.mrb[0].mxu0
  %483 = vdwg.mxu0
  %484 = vmatprep.subr.bf16.mxu0 0
  %485 = vmatpush1.bf16.msra.mxu0 %v358
  %486 = vmatprep.subr.bf16.mxu0 0
  %487 = vmatpush1.bf16.msra.mxu0 %v359
  %488 = vmatprep.subr.bf16.mxu0 0
  %489 = vmatpush1.bf16.msra.mxu0 %v360
  %490 = vmatprep.subr.bf16.mxu0 0
  %491 = vmatpush1.bf16.msra.mxu0 %v361
  %492 = vmatprep.subr.bf16.mxu0 0
  %493 = vmatpush1.bf16.msra.mxu0 %v362
  %494 = vmatprep.subr.bf16.mxu0 0
  %495 = vmatpush1.bf16.msra.mxu0 %v363
  %496 = vmatprep.subr.bf16.mxu0 0
  %497 = vmatpush1.bf16.msra.mxu0 %v364
  %498 = vmatprep.subr.bf16.mxu0 0
  %499 = vmatpush1.bf16.msra.mxu0 %v365
  %500 = vmatprep.subr.bf16.mxu0 0
  %501 = vmatpush1.bf16.msra.mxu0 %v366
  %502 = vmatprep.subr.bf16.mxu0 0
  %503 = vmatpush1.bf16.msra.mxu0 %v367
  %504 = vmatprep.subr.bf16.mxu0 0
  %505 = vmatpush1.bf16.msra.mxu0 %v368
  %506 = vmatprep.subr.bf16.mxu0 0
  %507 = vmatpush1.bf16.msra.mxu0 %v369
  %508 = vmatprep.subr.bf16.mxu0 0
  %509 = vmatpush1.bf16.msra.mxu0 %v370
  %510 = vmatprep.subr.bf16.mxu0 0
  %511 = vmatpush1.bf16.msra.mxu0 %v371
  %512 = vmatprep.subr.bf16.mxu0 0
  %513 = vmatpush1.bf16.msra.mxu0 %v372
  %514 = vmatprep.subr.bf16.mxu0 0
  %515 = vmatpush1.bf16.msra.mxu0 %v373
  %516 = vmatprep.mubr.bf16.mxu0 %v37
  %517 = vmatmul.mubr.bf16.gmra.mrb[0].mxu0 %v36
  %v518 = vpop.f32.mrb[0].mxu0
  %v519 = vadd.f32 %v479, %v518
  %v520 = vpop.f32.mrb[0].mxu0
  %v521 = vpop.f32.mrb[0].mxu0
  %v522 = vpop.f32.mrb[0].mxu0
  %523 = vdwg.mxu0
  %524 = vmatprep.subr.bf16.mxu0 0
  %525 = vmatpush1.bf16.msra.mxu0 %v374
  %526 = vmatprep.subr.bf16.mxu0 0
  %527 = vmatpush1.bf16.msra.mxu0 %v375
  %528 = vmatprep.subr.bf16.mxu0 0
  %529 = vmatpush1.bf16.msra.mxu0 %v376
  %530 = vmatprep.subr.bf16.mxu0 0
  %531 = vmatpush1.bf16.msra.mxu0 %v377
  %532 = vmatprep.subr.bf16.mxu0 0
  %533 = vmatpush1.bf16.msra.mxu0 %v378
  %534 = vmatprep.subr.bf16.mxu0 0
  %535 = vmatpush1.bf16.msra.mxu0 %v379
  %536 = vmatprep.subr.bf16.mxu0 0
  %537 = vmatpush1.bf16.msra.mxu0 %v380
  %538 = vmatprep.subr.bf16.mxu0 0
  %539 = vmatpush1.bf16.msra.mxu0 %v381
  %540 = vmatprep.subr.bf16.mxu0 0
  %541 = vmatpush1.bf16.msra.mxu0 %v382
  %542 = vmatprep.subr.bf16.mxu0 0
  %543 = vmatpush1.bf16.msra.mxu0 %v383
  %544 = vmatprep.subr.bf16.mxu0 0
  %545 = vmatpush1.bf16.msra.mxu0 %v384
  %546 = vmatprep.subr.bf16.mxu0 0
  %547 = vmatpush1.bf16.msra.mxu0 %v385
  %548 = vmatprep.subr.bf16.mxu0 0
  %549 = vmatpush1.bf16.msra.mxu0 %v386
  %550 = vmatprep.subr.bf16.mxu0 0
  %551 = vmatpush1.bf16.msra.mxu0 %v387
  %552 = vmatprep.subr.bf16.mxu0 0
  %553 = vmatpush1.bf16.msra.mxu0 %v388
  %554 = vmatprep.subr.bf16.mxu0 0
  %555 = vmatpush1.bf16.msra.mxu0 %v389
  %556 = vmatprep.mubr.bf16.mxu0 %v39
  %557 = vmatmul.mubr.bf16.gmra.mrb[0].mxu0 %v38
  %v558 = vpop.f32.mrb[0].mxu0
  %v559 = vadd.f32 %v519, %v558
  %v560 = vpop.f32.mrb[0].mxu0
  %v561 = vpop.f32.mrb[0].mxu0
  %v562 = vpop.f32.mrb[0].mxu0
  %563 = vdwg.mxu0
  %564 = vmatprep.subr.bf16.mxu0 0
  %565 = vmatpush1.bf16.msra.mxu0 %v390
  %566 = vmatprep.subr.bf16.mxu0 0
  %567 = vmatpush1.bf16.msra.mxu0 0
  %568 = vmatprep.subr.bf16.mxu0 0
  %569 = vmatpush1.bf16.msra.mxu0 0
  %570 = vmatprep.subr.bf16.mxu0 0
  %571 = vmatpush1.bf16.msra.mxu0 0
  %572 = vmatprep.subr.bf16.mxu0 0
  %573 = vmatpush1.bf16.msra.mxu0 0
  %574 = vmatprep.subr.bf16.mxu0 0
  %575 = vmatpush1.bf16.msra.mxu0 0
  %576 = vmatprep.subr.bf16.mxu0 0
  %577 = vmatpush1.bf16.msra.mxu0 0
  %578 = vmatprep.subr.bf16.mxu0 0
  %579 = vmatpush1.bf16.msra.mxu0 0
  %580 = vmatprep.subr.bf16.mxu0 0
  %581 = vmatpush1.bf16.msra.mxu0 0
  %582 = vmatprep.subr.bf16.mxu0 0
  %583 = vmatpush1.bf16.msra.mxu0 0
  %584 = vmatprep.subr.bf16.mxu0 0
  %585 = vmatpush1.bf16.msra.mxu0 0
  %586 = vmatprep.subr.bf16.mxu0 0
  %587 = vmatpush1.bf16.msra.mxu0 0
  %588 = vmatprep.subr.bf16.mxu0 0
  %589 = vmatpush1.bf16.msra.mxu0 0
  %590 = vmatprep.subr.bf16.mxu0 0
  %591 = vmatpush1.bf16.msra.mxu0 0
  %592 = vmatprep.subr.bf16.mxu0 0
  %593 = vmatpush1.bf16.msra.mxu0 0
  %594 = vmatprep.subr.bf16.mxu0 0
  %595 = vmatpush1.bf16.msra.mxu0 0
  %596 = vmatprep.mubr.bf16.mxu0 0
  %597 = vmatmul.mubr.bf16.gmra.mrb[0].mxu0 %v442
  %v598 = vpop.f32.mrb[0].mxu0
  %v599 = vadd.f32 %v559, %v598
  %v600 = vpop.f32.mrb[0].mxu0
  %v601 = vpop.f32.mrb[0].mxu0
  %v602 = vpop.f32.mrb[0].mxu0
  %603 = vdwg.mxu0
  %v604 = vmax.f32 %v599, 0.0
  %v605 = vpack.c.bf16 %v604, %v604
  %v606 = vld [vmem:[%s3] sm:$0xf]
  %v607 = vld [vmem:[%s3 + $0x4] sm:$0xf]
  %v608 = vld [vmem:[%s3 + $0x8] sm:$0xf]
  %v609 = vld [vmem:[%s3 + $0xc] sm:$0xf]
  %v610 = vld [vmem:[%s3 + $0x10] sm:$0xf]
  %v611 = vld [vmem:[%s3 + $0x14] sm:$0xf]
  %v612 = vld [vmem:[%s3 + $0x18] sm:$0xf]
  %v613 = vld [vmem:[%s3 + $0x1c] sm:$0xf]
  %v614 = vld [vmem:[%s3 + $0x20] sm:$0xf]
  %v615 = vld [vmem:[%s3 + $0x24] sm:$0xf]
  %v616 = vld [vmem:[%s3 + $0x28] sm:$0xf]
  %v617 = vld [vmem:[%s3 + $0x2c] sm:$0xf]
  %v618 = vld [vmem:[%s3 + $0x30] sm:$0xf]
  %v619 = vld [vmem:[%s3 + $0x34] sm:$0xf]
  %v620 = vld [vmem:[%s3 + $0x38] sm:$0xf]
  %v621 = vld [vmem:[%s3 + $0x3c] sm:$0xf]
  %v622 = vld [vmem:[%s4] sm:$0x1]
  %v624 = vlaneseq
  %v625 = vshrl.u32 %v624, 7
  %v626 = vsub.s32 0, %v625
  %v627 = vrot.slane %v622, %v626
  %v645 = vunpack.c.l.b16 %v606
  %v646 = vunpack.c.l.b16 %v607
  %v647 = vunpack.c.l.b16 %v608
  %v648 = vunpack.c.l.b16 %v609
  %v649 = vunpack.c.l.b16 %v610
  %v650 = vunpack.c.l.b16 %v611
  %v651 = vunpack.c.l.b16 %v612
  %v652 = vunpack.c.l.b16 %v613
  %v653 = vunpack.c.l.b16 %v614
  %v654 = vunpack.c.l.b16 %v615
  %v655 = vunpack.c.l.b16 %v616
  %v656 = vunpack.c.l.b16 %v617
  %v657 = vunpack.c.l.b16 %v618
  %v658 = vunpack.c.l.b16 %v619
  %v659 = vunpack.c.l.b16 %v620
  %v660 = vunpack.c.l.b16 %v621
  %v661 = vpack.c.b16 %v646, %v645
  %v662 = vpack.c.b16 %v648, %v647
  %v663 = vpack.c.b16 %v650, %v649
  %v664 = vpack.c.b16 %v652, %v651
  %v665 = vpack.c.b16 %v654, %v653
  %v666 = vpack.c.b16 %v656, %v655
  %v667 = vpack.c.b16 %v658, %v657
  %v668 = vpack.c.b16 %v660, %v659
  %677 = vmatprep.subr.bf16.mxu0 0
  %678 = vmatpush1.bf16.msra.mxu0 %v661
  %679 = vmatprep.subr.bf16.mxu0 0
  %680 = vmatpush1.bf16.msra.mxu0 %v662
  %681 = vmatprep.subr.bf16.mxu0 0
  %682 = vmatpush1.bf16.msra.mxu0 %v663
  %683 = vmatprep.subr.bf16.mxu0 0
  %684 = vmatpush1.bf16.msra.mxu0 %v664
  %685 = vmatprep.subr.bf16.mxu0 0
  %686 = vmatpush1.bf16.msra.mxu0 %v665
  %687 = vmatprep.subr.bf16.mxu0 0
  %688 = vmatpush1.bf16.msra.mxu0 %v666
  %689 = vmatprep.subr.bf16.mxu0 0
  %690 = vmatpush1.bf16.msra.mxu0 %v667
  %691 = vmatprep.subr.bf16.mxu0 0
  %692 = vmatpush1.bf16.msra.mxu0 %v668
  %693 = vmatprep.subr.bf16.mxu0 0
  %694 = vmatpush1.bf16.msra.mxu0 0
  %695 = vmatprep.subr.bf16.mxu0 0
  %696 = vmatpush1.bf16.msra.mxu0 0
  %697 = vmatprep.subr.bf16.mxu0 0
  %698 = vmatpush1.bf16.msra.mxu0 0
  %699 = vmatprep.subr.bf16.mxu0 0
  %700 = vmatpush1.bf16.msra.mxu0 0
  %701 = vmatprep.subr.bf16.mxu0 0
  %702 = vmatpush1.bf16.msra.mxu0 0
  %703 = vmatprep.subr.bf16.mxu0 0
  %704 = vmatpush1.bf16.msra.mxu0 0
  %705 = vmatprep.subr.bf16.mxu0 0
  %706 = vmatpush1.bf16.msra.mxu0 0
  %707 = vmatprep.subr.bf16.mxu0 0
  %708 = vmatpush1.bf16.msra.mxu0 0
  %709 = vmatprep.mubr.bf16.mxu0 0
  %710 = vmatmul.mubr.bf16.gmra.mrb[0].mxu0 %v605
  %v711 = vpop.f32.mrb[0].mxu0
  %v712 = vadd.f32 %v627, %v711
  %v713 = vpop.f32.mrb[0].mxu0
  %v714 = vpop.f32.mrb[0].mxu0
  %v715 = vpop.f32.mrb[0].mxu0
  %716 = vdwg.mxu0
  %v717 = vmax.f32 %v712, 0.0
  %v718 = vpack.c.bf16 %v717, %v717
  %v719 = vld [vmem:[%s5] sm:$0xf]
  %v720 = vld [vmem:[%s5 + $0x4] sm:$0xf]
  %v721 = vld [vmem:[%s5 + $0x8] sm:$0xf]
  %v722 = vld [vmem:[%s5 + $0xc] sm:$0xf]
  %v723 = vld [vmem:[%s5 + $0x10] sm:$0xf]
  %v724 = vld [vmem:[%s5 + $0x14] sm:$0xf]
  %v725 = vld [vmem:[%s5 + $0x18] sm:$0xf]
  %v726 = vld [vmem:[%s5 + $0x1c] sm:$0xf]
  %v727 = vld [vmem:[%s5 + $0x20] sm:$0xf]
  %v728 = vld [vmem:[%s5 + $0x24] sm:$0xf]
  %v729 = vld [vmem:[%s5 + $0x28] sm:$0xf]
  %v730 = vld [vmem:[%s5 + $0x2c] sm:$0xf]
  %v731 = vld [vmem:[%s5 + $0x30] sm:$0xf]
  %v732 = vld [vmem:[%s5 + $0x34] sm:$0xf]
  %v733 = vld [vmem:[%s5 + $0x38] sm:$0xf]
  %v734 = vld [vmem:[%s5 + $0x3c] sm:$0xf]
  %v735 = vld [vmem:[%s6] sm:$0x1]
  %v737 = vlaneseq
  %v738 = vshrl.u32 %v737, 7
  %v739 = vsub.s32 0, %v738
  %v740 = vrot.slane %v735, %v739
  %v758 = vunpack.c.l.b16 %v719
  %v759 = vunpack.c.l.b16 %v720
  %v760 = vunpack.c.l.b16 %v721
  %v761 = vunpack.c.l.b16 %v722
  %v762 = vunpack.c.l.b16 %v723
  %v763 = vunpack.c.l.b16 %v724
  %v764 = vunpack.c.l.b16 %v725
  %v765 = vunpack.c.l.b16 %v726
  %v766 = vunpack.c.l.b16 %v727
  %v767 = vunpack.c.l.b16 %v728
  %v768 = vunpack.c.l.b16 %v729
  %v769 = vunpack.c.l.b16 %v730
  %v770 = vunpack.c.l.b16 %v731
  %v771 = vunpack.c.l.b16 %v732
  %v772 = vunpack.c.l.b16 %v733
  %v773 = vunpack.c.l.b16 %v734
  %v774 = vpack.c.b16 %v759, %v758
  %v775 = vpack.c.b16 %v761, %v760
  %v776 = vpack.c.b16 %v763, %v762
  %v777 = vpack.c.b16 %v765, %v764
  %v778 = vpack.c.b16 %v767, %v766
  %v779 = vpack.c.b16 %v769, %v768
  %v780 = vpack.c.b16 %v771, %v770
  %v781 = vpack.c.b16 %v773, %v772
  %790 = vmatprep.subr.bf16.mxu0 0
  %791 = vmatpush1.bf16.msra.mxu0 %v774
  %792 = vmatprep.subr.bf16.mxu0 0
  %793 = vmatpush1.bf16.msra.mxu0 %v775
  %794 = vmatprep.subr.bf16.mxu0 0
  %795 = vmatpush1.bf16.msra.mxu0 %v776
  %796 = vmatprep.subr.bf16.mxu0 0
  %797 = vmatpush1.bf16.msra.mxu0 %v777
  %798 = vmatprep.subr.bf16.mxu0 0
  %799 = vmatpush1.bf16.msra.mxu0 %v778
  %800 = vmatprep.subr.bf16.mxu0 0
  %801 = vmatpush1.bf16.msra.mxu0 %v779
  %802 = vmatprep.subr.bf16.mxu0 0
  %803 = vmatpush1.bf16.msra.mxu0 %v780
  %804 = vmatprep.subr.bf16.mxu0 0
  %805 = vmatpush1.bf16.msra.mxu0 %v781
  %806 = vmatprep.subr.bf16.mxu0 0
  %807 = vmatpush1.bf16.msra.mxu0 0
  %808 = vmatprep.subr.bf16.mxu0 0
  %809 = vmatpush1.bf16.msra.mxu0 0
  %810 = vmatprep.subr.bf16.mxu0 0
  %811 = vmatpush1.bf16.msra.mxu0 0
  %812 = vmatprep.subr.bf16.mxu0 0
  %813 = vmatpush1.bf16.msra.mxu0 0
  %814 = vmatprep.subr.bf16.mxu0 0
  %815 = vmatpush1.bf16.msra.mxu0 0
  %816 = vmatprep.subr.bf16.mxu0 0
  %817 = vmatpush1.bf16.msra.mxu0 0
  %818 = vmatprep.subr.bf16.mxu0 0
  %819 = vmatpush1.bf16.msra.mxu0 0
  %820 = vmatprep.subr.bf16.mxu0 0
  %821 = vmatpush1.bf16.msra.mxu0 0
  %822 = vmatprep.mubr.bf16.mxu0 0
  %823 = vmatmul.mubr.bf16.gmra.mrb[0].mxu0 %v718
  %v824 = vpop.f32.mrb[0].mxu0
  %v825 = vadd.f32 %v740, %v824
  %v826 = vpop.f32.mrb[0].mxu0
  %v827 = vpop.f32.mrb[0].mxu0
  %v828 = vpop.f32.mrb[0].mxu0
  %829 = vdwg.mxu0
  %830 = vst [vmem:[%s7] sm:$0xff] %v825
  // Predicated region
  $region30: #{convnn_forward.7} parent=0 // pred_check
    _
  $region31: #{convnn_forward.7} parent=0 // pred_check_branch
    %832 = sbr.rel (0) target = $region33
  $region32: #{convnn_forward.7} parent=0 // pred_region
    _
  $region33: #{convnn_forward.7} parent=0 // pred_fallthru
    _
  // Predicated region
  $region34: #{convnn_forward.7} parent=0 // pred_check
    _
  $region35: #{convnn_forward.7} parent=0 // pred_check_branch
    %834 = sbr.rel (0) target = $region37
  $region36: #{convnn_forward.7} parent=0 // pred_region
    _
  $region37: #{convnn_forward.7} parent=0 // pred_fallthru
    _

</llo_original>
